<compile_context>
chip_gen: v7x
topology: tpu7x:2x2x1
jax: 0.10.0
libtpu: 0.0.40
codegen_flags: <defaults>
</compile_context>

<pallas_src>
import jax
import jax.numpy as jnp
import numpy as np
from jax.experimental import pallas as pl
from jax.experimental.pallas import tpu as pltpu

# ---- module hyperparameters (the original file's undefined globals SOS /
# ---- max_length are defined here deterministically) ----
SOS = 1
MAX_LENGTH = 8
N_LATENTS = 32
N_CHARACTERS = 10
N_HIDDENS = 32
BATCH = 4


def text_decoder_kernel(h_init_ref, gz0_ref, lz_ref, emb_ref,
                        wih0c_ref, whh0_ref, bhh0_ref,
                        wih1_ref, bih1_ref, whh1_ref, bhh1_ref,
                        h2oh_ref,
                        words_ref):
    B, H = h_init_ref.shape
    C = lz_ref.shape[1]

    # ---- initial state: h = z2h(z) repeated for both layers; c_in = SOS ----
    h0 = h_init_ref[...]
    h1 = h_init_ref[...]
    iota_c = jax.lax.broadcasted_iota(jnp.int32, (B, C), 1)
    onehot = (iota_c == SOS).astype(jnp.float32)

    # loop-invariant z-terms (precomputed in the wrapper, loaded once)
    gz0_r = gz0_ref[0]        # z @ W_ir_z^T + b_ir   (B, H)
    gz0_z = gz0_ref[1]
    gz0_n = gz0_ref[2]
    lz = lz_ref[...]          # z @ W_h2o_z^T + b_h2o (B, C)

    def gru_layer(x, h_prev, wih_ref, bi_r, bi_z, bi_n, whh_ref, bhh_ref):
        # PyTorch GRU gate order (r, z, n); b_hn stays inside r * (...)
        gi_r = jnp.dot(x, wih_ref[0], preferred_element_type=jnp.float32) + bi_r
        gi_z = jnp.dot(x, wih_ref[1], preferred_element_type=jnp.float32) + bi_z
        gi_n = jnp.dot(x, wih_ref[2], preferred_element_type=jnp.float32) + bi_n
        gh_r = jnp.dot(h_prev, whh_ref[0],
                       preferred_element_type=jnp.float32) + bhh_ref[0]
        gh_z = jnp.dot(h_prev, whh_ref[1],
                       preferred_element_type=jnp.float32) + bhh_ref[1]
        gh_n = jnp.dot(h_prev, whh_ref[2],
                       preferred_element_type=jnp.float32) + bhh_ref[2]
        r = jax.nn.sigmoid(gi_r + gh_r)
        zg = jax.nn.sigmoid(gi_z + gh_z)
        n = jnp.tanh(gi_n + r * gh_n)
        return (1.0 - zg) * n + zg * h_prev

    # ---- fully unrolled decode loop; state stays in vector registers ----
    for t in range(MAX_LENGTH):
        # embedding lookup as one-hot matmul, then swish
        emb = jnp.dot(onehot, emb_ref[...], preferred_element_type=jnp.float32)
        c_in = emb * jax.nn.sigmoid(emb)

        # 2-layer GRU, one time step (layer-0 z contribution folded into gz0_*)
        h0 = gru_layer(c_in, h0, wih0c_ref, gz0_r, gz0_z, gz0_n,
                       whh0_ref, bhh0_ref)
        h1 = gru_layer(h0, h1, wih1_ref,
                       bih1_ref[0], bih1_ref[1], bih1_ref[2],
                       whh1_ref, bhh1_ref)

        # output head: h2o(cat(h1, z)) with the z-part + bias folded into lz
        logits = jnp.dot(h1, h2oh_ref[...],
                         preferred_element_type=jnp.float32) + lz

        # log_softmax
        m = jnp.max(logits, axis=1, keepdims=True)
        logp = (logits - m) - jnp.log(
            jnp.sum(jnp.exp(logits - m), axis=1, keepdims=True))
        words_ref[t] = logp                              # static-index store

        # greedy feedback: argmax (first max on ties), reusing m
        cand = jnp.where(logits == m, iota_c, C)
        first = jnp.min(cand, axis=1, keepdims=True)
        onehot = (iota_c == first).astype(jnp.float32)


def _prepare_inputs(z, p):
    """Split/transpose PyTorch-layout weights and hoist loop-invariant z terms."""
    H, L, C = N_HIDDENS, N_LATENTS, N_CHARACTERS
    B = z.shape[0]

    # z2h(z)  (no nonlinearity, matches the module)
    h_init = z @ p["z2h_w"].T + p["z2h_b"][None, :]                      # (B, H)

    # layer-0 input-to-hidden: columns [0:H] act on c_in, [H:] act on z
    w_ih0 = p["w_ih0"]                                                   # (3H, H+L)
    wih0c = jnp.transpose(w_ih0[:, :H].reshape(3, H, H), (0, 2, 1))      # (3, in, out)
    gz0 = z @ w_ih0[:, H:].T + p["b_ih0"][None, :]                       # (B, 3H)
    gz0 = jnp.transpose(gz0.reshape(B, 3, H), (1, 0, 2))                 # (3, B, H)

    whh0 = jnp.transpose(p["w_hh0"].reshape(3, H, H), (0, 2, 1))         # (3, H, H)
    bhh0 = p["b_hh0"].reshape(3, 1, H)

    wih1 = jnp.transpose(p["w_ih1"].reshape(3, H, H), (0, 2, 1))
    bih1 = p["b_ih1"].reshape(3, 1, H)
    whh1 = jnp.transpose(p["w_hh1"].reshape(3, H, H), (0, 2, 1))
    bhh1 = p["b_hh1"].reshape(3, 1, H)

    # h2o: h-part stays a weight, z-part + bias folded into a (B, C) term
    w_h2o = p["h2o_w"]                                                   # (C, H+L)
    h2oh = w_h2o[:, :H].T                                                # (H, C)
    lz = z @ w_h2o[:, H:].T + p["h2o_b"][None, :]                        # (B, C)

    return (h_init, gz0, lz, p["embed_w"],
            wih0c, whh0, bhh0, wih1, bih1, whh1, bhh1, h2oh)


@jax.jit
def text_decoder_forward(z, params):
    B = z.shape[0]
    C = N_CHARACTERS
    inputs = _prepare_inputs(z, params)

    # single kernel invocation: everything (a few tens of KB) resident in VMEM
    words_tbc = pl.pallas_call(
        text_decoder_kernel,
        out_shape=jax.ShapeDtypeStruct((MAX_LENGTH, B, C), jnp.float32),
        in_specs=[pl.BlockSpec(memory_space=pltpu.MemorySpace.VMEM)
                  for _ in inputs],
        out_specs=pl.BlockSpec(memory_space=pltpu.MemorySpace.VMEM),
    )(*inputs)

    # back to the PyTorch convention (B, max_length, n_characters)
    return jnp.transpose(words_tbc, (1, 0, 2))


def init_params(key):
    """Parameters in PyTorch layout (embed / Linear / nn.GRU conventions)."""
    H, L, C = N_HIDDENS, N_LATENTS, N_CHARACTERS
    ks = jax.random.split(key, 13)
    u = lambda k, shape, s: jax.random.uniform(k, shape, jnp.float32, -s, s)
    sH = 1.0 / np.sqrt(H)
    sL = 1.0 / np.sqrt(L)
    sHL = 1.0 / np.sqrt(H + L)
    return {
        "embed_w": jax.random.normal(ks[0], (C, H), jnp.float32),
        "z2h_w":   u(ks[1], (H, L), sL),
        "z2h_b":   u(ks[2], (H,), sL),
        "w_ih0":   u(ks[3], (3 * H, H + L), sH),
        "w_hh0":   u(ks[4], (3 * H, H), sH),
        "b_ih0":   u(ks[5], (3 * H,), sH),
        "b_hh0":   u(ks[6], (3 * H,), sH),
        "w_ih1":   u(ks[7], (3 * H, H), sH),
        "w_hh1":   u(ks[8], (3 * H, H), sH),
        "b_ih1":   u(ks[9], (3 * H,), sH),
        "b_hh1":   u(ks[10], (3 * H,), sH),
        "h2o_w":   u(ks[11], (C, H + L), sHL),
        "h2o_b":   u(ks[12], (C,), sHL),
    }


if __name__ == "__main__":
    key = jax.random.PRNGKey(0)
    pkey, zkey = jax.random.split(key)
    params = init_params(pkey)
    z = jax.random.normal(zkey, (BATCH, N_LATENTS), jnp.float32)

    words = jax.block_until_ready(text_decoder_forward(z, params))

    assert words.shape == (BATCH, MAX_LENGTH, N_CHARACTERS), words.shape
    w = np.asarray(words)
    assert np.all(np.isfinite(w)), "non-finite log-probs"
    # log_softmax invariant: probabilities sum to 1 per (batch, step)
    assert np.allclose(np.exp(w).sum(-1), 1.0, atol=1e-4), "log_softmax broken"
    print("KERNEL_OK")
</pallas_src>

<mosaic_0001>
module attributes {stable_mosaic.version = 11 : i64} {
  func.func @text_decoder_kernel(%arg0: memref<4x32xf32, #tpu.memory_space<vmem>>, %arg1: memref<3x4x32xf32, #tpu.memory_space<vmem>>, %arg2: memref<4x10xf32, #tpu.memory_space<vmem>>, %arg3: memref<10x32xf32, #tpu.memory_space<vmem>>, %arg4: memref<3x32x32xf32, #tpu.memory_space<vmem>>, %arg5: memref<3x32x32xf32, #tpu.memory_space<vmem>>, %arg6: memref<3x1x32xf32, #tpu.memory_space<vmem>>, %arg7: memref<3x32x32xf32, #tpu.memory_space<vmem>>, %arg8: memref<3x1x32xf32, #tpu.memory_space<vmem>>, %arg9: memref<3x32x32xf32, #tpu.memory_space<vmem>>, %arg10: memref<3x1x32xf32, #tpu.memory_space<vmem>>, %arg11: memref<32x10xf32, #tpu.memory_space<vmem>>, %arg12: memref<8x4x10xf32, #tpu.memory_space<vmem>>) attributes {dimension_semantics = [], scalar_prefetch = 0 : i64, scratch_operands = 0 : i64, tpu.core_type = #tpu.core_type<tc>} {
    %c0 = arith.constant 0 : index
    %c0_0 = arith.constant 0 : index
    %0 = vector.load %arg0[%c0, %c0_0] : memref<4x32xf32, #tpu.memory_space<vmem>>, vector<4x32xf32>
    %c0_1 = arith.constant 0 : index
    %c0_2 = arith.constant 0 : index
    %1 = vector.load %arg0[%c0_1, %c0_2] : memref<4x32xf32, #tpu.memory_space<vmem>>, vector<4x32xf32>
    %2 = tpu.iota {dimensions = array<i32: 1>} : vector<4x10xi32>
    %c1_i32 = arith.constant 1 : i32
    %3 = vector.broadcast %c1_i32 : i32 to vector<4x10xi32>
    %4 = arith.cmpi eq, %2, %3 : vector<4x10xi32>
    %5 = arith.extui %4 : vector<4x10xi1> to vector<4x10xi32>
    %6 = arith.sitofp %5 : vector<4x10xi32> to vector<4x10xf32>
    %c0_3 = arith.constant 0 : index
    %c0_4 = arith.constant 0 : index
    %c0_5 = arith.constant 0 : index
    %7 = vector.load %arg1[%c0_3, %c0_4, %c0_5] : memref<3x4x32xf32, #tpu.memory_space<vmem>>, vector<1x4x32xf32>
    %8 = vector.shape_cast %7 : vector<1x4x32xf32> to vector<4x32xf32>
    %c1 = arith.constant 1 : index
    %c0_6 = arith.constant 0 : index
    %c0_7 = arith.constant 0 : index
    %9 = vector.load %arg1[%c1, %c0_6, %c0_7] : memref<3x4x32xf32, #tpu.memory_space<vmem>>, vector<1x4x32xf32>
    %10 = vector.shape_cast %9 : vector<1x4x32xf32> to vector<4x32xf32>
    %c2 = arith.constant 2 : index
    %c0_8 = arith.constant 0 : index
    %c0_9 = arith.constant 0 : index
    %11 = vector.load %arg1[%c2, %c0_8, %c0_9] : memref<3x4x32xf32, #tpu.memory_space<vmem>>, vector<1x4x32xf32>
    %12 = vector.shape_cast %11 : vector<1x4x32xf32> to vector<4x32xf32>
    %c0_10 = arith.constant 0 : index
    %c0_11 = arith.constant 0 : index
    %13 = vector.load %arg2[%c0_10, %c0_11] : memref<4x10xf32, #tpu.memory_space<vmem>>, vector<4x10xf32>
    %c0_12 = arith.constant 0 : index
    %c0_13 = arith.constant 0 : index
    %14 = vector.load %arg3[%c0_12, %c0_13] : memref<10x32xf32, #tpu.memory_space<vmem>>, vector<10x32xf32>
    %cst = arith.constant dense<0.000000e+00> : vector<4x32xf32>
    %15 = tpu.matmul %6, %14, %cst {dimension_numbers = #tpu.dot_dimension_numbers<[1], [0], [0], [1], [0, 0, 1, 1], [], []>} : vector<4x10xf32>, vector<10x32xf32>, vector<4x32xf32> -> vector<4x32xf32>
    %16 = arith.negf %15 : vector<4x32xf32>
    %17 = math.exp %16 : vector<4x32xf32>
    %cst_14 = arith.constant 1.000000e+00 : f32
    %18 = vector.broadcast %cst_14 : f32 to vector<4x32xf32>
    %19 = arith.addf %18, %17 : vector<4x32xf32>
    %20 = arith.divf %18, %19 : vector<4x32xf32>
    %21 = arith.mulf %15, %20 : vector<4x32xf32>
    %c0_15 = arith.constant 0 : index
    %c0_16 = arith.constant 0 : index
    %c0_17 = arith.constant 0 : index
    %22 = vector.load %arg4[%c0_15, %c0_16, %c0_17] : memref<3x32x32xf32, #tpu.memory_space<vmem>>, vector<1x32x32xf32>
    %23 = vector.shape_cast %22 : vector<1x32x32xf32> to vector<32x32xf32>
    %cst_18 = arith.constant dense<0.000000e+00> : vector<4x32xf32>
    %24 = tpu.matmul %21, %23, %cst_18 {dimension_numbers = #tpu.dot_dimension_numbers<[1], [0], [0], [1], [0, 0, 1, 1], [], []>} : vector<4x32xf32>, vector<32x32xf32>, vector<4x32xf32> -> vector<4x32xf32>
    %25 = arith.addf %24, %8 : vector<4x32xf32>
    %c1_19 = arith.constant 1 : index
    %c0_20 = arith.constant 0 : index
    %c0_21 = arith.constant 0 : index
    %26 = vector.load %arg4[%c1_19, %c0_20, %c0_21] : memref<3x32x32xf32, #tpu.memory_space<vmem>>, vector<1x32x32xf32>
    %27 = vector.shape_cast %26 : vector<1x32x32xf32> to vector<32x32xf32>
    %cst_22 = arith.constant dense<0.000000e+00> : vector<4x32xf32>
    %28 = tpu.matmul %21, %27, %cst_22 {dimension_numbers = #tpu.dot_dimension_numbers<[1], [0], [0], [1], [0, 0, 1, 1], [], []>} : vector<4x32xf32>, vector<32x32xf32>, vector<4x32xf32> -> vector<4x32xf32>
    %29 = arith.addf %28, %10 : vector<4x32xf32>
    %c2_23 = arith.constant 2 : index
    %c0_24 = arith.constant 0 : index
    %c0_25 = arith.constant 0 : index
    %30 = vector.load %arg4[%c2_23, %c0_24, %c0_25] : memref<3x32x32xf32, #tpu.memory_space<vmem>>, vector<1x32x32xf32>
    %31 = vector.shape_cast %30 : vector<1x32x32xf32> to vector<32x32xf32>
    %cst_26 = arith.constant dense<0.000000e+00> : vector<4x32xf32>
    %32 = tpu.matmul %21, %31, %cst_26 {dimension_numbers = #tpu.dot_dimension_numbers<[1], [0], [0], [1], [0, 0, 1, 1], [], []>} : vector<4x32xf32>, vector<32x32xf32>, vector<4x32xf32> -> vector<4x32xf32>
    %33 = arith.addf %32, %12 : vector<4x32xf32>
    %c0_27 = arith.constant 0 : index
    %c0_28 = arith.constant 0 : index
    %c0_29 = arith.constant 0 : index
    %34 = vector.load %arg5[%c0_27, %c0_28, %c0_29] : memref<3x32x32xf32, #tpu.memory_space<vmem>>, vector<1x32x32xf32>
    %35 = vector.shape_cast %34 : vector<1x32x32xf32> to vector<32x32xf32>
    %cst_30 = arith.constant dense<0.000000e+00> : vector<4x32xf32>
    %36 = tpu.matmul %0, %35, %cst_30 {dimension_numbers = #tpu.dot_dimension_numbers<[1], [0], [0], [1], [0, 0, 1, 1], [], []>} : vector<4x32xf32>, vector<32x32xf32>, vector<4x32xf32> -> vector<4x32xf32>
    %c0_31 = arith.constant 0 : index
    %c0_32 = arith.constant 0 : index
    %c0_33 = arith.constant 0 : index
    %37 = vector.load %arg6[%c0_31, %c0_32, %c0_33] : memref<3x1x32xf32, #tpu.memory_space<vmem>>, vector<1x1x32xf32>
    %38 = vector.shape_cast %37 : vector<1x1x32xf32> to vector<1x32xf32>
    %39 = vector.broadcast %38 : vector<1x32xf32> to vector<4x32xf32>
    %40 = arith.addf %36, %39 : vector<4x32xf32>
    %c1_34 = arith.constant 1 : index
    %c0_35 = arith.constant 0 : index
    %c0_36 = arith.constant 0 : index
    %41 = vector.load %arg5[%c1_34, %c0_35, %c0_36] : memref<3x32x32xf32, #tpu.memory_space<vmem>>, vector<1x32x32xf32>
    %42 = vector.shape_cast %41 : vector<1x32x32xf32> to vector<32x32xf32>
    %cst_37 = arith.constant dense<0.000000e+00> : vector<4x32xf32>
    %43 = tpu.matmul %0, %42, %cst_37 {dimension_numbers = #tpu.dot_dimension_numbers<[1], [0], [0], [1], [0, 0, 1, 1], [], []>} : vector<4x32xf32>, vector<32x32xf32>, vector<4x32xf32> -> vector<4x32xf32>
    %c1_38 = arith.constant 1 : index
    %c0_39 = arith.constant 0 : index
    %c0_40 = arith.constant 0 : index
    %44 = vector.load %arg6[%c1_38, %c0_39, %c0_40] : memref<3x1x32xf32, #tpu.memory_space<vmem>>, vector<1x1x32xf32>
    %45 = vector.shape_cast %44 : vector<1x1x32xf32> to vector<1x32xf32>
    %46 = vector.broadcast %45 : vector<1x32xf32> to vector<4x32xf32>
    %47 = arith.addf %43, %46 : vector<4x32xf32>
    %c2_41 = arith.constant 2 : index
    %c0_42 = arith.constant 0 : index
    %c0_43 = arith.constant 0 : index
    %48 = vector.load %arg5[%c2_41, %c0_42, %c0_43] : memref<3x32x32xf32, #tpu.memory_space<vmem>>, vector<1x32x32xf32>
    %49 = vector.shape_cast %48 : vector<1x32x32xf32> to vector<32x32xf32>
    %cst_44 = arith.constant dense<0.000000e+00> : vector<4x32xf32>
    %50 = tpu.matmul %0, %49, %cst_44 {dimension_numbers = #tpu.dot_dimension_numbers<[1], [0], [0], [1], [0, 0, 1, 1], [], []>} : vector<4x32xf32>, vector<32x32xf32>, vector<4x32xf32> -> vector<4x32xf32>
    %c2_45 = arith.constant 2 : index
    %c0_46 = arith.constant 0 : index
    %c0_47 = arith.constant 0 : index
    %51 = vector.load %arg6[%c2_45, %c0_46, %c0_47] : memref<3x1x32xf32, #tpu.memory_space<vmem>>, vector<1x1x32xf32>
    %52 = vector.shape_cast %51 : vector<1x1x32xf32> to vector<1x32xf32>
    %53 = vector.broadcast %52 : vector<1x32xf32> to vector<4x32xf32>
    %54 = arith.addf %50, %53 : vector<4x32xf32>
    %55 = arith.addf %25, %40 : vector<4x32xf32>
    %56 = arith.negf %55 : vector<4x32xf32>
    %57 = math.exp %56 : vector<4x32xf32>
    %cst_48 = arith.constant 1.000000e+00 : f32
    %58 = vector.broadcast %cst_48 : f32 to vector<4x32xf32>
    %59 = arith.addf %58, %57 : vector<4x32xf32>
    %60 = arith.divf %58, %59 : vector<4x32xf32>
    %61 = arith.addf %29, %47 : vector<4x32xf32>
    %62 = arith.negf %61 : vector<4x32xf32>
    %63 = math.exp %62 : vector<4x32xf32>
    %cst_49 = arith.constant 1.000000e+00 : f32
    %64 = vector.broadcast %cst_49 : f32 to vector<4x32xf32>
    %65 = arith.addf %64, %63 : vector<4x32xf32>
    %66 = arith.divf %64, %65 : vector<4x32xf32>
    %67 = arith.mulf %60, %54 : vector<4x32xf32>
    %68 = arith.addf %33, %67 : vector<4x32xf32>
    %69 = math.tanh %68 : vector<4x32xf32>
    %cst_50 = arith.constant 1.000000e+00 : f32
    %70 = vector.broadcast %cst_50 : f32 to vector<4x32xf32>
    %71 = arith.subf %70, %66 : vector<4x32xf32>
    %72 = arith.mulf %71, %69 : vector<4x32xf32>
    %73 = arith.mulf %66, %0 : vector<4x32xf32>
    %74 = arith.addf %72, %73 : vector<4x32xf32>
    %c0_51 = arith.constant 0 : index
    %c0_52 = arith.constant 0 : index
    %c0_53 = arith.constant 0 : index
    %75 = vector.load %arg8[%c0_51, %c0_52, %c0_53] : memref<3x1x32xf32, #tpu.memory_space<vmem>>, vector<1x1x32xf32>
    %76 = vector.shape_cast %75 : vector<1x1x32xf32> to vector<1x32xf32>
    %c1_54 = arith.constant 1 : index
    %c0_55 = arith.constant 0 : index
    %c0_56 = arith.constant 0 : index
    %77 = vector.load %arg8[%c1_54, %c0_55, %c0_56] : memref<3x1x32xf32, #tpu.memory_space<vmem>>, vector<1x1x32xf32>
    %78 = vector.shape_cast %77 : vector<1x1x32xf32> to vector<1x32xf32>
    %c2_57 = arith.constant 2 : index
    %c0_58 = arith.constant 0 : index
    %c0_59 = arith.constant 0 : index
    %79 = vector.load %arg8[%c2_57, %c0_58, %c0_59] : memref<3x1x32xf32, #tpu.memory_space<vmem>>, vector<1x1x32xf32>
    %80 = vector.shape_cast %79 : vector<1x1x32xf32> to vector<1x32xf32>
    %c0_60 = arith.constant 0 : index
    %c0_61 = arith.constant 0 : index
    %c0_62 = arith.constant 0 : index
    %81 = vector.load %arg7[%c0_60, %c0_61, %c0_62] : memref<3x32x32xf32, #tpu.memory_space<vmem>>, vector<1x32x32xf32>
    %82 = vector.shape_cast %81 : vector<1x32x32xf32> to vector<32x32xf32>
    %cst_63 = arith.constant dense<0.000000e+00> : vector<4x32xf32>
    %83 = tpu.matmul %74, %82, %cst_63 {dimension_numbers = #tpu.dot_dimension_numbers<[1], [0], [0], [1], [0, 0, 1, 1], [], []>} : vector<4x32xf32>, vector<32x32xf32>, vector<4x32xf32> -> vector<4x32xf32>
    %84 = vector.broadcast %76 : vector<1x32xf32> to vector<4x32xf32>
    %85 = arith.addf %83, %84 : vector<4x32xf32>
    %c1_64 = arith.constant 1 : index
    %c0_65 = arith.constant 0 : index
    %c0_66 = arith.constant 0 : index
    %86 = vector.load %arg7[%c1_64, %c0_65, %c0_66] : memref<3x32x32xf32, #tpu.memory_space<vmem>>, vector<1x32x32xf32>
    %87 = vector.shape_cast %86 : vector<1x32x32xf32> to vector<32x32xf32>
    %cst_67 = arith.constant dense<0.000000e+00> : vector<4x32xf32>
    %88 = tpu.matmul %74, %87, %cst_67 {dimension_numbers = #tpu.dot_dimension_numbers<[1], [0], [0], [1], [0, 0, 1, 1], [], []>} : vector<4x32xf32>, vector<32x32xf32>, vector<4x32xf32> -> vector<4x32xf32>
    %89 = vector.broadcast %78 : vector<1x32xf32> to vector<4x32xf32>
    %90 = arith.addf %88, %89 : vector<4x32xf32>
    %c2_68 = arith.constant 2 : index
    %c0_69 = arith.constant 0 : index
    %c0_70 = arith.constant 0 : index
    %91 = vector.load %arg7[%c2_68, %c0_69, %c0_70] : memref<3x32x32xf32, #tpu.memory_space<vmem>>, vector<1x32x32xf32>
    %92 = vector.shape_cast %91 : vector<1x32x32xf32> to vector<32x32xf32>
    %cst_71 = arith.constant dense<0.000000e+00> : vector<4x32xf32>
    %93 = tpu.matmul %74, %92, %cst_71 {dimension_numbers = #tpu.dot_dimension_numbers<[1], [0], [0], [1], [0, 0, 1, 1], [], []>} : vector<4x32xf32>, vector<32x32xf32>, vector<4x32xf32> -> vector<4x32xf32>
    %94 = vector.broadcast %80 : vector<1x32xf32> to vector<4x32xf32>
    %95 = arith.addf %93, %94 : vector<4x32xf32>
    %c0_72 = arith.constant 0 : index
    %c0_73 = arith.constant 0 : index
    %c0_74 = arith.constant 0 : index
    %96 = vector.load %arg9[%c0_72, %c0_73, %c0_74] : memref<3x32x32xf32, #tpu.memory_space<vmem>>, vector<1x32x32xf32>
    %97 = vector.shape_cast %96 : vector<1x32x32xf32> to vector<32x32xf32>
    %cst_75 = arith.constant dense<0.000000e+00> : vector<4x32xf32>
    %98 = tpu.matmul %1, %97, %cst_75 {dimension_numbers = #tpu.dot_dimension_numbers<[1], [0], [0], [1], [0, 0, 1, 1], [], []>} : vector<4x32xf32>, vector<32x32xf32>, vector<4x32xf32> -> vector<4x32xf32>
    %c0_76 = arith.constant 0 : index
    %c0_77 = arith.constant 0 : index
    %c0_78 = arith.constant 0 : index
    %99 = vector.load %arg10[%c0_76, %c0_77, %c0_78] : memref<3x1x32xf32, #tpu.memory_space<vmem>>, vector<1x1x32xf32>
    %100 = vector.shape_cast %99 : vector<1x1x32xf32> to vector<1x32xf32>
    %101 = vector.broadcast %100 : vector<1x32xf32> to vector<4x32xf32>
    %102 = arith.addf %98, %101 : vector<4x32xf32>
    %c1_79 = arith.constant 1 : index
    %c0_80 = arith.constant 0 : index
    %c0_81 = arith.constant 0 : index
    %103 = vector.load %arg9[%c1_79, %c0_80, %c0_81] : memref<3x32x32xf32, #tpu.memory_space<vmem>>, vector<1x32x32xf32>
    %104 = vector.shape_cast %103 : vector<1x32x32xf32> to vector<32x32xf32>
    %cst_82 = arith.constant dense<0.000000e+00> : vector<4x32xf32>
    %105 = tpu.matmul %1, %104, %cst_82 {dimension_numbers = #tpu.dot_dimension_numbers<[1], [0], [0], [1], [0, 0, 1, 1], [], []>} : vector<4x32xf32>, vector<32x32xf32>, vector<4x32xf32> -> vector<4x32xf32>
    %c1_83 = arith.constant 1 : index
    %c0_84 = arith.constant 0 : index
    %c0_85 = arith.constant 0 : index
    %106 = vector.load %arg10[%c1_83, %c0_84, %c0_85] : memref<3x1x32xf32, #tpu.memory_space<vmem>>, vector<1x1x32xf32>
    %107 = vector.shape_cast %106 : vector<1x1x32xf32> to vector<1x32xf32>
    %108 = vector.broadcast %107 : vector<1x32xf32> to vector<4x32xf32>
    %109 = arith.addf %105, %108 : vector<4x32xf32>
    %c2_86 = arith.constant 2 : index
    %c0_87 = arith.constant 0 : index
    %c0_88 = arith.constant 0 : index
    %110 = vector.load %arg9[%c2_86, %c0_87, %c0_88] : memref<3x32x32xf32, #tpu.memory_space<vmem>>, vector<1x32x32xf32>
    %111 = vector.shape_cast %110 : vector<1x32x32xf32> to vector<32x32xf32>
    %cst_89 = arith.constant dense<0.000000e+00> : vector<4x32xf32>
    %112 = tpu.matmul %1, %111, %cst_89 {dimension_numbers = #tpu.dot_dimension_numbers<[1], [0], [0], [1], [0, 0, 1, 1], [], []>} : vector<4x32xf32>, vector<32x32xf32>, vector<4x32xf32> -> vector<4x32xf32>
    %c2_90 = arith.constant 2 : index
    %c0_91 = arith.constant 0 : index
    %c0_92 = arith.constant 0 : index
    %113 = vector.load %arg10[%c2_90, %c0_91, %c0_92] : memref<3x1x32xf32, #tpu.memory_space<vmem>>, vector<1x1x32xf32>
    %114 = vector.shape_cast %113 : vector<1x1x32xf32> to vector<1x32xf32>
    %115 = vector.broadcast %114 : vector<1x32xf32> to vector<4x32xf32>
    %116 = arith.addf %112, %115 : vector<4x32xf32>
    %117 = arith.addf %85, %102 : vector<4x32xf32>
    %118 = arith.negf %117 : vector<4x32xf32>
    %119 = math.exp %118 : vector<4x32xf32>
    %cst_93 = arith.constant 1.000000e+00 : f32
    %120 = vector.broadcast %cst_93 : f32 to vector<4x32xf32>
    %121 = arith.addf %120, %119 : vector<4x32xf32>
    %122 = arith.divf %120, %121 : vector<4x32xf32>
    %123 = arith.addf %90, %109 : vector<4x32xf32>
    %124 = arith.negf %123 : vector<4x32xf32>
    %125 = math.exp %124 : vector<4x32xf32>
    %cst_94 = arith.constant 1.000000e+00 : f32
    %126 = vector.broadcast %cst_94 : f32 to vector<4x32xf32>
    %127 = arith.addf %126, %125 : vector<4x32xf32>
    %128 = arith.divf %126, %127 : vector<4x32xf32>
    %129 = arith.mulf %122, %116 : vector<4x32xf32>
    %130 = arith.addf %95, %129 : vector<4x32xf32>
    %131 = math.tanh %130 : vector<4x32xf32>
    %cst_95 = arith.constant 1.000000e+00 : f32
    %132 = vector.broadcast %cst_95 : f32 to vector<4x32xf32>
    %133 = arith.subf %132, %128 : vector<4x32xf32>
    %134 = arith.mulf %133, %131 : vector<4x32xf32>
    %135 = arith.mulf %128, %1 : vector<4x32xf32>
    %136 = arith.addf %134, %135 : vector<4x32xf32>
    %c0_96 = arith.constant 0 : index
    %c0_97 = arith.constant 0 : index
    %137 = vector.load %arg11[%c0_96, %c0_97] : memref<32x10xf32, #tpu.memory_space<vmem>>, vector<32x10xf32>
    %cst_98 = arith.constant dense<0.000000e+00> : vector<4x10xf32>
    %138 = tpu.matmul %136, %137, %cst_98 {dimension_numbers = #tpu.dot_dimension_numbers<[1], [0], [0], [1], [0, 0, 1, 1], [], []>} : vector<4x32xf32>, vector<32x10xf32>, vector<4x10xf32> -> vector<4x10xf32>
    %139 = arith.addf %138, %13 : vector<4x10xf32>
    %cst_99 = arith.constant dense<0xFF800000> : vector<4xf32>
    %140 = vector.multi_reduction <maximumf>, %139, %cst_99 [1] : vector<4x10xf32> to vector<4xf32>
    %141 = vector.shape_cast %140 : vector<4xf32> to vector<4x1xf32>
    %142 = vector.broadcast %141 : vector<4x1xf32> to vector<4x10xf32>
    %143 = arith.subf %139, %142 : vector<4x10xf32>
    %144 = vector.broadcast %141 : vector<4x1xf32> to vector<4x10xf32>
    %145 = arith.subf %139, %144 : vector<4x10xf32>
    %146 = math.exp %145 : vector<4x10xf32>
    %cst_100 = arith.constant dense<0.000000e+00> : vector<4xf32>
    %147 = vector.multi_reduction <add>, %146, %cst_100 [1] : vector<4x10xf32> to vector<4xf32>
    %148 = vector.shape_cast %147 : vector<4xf32> to vector<4x1xf32>
    %149 = math.log %148 : vector<4x1xf32>
    %150 = vector.broadcast %149 : vector<4x1xf32> to vector<4x10xf32>
    %151 = arith.subf %143, %150 : vector<4x10xf32>
    %c0_101 = arith.constant 0 : index
    %c0_102 = arith.constant 0 : index
    %c0_103 = arith.constant 0 : index
    %152 = vector.load %arg12[%c0_101, %c0_102, %c0_103] : memref<8x4x10xf32, #tpu.memory_space<vmem>>, vector<1x4x10xf32>
    %153 = vector.shape_cast %152 : vector<1x4x10xf32> to vector<4x10xf32>
    %154 = vector.shape_cast %151 : vector<4x10xf32> to vector<1x4x10xf32>
    tpu.vector_store %arg12[%c0_101, %c0_102, %c0_103], %154 {strides = array<i32>} : memref<8x4x10xf32, #tpu.memory_space<vmem>>, vector<1x4x10xf32>,
    %155 = vector.broadcast %141 : vector<4x1xf32> to vector<4x10xf32>
    %156 = arith.cmpf oeq, %139, %155 : vector<4x10xf32>
    %c10_i32 = arith.constant 10 : i32
    %157 = vector.broadcast %c10_i32 : i32 to vector<4x10xi32>
    %158 = arith.select %156, %2, %157 : vector<4x10xi1>, vector<4x10xi32>
    %cst_104 = arith.constant dense<2147483647> : vector<4xi32>
    %159 = vector.multi_reduction <minsi>, %158, %cst_104 [1] : vector<4x10xi32> to vector<4xi32>
    %160 = vector.shape_cast %159 : vector<4xi32> to vector<4x1xi32>
    %161 = vector.broadcast %160 : vector<4x1xi32> to vector<4x10xi32>
    %162 = arith.cmpi eq, %2, %161 : vector<4x10xi32>
    %163 = arith.extui %162 : vector<4x10xi1> to vector<4x10xi32>
    %164 = arith.sitofp %163 : vector<4x10xi32> to vector<4x10xf32>
    %c0_105 = arith.constant 0 : index
    %c0_106 = arith.constant 0 : index
    %165 = vector.load %arg3[%c0_105, %c0_106] : memref<10x32xf32, #tpu.memory_space<vmem>>, vector<10x32xf32>
    %cst_107 = arith.constant dense<0.000000e+00> : vector<4x32xf32>
    %166 = tpu.matmul %164, %165, %cst_107 {dimension_numbers = #tpu.dot_dimension_numbers<[1], [0], [0], [1], [0, 0, 1, 1], [], []>} : vector<4x10xf32>, vector<10x32xf32>, vector<4x32xf32> -> vector<4x32xf32>
    %167 = arith.negf %166 : vector<4x32xf32>
    %168 = math.exp %167 : vector<4x32xf32>
    %cst_108 = arith.constant 1.000000e+00 : f32
    %169 = vector.broadcast %cst_108 : f32 to vector<4x32xf32>
    %170 = arith.addf %169, %168 : vector<4x32xf32>
    %171 = arith.divf %169, %170 : vector<4x32xf32>
    %172 = arith.mulf %166, %171 : vector<4x32xf32>
    %c0_109 = arith.constant 0 : index
    %c0_110 = arith.constant 0 : index
    %c0_111 = arith.constant 0 : index
    %173 = vector.load %arg4[%c0_109, %c0_110, %c0_111] : memref<3x32x32xf32, #tpu.memory_space<vmem>>, vector<1x32x32xf32>
    %174 = vector.shape_cast %173 : vector<1x32x32xf32> to vector<32x32xf32>
    %cst_112 = arith.constant dense<0.000000e+00> : vector<4x32xf32>
    %175 = tpu.matmul %172, %174, %cst_112 {dimension_numbers = #tpu.dot_dimension_numbers<[1], [0], [0], [1], [0, 0, 1, 1], [], []>} : vector<4x32xf32>, vector<32x32xf32>, vector<4x32xf32> -> vector<4x32xf32>
    %176 = arith.addf %175, %8 : vector<4x32xf32>
    %c1_113 = arith.constant 1 : index
    %c0_114 = arith.constant 0 : index
    %c0_115 = arith.constant 0 : index
    %177 = vector.load %arg4[%c1_113, %c0_114, %c0_115] : memref<3x32x32xf32, #tpu.memory_space<vmem>>, vector<1x32x32xf32>
    %178 = vector.shape_cast %177 : vector<1x32x32xf32> to vector<32x32xf32>
    %cst_116 = arith.constant dense<0.000000e+00> : vector<4x32xf32>
    %179 = tpu.matmul %172, %178, %cst_116 {dimension_numbers = #tpu.dot_dimension_numbers<[1], [0], [0], [1], [0, 0, 1, 1], [], []>} : vector<4x32xf32>, vector<32x32xf32>, vector<4x32xf32> -> vector<4x32xf32>
    %180 = arith.addf %179, %10 : vector<4x32xf32>
    %c2_117 = arith.constant 2 : index
    %c0_118 = arith.constant 0 : index
    %c0_119 = arith.constant 0 : index
    %181 = vector.load %arg4[%c2_117, %c0_118, %c0_119] : memref<3x32x32xf32, #tpu.memory_space<vmem>>, vector<1x32x32xf32>
    %182 = vector.shape_cast %181 : vector<1x32x32xf32> to vector<32x32xf32>
    %cst_120 = arith.constant dense<0.000000e+00> : vector<4x32xf32>
    %183 = tpu.matmul %172, %182, %cst_120 {dimension_numbers = #tpu.dot_dimension_numbers<[1], [0], [0], [1], [0, 0, 1, 1], [], []>} : vector<4x32xf32>, vector<32x32xf32>, vector<4x32xf32> -> vector<4x32xf32>
    %184 = arith.addf %183, %12 : vector<4x32xf32>
    %c0_121 = arith.constant 0 : index
    %c0_122 = arith.constant 0 : index
    %c0_123 = arith.constant 0 : index
    %185 = vector.load %arg5[%c0_121, %c0_122, %c0_123] : memref<3x32x32xf32, #tpu.memory_space<vmem>>, vector<1x32x32xf32>
    %186 = vector.shape_cast %185 : vector<1x32x32xf32> to vector<32x32xf32>
    %cst_124 = arith.constant dense<0.000000e+00> : vector<4x32xf32>
    %187 = tpu.matmul %74, %186, %cst_124 {dimension_numbers = #tpu.dot_dimension_numbers<[1], [0], [0], [1], [0, 0, 1, 1], [], []>} : vector<4x32xf32>, vector<32x32xf32>, vector<4x32xf32> -> vector<4x32xf32>
    %c0_125 = arith.constant 0 : index
    %c0_126 = arith.constant 0 : index
    %c0_127 = arith.constant 0 : index
    %188 = vector.load %arg6[%c0_125, %c0_126, %c0_127] : memref<3x1x32xf32, #tpu.memory_space<vmem>>, vector<1x1x32xf32>
    %189 = vector.shape_cast %188 : vector<1x1x32xf32> to vector<1x32xf32>
    %190 = vector.broadcast %189 : vector<1x32xf32> to vector<4x32xf32>
    %191 = arith.addf %187, %190 : vector<4x32xf32>
    %c1_128 = arith.constant 1 : index
    %c0_129 = arith.constant 0 : index
    %c0_130 = arith.constant 0 : index
    %192 = vector.load %arg5[%c1_128, %c0_129, %c0_130] : memref<3x32x32xf32, #tpu.memory_space<vmem>>, vector<1x32x32xf32>
    %193 = vector.shape_cast %192 : vector<1x32x32xf32> to vector<32x32xf32>
    %cst_131 = arith.constant dense<0.000000e+00> : vector<4x32xf32>
    %194 = tpu.matmul %74, %193, %cst_131 {dimension_numbers = #tpu.dot_dimension_numbers<[1], [0], [0], [1], [0, 0, 1, 1], [], []>} : vector<4x32xf32>, vector<32x32xf32>, vector<4x32xf32> -> vector<4x32xf32>
    %c1_132 = arith.constant 1 : index
    %c0_133 = arith.constant 0 : index
    %c0_134 = arith.constant 0 : index
    %195 = vector.load %arg6[%c1_132, %c0_133, %c0_134] : memref<3x1x32xf32, #tpu.memory_space<vmem>>, vector<1x1x32xf32>
    %196 = vector.shape_cast %195 : vector<1x1x32xf32> to vector<1x32xf32>
    %197 = vector.broadcast %196 : vector<1x32xf32> to vector<4x32xf32>
    %198 = arith.addf %194, %197 : vector<4x32xf32>
    %c2_135 = arith.constant 2 : index
    %c0_136 = arith.constant 0 : index
    %c0_137 = arith.constant 0 : index
    %199 = vector.load %arg5[%c2_135, %c0_136, %c0_137] : memref<3x32x32xf32, #tpu.memory_space<vmem>>, vector<1x32x32xf32>
    %200 = vector.shape_cast %199 : vector<1x32x32xf32> to vector<32x32xf32>
    %cst_138 = arith.constant dense<0.000000e+00> : vector<4x32xf32>
    %201 = tpu.matmul %74, %200, %cst_138 {dimension_numbers = #tpu.dot_dimension_numbers<[1], [0], [0], [1], [0, 0, 1, 1], [], []>} : vector<4x32xf32>, vector<32x32xf32>, vector<4x32xf32> -> vector<4x32xf32>
    %c2_139 = arith.constant 2 : index
    %c0_140 = arith.constant 0 : index
    %c0_141 = arith.constant 0 : index
    %202 = vector.load %arg6[%c2_139, %c0_140, %c0_141] : memref<3x1x32xf32, #tpu.memory_space<vmem>>, vector<1x1x32xf32>
    %203 = vector.shape_cast %202 : vector<1x1x32xf32> to vector<1x32xf32>
    %204 = vector.broadcast %203 : vector<1x32xf32> to vector<4x32xf32>
    %205 = arith.addf %201, %204 : vector<4x32xf32>
    %206 = arith.addf %176, %191 : vector<4x32xf32>
    %207 = arith.negf %206 : vector<4x32xf32>
    %208 = math.exp %207 : vector<4x32xf32>
    %cst_142 = arith.constant 1.000000e+00 : f32
    %209 = vector.broadcast %cst_142 : f32 to vector<4x32xf32>
    %210 = arith.addf %209, %208 : vector<4x32xf32>
    %211 = arith.divf %209, %210 : vector<4x32xf32>
    %212 = arith.addf %180, %198 : vector<4x32xf32>
    %213 = arith.negf %212 : vector<4x32xf32>
    %214 = math.exp %213 : vector<4x32xf32>
    %cst_143 = arith.constant 1.000000e+00 : f32
    %215 = vector.broadcast %cst_143 : f32 to vector<4x32xf32>
    %216 = arith.addf %215, %214 : vector<4x32xf32>
    %217 = arith.divf %215, %216 : vector<4x32xf32>
    %218 = arith.mulf %211, %205 : vector<4x32xf32>
    %219 = arith.addf %184, %218 : vector<4x32xf32>
    %220 = math.tanh %219 : vector<4x32xf32>
    %cst_144 = arith.constant 1.000000e+00 : f32
    %221 = vector.broadcast %cst_144 : f32 to vector<4x32xf32>
    %222 = arith.subf %221, %217 : vector<4x32xf32>
    %223 = arith.mulf %222, %220 : vector<4x32xf32>
    %224 = arith.mulf %217, %74 : vector<4x32xf32>
    %225 = arith.addf %223, %224 : vector<4x32xf32>
    %c0_145 = arith.constant 0 : index
    %c0_146 = arith.constant 0 : index
    %c0_147 = arith.constant 0 : index
    %226 = vector.load %arg8[%c0_145, %c0_146, %c0_147] : memref<3x1x32xf32, #tpu.memory_space<vmem>>, vector<1x1x32xf32>
    %227 = vector.shape_cast %226 : vector<1x1x32xf32> to vector<1x32xf32>
    %c1_148 = arith.constant 1 : index
    %c0_149 = arith.constant 0 : index
    %c0_150 = arith.constant 0 : index
    %228 = vector.load %arg8[%c1_148, %c0_149, %c0_150] : memref<3x1x32xf32, #tpu.memory_space<vmem>>, vector<1x1x32xf32>
    %229 = vector.shape_cast %228 : vector<1x1x32xf32> to vector<1x32xf32>
    %c2_151 = arith.constant 2 : index
    %c0_152 = arith.constant 0 : index
    %c0_153 = arith.constant 0 : index
    %230 = vector.load %arg8[%c2_151, %c0_152, %c0_153] : memref<3x1x32xf32, #tpu.memory_space<vmem>>, vector<1x1x32xf32>
    %231 = vector.shape_cast %230 : vector<1x1x32xf32> to vector<1x32xf32>
    %c0_154 = arith.constant 0 : index
    %c0_155 = arith.constant 0 : index
    %c0_156 = arith.constant 0 : index
    %232 = vector.load %arg7[%c0_154, %c0_155, %c0_156] : memref<3x32x32xf32, #tpu.memory_space<vmem>>, vector<1x32x32xf32>
    %233 = vector.shape_cast %232 : vector<1x32x32xf32> to vector<32x32xf32>
    %cst_157 = arith.constant dense<0.000000e+00> : vector<4x32xf32>
    %234 = tpu.matmul %225, %233, %cst_157 {dimension_numbers = #tpu.dot_dimension_numbers<[1], [0], [0], [1], [0, 0, 1, 1], [], []>} : vector<4x32xf32>, vector<32x32xf32>, vector<4x32xf32> -> vector<4x32xf32>
    %235 = vector.broadcast %227 : vector<1x32xf32> to vector<4x32xf32>
    %236 = arith.addf %234, %235 : vector<4x32xf32>
    %c1_158 = arith.constant 1 : index
    %c0_159 = arith.constant 0 : index
    %c0_160 = arith.constant 0 : index
    %237 = vector.load %arg7[%c1_158, %c0_159, %c0_160] : memref<3x32x32xf32, #tpu.memory_space<vmem>>, vector<1x32x32xf32>
    %238 = vector.shape_cast %237 : vector<1x32x32xf32> to vector<32x32xf32>
    %cst_161 = arith.constant dense<0.000000e+00> : vector<4x32xf32>
    %239 = tpu.matmul %225, %238, %cst_161 {dimension_numbers = #tpu.dot_dimension_numbers<[1], [0], [0], [1], [0, 0, 1, 1], [], []>} : vector<4x32xf32>, vector<32x32xf32>, vector<4x32xf32> -> vector<4x32xf32>
    %240 = vector.broadcast %229 : vector<1x32xf32> to vector<4x32xf32>
    %241 = arith.addf %239, %240 : vector<4x32xf32>
    %c2_162 = arith.constant 2 : index
    %c0_163 = arith.constant 0 : index
    %c0_164 = arith.constant 0 : index
    %242 = vector.load %arg7[%c2_162, %c0_163, %c0_164] : memref<3x32x32xf32, #tpu.memory_space<vmem>>, vector<1x32x32xf32>
    %243 = vector.shape_cast %242 : vector<1x32x32xf32> to vector<32x32xf32>
    %cst_165 = arith.constant dense<0.000000e+00> : vector<4x32xf32>
    %244 = tpu.matmul %225, %243, %cst_165 {dimension_numbers = #tpu.dot_dimension_numbers<[1], [0], [0], [1], [0, 0, 1, 1], [], []>} : vector<4x32xf32>, vector<32x32xf32>, vector<4x32xf32> -> vector<4x32xf32>
    %245 = vector.broadcast %231 : vector<1x32xf32> to vector<4x32xf32>
    %246 = arith.addf %244, %245 : vector<4x32xf32>
    %c0_166 = arith.constant 0 : index
    %c0_167 = arith.constant 0 : index
    %c0_168 = arith.constant 0 : index
    %247 = vector.load %arg9[%c0_166, %c0_167, %c0_168] : memref<3x32x32xf32, #tpu.memory_space<vmem>>, vector<1x32x32xf32>
    %248 = vector.shape_cast %247 : vector<1x32x32xf32> to vector<32x32xf32>
    %cst_169 = arith.constant dense<0.000000e+00> : vector<4x32xf32>
    %249 = tpu.matmul %136, %248, %cst_169 {dimension_numbers = #tpu.dot_dimension_numbers<[1], [0], [0], [1], [0, 0, 1, 1], [], []>} : vector<4x32xf32>, vector<32x32xf32>, vector<4x32xf32> -> vector<4x32xf32>
    %c0_170 = arith.constant 0 : index
    %c0_171 = arith.constant 0 : index
    %c0_172 = arith.constant 0 : index
    %250 = vector.load %arg10[%c0_170, %c0_171, %c0_172] : memref<3x1x32xf32, #tpu.memory_space<vmem>>, vector<1x1x32xf32>
    %251 = vector.shape_cast %250 : vector<1x1x32xf32> to vector<1x32xf32>
    %252 = vector.broadcast %251 : vector<1x32xf32> to vector<4x32xf32>
    %253 = arith.addf %249, %252 : vector<4x32xf32>
    %c1_173 = arith.constant 1 : index
    %c0_174 = arith.constant 0 : index
    %c0_175 = arith.constant 0 : index
    %254 = vector.load %arg9[%c1_173, %c0_174, %c0_175] : memref<3x32x32xf32, #tpu.memory_space<vmem>>, vector<1x32x32xf32>
    %255 = vector.shape_cast %254 : vector<1x32x32xf32> to vector<32x32xf32>
    %cst_176 = arith.constant dense<0.000000e+00> : vector<4x32xf32>
    %256 = tpu.matmul %136, %255, %cst_176 {dimension_numbers = #tpu.dot_dimension_numbers<[1], [0], [0], [1], [0, 0, 1, 1], [], []>} : vector<4x32xf32>, vector<32x32xf32>, vector<4x32xf32> -> vector<4x32xf32>
    %c1_177 = arith.constant 1 : index
    %c0_178 = arith.constant 0 : index
    %c0_179 = arith.constant 0 : index
    %257 = vector.load %arg10[%c1_177, %c0_178, %c0_179] : memref<3x1x32xf32, #tpu.memory_space<vmem>>, vector<1x1x32xf32>
    %258 = vector.shape_cast %257 : vector<1x1x32xf32> to vector<1x32xf32>
    %259 = vector.broadcast %258 : vector<1x32xf32> to vector<4x32xf32>
    %260 = arith.addf %256, %259 : vector<4x32xf32>
    %c2_180 = arith.constant 2 : index
    %c0_181 = arith.constant 0 : index
    %c0_182 = arith.constant 0 : index
    %261 = vector.load %arg9[%c2_180, %c0_181, %c0_182] : memref<3x32x32xf32, #tpu.memory_space<vmem>>, vector<1x32x32xf32>
    %262 = vector.shape_cast %261 : vector<1x32x32xf32> to vector<32x32xf32>
    %cst_183 = arith.constant dense<0.000000e+00> : vector<4x32xf32>
    %263 = tpu.matmul %136, %262, %cst_183 {dimension_numbers = #tpu.dot_dimension_numbers<[1], [0], [0], [1], [0, 0, 1, 1], [], []>} : vector<4x32xf32>, vector<32x32xf32>, vector<4x32xf32> -> vector<4x32xf32>
    %c2_184 = arith.constant 2 : index
    %c0_185 = arith.constant 0 : index
    %c0_186 = arith.constant 0 : index
    %264 = vector.load %arg10[%c2_184, %c0_185, %c0_186] : memref<3x1x32xf32, #tpu.memory_space<vmem>>, vector<1x1x32xf32>
    %265 = vector.shape_cast %264 : vector<1x1x32xf32> to vector<1x32xf32>
    %266 = vector.broadcast %265 : vector<1x32xf32> to vector<4x32xf32>
    %267 = arith.addf %263, %266 : vector<4x32xf32>
    %268 = arith.addf %236, %253 : vector<4x32xf32>
    %269 = arith.negf %268 : vector<4x32xf32>
    %270 = math.exp %269 : vector<4x32xf32>
    %cst_187 = arith.constant 1.000000e+00 : f32
    %271 = vector.broadcast %cst_187 : f32 to vector<4x32xf32>
    %272 = arith.addf %271, %270 : vector<4x32xf32>
    %273 = arith.divf %271, %272 : vector<4x32xf32>
    %274 = arith.addf %241, %260 : vector<4x32xf32>
    %275 = arith.negf %274 : vector<4x32xf32>
    %276 = math.exp %275 : vector<4x32xf32>
    %cst_188 = arith.constant 1.000000e+00 : f32
    %277 = vector.broadcast %cst_188 : f32 to vector<4x32xf32>
    %278 = arith.addf %277, %276 : vector<4x32xf32>
    %279 = arith.divf %277, %278 : vector<4x32xf32>
    %280 = arith.mulf %273, %267 : vector<4x32xf32>
    %281 = arith.addf %246, %280 : vector<4x32xf32>
    %282 = math.tanh %281 : vector<4x32xf32>
    %cst_189 = arith.constant 1.000000e+00 : f32
    %283 = vector.broadcast %cst_189 : f32 to vector<4x32xf32>
    %284 = arith.subf %283, %279 : vector<4x32xf32>
    %285 = arith.mulf %284, %282 : vector<4x32xf32>
    %286 = arith.mulf %279, %136 : vector<4x32xf32>
    %287 = arith.addf %285, %286 : vector<4x32xf32>
    %c0_190 = arith.constant 0 : index
    %c0_191 = arith.constant 0 : index
    %288 = vector.load %arg11[%c0_190, %c0_191] : memref<32x10xf32, #tpu.memory_space<vmem>>, vector<32x10xf32>
    %cst_192 = arith.constant dense<0.000000e+00> : vector<4x10xf32>
    %289 = tpu.matmul %287, %288, %cst_192 {dimension_numbers = #tpu.dot_dimension_numbers<[1], [0], [0], [1], [0, 0, 1, 1], [], []>} : vector<4x32xf32>, vector<32x10xf32>, vector<4x10xf32> -> vector<4x10xf32>
    %290 = arith.addf %289, %13 : vector<4x10xf32>
    %cst_193 = arith.constant dense<0xFF800000> : vector<4xf32>
    %291 = vector.multi_reduction <maximumf>, %290, %cst_193 [1] : vector<4x10xf32> to vector<4xf32>
    %292 = vector.shape_cast %291 : vector<4xf32> to vector<4x1xf32>
    %293 = vector.broadcast %292 : vector<4x1xf32> to vector<4x10xf32>
    %294 = arith.subf %290, %293 : vector<4x10xf32>
    %295 = vector.broadcast %292 : vector<4x1xf32> to vector<4x10xf32>
    %296 = arith.subf %290, %295 : vector<4x10xf32>
    %297 = math.exp %296 : vector<4x10xf32>
    %cst_194 = arith.constant dense<0.000000e+00> : vector<4xf32>
    %298 = vector.multi_reduction <add>, %297, %cst_194 [1] : vector<4x10xf32> to vector<4xf32>
    %299 = vector.shape_cast %298 : vector<4xf32> to vector<4x1xf32>
    %300 = math.log %299 : vector<4x1xf32>
    %301 = vector.broadcast %300 : vector<4x1xf32> to vector<4x10xf32>
    %302 = arith.subf %294, %301 : vector<4x10xf32>
    %c1_195 = arith.constant 1 : index
    %c0_196 = arith.constant 0 : index
    %c0_197 = arith.constant 0 : index
    %303 = vector.load %arg12[%c1_195, %c0_196, %c0_197] : memref<8x4x10xf32, #tpu.memory_space<vmem>>, vector<1x4x10xf32>
    %304 = vector.shape_cast %303 : vector<1x4x10xf32> to vector<4x10xf32>
    %305 = vector.shape_cast %302 : vector<4x10xf32> to vector<1x4x10xf32>
    tpu.vector_store %arg12[%c1_195, %c0_196, %c0_197], %305 {strides = array<i32>} : memref<8x4x10xf32, #tpu.memory_space<vmem>>, vector<1x4x10xf32>,
    %306 = vector.broadcast %292 : vector<4x1xf32> to vector<4x10xf32>
    %307 = arith.cmpf oeq, %290, %306 : vector<4x10xf32>
    %c10_i32_198 = arith.constant 10 : i32
    %308 = vector.broadcast %c10_i32_198 : i32 to vector<4x10xi32>
    %309 = arith.select %307, %2, %308 : vector<4x10xi1>, vector<4x10xi32>
    %cst_199 = arith.constant dense<2147483647> : vector<4xi32>
    %310 = vector.multi_reduction <minsi>, %309, %cst_199 [1] : vector<4x10xi32> to vector<4xi32>
    %311 = vector.shape_cast %310 : vector<4xi32> to vector<4x1xi32>
    %312 = vector.broadcast %311 : vector<4x1xi32> to vector<4x10xi32>
    %313 = arith.cmpi eq, %2, %312 : vector<4x10xi32>
    %314 = arith.extui %313 : vector<4x10xi1> to vector<4x10xi32>
    %315 = arith.sitofp %314 : vector<4x10xi32> to vector<4x10xf32>
    %c0_200 = arith.constant 0 : index
    %c0_201 = arith.constant 0 : index
    %316 = vector.load %arg3[%c0_200, %c0_201] : memref<10x32xf32, #tpu.memory_space<vmem>>, vector<10x32xf32>
    %cst_202 = arith.constant dense<0.000000e+00> : vector<4x32xf32>
    %317 = tpu.matmul %315, %316, %cst_202 {dimension_numbers = #tpu.dot_dimension_numbers<[1], [0], [0], [1], [0, 0, 1, 1], [], []>} : vector<4x10xf32>, vector<10x32xf32>, vector<4x32xf32> -> vector<4x32xf32>
    %318 = arith.negf %317 : vector<4x32xf32>
    %319 = math.exp %318 : vector<4x32xf32>
    %cst_203 = arith.constant 1.000000e+00 : f32
    %320 = vector.broadcast %cst_203 : f32 to vector<4x32xf32>
    %321 = arith.addf %320, %319 : vector<4x32xf32>
    %322 = arith.divf %320, %321 : vector<4x32xf32>
    %323 = arith.mulf %317, %322 : vector<4x32xf32>
    %c0_204 = arith.constant 0 : index
    %c0_205 = arith.constant 0 : index
    %c0_206 = arith.constant 0 : index
    %324 = vector.load %arg4[%c0_204, %c0_205, %c0_206] : memref<3x32x32xf32, #tpu.memory_space<vmem>>, vector<1x32x32xf32>
    %325 = vector.shape_cast %324 : vector<1x32x32xf32> to vector<32x32xf32>
    %cst_207 = arith.constant dense<0.000000e+00> : vector<4x32xf32>
    %326 = tpu.matmul %323, %325, %cst_207 {dimension_numbers = #tpu.dot_dimension_numbers<[1], [0], [0], [1], [0, 0, 1, 1], [], []>} : vector<4x32xf32>, vector<32x32xf32>, vector<4x32xf32> -> vector<4x32xf32>
    %327 = arith.addf %326, %8 : vector<4x32xf32>
    %c1_208 = arith.constant 1 : index
    %c0_209 = arith.constant 0 : index
    %c0_210 = arith.constant 0 : index
    %328 = vector.load %arg4[%c1_208, %c0_209, %c0_210] : memref<3x32x32xf32, #tpu.memory_space<vmem>>, vector<1x32x32xf32>
    %329 = vector.shape_cast %328 : vector<1x32x32xf32> to vector<32x32xf32>
    %cst_211 = arith.constant dense<0.000000e+00> : vector<4x32xf32>
    %330 = tpu.matmul %323, %329, %cst_211 {dimension_numbers = #tpu.dot_dimension_numbers<[1], [0], [0], [1], [0, 0, 1, 1], [], []>} : vector<4x32xf32>, vector<32x32xf32>, vector<4x32xf32> -> vector<4x32xf32>
    %331 = arith.addf %330, %10 : vector<4x32xf32>
    %c2_212 = arith.constant 2 : index
    %c0_213 = arith.constant 0 : index
    %c0_214 = arith.constant 0 : index
    %332 = vector.load %arg4[%c2_212, %c0_213, %c0_214] : memref<3x32x32xf32, #tpu.memory_space<vmem>>, vector<1x32x32xf32>
    %333 = vector.shape_cast %332 : vector<1x32x32xf32> to vector<32x32xf32>
    %cst_215 = arith.constant dense<0.000000e+00> : vector<4x32xf32>
    %334 = tpu.matmul %323, %333, %cst_215 {dimension_numbers = #tpu.dot_dimension_numbers<[1], [0], [0], [1], [0, 0, 1, 1], [], []>} : vector<4x32xf32>, vector<32x32xf32>, vector<4x32xf32> -> vector<4x32xf32>
    %335 = arith.addf %334, %12 : vector<4x32xf32>
    %c0_216 = arith.constant 0 : index
    %c0_217 = arith.constant 0 : index
    %c0_218 = arith.constant 0 : index
    %336 = vector.load %arg5[%c0_216, %c0_217, %c0_218] : memref<3x32x32xf32, #tpu.memory_space<vmem>>, vector<1x32x32xf32>
    %337 = vector.shape_cast %336 : vector<1x32x32xf32> to vector<32x32xf32>
    %cst_219 = arith.constant dense<0.000000e+00> : vector<4x32xf32>
    %338 = tpu.matmul %225, %337, %cst_219 {dimension_numbers = #tpu.dot_dimension_numbers<[1], [0], [0], [1], [0, 0, 1, 1], [], []>} : vector<4x32xf32>, vector<32x32xf32>, vector<4x32xf32> -> vector<4x32xf32>
    %c0_220 = arith.constant 0 : index
    %c0_221 = arith.constant 0 : index
    %c0_222 = arith.constant 0 : index
    %339 = vector.load %arg6[%c0_220, %c0_221, %c0_222] : memref<3x1x32xf32, #tpu.memory_space<vmem>>, vector<1x1x32xf32>
    %340 = vector.shape_cast %339 : vector<1x1x32xf32> to vector<1x32xf32>
    %341 = vector.broadcast %340 : vector<1x32xf32> to vector<4x32xf32>
    %342 = arith.addf %338, %341 : vector<4x32xf32>
    %c1_223 = arith.constant 1 : index
    %c0_224 = arith.constant 0 : index
    %c0_225 = arith.constant 0 : index
    %343 = vector.load %arg5[%c1_223, %c0_224, %c0_225] : memref<3x32x32xf32, #tpu.memory_space<vmem>>, vector<1x32x32xf32>
    %344 = vector.shape_cast %343 : vector<1x32x32xf32> to vector<32x32xf32>
    %cst_226 = arith.constant dense<0.000000e+00> : vector<4x32xf32>
    %345 = tpu.matmul %225, %344, %cst_226 {dimension_numbers = #tpu.dot_dimension_numbers<[1], [0], [0], [1], [0, 0, 1, 1], [], []>} : vector<4x32xf32>, vector<32x32xf32>, vector<4x32xf32> -> vector<4x32xf32>
    %c1_227 = arith.constant 1 : index
    %c0_228 = arith.constant 0 : index
    %c0_229 = arith.constant 0 : index
    %346 = vector.load %arg6[%c1_227, %c0_228, %c0_229] : memref<3x1x32xf32, #tpu.memory_space<vmem>>, vector<1x1x32xf32>
    %347 = vector.shape_cast %346 : vector<1x1x32xf32> to vector<1x32xf32>
    %348 = vector.broadcast %347 : vector<1x32xf32> to vector<4x32xf32>
    %349 = arith.addf %345, %348 : vector<4x32xf32>
    %c2_230 = arith.constant 2 : index
    %c0_231 = arith.constant 0 : index
    %c0_232 = arith.constant 0 : index
    %350 = vector.load %arg5[%c2_230, %c0_231, %c0_232] : memref<3x32x32xf32, #tpu.memory_space<vmem>>, vector<1x32x32xf32>
    %351 = vector.shape_cast %350 : vector<1x32x32xf32> to vector<32x32xf32>
    %cst_233 = arith.constant dense<0.000000e+00> : vector<4x32xf32>
    %352 = tpu.matmul %225, %351, %cst_233 {dimension_numbers = #tpu.dot_dimension_numbers<[1], [0], [0], [1], [0, 0, 1, 1], [], []>} : vector<4x32xf32>, vector<32x32xf32>, vector<4x32xf32> -> vector<4x32xf32>
    %c2_234 = arith.constant 2 : index
    %c0_235 = arith.constant 0 : index
    %c0_236 = arith.constant 0 : index
    %353 = vector.load %arg6[%c2_234, %c0_235, %c0_236] : memref<3x1x32xf32, #tpu.memory_space<vmem>>, vector<1x1x32xf32>
    %354 = vector.shape_cast %353 : vector<1x1x32xf32> to vector<1x32xf32>
    %355 = vector.broadcast %354 : vector<1x32xf32> to vector<4x32xf32>
    %356 = arith.addf %352, %355 : vector<4x32xf32>
    %357 = arith.addf %327, %342 : vector<4x32xf32>
    %358 = arith.negf %357 : vector<4x32xf32>
    %359 = math.exp %358 : vector<4x32xf32>
    %cst_237 = arith.constant 1.000000e+00 : f32
    %360 = vector.broadcast %cst_237 : f32 to vector<4x32xf32>
    %361 = arith.addf %360, %359 : vector<4x32xf32>
    %362 = arith.divf %360, %361 : vector<4x32xf32>
    %363 = arith.addf %331, %349 : vector<4x32xf32>
    %364 = arith.negf %363 : vector<4x32xf32>
    %365 = math.exp %364 : vector<4x32xf32>
    %cst_238 = arith.constant 1.000000e+00 : f32
    %366 = vector.broadcast %cst_238 : f32 to vector<4x32xf32>
    %367 = arith.addf %366, %365 : vector<4x32xf32>
    %368 = arith.divf %366, %367 : vector<4x32xf32>
    %369 = arith.mulf %362, %356 : vector<4x32xf32>
    %370 = arith.addf %335, %369 : vector<4x32xf32>
    %371 = math.tanh %370 : vector<4x32xf32>
    %cst_239 = arith.constant 1.000000e+00 : f32
    %372 = vector.broadcast %cst_239 : f32 to vector<4x32xf32>
    %373 = arith.subf %372, %368 : vector<4x32xf32>
    %374 = arith.mulf %373, %371 : vector<4x32xf32>
    %375 = arith.mulf %368, %225 : vector<4x32xf32>
    %376 = arith.addf %374, %375 : vector<4x32xf32>
    %c0_240 = arith.constant 0 : index
    %c0_241 = arith.constant 0 : index
    %c0_242 = arith.constant 0 : index
    %377 = vector.load %arg8[%c0_240, %c0_241, %c0_242] : memref<3x1x32xf32, #tpu.memory_space<vmem>>, vector<1x1x32xf32>
    %378 = vector.shape_cast %377 : vector<1x1x32xf32> to vector<1x32xf32>
    %c1_243 = arith.constant 1 : index
    %c0_244 = arith.constant 0 : index
    %c0_245 = arith.constant 0 : index
    %379 = vector.load %arg8[%c1_243, %c0_244, %c0_245] : memref<3x1x32xf32, #tpu.memory_space<vmem>>, vector<1x1x32xf32>
    %380 = vector.shape_cast %379 : vector<1x1x32xf32> to vector<1x32xf32>
    %c2_246 = arith.constant 2 : index
    %c0_247 = arith.constant 0 : index
    %c0_248 = arith.constant 0 : index
    %381 = vector.load %arg8[%c2_246, %c0_247, %c0_248] : memref<3x1x32xf32, #tpu.memory_space<vmem>>, vector<1x1x32xf32>
    %382 = vector.shape_cast %381 : vector<1x1x32xf32> to vector<1x32xf32>
    %c0_249 = arith.constant 0 : index
    %c0_250 = arith.constant 0 : index
    %c0_251 = arith.constant 0 : index
    %383 = vector.load %arg7[%c0_249, %c0_250, %c0_251] : memref<3x32x32xf32, #tpu.memory_space<vmem>>, vector<1x32x32xf32>
    %384 = vector.shape_cast %383 : vector<1x32x32xf32> to vector<32x32xf32>
    %cst_252 = arith.constant dense<0.000000e+00> : vector<4x32xf32>
    %385 = tpu.matmul %376, %384, %cst_252 {dimension_numbers = #tpu.dot_dimension_numbers<[1], [0], [0], [1], [0, 0, 1, 1], [], []>} : vector<4x32xf32>, vector<32x32xf32>, vector<4x32xf32> -> vector<4x32xf32>
    %386 = vector.broadcast %378 : vector<1x32xf32> to vector<4x32xf32>
    %387 = arith.addf %385, %386 : vector<4x32xf32>
    %c1_253 = arith.constant 1 : index
    %c0_254 = arith.constant 0 : index
    %c0_255 = arith.constant 0 : index
    %388 = vector.load %arg7[%c1_253, %c0_254, %c0_255] : memref<3x32x32xf32, #tpu.memory_space<vmem>>, vector<1x32x32xf32>
    %389 = vector.shape_cast %388 : vector<1x32x32xf32> to vector<32x32xf32>
    %cst_256 = arith.constant dense<0.000000e+00> : vector<4x32xf32>
    %390 = tpu.matmul %376, %389, %cst_256 {dimension_numbers = #tpu.dot_dimension_numbers<[1], [0], [0], [1], [0, 0, 1, 1], [], []>} : vector<4x32xf32>, vector<32x32xf32>, vector<4x32xf32> -> vector<4x32xf32>
    %391 = vector.broadcast %380 : vector<1x32xf32> to vector<4x32xf32>
    %392 = arith.addf %390, %391 : vector<4x32xf32>
    %c2_257 = arith.constant 2 : index
    %c0_258 = arith.constant 0 : index
    %c0_259 = arith.constant 0 : index
    %393 = vector.load %arg7[%c2_257, %c0_258, %c0_259] : memref<3x32x32xf32, #tpu.memory_space<vmem>>, vector<1x32x32xf32>
    %394 = vector.shape_cast %393 : vector<1x32x32xf32> to vector<32x32xf32>
    %cst_260 = arith.constant dense<0.000000e+00> : vector<4x32xf32>
    %395 = tpu.matmul %376, %394, %cst_260 {dimension_numbers = #tpu.dot_dimension_numbers<[1], [0], [0], [1], [0, 0, 1, 1], [], []>} : vector<4x32xf32>, vector<32x32xf32>, vector<4x32xf32> -> vector<4x32xf32>
    %396 = vector.broadcast %382 : vector<1x32xf32> to vector<4x32xf32>
    %397 = arith.addf %395, %396 : vector<4x32xf32>
    %c0_261 = arith.constant 0 : index
    %c0_262 = arith.constant 0 : index
    %c0_263 = arith.constant 0 : index
    %398 = vector.load %arg9[%c0_261, %c0_262, %c0_263] : memref<3x32x32xf32, #tpu.memory_space<vmem>>, vector<1x32x32xf32>
    %399 = vector.shape_cast %398 : vector<1x32x32xf32> to vector<32x32xf32>
    %cst_264 = arith.constant dense<0.000000e+00> : vector<4x32xf32>
    %400 = tpu.matmul %287, %399, %cst_264 {dimension_numbers = #tpu.dot_dimension_numbers<[1], [0], [0], [1], [0, 0, 1, 1], [], []>} : vector<4x32xf32>, vector<32x32xf32>, vector<4x32xf32> -> vector<4x32xf32>
    %c0_265 = arith.constant 0 : index
    %c0_266 = arith.constant 0 : index
    %c0_267 = arith.constant 0 : index
    %401 = vector.load %arg10[%c0_265, %c0_266, %c0_267] : memref<3x1x32xf32, #tpu.memory_space<vmem>>, vector<1x1x32xf32>
    %402 = vector.shape_cast %401 : vector<1x1x32xf32> to vector<1x32xf32>
    %403 = vector.broadcast %402 : vector<1x32xf32> to vector<4x32xf32>
    %404 = arith.addf %400, %403 : vector<4x32xf32>
    %c1_268 = arith.constant 1 : index
    %c0_269 = arith.constant 0 : index
    %c0_270 = arith.constant 0 : index
    %405 = vector.load %arg9[%c1_268, %c0_269, %c0_270] : memref<3x32x32xf32, #tpu.memory_space<vmem>>, vector<1x32x32xf32>
    %406 = vector.shape_cast %405 : vector<1x32x32xf32> to vector<32x32xf32>
    %cst_271 = arith.constant dense<0.000000e+00> : vector<4x32xf32>
    %407 = tpu.matmul %287, %406, %cst_271 {dimension_numbers = #tpu.dot_dimension_numbers<[1], [0], [0], [1], [0, 0, 1, 1], [], []>} : vector<4x32xf32>, vector<32x32xf32>, vector<4x32xf32> -> vector<4x32xf32>
    %c1_272 = arith.constant 1 : index
    %c0_273 = arith.constant 0 : index
    %c0_274 = arith.constant 0 : index
    %408 = vector.load %arg10[%c1_272, %c0_273, %c0_274] : memref<3x1x32xf32, #tpu.memory_space<vmem>>, vector<1x1x32xf32>
    %409 = vector.shape_cast %408 : vector<1x1x32xf32> to vector<1x32xf32>
    %410 = vector.broadcast %409 : vector<1x32xf32> to vector<4x32xf32>
    %411 = arith.addf %407, %410 : vector<4x32xf32>
    %c2_275 = arith.constant 2 : index
    %c0_276 = arith.constant 0 : index
    %c0_277 = arith.constant 0 : index
    %412 = vector.load %arg9[%c2_275, %c0_276, %c0_277] : memref<3x32x32xf32, #tpu.memory_space<vmem>>, vector<1x32x32xf32>
    %413 = vector.shape_cast %412 : vector<1x32x32xf32> to vector<32x32xf32>
    %cst_278 = arith.constant dense<0.000000e+00> : vector<4x32xf32>
    %414 = tpu.matmul %287, %413, %cst_278 {dimension_numbers = #tpu.dot_dimension_numbers<[1], [0], [0], [1], [0, 0, 1, 1], [], []>} : vector<4x32xf32>, vector<32x32xf32>, vector<4x32xf32> -> vector<4x32xf32>
    %c2_279 = arith.constant 2 : index
    %c0_280 = arith.constant 0 : index
    %c0_281 = arith.constant 0 : index
    %415 = vector.load %arg10[%c2_279, %c0_280, %c0_281] : memref<3x1x32xf32, #tpu.memory_space<vmem>>, vector<1x1x32xf32>
    %416 = vector.shape_cast %415 : vector<1x1x32xf32> to vector<1x32xf32>
    %417 = vector.broadcast %416 : vector<1x32xf32> to vector<4x32xf32>
    %418 = arith.addf %414, %417 : vector<4x32xf32>
    %419 = arith.addf %387, %404 : vector<4x32xf32>
    %420 = arith.negf %419 : vector<4x32xf32>
    %421 = math.exp %420 : vector<4x32xf32>
    %cst_282 = arith.constant 1.000000e+00 : f32
    %422 = vector.broadcast %cst_282 : f32 to vector<4x32xf32>
    %423 = arith.addf %422, %421 : vector<4x32xf32>
    %424 = arith.divf %422, %423 : vector<4x32xf32>
    %425 = arith.addf %392, %411 : vector<4x32xf32>
    %426 = arith.negf %425 : vector<4x32xf32>
    %427 = math.exp %426 : vector<4x32xf32>
    %cst_283 = arith.constant 1.000000e+00 : f32
    %428 = vector.broadcast %cst_283 : f32 to vector<4x32xf32>
    %429 = arith.addf %428, %427 : vector<4x32xf32>
    %430 = arith.divf %428, %429 : vector<4x32xf32>
    %431 = arith.mulf %424, %418 : vector<4x32xf32>
    %432 = arith.addf %397, %431 : vector<4x32xf32>
    %433 = math.tanh %432 : vector<4x32xf32>
    %cst_284 = arith.constant 1.000000e+00 : f32
    %434 = vector.broadcast %cst_284 : f32 to vector<4x32xf32>
    %435 = arith.subf %434, %430 : vector<4x32xf32>
    %436 = arith.mulf %435, %433 : vector<4x32xf32>
    %437 = arith.mulf %430, %287 : vector<4x32xf32>
    %438 = arith.addf %436, %437 : vector<4x32xf32>
    %c0_285 = arith.constant 0 : index
    %c0_286 = arith.constant 0 : index
    %439 = vector.load %arg11[%c0_285, %c0_286] : memref<32x10xf32, #tpu.memory_space<vmem>>, vector<32x10xf32>
    %cst_287 = arith.constant dense<0.000000e+00> : vector<4x10xf32>
    %440 = tpu.matmul %438, %439, %cst_287 {dimension_numbers = #tpu.dot_dimension_numbers<[1], [0], [0], [1], [0, 0, 1, 1], [], []>} : vector<4x32xf32>, vector<32x10xf32>, vector<4x10xf32> -> vector<4x10xf32>
    %441 = arith.addf %440, %13 : vector<4x10xf32>
    %cst_288 = arith.constant dense<0xFF800000> : vector<4xf32>
    %442 = vector.multi_reduction <maximumf>, %441, %cst_288 [1] : vector<4x10xf32> to vector<4xf32>
    %443 = vector.shape_cast %442 : vector<4xf32> to vector<4x1xf32>
    %444 = vector.broadcast %443 : vector<4x1xf32> to vector<4x10xf32>
    %445 = arith.subf %441, %444 : vector<4x10xf32>
    %446 = vector.broadcast %443 : vector<4x1xf32> to vector<4x10xf32>
    %447 = arith.subf %441, %446 : vector<4x10xf32>
    %448 = math.exp %447 : vector<4x10xf32>
    %cst_289 = arith.constant dense<0.000000e+00> : vector<4xf32>
    %449 = vector.multi_reduction <add>, %448, %cst_289 [1] : vector<4x10xf32> to vector<4xf32>
    %450 = vector.shape_cast %449 : vector<4xf32> to vector<4x1xf32>
    %451 = math.log %450 : vector<4x1xf32>
    %452 = vector.broadcast %451 : vector<4x1xf32> to vector<4x10xf32>
    %453 = arith.subf %445, %452 : vector<4x10xf32>
    %c2_290 = arith.constant 2 : index
    %c0_291 = arith.constant 0 : index
    %c0_292 = arith.constant 0 : index
    %454 = vector.load %arg12[%c2_290, %c0_291, %c0_292] : memref<8x4x10xf32, #tpu.memory_space<vmem>>, vector<1x4x10xf32>
    %455 = vector.shape_cast %454 : vector<1x4x10xf32> to vector<4x10xf32>
    %456 = vector.shape_cast %453 : vector<4x10xf32> to vector<1x4x10xf32>
    tpu.vector_store %arg12[%c2_290, %c0_291, %c0_292], %456 {strides = array<i32>} : memref<8x4x10xf32, #tpu.memory_space<vmem>>, vector<1x4x10xf32>,
    %457 = vector.broadcast %443 : vector<4x1xf32> to vector<4x10xf32>
    %458 = arith.cmpf oeq, %441, %457 : vector<4x10xf32>
    %c10_i32_293 = arith.constant 10 : i32
    %459 = vector.broadcast %c10_i32_293 : i32 to vector<4x10xi32>
    %460 = arith.select %458, %2, %459 : vector<4x10xi1>, vector<4x10xi32>
    %cst_294 = arith.constant dense<2147483647> : vector<4xi32>
    %461 = vector.multi_reduction <minsi>, %460, %cst_294 [1] : vector<4x10xi32> to vector<4xi32>
    %462 = vector.shape_cast %461 : vector<4xi32> to vector<4x1xi32>
    %463 = vector.broadcast %462 : vector<4x1xi32> to vector<4x10xi32>
    %464 = arith.cmpi eq, %2, %463 : vector<4x10xi32>
    %465 = arith.extui %464 : vector<4x10xi1> to vector<4x10xi32>
    %466 = arith.sitofp %465 : vector<4x10xi32> to vector<4x10xf32>
    %c0_295 = arith.constant 0 : index
    %c0_296 = arith.constant 0 : index
    %467 = vector.load %arg3[%c0_295, %c0_296] : memref<10x32xf32, #tpu.memory_space<vmem>>, vector<10x32xf32>
    %cst_297 = arith.constant dense<0.000000e+00> : vector<4x32xf32>
    %468 = tpu.matmul %466, %467, %cst_297 {dimension_numbers = #tpu.dot_dimension_numbers<[1], [0], [0], [1], [0, 0, 1, 1], [], []>} : vector<4x10xf32>, vector<10x32xf32>, vector<4x32xf32> -> vector<4x32xf32>
    %469 = arith.negf %468 : vector<4x32xf32>
    %470 = math.exp %469 : vector<4x32xf32>
    %cst_298 = arith.constant 1.000000e+00 : f32
    %471 = vector.broadcast %cst_298 : f32 to vector<4x32xf32>
    %472 = arith.addf %471, %470 : vector<4x32xf32>
    %473 = arith.divf %471, %472 : vector<4x32xf32>
    %474 = arith.mulf %468, %473 : vector<4x32xf32>
    %c0_299 = arith.constant 0 : index
    %c0_300 = arith.constant 0 : index
    %c0_301 = arith.constant 0 : index
    %475 = vector.load %arg4[%c0_299, %c0_300, %c0_301] : memref<3x32x32xf32, #tpu.memory_space<vmem>>, vector<1x32x32xf32>
    %476 = vector.shape_cast %475 : vector<1x32x32xf32> to vector<32x32xf32>
    %cst_302 = arith.constant dense<0.000000e+00> : vector<4x32xf32>
    %477 = tpu.matmul %474, %476, %cst_302 {dimension_numbers = #tpu.dot_dimension_numbers<[1], [0], [0], [1], [0, 0, 1, 1], [], []>} : vector<4x32xf32>, vector<32x32xf32>, vector<4x32xf32> -> vector<4x32xf32>
    %478 = arith.addf %477, %8 : vector<4x32xf32>
    %c1_303 = arith.constant 1 : index
    %c0_304 = arith.constant 0 : index
    %c0_305 = arith.constant 0 : index
    %479 = vector.load %arg4[%c1_303, %c0_304, %c0_305] : memref<3x32x32xf32, #tpu.memory_space<vmem>>, vector<1x32x32xf32>
    %480 = vector.shape_cast %479 : vector<1x32x32xf32> to vector<32x32xf32>
    %cst_306 = arith.constant dense<0.000000e+00> : vector<4x32xf32>
    %481 = tpu.matmul %474, %480, %cst_306 {dimension_numbers = #tpu.dot_dimension_numbers<[1], [0], [0], [1], [0, 0, 1, 1], [], []>} : vector<4x32xf32>, vector<32x32xf32>, vector<4x32xf32> -> vector<4x32xf32>
    %482 = arith.addf %481, %10 : vector<4x32xf32>
    %c2_307 = arith.constant 2 : index
    %c0_308 = arith.constant 0 : index
    %c0_309 = arith.constant 0 : index
    %483 = vector.load %arg4[%c2_307, %c0_308, %c0_309] : memref<3x32x32xf32, #tpu.memory_space<vmem>>, vector<1x32x32xf32>
    %484 = vector.shape_cast %483 : vector<1x32x32xf32> to vector<32x32xf32>
    %cst_310 = arith.constant dense<0.000000e+00> : vector<4x32xf32>
    %485 = tpu.matmul %474, %484, %cst_310 {dimension_numbers = #tpu.dot_dimension_numbers<[1], [0], [0], [1], [0, 0, 1, 1], [], []>} : vector<4x32xf32>, vector<32x32xf32>, vector<4x32xf32> -> vector<4x32xf32>
    %486 = arith.addf %485, %12 : vector<4x32xf32>
    %c0_311 = arith.constant 0 : index
    %c0_312 = arith.constant 0 : index
    %c0_313 = arith.constant 0 : index
    %487 = vector.load %arg5[%c0_311, %c0_312, %c0_313] : memref<3x32x32xf32, #tpu.memory_space<vmem>>, vector<1x32x32xf32>
    %488 = vector.shape_cast %487 : vector<1x32x32xf32> to vector<32x32xf32>
    %cst_314 = arith.constant dense<0.000000e+00> : vector<4x32xf32>
    %489 = tpu.matmul %376, %488, %cst_314 {dimension_numbers = #tpu.dot_dimension_numbers<[1], [0], [0], [1], [0, 0, 1, 1], [], []>} : vector<4x32xf32>, vector<32x32xf32>, vector<4x32xf32> -> vector<4x32xf32>
    %c0_315 = arith.constant 0 : index
    %c0_316 = arith.constant 0 : index
    %c0_317 = arith.constant 0 : index
    %490 = vector.load %arg6[%c0_315, %c0_316, %c0_317] : memref<3x1x32xf32, #tpu.memory_space<vmem>>, vector<1x1x32xf32>
    %491 = vector.shape_cast %490 : vector<1x1x32xf32> to vector<1x32xf32>
    %492 = vector.broadcast %491 : vector<1x32xf32> to vector<4x32xf32>
    %493 = arith.addf %489, %492 : vector<4x32xf32>
    %c1_318 = arith.constant 1 : index
    %c0_319 = arith.constant 0 : index
    %c0_320 = arith.constant 0 : index
    %494 = vector.load %arg5[%c1_318, %c0_319, %c0_320] : memref<3x32x32xf32, #tpu.memory_space<vmem>>, vector<1x32x32xf32>
    %495 = vector.shape_cast %494 : vector<1x32x32xf32> to vector<32x32xf32>
    %cst_321 = arith.constant dense<0.000000e+00> : vector<4x32xf32>
    %496 = tpu.matmul %376, %495, %cst_321 {dimension_numbers = #tpu.dot_dimension_numbers<[1], [0], [0], [1], [0, 0, 1, 1], [], []>} : vector<4x32xf32>, vector<32x32xf32>, vector<4x32xf32> -> vector<4x32xf32>
    %c1_322 = arith.constant 1 : index
    %c0_323 = arith.constant 0 : index
    %c0_324 = arith.constant 0 : index
    %497 = vector.load %arg6[%c1_322, %c0_323, %c0_324] : memref<3x1x32xf32, #tpu.memory_space<vmem>>, vector<1x1x32xf32>
    %498 = vector.shape_cast %497 : vector<1x1x32xf32> to vector<1x32xf32>
    %499 = vector.broadcast %498 : vector<1x32xf32> to vector<4x32xf32>
    %500 = arith.addf %496, %499 : vector<4x32xf32>
    %c2_325 = arith.constant 2 : index
    %c0_326 = arith.constant 0 : index
    %c0_327 = arith.constant 0 : index
    %501 = vector.load %arg5[%c2_325, %c0_326, %c0_327] : memref<3x32x32xf32, #tpu.memory_space<vmem>>, vector<1x32x32xf32>
    %502 = vector.shape_cast %501 : vector<1x32x32xf32> to vector<32x32xf32>
    %cst_328 = arith.constant dense<0.000000e+00> : vector<4x32xf32>
    %503 = tpu.matmul %376, %502, %cst_328 {dimension_numbers = #tpu.dot_dimension_numbers<[1], [0], [0], [1], [0, 0, 1, 1], [], []>} : vector<4x32xf32>, vector<32x32xf32>, vector<4x32xf32> -> vector<4x32xf32>
    %c2_329 = arith.constant 2 : index
    %c0_330 = arith.constant 0 : index
    %c0_331 = arith.constant 0 : index
    %504 = vector.load %arg6[%c2_329, %c0_330, %c0_331] : memref<3x1x32xf32, #tpu.memory_space<vmem>>, vector<1x1x32xf32>
    %505 = vector.shape_cast %504 : vector<1x1x32xf32> to vector<1x32xf32>
    %506 = vector.broadcast %505 : vector<1x32xf32> to vector<4x32xf32>
    %507 = arith.addf %503, %506 : vector<4x32xf32>
    %508 = arith.addf %478, %493 : vector<4x32xf32>
    %509 = arith.negf %508 : vector<4x32xf32>
    %510 = math.exp %509 : vector<4x32xf32>
    %cst_332 = arith.constant 1.000000e+00 : f32
    %511 = vector.broadcast %cst_332 : f32 to vector<4x32xf32>
    %512 = arith.addf %511, %510 : vector<4x32xf32>
    %513 = arith.divf %511, %512 : vector<4x32xf32>
    %514 = arith.addf %482, %500 : vector<4x32xf32>
    %515 = arith.negf %514 : vector<4x32xf32>
    %516 = math.exp %515 : vector<4x32xf32>
    %cst_333 = arith.constant 1.000000e+00 : f32
    %517 = vector.broadcast %cst_333 : f32 to vector<4x32xf32>
    %518 = arith.addf %517, %516 : vector<4x32xf32>
    %519 = arith.divf %517, %518 : vector<4x32xf32>
    %520 = arith.mulf %513, %507 : vector<4x32xf32>
    %521 = arith.addf %486, %520 : vector<4x32xf32>
    %522 = math.tanh %521 : vector<4x32xf32>
    %cst_334 = arith.constant 1.000000e+00 : f32
    %523 = vector.broadcast %cst_334 : f32 to vector<4x32xf32>
    %524 = arith.subf %523, %519 : vector<4x32xf32>
    %525 = arith.mulf %524, %522 : vector<4x32xf32>
    %526 = arith.mulf %519, %376 : vector<4x32xf32>
    %527 = arith.addf %525, %526 : vector<4x32xf32>
    %c0_335 = arith.constant 0 : index
    %c0_336 = arith.constant 0 : index
    %c0_337 = arith.constant 0 : index
    %528 = vector.load %arg8[%c0_335, %c0_336, %c0_337] : memref<3x1x32xf32, #tpu.memory_space<vmem>>, vector<1x1x32xf32>
    %529 = vector.shape_cast %528 : vector<1x1x32xf32> to vector<1x32xf32>
    %c1_338 = arith.constant 1 : index
    %c0_339 = arith.constant 0 : index
    %c0_340 = arith.constant 0 : index
    %530 = vector.load %arg8[%c1_338, %c0_339, %c0_340] : memref<3x1x32xf32, #tpu.memory_space<vmem>>, vector<1x1x32xf32>
    %531 = vector.shape_cast %530 : vector<1x1x32xf32> to vector<1x32xf32>
    %c2_341 = arith.constant 2 : index
    %c0_342 = arith.constant 0 : index
    %c0_343 = arith.constant 0 : index
    %532 = vector.load %arg8[%c2_341, %c0_342, %c0_343] : memref<3x1x32xf32, #tpu.memory_space<vmem>>, vector<1x1x32xf32>
    %533 = vector.shape_cast %532 : vector<1x1x32xf32> to vector<1x32xf32>
    %c0_344 = arith.constant 0 : index
    %c0_345 = arith.constant 0 : index
    %c0_346 = arith.constant 0 : index
    %534 = vector.load %arg7[%c0_344, %c0_345, %c0_346] : memref<3x32x32xf32, #tpu.memory_space<vmem>>, vector<1x32x32xf32>
    %535 = vector.shape_cast %534 : vector<1x32x32xf32> to vector<32x32xf32>
    %cst_347 = arith.constant dense<0.000000e+00> : vector<4x32xf32>
    %536 = tpu.matmul %527, %535, %cst_347 {dimension_numbers = #tpu.dot_dimension_numbers<[1], [0], [0], [1], [0, 0, 1, 1], [], []>} : vector<4x32xf32>, vector<32x32xf32>, vector<4x32xf32> -> vector<4x32xf32>
    %537 = vector.broadcast %529 : vector<1x32xf32> to vector<4x32xf32>
    %538 = arith.addf %536, %537 : vector<4x32xf32>
    %c1_348 = arith.constant 1 : index
    %c0_349 = arith.constant 0 : index
    %c0_350 = arith.constant 0 : index
    %539 = vector.load %arg7[%c1_348, %c0_349, %c0_350] : memref<3x32x32xf32, #tpu.memory_space<vmem>>, vector<1x32x32xf32>
    %540 = vector.shape_cast %539 : vector<1x32x32xf32> to vector<32x32xf32>
    %cst_351 = arith.constant dense<0.000000e+00> : vector<4x32xf32>
    %541 = tpu.matmul %527, %540, %cst_351 {dimension_numbers = #tpu.dot_dimension_numbers<[1], [0], [0], [1], [0, 0, 1, 1], [], []>} : vector<4x32xf32>, vector<32x32xf32>, vector<4x32xf32> -> vector<4x32xf32>
    %542 = vector.broadcast %531 : vector<1x32xf32> to vector<4x32xf32>
    %543 = arith.addf %541, %542 : vector<4x32xf32>
    %c2_352 = arith.constant 2 : index
    %c0_353 = arith.constant 0 : index
    %c0_354 = arith.constant 0 : index
    %544 = vector.load %arg7[%c2_352, %c0_353, %c0_354] : memref<3x32x32xf32, #tpu.memory_space<vmem>>, vector<1x32x32xf32>
    %545 = vector.shape_cast %544 : vector<1x32x32xf32> to vector<32x32xf32>
    %cst_355 = arith.constant dense<0.000000e+00> : vector<4x32xf32>
    %546 = tpu.matmul %527, %545, %cst_355 {dimension_numbers = #tpu.dot_dimension_numbers<[1], [0], [0], [1], [0, 0, 1, 1], [], []>} : vector<4x32xf32>, vector<32x32xf32>, vector<4x32xf32> -> vector<4x32xf32>
    %547 = vector.broadcast %533 : vector<1x32xf32> to vector<4x32xf32>
    %548 = arith.addf %546, %547 : vector<4x32xf32>
    %c0_356 = arith.constant 0 : index
    %c0_357 = arith.constant 0 : index
    %c0_358 = arith.constant 0 : index
    %549 = vector.load %arg9[%c0_356, %c0_357, %c0_358] : memref<3x32x32xf32, #tpu.memory_space<vmem>>, vector<1x32x32xf32>
    %550 = vector.shape_cast %549 : vector<1x32x32xf32> to vector<32x32xf32>
    %cst_359 = arith.constant dense<0.000000e+00> : vector<4x32xf32>
    %551 = tpu.matmul %438, %550, %cst_359 {dimension_numbers = #tpu.dot_dimension_numbers<[1], [0], [0], [1], [0, 0, 1, 1], [], []>} : vector<4x32xf32>, vector<32x32xf32>, vector<4x32xf32> -> vector<4x32xf32>
    %c0_360 = arith.constant 0 : index
    %c0_361 = arith.constant 0 : index
    %c0_362 = arith.constant 0 : index
    %552 = vector.load %arg10[%c0_360, %c0_361, %c0_362] : memref<3x1x32xf32, #tpu.memory_space<vmem>>, vector<1x1x32xf32>
    %553 = vector.shape_cast %552 : vector<1x1x32xf32> to vector<1x32xf32>
    %554 = vector.broadcast %553 : vector<1x32xf32> to vector<4x32xf32>
    %555 = arith.addf %551, %554 : vector<4x32xf32>
    %c1_363 = arith.constant 1 : index
    %c0_364 = arith.constant 0 : index
    %c0_365 = arith.constant 0 : index
    %556 = vector.load %arg9[%c1_363, %c0_364, %c0_365] : memref<3x32x32xf32, #tpu.memory_space<vmem>>, vector<1x32x32xf32>
    %557 = vector.shape_cast %556 : vector<1x32x32xf32> to vector<32x32xf32>
    %cst_366 = arith.constant dense<0.000000e+00> : vector<4x32xf32>
    %558 = tpu.matmul %438, %557, %cst_366 {dimension_numbers = #tpu.dot_dimension_numbers<[1], [0], [0], [1], [0, 0, 1, 1], [], []>} : vector<4x32xf32>, vector<32x32xf32>, vector<4x32xf32> -> vector<4x32xf32>
    %c1_367 = arith.constant 1 : index
    %c0_368 = arith.constant 0 : index
    %c0_369 = arith.constant 0 : index
    %559 = vector.load %arg10[%c1_367, %c0_368, %c0_369] : memref<3x1x32xf32, #tpu.memory_space<vmem>>, vector<1x1x32xf32>
    %560 = vector.shape_cast %559 : vector<1x1x32xf32> to vector<1x32xf32>
    %561 = vector.broadcast %560 : vector<1x32xf32> to vector<4x32xf32>
    %562 = arith.addf %558, %561 : vector<4x32xf32>
    %c2_370 = arith.constant 2 : index
    %c0_371 = arith.constant 0 : index
    %c0_372 = arith.constant 0 : index
    %563 = vector.load %arg9[%c2_370, %c0_371, %c0_372] : memref<3x32x32xf32, #tpu.memory_space<vmem>>, vector<1x32x32xf32>
    %564 = vector.shape_cast %563 : vector<1x32x32xf32> to vector<32x32xf32>
    %cst_373 = arith.constant dense<0.000000e+00> : vector<4x32xf32>
    %565 = tpu.matmul %438, %564, %cst_373 {dimension_numbers = #tpu.dot_dimension_numbers<[1], [0], [0], [1], [0, 0, 1, 1], [], []>} : vector<4x32xf32>, vector<32x32xf32>, vector<4x32xf32> -> vector<4x32xf32>
    %c2_374 = arith.constant 2 : index
    %c0_375 = arith.constant 0 : index
    %c0_376 = arith.constant 0 : index
    %566 = vector.load %arg10[%c2_374, %c0_375, %c0_376] : memref<3x1x32xf32, #tpu.memory_space<vmem>>, vector<1x1x32xf32>
    %567 = vector.shape_cast %566 : vector<1x1x32xf32> to vector<1x32xf32>
    %568 = vector.broadcast %567 : vector<1x32xf32> to vector<4x32xf32>
    %569 = arith.addf %565, %568 : vector<4x32xf32>
    %570 = arith.addf %538, %555 : vector<4x32xf32>
    %571 = arith.negf %570 : vector<4x32xf32>
    %572 = math.exp %571 : vector<4x32xf32>
    %cst_377 = arith.constant 1.000000e+00 : f32
    %573 = vector.broadcast %cst_377 : f32 to vector<4x32xf32>
    %574 = arith.addf %573, %572 : vector<4x32xf32>
    %575 = arith.divf %573, %574 : vector<4x32xf32>
    %576 = arith.addf %543, %562 : vector<4x32xf32>
    %577 = arith.negf %576 : vector<4x32xf32>
    %578 = math.exp %577 : vector<4x32xf32>
    %cst_378 = arith.constant 1.000000e+00 : f32
    %579 = vector.broadcast %cst_378 : f32 to vector<4x32xf32>
    %580 = arith.addf %579, %578 : vector<4x32xf32>
    %581 = arith.divf %579, %580 : vector<4x32xf32>
    %582 = arith.mulf %575, %569 : vector<4x32xf32>
    %583 = arith.addf %548, %582 : vector<4x32xf32>
    %584 = math.tanh %583 : vector<4x32xf32>
    %cst_379 = arith.constant 1.000000e+00 : f32
    %585 = vector.broadcast %cst_379 : f32 to vector<4x32xf32>
    %586 = arith.subf %585, %581 : vector<4x32xf32>
    %587 = arith.mulf %586, %584 : vector<4x32xf32>
    %588 = arith.mulf %581, %438 : vector<4x32xf32>
    %589 = arith.addf %587, %588 : vector<4x32xf32>
    %c0_380 = arith.constant 0 : index
    %c0_381 = arith.constant 0 : index
    %590 = vector.load %arg11[%c0_380, %c0_381] : memref<32x10xf32, #tpu.memory_space<vmem>>, vector<32x10xf32>
    %cst_382 = arith.constant dense<0.000000e+00> : vector<4x10xf32>
    %591 = tpu.matmul %589, %590, %cst_382 {dimension_numbers = #tpu.dot_dimension_numbers<[1], [0], [0], [1], [0, 0, 1, 1], [], []>} : vector<4x32xf32>, vector<32x10xf32>, vector<4x10xf32> -> vector<4x10xf32>
    %592 = arith.addf %591, %13 : vector<4x10xf32>
    %cst_383 = arith.constant dense<0xFF800000> : vector<4xf32>
    %593 = vector.multi_reduction <maximumf>, %592, %cst_383 [1] : vector<4x10xf32> to vector<4xf32>
    %594 = vector.shape_cast %593 : vector<4xf32> to vector<4x1xf32>
    %595 = vector.broadcast %594 : vector<4x1xf32> to vector<4x10xf32>
    %596 = arith.subf %592, %595 : vector<4x10xf32>
    %597 = vector.broadcast %594 : vector<4x1xf32> to vector<4x10xf32>
    %598 = arith.subf %592, %597 : vector<4x10xf32>
    %599 = math.exp %598 : vector<4x10xf32>
    %cst_384 = arith.constant dense<0.000000e+00> : vector<4xf32>
    %600 = vector.multi_reduction <add>, %599, %cst_384 [1] : vector<4x10xf32> to vector<4xf32>
    %601 = vector.shape_cast %600 : vector<4xf32> to vector<4x1xf32>
    %602 = math.log %601 : vector<4x1xf32>
    %603 = vector.broadcast %602 : vector<4x1xf32> to vector<4x10xf32>
    %604 = arith.subf %596, %603 : vector<4x10xf32>
    %c3 = arith.constant 3 : index
    %c0_385 = arith.constant 0 : index
    %c0_386 = arith.constant 0 : index
    %605 = vector.load %arg12[%c3, %c0_385, %c0_386] : memref<8x4x10xf32, #tpu.memory_space<vmem>>, vector<1x4x10xf32>
    %606 = vector.shape_cast %605 : vector<1x4x10xf32> to vector<4x10xf32>
    %607 = vector.shape_cast %604 : vector<4x10xf32> to vector<1x4x10xf32>
    tpu.vector_store %arg12[%c3, %c0_385, %c0_386], %607 {strides = array<i32>} : memref<8x4x10xf32, #tpu.memory_space<vmem>>, vector<1x4x10xf32>,
    %608 = vector.broadcast %594 : vector<4x1xf32> to vector<4x10xf32>
    %609 = arith.cmpf oeq, %592, %608 : vector<4x10xf32>
    %c10_i32_387 = arith.constant 10 : i32
    %610 = vector.broadcast %c10_i32_387 : i32 to vector<4x10xi32>
    %611 = arith.select %609, %2, %610 : vector<4x10xi1>, vector<4x10xi32>
    %cst_388 = arith.constant dense<2147483647> : vector<4xi32>
    %612 = vector.multi_reduction <minsi>, %611, %cst_388 [1] : vector<4x10xi32> to vector<4xi32>
    %613 = vector.shape_cast %612 : vector<4xi32> to vector<4x1xi32>
    %614 = vector.broadcast %613 : vector<4x1xi32> to vector<4x10xi32>
    %615 = arith.cmpi eq, %2, %614 : vector<4x10xi32>
    %616 = arith.extui %615 : vector<4x10xi1> to vector<4x10xi32>
    %617 = arith.sitofp %616 : vector<4x10xi32> to vector<4x10xf32>
    %c0_389 = arith.constant 0 : index
    %c0_390 = arith.constant 0 : index
    %618 = vector.load %arg3[%c0_389, %c0_390] : memref<10x32xf32, #tpu.memory_space<vmem>>, vector<10x32xf32>
    %cst_391 = arith.constant dense<0.000000e+00> : vector<4x32xf32>
    %619 = tpu.matmul %617, %618, %cst_391 {dimension_numbers = #tpu.dot_dimension_numbers<[1], [0], [0], [1], [0, 0, 1, 1], [], []>} : vector<4x10xf32>, vector<10x32xf32>, vector<4x32xf32> -> vector<4x32xf32>
    %620 = arith.negf %619 : vector<4x32xf32>
    %621 = math.exp %620 : vector<4x32xf32>
    %cst_392 = arith.constant 1.000000e+00 : f32
    %622 = vector.broadcast %cst_392 : f32 to vector<4x32xf32>
    %623 = arith.addf %622, %621 : vector<4x32xf32>
    %624 = arith.divf %622, %623 : vector<4x32xf32>
    %625 = arith.mulf %619, %624 : vector<4x32xf32>
    %c0_393 = arith.constant 0 : index
    %c0_394 = arith.constant 0 : index
    %c0_395 = arith.constant 0 : index
    %626 = vector.load %arg4[%c0_393, %c0_394, %c0_395] : memref<3x32x32xf32, #tpu.memory_space<vmem>>, vector<1x32x32xf32>
    %627 = vector.shape_cast %626 : vector<1x32x32xf32> to vector<32x32xf32>
    %cst_396 = arith.constant dense<0.000000e+00> : vector<4x32xf32>
    %628 = tpu.matmul %625, %627, %cst_396 {dimension_numbers = #tpu.dot_dimension_numbers<[1], [0], [0], [1], [0, 0, 1, 1], [], []>} : vector<4x32xf32>, vector<32x32xf32>, vector<4x32xf32> -> vector<4x32xf32>
    %629 = arith.addf %628, %8 : vector<4x32xf32>
    %c1_397 = arith.constant 1 : index
    %c0_398 = arith.constant 0 : index
    %c0_399 = arith.constant 0 : index
    %630 = vector.load %arg4[%c1_397, %c0_398, %c0_399] : memref<3x32x32xf32, #tpu.memory_space<vmem>>, vector<1x32x32xf32>
    %631 = vector.shape_cast %630 : vector<1x32x32xf32> to vector<32x32xf32>
    %cst_400 = arith.constant dense<0.000000e+00> : vector<4x32xf32>
    %632 = tpu.matmul %625, %631, %cst_400 {dimension_numbers = #tpu.dot_dimension_numbers<[1], [0], [0], [1], [0, 0, 1, 1], [], []>} : vector<4x32xf32>, vector<32x32xf32>, vector<4x32xf32> -> vector<4x32xf32>
    %633 = arith.addf %632, %10 : vector<4x32xf32>
    %c2_401 = arith.constant 2 : index
    %c0_402 = arith.constant 0 : index
    %c0_403 = arith.constant 0 : index
    %634 = vector.load %arg4[%c2_401, %c0_402, %c0_403] : memref<3x32x32xf32, #tpu.memory_space<vmem>>, vector<1x32x32xf32>
    %635 = vector.shape_cast %634 : vector<1x32x32xf32> to vector<32x32xf32>
    %cst_404 = arith.constant dense<0.000000e+00> : vector<4x32xf32>
    %636 = tpu.matmul %625, %635, %cst_404 {dimension_numbers = #tpu.dot_dimension_numbers<[1], [0], [0], [1], [0, 0, 1, 1], [], []>} : vector<4x32xf32>, vector<32x32xf32>, vector<4x32xf32> -> vector<4x32xf32>
    %637 = arith.addf %636, %12 : vector<4x32xf32>
    %c0_405 = arith.constant 0 : index
    %c0_406 = arith.constant 0 : index
    %c0_407 = arith.constant 0 : index
    %638 = vector.load %arg5[%c0_405, %c0_406, %c0_407] : memref<3x32x32xf32, #tpu.memory_space<vmem>>, vector<1x32x32xf32>
    %639 = vector.shape_cast %638 : vector<1x32x32xf32> to vector<32x32xf32>
    %cst_408 = arith.constant dense<0.000000e+00> : vector<4x32xf32>
    %640 = tpu.matmul %527, %639, %cst_408 {dimension_numbers = #tpu.dot_dimension_numbers<[1], [0], [0], [1], [0, 0, 1, 1], [], []>} : vector<4x32xf32>, vector<32x32xf32>, vector<4x32xf32> -> vector<4x32xf32>
    %c0_409 = arith.constant 0 : index
    %c0_410 = arith.constant 0 : index
    %c0_411 = arith.constant 0 : index
    %641 = vector.load %arg6[%c0_409, %c0_410, %c0_411] : memref<3x1x32xf32, #tpu.memory_space<vmem>>, vector<1x1x32xf32>
    %642 = vector.shape_cast %641 : vector<1x1x32xf32> to vector<1x32xf32>
    %643 = vector.broadcast %642 : vector<1x32xf32> to vector<4x32xf32>
    %644 = arith.addf %640, %643 : vector<4x32xf32>
    %c1_412 = arith.constant 1 : index
    %c0_413 = arith.constant 0 : index
    %c0_414 = arith.constant 0 : index
    %645 = vector.load %arg5[%c1_412, %c0_413, %c0_414] : memref<3x32x32xf32, #tpu.memory_space<vmem>>, vector<1x32x32xf32>
    %646 = vector.shape_cast %645 : vector<1x32x32xf32> to vector<32x32xf32>
    %cst_415 = arith.constant dense<0.000000e+00> : vector<4x32xf32>
    %647 = tpu.matmul %527, %646, %cst_415 {dimension_numbers = #tpu.dot_dimension_numbers<[1], [0], [0], [1], [0, 0, 1, 1], [], []>} : vector<4x32xf32>, vector<32x32xf32>, vector<4x32xf32> -> vector<4x32xf32>
    %c1_416 = arith.constant 1 : index
    %c0_417 = arith.constant 0 : index
    %c0_418 = arith.constant 0 : index
    %648 = vector.load %arg6[%c1_416, %c0_417, %c0_418] : memref<3x1x32xf32, #tpu.memory_space<vmem>>, vector<1x1x32xf32>
    %649 = vector.shape_cast %648 : vector<1x1x32xf32> to vector<1x32xf32>
    %650 = vector.broadcast %649 : vector<1x32xf32> to vector<4x32xf32>
    %651 = arith.addf %647, %650 : vector<4x32xf32>
    %c2_419 = arith.constant 2 : index
    %c0_420 = arith.constant 0 : index
    %c0_421 = arith.constant 0 : index
    %652 = vector.load %arg5[%c2_419, %c0_420, %c0_421] : memref<3x32x32xf32, #tpu.memory_space<vmem>>, vector<1x32x32xf32>
    %653 = vector.shape_cast %652 : vector<1x32x32xf32> to vector<32x32xf32>
    %cst_422 = arith.constant dense<0.000000e+00> : vector<4x32xf32>
    %654 = tpu.matmul %527, %653, %cst_422 {dimension_numbers = #tpu.dot_dimension_numbers<[1], [0], [0], [1], [0, 0, 1, 1], [], []>} : vector<4x32xf32>, vector<32x32xf32>, vector<4x32xf32> -> vector<4x32xf32>
    %c2_423 = arith.constant 2 : index
    %c0_424 = arith.constant 0 : index
    %c0_425 = arith.constant 0 : index
    %655 = vector.load %arg6[%c2_423, %c0_424, %c0_425] : memref<3x1x32xf32, #tpu.memory_space<vmem>>, vector<1x1x32xf32>
    %656 = vector.shape_cast %655 : vector<1x1x32xf32> to vector<1x32xf32>
    %657 = vector.broadcast %656 : vector<1x32xf32> to vector<4x32xf32>
    %658 = arith.addf %654, %657 : vector<4x32xf32>
    %659 = arith.addf %629, %644 : vector<4x32xf32>
    %660 = arith.negf %659 : vector<4x32xf32>
    %661 = math.exp %660 : vector<4x32xf32>
    %cst_426 = arith.constant 1.000000e+00 : f32
    %662 = vector.broadcast %cst_426 : f32 to vector<4x32xf32>
    %663 = arith.addf %662, %661 : vector<4x32xf32>
    %664 = arith.divf %662, %663 : vector<4x32xf32>
    %665 = arith.addf %633, %651 : vector<4x32xf32>
    %666 = arith.negf %665 : vector<4x32xf32>
    %667 = math.exp %666 : vector<4x32xf32>
    %cst_427 = arith.constant 1.000000e+00 : f32
    %668 = vector.broadcast %cst_427 : f32 to vector<4x32xf32>
    %669 = arith.addf %668, %667 : vector<4x32xf32>
    %670 = arith.divf %668, %669 : vector<4x32xf32>
    %671 = arith.mulf %664, %658 : vector<4x32xf32>
    %672 = arith.addf %637, %671 : vector<4x32xf32>
    %673 = math.tanh %672 : vector<4x32xf32>
    %cst_428 = arith.constant 1.000000e+00 : f32
    %674 = vector.broadcast %cst_428 : f32 to vector<4x32xf32>
    %675 = arith.subf %674, %670 : vector<4x32xf32>
    %676 = arith.mulf %675, %673 : vector<4x32xf32>
    %677 = arith.mulf %670, %527 : vector<4x32xf32>
    %678 = arith.addf %676, %677 : vector<4x32xf32>
    %c0_429 = arith.constant 0 : index
    %c0_430 = arith.constant 0 : index
    %c0_431 = arith.constant 0 : index
    %679 = vector.load %arg8[%c0_429, %c0_430, %c0_431] : memref<3x1x32xf32, #tpu.memory_space<vmem>>, vector<1x1x32xf32>
    %680 = vector.shape_cast %679 : vector<1x1x32xf32> to vector<1x32xf32>
    %c1_432 = arith.constant 1 : index
    %c0_433 = arith.constant 0 : index
    %c0_434 = arith.constant 0 : index
    %681 = vector.load %arg8[%c1_432, %c0_433, %c0_434] : memref<3x1x32xf32, #tpu.memory_space<vmem>>, vector<1x1x32xf32>
    %682 = vector.shape_cast %681 : vector<1x1x32xf32> to vector<1x32xf32>
    %c2_435 = arith.constant 2 : index
    %c0_436 = arith.constant 0 : index
    %c0_437 = arith.constant 0 : index
    %683 = vector.load %arg8[%c2_435, %c0_436, %c0_437] : memref<3x1x32xf32, #tpu.memory_space<vmem>>, vector<1x1x32xf32>
    %684 = vector.shape_cast %683 : vector<1x1x32xf32> to vector<1x32xf32>
    %c0_438 = arith.constant 0 : index
    %c0_439 = arith.constant 0 : index
    %c0_440 = arith.constant 0 : index
    %685 = vector.load %arg7[%c0_438, %c0_439, %c0_440] : memref<3x32x32xf32, #tpu.memory_space<vmem>>, vector<1x32x32xf32>
    %686 = vector.shape_cast %685 : vector<1x32x32xf32> to vector<32x32xf32>
    %cst_441 = arith.constant dense<0.000000e+00> : vector<4x32xf32>
    %687 = tpu.matmul %678, %686, %cst_441 {dimension_numbers = #tpu.dot_dimension_numbers<[1], [0], [0], [1], [0, 0, 1, 1], [], []>} : vector<4x32xf32>, vector<32x32xf32>, vector<4x32xf32> -> vector<4x32xf32>
    %688 = vector.broadcast %680 : vector<1x32xf32> to vector<4x32xf32>
    %689 = arith.addf %687, %688 : vector<4x32xf32>
    %c1_442 = arith.constant 1 : index
    %c0_443 = arith.constant 0 : index
    %c0_444 = arith.constant 0 : index
    %690 = vector.load %arg7[%c1_442, %c0_443, %c0_444] : memref<3x32x32xf32, #tpu.memory_space<vmem>>, vector<1x32x32xf32>
    %691 = vector.shape_cast %690 : vector<1x32x32xf32> to vector<32x32xf32>
    %cst_445 = arith.constant dense<0.000000e+00> : vector<4x32xf32>
    %692 = tpu.matmul %678, %691, %cst_445 {dimension_numbers = #tpu.dot_dimension_numbers<[1], [0], [0], [1], [0, 0, 1, 1], [], []>} : vector<4x32xf32>, vector<32x32xf32>, vector<4x32xf32> -> vector<4x32xf32>
    %693 = vector.broadcast %682 : vector<1x32xf32> to vector<4x32xf32>
    %694 = arith.addf %692, %693 : vector<4x32xf32>
    %c2_446 = arith.constant 2 : index
    %c0_447 = arith.constant 0 : index
    %c0_448 = arith.constant 0 : index
    %695 = vector.load %arg7[%c2_446, %c0_447, %c0_448] : memref<3x32x32xf32, #tpu.memory_space<vmem>>, vector<1x32x32xf32>
    %696 = vector.shape_cast %695 : vector<1x32x32xf32> to vector<32x32xf32>
    %cst_449 = arith.constant dense<0.000000e+00> : vector<4x32xf32>
    %697 = tpu.matmul %678, %696, %cst_449 {dimension_numbers = #tpu.dot_dimension_numbers<[1], [0], [0], [1], [0, 0, 1, 1], [], []>} : vector<4x32xf32>, vector<32x32xf32>, vector<4x32xf32> -> vector<4x32xf32>
    %698 = vector.broadcast %684 : vector<1x32xf32> to vector<4x32xf32>
    %699 = arith.addf %697, %698 : vector<4x32xf32>
    %c0_450 = arith.constant 0 : index
    %c0_451 = arith.constant 0 : index
    %c0_452 = arith.constant 0 : index
    %700 = vector.load %arg9[%c0_450, %c0_451, %c0_452] : memref<3x32x32xf32, #tpu.memory_space<vmem>>, vector<1x32x32xf32>
    %701 = vector.shape_cast %700 : vector<1x32x32xf32> to vector<32x32xf32>
    %cst_453 = arith.constant dense<0.000000e+00> : vector<4x32xf32>
    %702 = tpu.matmul %589, %701, %cst_453 {dimension_numbers = #tpu.dot_dimension_numbers<[1], [0], [0], [1], [0, 0, 1, 1], [], []>} : vector<4x32xf32>, vector<32x32xf32>, vector<4x32xf32> -> vector<4x32xf32>
    %c0_454 = arith.constant 0 : index
    %c0_455 = arith.constant 0 : index
    %c0_456 = arith.constant 0 : index
    %703 = vector.load %arg10[%c0_454, %c0_455, %c0_456] : memref<3x1x32xf32, #tpu.memory_space<vmem>>, vector<1x1x32xf32>
    %704 = vector.shape_cast %703 : vector<1x1x32xf32> to vector<1x32xf32>
    %705 = vector.broadcast %704 : vector<1x32xf32> to vector<4x32xf32>
    %706 = arith.addf %702, %705 : vector<4x32xf32>
    %c1_457 = arith.constant 1 : index
    %c0_458 = arith.constant 0 : index
    %c0_459 = arith.constant 0 : index
    %707 = vector.load %arg9[%c1_457, %c0_458, %c0_459] : memref<3x32x32xf32, #tpu.memory_space<vmem>>, vector<1x32x32xf32>
    %708 = vector.shape_cast %707 : vector<1x32x32xf32> to vector<32x32xf32>
    %cst_460 = arith.constant dense<0.000000e+00> : vector<4x32xf32>
    %709 = tpu.matmul %589, %708, %cst_460 {dimension_numbers = #tpu.dot_dimension_numbers<[1], [0], [0], [1], [0, 0, 1, 1], [], []>} : vector<4x32xf32>, vector<32x32xf32>, vector<4x32xf32> -> vector<4x32xf32>
    %c1_461 = arith.constant 1 : index
    %c0_462 = arith.constant 0 : index
    %c0_463 = arith.constant 0 : index
    %710 = vector.load %arg10[%c1_461, %c0_462, %c0_463] : memref<3x1x32xf32, #tpu.memory_space<vmem>>, vector<1x1x32xf32>
    %711 = vector.shape_cast %710 : vector<1x1x32xf32> to vector<1x32xf32>
    %712 = vector.broadcast %711 : vector<1x32xf32> to vector<4x32xf32>
    %713 = arith.addf %709, %712 : vector<4x32xf32>
    %c2_464 = arith.constant 2 : index
    %c0_465 = arith.constant 0 : index
    %c0_466 = arith.constant 0 : index
    %714 = vector.load %arg9[%c2_464, %c0_465, %c0_466] : memref<3x32x32xf32, #tpu.memory_space<vmem>>, vector<1x32x32xf32>
    %715 = vector.shape_cast %714 : vector<1x32x32xf32> to vector<32x32xf32>
    %cst_467 = arith.constant dense<0.000000e+00> : vector<4x32xf32>
    %716 = tpu.matmul %589, %715, %cst_467 {dimension_numbers = #tpu.dot_dimension_numbers<[1], [0], [0], [1], [0, 0, 1, 1], [], []>} : vector<4x32xf32>, vector<32x32xf32>, vector<4x32xf32> -> vector<4x32xf32>
    %c2_468 = arith.constant 2 : index
    %c0_469 = arith.constant 0 : index
    %c0_470 = arith.constant 0 : index
    %717 = vector.load %arg10[%c2_468, %c0_469, %c0_470] : memref<3x1x32xf32, #tpu.memory_space<vmem>>, vector<1x1x32xf32>
    %718 = vector.shape_cast %717 : vector<1x1x32xf32> to vector<1x32xf32>
    %719 = vector.broadcast %718 : vector<1x32xf32> to vector<4x32xf32>
    %720 = arith.addf %716, %719 : vector<4x32xf32>
    %721 = arith.addf %689, %706 : vector<4x32xf32>
    %722 = arith.negf %721 : vector<4x32xf32>
    %723 = math.exp %722 : vector<4x32xf32>
    %cst_471 = arith.constant 1.000000e+00 : f32
    %724 = vector.broadcast %cst_471 : f32 to vector<4x32xf32>
    %725 = arith.addf %724, %723 : vector<4x32xf32>
    %726 = arith.divf %724, %725 : vector<4x32xf32>
    %727 = arith.addf %694, %713 : vector<4x32xf32>
    %728 = arith.negf %727 : vector<4x32xf32>
    %729 = math.exp %728 : vector<4x32xf32>
    %cst_472 = arith.constant 1.000000e+00 : f32
    %730 = vector.broadcast %cst_472 : f32 to vector<4x32xf32>
    %731 = arith.addf %730, %729 : vector<4x32xf32>
    %732 = arith.divf %730, %731 : vector<4x32xf32>
    %733 = arith.mulf %726, %720 : vector<4x32xf32>
    %734 = arith.addf %699, %733 : vector<4x32xf32>
    %735 = math.tanh %734 : vector<4x32xf32>
    %cst_473 = arith.constant 1.000000e+00 : f32
    %736 = vector.broadcast %cst_473 : f32 to vector<4x32xf32>
    %737 = arith.subf %736, %732 : vector<4x32xf32>
    %738 = arith.mulf %737, %735 : vector<4x32xf32>
    %739 = arith.mulf %732, %589 : vector<4x32xf32>
    %740 = arith.addf %738, %739 : vector<4x32xf32>
    %c0_474 = arith.constant 0 : index
    %c0_475 = arith.constant 0 : index
    %741 = vector.load %arg11[%c0_474, %c0_475] : memref<32x10xf32, #tpu.memory_space<vmem>>, vector<32x10xf32>
    %cst_476 = arith.constant dense<0.000000e+00> : vector<4x10xf32>
    %742 = tpu.matmul %740, %741, %cst_476 {dimension_numbers = #tpu.dot_dimension_numbers<[1], [0], [0], [1], [0, 0, 1, 1], [], []>} : vector<4x32xf32>, vector<32x10xf32>, vector<4x10xf32> -> vector<4x10xf32>
    %743 = arith.addf %742, %13 : vector<4x10xf32>
    %cst_477 = arith.constant dense<0xFF800000> : vector<4xf32>
    %744 = vector.multi_reduction <maximumf>, %743, %cst_477 [1] : vector<4x10xf32> to vector<4xf32>
    %745 = vector.shape_cast %744 : vector<4xf32> to vector<4x1xf32>
    %746 = vector.broadcast %745 : vector<4x1xf32> to vector<4x10xf32>
    %747 = arith.subf %743, %746 : vector<4x10xf32>
    %748 = vector.broadcast %745 : vector<4x1xf32> to vector<4x10xf32>
    %749 = arith.subf %743, %748 : vector<4x10xf32>
    %750 = math.exp %749 : vector<4x10xf32>
    %cst_478 = arith.constant dense<0.000000e+00> : vector<4xf32>
    %751 = vector.multi_reduction <add>, %750, %cst_478 [1] : vector<4x10xf32> to vector<4xf32>
    %752 = vector.shape_cast %751 : vector<4xf32> to vector<4x1xf32>
    %753 = math.log %752 : vector<4x1xf32>
    %754 = vector.broadcast %753 : vector<4x1xf32> to vector<4x10xf32>
    %755 = arith.subf %747, %754 : vector<4x10xf32>
    %c4 = arith.constant 4 : index
    %c0_479 = arith.constant 0 : index
    %c0_480 = arith.constant 0 : index
    %756 = vector.load %arg12[%c4, %c0_479, %c0_480] : memref<8x4x10xf32, #tpu.memory_space<vmem>>, vector<1x4x10xf32>
    %757 = vector.shape_cast %756 : vector<1x4x10xf32> to vector<4x10xf32>
    %758 = vector.shape_cast %755 : vector<4x10xf32> to vector<1x4x10xf32>
    tpu.vector_store %arg12[%c4, %c0_479, %c0_480], %758 {strides = array<i32>} : memref<8x4x10xf32, #tpu.memory_space<vmem>>, vector<1x4x10xf32>,
    %759 = vector.broadcast %745 : vector<4x1xf32> to vector<4x10xf32>
    %760 = arith.cmpf oeq, %743, %759 : vector<4x10xf32>
    %c10_i32_481 = arith.constant 10 : i32
    %761 = vector.broadcast %c10_i32_481 : i32 to vector<4x10xi32>
    %762 = arith.select %760, %2, %761 : vector<4x10xi1>, vector<4x10xi32>
    %cst_482 = arith.constant dense<2147483647> : vector<4xi32>
    %763 = vector.multi_reduction <minsi>, %762, %cst_482 [1] : vector<4x10xi32> to vector<4xi32>
    %764 = vector.shape_cast %763 : vector<4xi32> to vector<4x1xi32>
    %765 = vector.broadcast %764 : vector<4x1xi32> to vector<4x10xi32>
    %766 = arith.cmpi eq, %2, %765 : vector<4x10xi32>
    %767 = arith.extui %766 : vector<4x10xi1> to vector<4x10xi32>
    %768 = arith.sitofp %767 : vector<4x10xi32> to vector<4x10xf32>
    %c0_483 = arith.constant 0 : index
    %c0_484 = arith.constant 0 : index
    %769 = vector.load %arg3[%c0_483, %c0_484] : memref<10x32xf32, #tpu.memory_space<vmem>>, vector<10x32xf32>
    %cst_485 = arith.constant dense<0.000000e+00> : vector<4x32xf32>
    %770 = tpu.matmul %768, %769, %cst_485 {dimension_numbers = #tpu.dot_dimension_numbers<[1], [0], [0], [1], [0, 0, 1, 1], [], []>} : vector<4x10xf32>, vector<10x32xf32>, vector<4x32xf32> -> vector<4x32xf32>
    %771 = arith.negf %770 : vector<4x32xf32>
    %772 = math.exp %771 : vector<4x32xf32>
    %cst_486 = arith.constant 1.000000e+00 : f32
    %773 = vector.broadcast %cst_486 : f32 to vector<4x32xf32>
    %774 = arith.addf %773, %772 : vector<4x32xf32>
    %775 = arith.divf %773, %774 : vector<4x32xf32>
    %776 = arith.mulf %770, %775 : vector<4x32xf32>
    %c0_487 = arith.constant 0 : index
    %c0_488 = arith.constant 0 : index
    %c0_489 = arith.constant 0 : index
    %777 = vector.load %arg4[%c0_487, %c0_488, %c0_489] : memref<3x32x32xf32, #tpu.memory_space<vmem>>, vector<1x32x32xf32>
    %778 = vector.shape_cast %777 : vector<1x32x32xf32> to vector<32x32xf32>
    %cst_490 = arith.constant dense<0.000000e+00> : vector<4x32xf32>
    %779 = tpu.matmul %776, %778, %cst_490 {dimension_numbers = #tpu.dot_dimension_numbers<[1], [0], [0], [1], [0, 0, 1, 1], [], []>} : vector<4x32xf32>, vector<32x32xf32>, vector<4x32xf32> -> vector<4x32xf32>
    %780 = arith.addf %779, %8 : vector<4x32xf32>
    %c1_491 = arith.constant 1 : index
    %c0_492 = arith.constant 0 : index
    %c0_493 = arith.constant 0 : index
    %781 = vector.load %arg4[%c1_491, %c0_492, %c0_493] : memref<3x32x32xf32, #tpu.memory_space<vmem>>, vector<1x32x32xf32>
    %782 = vector.shape_cast %781 : vector<1x32x32xf32> to vector<32x32xf32>
    %cst_494 = arith.constant dense<0.000000e+00> : vector<4x32xf32>
    %783 = tpu.matmul %776, %782, %cst_494 {dimension_numbers = #tpu.dot_dimension_numbers<[1], [0], [0], [1], [0, 0, 1, 1], [], []>} : vector<4x32xf32>, vector<32x32xf32>, vector<4x32xf32> -> vector<4x32xf32>
    %784 = arith.addf %783, %10 : vector<4x32xf32>
    %c2_495 = arith.constant 2 : index
    %c0_496 = arith.constant 0 : index
    %c0_497 = arith.constant 0 : index
    %785 = vector.load %arg4[%c2_495, %c0_496, %c0_497] : memref<3x32x32xf32, #tpu.memory_space<vmem>>, vector<1x32x32xf32>
    %786 = vector.shape_cast %785 : vector<1x32x32xf32> to vector<32x32xf32>
    %cst_498 = arith.constant dense<0.000000e+00> : vector<4x32xf32>
    %787 = tpu.matmul %776, %786, %cst_498 {dimension_numbers = #tpu.dot_dimension_numbers<[1], [0], [0], [1], [0, 0, 1, 1], [], []>} : vector<4x32xf32>, vector<32x32xf32>, vector<4x32xf32> -> vector<4x32xf32>
    %788 = arith.addf %787, %12 : vector<4x32xf32>
    %c0_499 = arith.constant 0 : index
    %c0_500 = arith.constant 0 : index
    %c0_501 = arith.constant 0 : index
    %789 = vector.load %arg5[%c0_499, %c0_500, %c0_501] : memref<3x32x32xf32, #tpu.memory_space<vmem>>, vector<1x32x32xf32>
    %790 = vector.shape_cast %789 : vector<1x32x32xf32> to vector<32x32xf32>
    %cst_502 = arith.constant dense<0.000000e+00> : vector<4x32xf32>
    %791 = tpu.matmul %678, %790, %cst_502 {dimension_numbers = #tpu.dot_dimension_numbers<[1], [0], [0], [1], [0, 0, 1, 1], [], []>} : vector<4x32xf32>, vector<32x32xf32>, vector<4x32xf32> -> vector<4x32xf32>
    %c0_503 = arith.constant 0 : index
    %c0_504 = arith.constant 0 : index
    %c0_505 = arith.constant 0 : index
    %792 = vector.load %arg6[%c0_503, %c0_504, %c0_505] : memref<3x1x32xf32, #tpu.memory_space<vmem>>, vector<1x1x32xf32>
    %793 = vector.shape_cast %792 : vector<1x1x32xf32> to vector<1x32xf32>
    %794 = vector.broadcast %793 : vector<1x32xf32> to vector<4x32xf32>
    %795 = arith.addf %791, %794 : vector<4x32xf32>
    %c1_506 = arith.constant 1 : index
    %c0_507 = arith.constant 0 : index
    %c0_508 = arith.constant 0 : index
    %796 = vector.load %arg5[%c1_506, %c0_507, %c0_508] : memref<3x32x32xf32, #tpu.memory_space<vmem>>, vector<1x32x32xf32>
    %797 = vector.shape_cast %796 : vector<1x32x32xf32> to vector<32x32xf32>
    %cst_509 = arith.constant dense<0.000000e+00> : vector<4x32xf32>
    %798 = tpu.matmul %678, %797, %cst_509 {dimension_numbers = #tpu.dot_dimension_numbers<[1], [0], [0], [1], [0, 0, 1, 1], [], []>} : vector<4x32xf32>, vector<32x32xf32>, vector<4x32xf32> -> vector<4x32xf32>
    %c1_510 = arith.constant 1 : index
    %c0_511 = arith.constant 0 : index
    %c0_512 = arith.constant 0 : index
    %799 = vector.load %arg6[%c1_510, %c0_511, %c0_512] : memref<3x1x32xf32, #tpu.memory_space<vmem>>, vector<1x1x32xf32>
    %800 = vector.shape_cast %799 : vector<1x1x32xf32> to vector<1x32xf32>
    %801 = vector.broadcast %800 : vector<1x32xf32> to vector<4x32xf32>
    %802 = arith.addf %798, %801 : vector<4x32xf32>
    %c2_513 = arith.constant 2 : index
    %c0_514 = arith.constant 0 : index
    %c0_515 = arith.constant 0 : index
    %803 = vector.load %arg5[%c2_513, %c0_514, %c0_515] : memref<3x32x32xf32, #tpu.memory_space<vmem>>, vector<1x32x32xf32>
    %804 = vector.shape_cast %803 : vector<1x32x32xf32> to vector<32x32xf32>
    %cst_516 = arith.constant dense<0.000000e+00> : vector<4x32xf32>
    %805 = tpu.matmul %678, %804, %cst_516 {dimension_numbers = #tpu.dot_dimension_numbers<[1], [0], [0], [1], [0, 0, 1, 1], [], []>} : vector<4x32xf32>, vector<32x32xf32>, vector<4x32xf32> -> vector<4x32xf32>
    %c2_517 = arith.constant 2 : index
    %c0_518 = arith.constant 0 : index
    %c0_519 = arith.constant 0 : index
    %806 = vector.load %arg6[%c2_517, %c0_518, %c0_519] : memref<3x1x32xf32, #tpu.memory_space<vmem>>, vector<1x1x32xf32>
    %807 = vector.shape_cast %806 : vector<1x1x32xf32> to vector<1x32xf32>
    %808 = vector.broadcast %807 : vector<1x32xf32> to vector<4x32xf32>
    %809 = arith.addf %805, %808 : vector<4x32xf32>
    %810 = arith.addf %780, %795 : vector<4x32xf32>
    %811 = arith.negf %810 : vector<4x32xf32>
    %812 = math.exp %811 : vector<4x32xf32>
    %cst_520 = arith.constant 1.000000e+00 : f32
    %813 = vector.broadcast %cst_520 : f32 to vector<4x32xf32>
    %814 = arith.addf %813, %812 : vector<4x32xf32>
    %815 = arith.divf %813, %814 : vector<4x32xf32>
    %816 = arith.addf %784, %802 : vector<4x32xf32>
    %817 = arith.negf %816 : vector<4x32xf32>
    %818 = math.exp %817 : vector<4x32xf32>
    %cst_521 = arith.constant 1.000000e+00 : f32
    %819 = vector.broadcast %cst_521 : f32 to vector<4x32xf32>
    %820 = arith.addf %819, %818 : vector<4x32xf32>
    %821 = arith.divf %819, %820 : vector<4x32xf32>
    %822 = arith.mulf %815, %809 : vector<4x32xf32>
    %823 = arith.addf %788, %822 : vector<4x32xf32>
    %824 = math.tanh %823 : vector<4x32xf32>
    %cst_522 = arith.constant 1.000000e+00 : f32
    %825 = vector.broadcast %cst_522 : f32 to vector<4x32xf32>
    %826 = arith.subf %825, %821 : vector<4x32xf32>
    %827 = arith.mulf %826, %824 : vector<4x32xf32>
    %828 = arith.mulf %821, %678 : vector<4x32xf32>
    %829 = arith.addf %827, %828 : vector<4x32xf32>
    %c0_523 = arith.constant 0 : index
    %c0_524 = arith.constant 0 : index
    %c0_525 = arith.constant 0 : index
    %830 = vector.load %arg8[%c0_523, %c0_524, %c0_525] : memref<3x1x32xf32, #tpu.memory_space<vmem>>, vector<1x1x32xf32>
    %831 = vector.shape_cast %830 : vector<1x1x32xf32> to vector<1x32xf32>
    %c1_526 = arith.constant 1 : index
    %c0_527 = arith.constant 0 : index
    %c0_528 = arith.constant 0 : index
    %832 = vector.load %arg8[%c1_526, %c0_527, %c0_528] : memref<3x1x32xf32, #tpu.memory_space<vmem>>, vector<1x1x32xf32>
    %833 = vector.shape_cast %832 : vector<1x1x32xf32> to vector<1x32xf32>
    %c2_529 = arith.constant 2 : index
    %c0_530 = arith.constant 0 : index
    %c0_531 = arith.constant 0 : index
    %834 = vector.load %arg8[%c2_529, %c0_530, %c0_531] : memref<3x1x32xf32, #tpu.memory_space<vmem>>, vector<1x1x32xf32>
    %835 = vector.shape_cast %834 : vector<1x1x32xf32> to vector<1x32xf32>
    %c0_532 = arith.constant 0 : index
    %c0_533 = arith.constant 0 : index
    %c0_534 = arith.constant 0 : index
    %836 = vector.load %arg7[%c0_532, %c0_533, %c0_534] : memref<3x32x32xf32, #tpu.memory_space<vmem>>, vector<1x32x32xf32>
    %837 = vector.shape_cast %836 : vector<1x32x32xf32> to vector<32x32xf32>
    %cst_535 = arith.constant dense<0.000000e+00> : vector<4x32xf32>
    %838 = tpu.matmul %829, %837, %cst_535 {dimension_numbers = #tpu.dot_dimension_numbers<[1], [0], [0], [1], [0, 0, 1, 1], [], []>} : vector<4x32xf32>, vector<32x32xf32>, vector<4x32xf32> -> vector<4x32xf32>
    %839 = vector.broadcast %831 : vector<1x32xf32> to vector<4x32xf32>
    %840 = arith.addf %838, %839 : vector<4x32xf32>
    %c1_536 = arith.constant 1 : index
    %c0_537 = arith.constant 0 : index
    %c0_538 = arith.constant 0 : index
    %841 = vector.load %arg7[%c1_536, %c0_537, %c0_538] : memref<3x32x32xf32, #tpu.memory_space<vmem>>, vector<1x32x32xf32>
    %842 = vector.shape_cast %841 : vector<1x32x32xf32> to vector<32x32xf32>
    %cst_539 = arith.constant dense<0.000000e+00> : vector<4x32xf32>
    %843 = tpu.matmul %829, %842, %cst_539 {dimension_numbers = #tpu.dot_dimension_numbers<[1], [0], [0], [1], [0, 0, 1, 1], [], []>} : vector<4x32xf32>, vector<32x32xf32>, vector<4x32xf32> -> vector<4x32xf32>
    %844 = vector.broadcast %833 : vector<1x32xf32> to vector<4x32xf32>
    %845 = arith.addf %843, %844 : vector<4x32xf32>
    %c2_540 = arith.constant 2 : index
    %c0_541 = arith.constant 0 : index
    %c0_542 = arith.constant 0 : index
    %846 = vector.load %arg7[%c2_540, %c0_541, %c0_542] : memref<3x32x32xf32, #tpu.memory_space<vmem>>, vector<1x32x32xf32>
    %847 = vector.shape_cast %846 : vector<1x32x32xf32> to vector<32x32xf32>
    %cst_543 = arith.constant dense<0.000000e+00> : vector<4x32xf32>
    %848 = tpu.matmul %829, %847, %cst_543 {dimension_numbers = #tpu.dot_dimension_numbers<[1], [0], [0], [1], [0, 0, 1, 1], [], []>} : vector<4x32xf32>, vector<32x32xf32>, vector<4x32xf32> -> vector<4x32xf32>
    %849 = vector.broadcast %835 : vector<1x32xf32> to vector<4x32xf32>
    %850 = arith.addf %848, %849 : vector<4x32xf32>
    %c0_544 = arith.constant 0 : index
    %c0_545 = arith.constant 0 : index
    %c0_546 = arith.constant 0 : index
    %851 = vector.load %arg9[%c0_544, %c0_545, %c0_546] : memref<3x32x32xf32, #tpu.memory_space<vmem>>, vector<1x32x32xf32>
    %852 = vector.shape_cast %851 : vector<1x32x32xf32> to vector<32x32xf32>
    %cst_547 = arith.constant dense<0.000000e+00> : vector<4x32xf32>
    %853 = tpu.matmul %740, %852, %cst_547 {dimension_numbers = #tpu.dot_dimension_numbers<[1], [0], [0], [1], [0, 0, 1, 1], [], []>} : vector<4x32xf32>, vector<32x32xf32>, vector<4x32xf32> -> vector<4x32xf32>
    %c0_548 = arith.constant 0 : index
    %c0_549 = arith.constant 0 : index
    %c0_550 = arith.constant 0 : index
    %854 = vector.load %arg10[%c0_548, %c0_549, %c0_550] : memref<3x1x32xf32, #tpu.memory_space<vmem>>, vector<1x1x32xf32>
    %855 = vector.shape_cast %854 : vector<1x1x32xf32> to vector<1x32xf32>
    %856 = vector.broadcast %855 : vector<1x32xf32> to vector<4x32xf32>
    %857 = arith.addf %853, %856 : vector<4x32xf32>
    %c1_551 = arith.constant 1 : index
    %c0_552 = arith.constant 0 : index
    %c0_553 = arith.constant 0 : index
    %858 = vector.load %arg9[%c1_551, %c0_552, %c0_553] : memref<3x32x32xf32, #tpu.memory_space<vmem>>, vector<1x32x32xf32>
    %859 = vector.shape_cast %858 : vector<1x32x32xf32> to vector<32x32xf32>
    %cst_554 = arith.constant dense<0.000000e+00> : vector<4x32xf32>
    %860 = tpu.matmul %740, %859, %cst_554 {dimension_numbers = #tpu.dot_dimension_numbers<[1], [0], [0], [1], [0, 0, 1, 1], [], []>} : vector<4x32xf32>, vector<32x32xf32>, vector<4x32xf32> -> vector<4x32xf32>
    %c1_555 = arith.constant 1 : index
    %c0_556 = arith.constant 0 : index
    %c0_557 = arith.constant 0 : index
    %861 = vector.load %arg10[%c1_555, %c0_556, %c0_557] : memref<3x1x32xf32, #tpu.memory_space<vmem>>, vector<1x1x32xf32>
    %862 = vector.shape_cast %861 : vector<1x1x32xf32> to vector<1x32xf32>
    %863 = vector.broadcast %862 : vector<1x32xf32> to vector<4x32xf32>
    %864 = arith.addf %860, %863 : vector<4x32xf32>
    %c2_558 = arith.constant 2 : index
    %c0_559 = arith.constant 0 : index
    %c0_560 = arith.constant 0 : index
    %865 = vector.load %arg9[%c2_558, %c0_559, %c0_560] : memref<3x32x32xf32, #tpu.memory_space<vmem>>, vector<1x32x32xf32>
    %866 = vector.shape_cast %865 : vector<1x32x32xf32> to vector<32x32xf32>
    %cst_561 = arith.constant dense<0.000000e+00> : vector<4x32xf32>
    %867 = tpu.matmul %740, %866, %cst_561 {dimension_numbers = #tpu.dot_dimension_numbers<[1], [0], [0], [1], [0, 0, 1, 1], [], []>} : vector<4x32xf32>, vector<32x32xf32>, vector<4x32xf32> -> vector<4x32xf32>
    %c2_562 = arith.constant 2 : index
    %c0_563 = arith.constant 0 : index
    %c0_564 = arith.constant 0 : index
    %868 = vector.load %arg10[%c2_562, %c0_563, %c0_564] : memref<3x1x32xf32, #tpu.memory_space<vmem>>, vector<1x1x32xf32>
    %869 = vector.shape_cast %868 : vector<1x1x32xf32> to vector<1x32xf32>
    %870 = vector.broadcast %869 : vector<1x32xf32> to vector<4x32xf32>
    %871 = arith.addf %867, %870 : vector<4x32xf32>
    %872 = arith.addf %840, %857 : vector<4x32xf32>
    %873 = arith.negf %872 : vector<4x32xf32>
    %874 = math.exp %873 : vector<4x32xf32>
    %cst_565 = arith.constant 1.000000e+00 : f32
    %875 = vector.broadcast %cst_565 : f32 to vector<4x32xf32>
    %876 = arith.addf %875, %874 : vector<4x32xf32>
    %877 = arith.divf %875, %876 : vector<4x32xf32>
    %878 = arith.addf %845, %864 : vector<4x32xf32>
    %879 = arith.negf %878 : vector<4x32xf32>
    %880 = math.exp %879 : vector<4x32xf32>
    %cst_566 = arith.constant 1.000000e+00 : f32
    %881 = vector.broadcast %cst_566 : f32 to vector<4x32xf32>
    %882 = arith.addf %881, %880 : vector<4x32xf32>
    %883 = arith.divf %881, %882 : vector<4x32xf32>
    %884 = arith.mulf %877, %871 : vector<4x32xf32>
    %885 = arith.addf %850, %884 : vector<4x32xf32>
    %886 = math.tanh %885 : vector<4x32xf32>
    %cst_567 = arith.constant 1.000000e+00 : f32
    %887 = vector.broadcast %cst_567 : f32 to vector<4x32xf32>
    %888 = arith.subf %887, %883 : vector<4x32xf32>
    %889 = arith.mulf %888, %886 : vector<4x32xf32>
    %890 = arith.mulf %883, %740 : vector<4x32xf32>
    %891 = arith.addf %889, %890 : vector<4x32xf32>
    %c0_568 = arith.constant 0 : index
    %c0_569 = arith.constant 0 : index
    %892 = vector.load %arg11[%c0_568, %c0_569] : memref<32x10xf32, #tpu.memory_space<vmem>>, vector<32x10xf32>
    %cst_570 = arith.constant dense<0.000000e+00> : vector<4x10xf32>
    %893 = tpu.matmul %891, %892, %cst_570 {dimension_numbers = #tpu.dot_dimension_numbers<[1], [0], [0], [1], [0, 0, 1, 1], [], []>} : vector<4x32xf32>, vector<32x10xf32>, vector<4x10xf32> -> vector<4x10xf32>
    %894 = arith.addf %893, %13 : vector<4x10xf32>
    %cst_571 = arith.constant dense<0xFF800000> : vector<4xf32>
    %895 = vector.multi_reduction <maximumf>, %894, %cst_571 [1] : vector<4x10xf32> to vector<4xf32>
    %896 = vector.shape_cast %895 : vector<4xf32> to vector<4x1xf32>
    %897 = vector.broadcast %896 : vector<4x1xf32> to vector<4x10xf32>
    %898 = arith.subf %894, %897 : vector<4x10xf32>
    %899 = vector.broadcast %896 : vector<4x1xf32> to vector<4x10xf32>
    %900 = arith.subf %894, %899 : vector<4x10xf32>
    %901 = math.exp %900 : vector<4x10xf32>
    %cst_572 = arith.constant dense<0.000000e+00> : vector<4xf32>
    %902 = vector.multi_reduction <add>, %901, %cst_572 [1] : vector<4x10xf32> to vector<4xf32>
    %903 = vector.shape_cast %902 : vector<4xf32> to vector<4x1xf32>
    %904 = math.log %903 : vector<4x1xf32>
    %905 = vector.broadcast %904 : vector<4x1xf32> to vector<4x10xf32>
    %906 = arith.subf %898, %905 : vector<4x10xf32>
    %c5 = arith.constant 5 : index
    %c0_573 = arith.constant 0 : index
    %c0_574 = arith.constant 0 : index
    %907 = vector.load %arg12[%c5, %c0_573, %c0_574] : memref<8x4x10xf32, #tpu.memory_space<vmem>>, vector<1x4x10xf32>
    %908 = vector.shape_cast %907 : vector<1x4x10xf32> to vector<4x10xf32>
    %909 = vector.shape_cast %906 : vector<4x10xf32> to vector<1x4x10xf32>
    tpu.vector_store %arg12[%c5, %c0_573, %c0_574], %909 {strides = array<i32>} : memref<8x4x10xf32, #tpu.memory_space<vmem>>, vector<1x4x10xf32>,
    %910 = vector.broadcast %896 : vector<4x1xf32> to vector<4x10xf32>
    %911 = arith.cmpf oeq, %894, %910 : vector<4x10xf32>
    %c10_i32_575 = arith.constant 10 : i32
    %912 = vector.broadcast %c10_i32_575 : i32 to vector<4x10xi32>
    %913 = arith.select %911, %2, %912 : vector<4x10xi1>, vector<4x10xi32>
    %cst_576 = arith.constant dense<2147483647> : vector<4xi32>
    %914 = vector.multi_reduction <minsi>, %913, %cst_576 [1] : vector<4x10xi32> to vector<4xi32>
    %915 = vector.shape_cast %914 : vector<4xi32> to vector<4x1xi32>
    %916 = vector.broadcast %915 : vector<4x1xi32> to vector<4x10xi32>
    %917 = arith.cmpi eq, %2, %916 : vector<4x10xi32>
    %918 = arith.extui %917 : vector<4x10xi1> to vector<4x10xi32>
    %919 = arith.sitofp %918 : vector<4x10xi32> to vector<4x10xf32>
    %c0_577 = arith.constant 0 : index
    %c0_578 = arith.constant 0 : index
    %920 = vector.load %arg3[%c0_577, %c0_578] : memref<10x32xf32, #tpu.memory_space<vmem>>, vector<10x32xf32>
    %cst_579 = arith.constant dense<0.000000e+00> : vector<4x32xf32>
    %921 = tpu.matmul %919, %920, %cst_579 {dimension_numbers = #tpu.dot_dimension_numbers<[1], [0], [0], [1], [0, 0, 1, 1], [], []>} : vector<4x10xf32>, vector<10x32xf32>, vector<4x32xf32> -> vector<4x32xf32>
    %922 = arith.negf %921 : vector<4x32xf32>
    %923 = math.exp %922 : vector<4x32xf32>
    %cst_580 = arith.constant 1.000000e+00 : f32
    %924 = vector.broadcast %cst_580 : f32 to vector<4x32xf32>
    %925 = arith.addf %924, %923 : vector<4x32xf32>
    %926 = arith.divf %924, %925 : vector<4x32xf32>
    %927 = arith.mulf %921, %926 : vector<4x32xf32>
    %c0_581 = arith.constant 0 : index
    %c0_582 = arith.constant 0 : index
    %c0_583 = arith.constant 0 : index
    %928 = vector.load %arg4[%c0_581, %c0_582, %c0_583] : memref<3x32x32xf32, #tpu.memory_space<vmem>>, vector<1x32x32xf32>
    %929 = vector.shape_cast %928 : vector<1x32x32xf32> to vector<32x32xf32>
    %cst_584 = arith.constant dense<0.000000e+00> : vector<4x32xf32>
    %930 = tpu.matmul %927, %929, %cst_584 {dimension_numbers = #tpu.dot_dimension_numbers<[1], [0], [0], [1], [0, 0, 1, 1], [], []>} : vector<4x32xf32>, vector<32x32xf32>, vector<4x32xf32> -> vector<4x32xf32>
    %931 = arith.addf %930, %8 : vector<4x32xf32>
    %c1_585 = arith.constant 1 : index
    %c0_586 = arith.constant 0 : index
    %c0_587 = arith.constant 0 : index
    %932 = vector.load %arg4[%c1_585, %c0_586, %c0_587] : memref<3x32x32xf32, #tpu.memory_space<vmem>>, vector<1x32x32xf32>
    %933 = vector.shape_cast %932 : vector<1x32x32xf32> to vector<32x32xf32>
    %cst_588 = arith.constant dense<0.000000e+00> : vector<4x32xf32>
    %934 = tpu.matmul %927, %933, %cst_588 {dimension_numbers = #tpu.dot_dimension_numbers<[1], [0], [0], [1], [0, 0, 1, 1], [], []>} : vector<4x32xf32>, vector<32x32xf32>, vector<4x32xf32> -> vector<4x32xf32>
    %935 = arith.addf %934, %10 : vector<4x32xf32>
    %c2_589 = arith.constant 2 : index
    %c0_590 = arith.constant 0 : index
    %c0_591 = arith.constant 0 : index
    %936 = vector.load %arg4[%c2_589, %c0_590, %c0_591] : memref<3x32x32xf32, #tpu.memory_space<vmem>>, vector<1x32x32xf32>
    %937 = vector.shape_cast %936 : vector<1x32x32xf32> to vector<32x32xf32>
    %cst_592 = arith.constant dense<0.000000e+00> : vector<4x32xf32>
    %938 = tpu.matmul %927, %937, %cst_592 {dimension_numbers = #tpu.dot_dimension_numbers<[1], [0], [0], [1], [0, 0, 1, 1], [], []>} : vector<4x32xf32>, vector<32x32xf32>, vector<4x32xf32> -> vector<4x32xf32>
    %939 = arith.addf %938, %12 : vector<4x32xf32>
    %c0_593 = arith.constant 0 : index
    %c0_594 = arith.constant 0 : index
    %c0_595 = arith.constant 0 : index
    %940 = vector.load %arg5[%c0_593, %c0_594, %c0_595] : memref<3x32x32xf32, #tpu.memory_space<vmem>>, vector<1x32x32xf32>
    %941 = vector.shape_cast %940 : vector<1x32x32xf32> to vector<32x32xf32>
    %cst_596 = arith.constant dense<0.000000e+00> : vector<4x32xf32>
    %942 = tpu.matmul %829, %941, %cst_596 {dimension_numbers = #tpu.dot_dimension_numbers<[1], [0], [0], [1], [0, 0, 1, 1], [], []>} : vector<4x32xf32>, vector<32x32xf32>, vector<4x32xf32> -> vector<4x32xf32>
    %c0_597 = arith.constant 0 : index
    %c0_598 = arith.constant 0 : index
    %c0_599 = arith.constant 0 : index
    %943 = vector.load %arg6[%c0_597, %c0_598, %c0_599] : memref<3x1x32xf32, #tpu.memory_space<vmem>>, vector<1x1x32xf32>
    %944 = vector.shape_cast %943 : vector<1x1x32xf32> to vector<1x32xf32>
    %945 = vector.broadcast %944 : vector<1x32xf32> to vector<4x32xf32>
    %946 = arith.addf %942, %945 : vector<4x32xf32>
    %c1_600 = arith.constant 1 : index
    %c0_601 = arith.constant 0 : index
    %c0_602 = arith.constant 0 : index
    %947 = vector.load %arg5[%c1_600, %c0_601, %c0_602] : memref<3x32x32xf32, #tpu.memory_space<vmem>>, vector<1x32x32xf32>
    %948 = vector.shape_cast %947 : vector<1x32x32xf32> to vector<32x32xf32>
    %cst_603 = arith.constant dense<0.000000e+00> : vector<4x32xf32>
    %949 = tpu.matmul %829, %948, %cst_603 {dimension_numbers = #tpu.dot_dimension_numbers<[1], [0], [0], [1], [0, 0, 1, 1], [], []>} : vector<4x32xf32>, vector<32x32xf32>, vector<4x32xf32> -> vector<4x32xf32>
    %c1_604 = arith.constant 1 : index
    %c0_605 = arith.constant 0 : index
    %c0_606 = arith.constant 0 : index
    %950 = vector.load %arg6[%c1_604, %c0_605, %c0_606] : memref<3x1x32xf32, #tpu.memory_space<vmem>>, vector<1x1x32xf32>
    %951 = vector.shape_cast %950 : vector<1x1x32xf32> to vector<1x32xf32>
    %952 = vector.broadcast %951 : vector<1x32xf32> to vector<4x32xf32>
    %953 = arith.addf %949, %952 : vector<4x32xf32>
    %c2_607 = arith.constant 2 : index
    %c0_608 = arith.constant 0 : index
    %c0_609 = arith.constant 0 : index
    %954 = vector.load %arg5[%c2_607, %c0_608, %c0_609] : memref<3x32x32xf32, #tpu.memory_space<vmem>>, vector<1x32x32xf32>
    %955 = vector.shape_cast %954 : vector<1x32x32xf32> to vector<32x32xf32>
    %cst_610 = arith.constant dense<0.000000e+00> : vector<4x32xf32>
    %956 = tpu.matmul %829, %955, %cst_610 {dimension_numbers = #tpu.dot_dimension_numbers<[1], [0], [0], [1], [0, 0, 1, 1], [], []>} : vector<4x32xf32>, vector<32x32xf32>, vector<4x32xf32> -> vector<4x32xf32>
    %c2_611 = arith.constant 2 : index
    %c0_612 = arith.constant 0 : index
    %c0_613 = arith.constant 0 : index
    %957 = vector.load %arg6[%c2_611, %c0_612, %c0_613] : memref<3x1x32xf32, #tpu.memory_space<vmem>>, vector<1x1x32xf32>
    %958 = vector.shape_cast %957 : vector<1x1x32xf32> to vector<1x32xf32>
    %959 = vector.broadcast %958 : vector<1x32xf32> to vector<4x32xf32>
    %960 = arith.addf %956, %959 : vector<4x32xf32>
    %961 = arith.addf %931, %946 : vector<4x32xf32>
    %962 = arith.negf %961 : vector<4x32xf32>
    %963 = math.exp %962 : vector<4x32xf32>
    %cst_614 = arith.constant 1.000000e+00 : f32
    %964 = vector.broadcast %cst_614 : f32 to vector<4x32xf32>
    %965 = arith.addf %964, %963 : vector<4x32xf32>
    %966 = arith.divf %964, %965 : vector<4x32xf32>
    %967 = arith.addf %935, %953 : vector<4x32xf32>
    %968 = arith.negf %967 : vector<4x32xf32>
    %969 = math.exp %968 : vector<4x32xf32>
    %cst_615 = arith.constant 1.000000e+00 : f32
    %970 = vector.broadcast %cst_615 : f32 to vector<4x32xf32>
    %971 = arith.addf %970, %969 : vector<4x32xf32>
    %972 = arith.divf %970, %971 : vector<4x32xf32>
    %973 = arith.mulf %966, %960 : vector<4x32xf32>
    %974 = arith.addf %939, %973 : vector<4x32xf32>
    %975 = math.tanh %974 : vector<4x32xf32>
    %cst_616 = arith.constant 1.000000e+00 : f32
    %976 = vector.broadcast %cst_616 : f32 to vector<4x32xf32>
    %977 = arith.subf %976, %972 : vector<4x32xf32>
    %978 = arith.mulf %977, %975 : vector<4x32xf32>
    %979 = arith.mulf %972, %829 : vector<4x32xf32>
    %980 = arith.addf %978, %979 : vector<4x32xf32>
    %c0_617 = arith.constant 0 : index
    %c0_618 = arith.constant 0 : index
    %c0_619 = arith.constant 0 : index
    %981 = vector.load %arg8[%c0_617, %c0_618, %c0_619] : memref<3x1x32xf32, #tpu.memory_space<vmem>>, vector<1x1x32xf32>
    %982 = vector.shape_cast %981 : vector<1x1x32xf32> to vector<1x32xf32>
    %c1_620 = arith.constant 1 : index
    %c0_621 = arith.constant 0 : index
    %c0_622 = arith.constant 0 : index
    %983 = vector.load %arg8[%c1_620, %c0_621, %c0_622] : memref<3x1x32xf32, #tpu.memory_space<vmem>>, vector<1x1x32xf32>
    %984 = vector.shape_cast %983 : vector<1x1x32xf32> to vector<1x32xf32>
    %c2_623 = arith.constant 2 : index
    %c0_624 = arith.constant 0 : index
    %c0_625 = arith.constant 0 : index
    %985 = vector.load %arg8[%c2_623, %c0_624, %c0_625] : memref<3x1x32xf32, #tpu.memory_space<vmem>>, vector<1x1x32xf32>
    %986 = vector.shape_cast %985 : vector<1x1x32xf32> to vector<1x32xf32>
    %c0_626 = arith.constant 0 : index
    %c0_627 = arith.constant 0 : index
    %c0_628 = arith.constant 0 : index
    %987 = vector.load %arg7[%c0_626, %c0_627, %c0_628] : memref<3x32x32xf32, #tpu.memory_space<vmem>>, vector<1x32x32xf32>
    %988 = vector.shape_cast %987 : vector<1x32x32xf32> to vector<32x32xf32>
    %cst_629 = arith.constant dense<0.000000e+00> : vector<4x32xf32>
    %989 = tpu.matmul %980, %988, %cst_629 {dimension_numbers = #tpu.dot_dimension_numbers<[1], [0], [0], [1], [0, 0, 1, 1], [], []>} : vector<4x32xf32>, vector<32x32xf32>, vector<4x32xf32> -> vector<4x32xf32>
    %990 = vector.broadcast %982 : vector<1x32xf32> to vector<4x32xf32>
    %991 = arith.addf %989, %990 : vector<4x32xf32>
    %c1_630 = arith.constant 1 : index
    %c0_631 = arith.constant 0 : index
    %c0_632 = arith.constant 0 : index
    %992 = vector.load %arg7[%c1_630, %c0_631, %c0_632] : memref<3x32x32xf32, #tpu.memory_space<vmem>>, vector<1x32x32xf32>
    %993 = vector.shape_cast %992 : vector<1x32x32xf32> to vector<32x32xf32>
    %cst_633 = arith.constant dense<0.000000e+00> : vector<4x32xf32>
    %994 = tpu.matmul %980, %993, %cst_633 {dimension_numbers = #tpu.dot_dimension_numbers<[1], [0], [0], [1], [0, 0, 1, 1], [], []>} : vector<4x32xf32>, vector<32x32xf32>, vector<4x32xf32> -> vector<4x32xf32>
    %995 = vector.broadcast %984 : vector<1x32xf32> to vector<4x32xf32>
    %996 = arith.addf %994, %995 : vector<4x32xf32>
    %c2_634 = arith.constant 2 : index
    %c0_635 = arith.constant 0 : index
    %c0_636 = arith.constant 0 : index
    %997 = vector.load %arg7[%c2_634, %c0_635, %c0_636] : memref<3x32x32xf32, #tpu.memory_space<vmem>>, vector<1x32x32xf32>
    %998 = vector.shape_cast %997 : vector<1x32x32xf32> to vector<32x32xf32>
    %cst_637 = arith.constant dense<0.000000e+00> : vector<4x32xf32>
    %999 = tpu.matmul %980, %998, %cst_637 {dimension_numbers = #tpu.dot_dimension_numbers<[1], [0], [0], [1], [0, 0, 1, 1], [], []>} : vector<4x32xf32>, vector<32x32xf32>, vector<4x32xf32> -> vector<4x32xf32>
    %1000 = vector.broadcast %986 : vector<1x32xf32> to vector<4x32xf32>
    %1001 = arith.addf %999, %1000 : vector<4x32xf32>
    %c0_638 = arith.constant 0 : index
    %c0_639 = arith.constant 0 : index
    %c0_640 = arith.constant 0 : index
    %1002 = vector.load %arg9[%c0_638, %c0_639, %c0_640] : memref<3x32x32xf32, #tpu.memory_space<vmem>>, vector<1x32x32xf32>
    %1003 = vector.shape_cast %1002 : vector<1x32x32xf32> to vector<32x32xf32>
    %cst_641 = arith.constant dense<0.000000e+00> : vector<4x32xf32>
    %1004 = tpu.matmul %891, %1003, %cst_641 {dimension_numbers = #tpu.dot_dimension_numbers<[1], [0], [0], [1], [0, 0, 1, 1], [], []>} : vector<4x32xf32>, vector<32x32xf32>, vector<4x32xf32> -> vector<4x32xf32>
    %c0_642 = arith.constant 0 : index
    %c0_643 = arith.constant 0 : index
    %c0_644 = arith.constant 0 : index
    %1005 = vector.load %arg10[%c0_642, %c0_643, %c0_644] : memref<3x1x32xf32, #tpu.memory_space<vmem>>, vector<1x1x32xf32>
    %1006 = vector.shape_cast %1005 : vector<1x1x32xf32> to vector<1x32xf32>
    %1007 = vector.broadcast %1006 : vector<1x32xf32> to vector<4x32xf32>
    %1008 = arith.addf %1004, %1007 : vector<4x32xf32>
    %c1_645 = arith.constant 1 : index
    %c0_646 = arith.constant 0 : index
    %c0_647 = arith.constant 0 : index
    %1009 = vector.load %arg9[%c1_645, %c0_646, %c0_647] : memref<3x32x32xf32, #tpu.memory_space<vmem>>, vector<1x32x32xf32>
    %1010 = vector.shape_cast %1009 : vector<1x32x32xf32> to vector<32x32xf32>
    %cst_648 = arith.constant dense<0.000000e+00> : vector<4x32xf32>
    %1011 = tpu.matmul %891, %1010, %cst_648 {dimension_numbers = #tpu.dot_dimension_numbers<[1], [0], [0], [1], [0, 0, 1, 1], [], []>} : vector<4x32xf32>, vector<32x32xf32>, vector<4x32xf32> -> vector<4x32xf32>
    %c1_649 = arith.constant 1 : index
    %c0_650 = arith.constant 0 : index
    %c0_651 = arith.constant 0 : index
    %1012 = vector.load %arg10[%c1_649, %c0_650, %c0_651] : memref<3x1x32xf32, #tpu.memory_space<vmem>>, vector<1x1x32xf32>
    %1013 = vector.shape_cast %1012 : vector<1x1x32xf32> to vector<1x32xf32>
    %1014 = vector.broadcast %1013 : vector<1x32xf32> to vector<4x32xf32>
    %1015 = arith.addf %1011, %1014 : vector<4x32xf32>
    %c2_652 = arith.constant 2 : index
    %c0_653 = arith.constant 0 : index
    %c0_654 = arith.constant 0 : index
    %1016 = vector.load %arg9[%c2_652, %c0_653, %c0_654] : memref<3x32x32xf32, #tpu.memory_space<vmem>>, vector<1x32x32xf32>
    %1017 = vector.shape_cast %1016 : vector<1x32x32xf32> to vector<32x32xf32>
    %cst_655 = arith.constant dense<0.000000e+00> : vector<4x32xf32>
    %1018 = tpu.matmul %891, %1017, %cst_655 {dimension_numbers = #tpu.dot_dimension_numbers<[1], [0], [0], [1], [0, 0, 1, 1], [], []>} : vector<4x32xf32>, vector<32x32xf32>, vector<4x32xf32> -> vector<4x32xf32>
    %c2_656 = arith.constant 2 : index
    %c0_657 = arith.constant 0 : index
    %c0_658 = arith.constant 0 : index
    %1019 = vector.load %arg10[%c2_656, %c0_657, %c0_658] : memref<3x1x32xf32, #tpu.memory_space<vmem>>, vector<1x1x32xf32>
    %1020 = vector.shape_cast %1019 : vector<1x1x32xf32> to vector<1x32xf32>
    %1021 = vector.broadcast %1020 : vector<1x32xf32> to vector<4x32xf32>
    %1022 = arith.addf %1018, %1021 : vector<4x32xf32>
    %1023 = arith.addf %991, %1008 : vector<4x32xf32>
    %1024 = arith.negf %1023 : vector<4x32xf32>
    %1025 = math.exp %1024 : vector<4x32xf32>
    %cst_659 = arith.constant 1.000000e+00 : f32
    %1026 = vector.broadcast %cst_659 : f32 to vector<4x32xf32>
    %1027 = arith.addf %1026, %1025 : vector<4x32xf32>
    %1028 = arith.divf %1026, %1027 : vector<4x32xf32>
    %1029 = arith.addf %996, %1015 : vector<4x32xf32>
    %1030 = arith.negf %1029 : vector<4x32xf32>
    %1031 = math.exp %1030 : vector<4x32xf32>
    %cst_660 = arith.constant 1.000000e+00 : f32
    %1032 = vector.broadcast %cst_660 : f32 to vector<4x32xf32>
    %1033 = arith.addf %1032, %1031 : vector<4x32xf32>
    %1034 = arith.divf %1032, %1033 : vector<4x32xf32>
    %1035 = arith.mulf %1028, %1022 : vector<4x32xf32>
    %1036 = arith.addf %1001, %1035 : vector<4x32xf32>
    %1037 = math.tanh %1036 : vector<4x32xf32>
    %cst_661 = arith.constant 1.000000e+00 : f32
    %1038 = vector.broadcast %cst_661 : f32 to vector<4x32xf32>
    %1039 = arith.subf %1038, %1034 : vector<4x32xf32>
    %1040 = arith.mulf %1039, %1037 : vector<4x32xf32>
    %1041 = arith.mulf %1034, %891 : vector<4x32xf32>
    %1042 = arith.addf %1040, %1041 : vector<4x32xf32>
    %c0_662 = arith.constant 0 : index
    %c0_663 = arith.constant 0 : index
    %1043 = vector.load %arg11[%c0_662, %c0_663] : memref<32x10xf32, #tpu.memory_space<vmem>>, vector<32x10xf32>
    %cst_664 = arith.constant dense<0.000000e+00> : vector<4x10xf32>
    %1044 = tpu.matmul %1042, %1043, %cst_664 {dimension_numbers = #tpu.dot_dimension_numbers<[1], [0], [0], [1], [0, 0, 1, 1], [], []>} : vector<4x32xf32>, vector<32x10xf32>, vector<4x10xf32> -> vector<4x10xf32>
    %1045 = arith.addf %1044, %13 : vector<4x10xf32>
    %cst_665 = arith.constant dense<0xFF800000> : vector<4xf32>
    %1046 = vector.multi_reduction <maximumf>, %1045, %cst_665 [1] : vector<4x10xf32> to vector<4xf32>
    %1047 = vector.shape_cast %1046 : vector<4xf32> to vector<4x1xf32>
    %1048 = vector.broadcast %1047 : vector<4x1xf32> to vector<4x10xf32>
    %1049 = arith.subf %1045, %1048 : vector<4x10xf32>
    %1050 = vector.broadcast %1047 : vector<4x1xf32> to vector<4x10xf32>
    %1051 = arith.subf %1045, %1050 : vector<4x10xf32>
    %1052 = math.exp %1051 : vector<4x10xf32>
    %cst_666 = arith.constant dense<0.000000e+00> : vector<4xf32>
    %1053 = vector.multi_reduction <add>, %1052, %cst_666 [1] : vector<4x10xf32> to vector<4xf32>
    %1054 = vector.shape_cast %1053 : vector<4xf32> to vector<4x1xf32>
    %1055 = math.log %1054 : vector<4x1xf32>
    %1056 = vector.broadcast %1055 : vector<4x1xf32> to vector<4x10xf32>
    %1057 = arith.subf %1049, %1056 : vector<4x10xf32>
    %c6 = arith.constant 6 : index
    %c0_667 = arith.constant 0 : index
    %c0_668 = arith.constant 0 : index
    %1058 = vector.load %arg12[%c6, %c0_667, %c0_668] : memref<8x4x10xf32, #tpu.memory_space<vmem>>, vector<1x4x10xf32>
    %1059 = vector.shape_cast %1058 : vector<1x4x10xf32> to vector<4x10xf32>
    %1060 = vector.shape_cast %1057 : vector<4x10xf32> to vector<1x4x10xf32>
    tpu.vector_store %arg12[%c6, %c0_667, %c0_668], %1060 {strides = array<i32>} : memref<8x4x10xf32, #tpu.memory_space<vmem>>, vector<1x4x10xf32>,
    %1061 = vector.broadcast %1047 : vector<4x1xf32> to vector<4x10xf32>
    %1062 = arith.cmpf oeq, %1045, %1061 : vector<4x10xf32>
    %c10_i32_669 = arith.constant 10 : i32
    %1063 = vector.broadcast %c10_i32_669 : i32 to vector<4x10xi32>
    %1064 = arith.select %1062, %2, %1063 : vector<4x10xi1>, vector<4x10xi32>
    %cst_670 = arith.constant dense<2147483647> : vector<4xi32>
    %1065 = vector.multi_reduction <minsi>, %1064, %cst_670 [1] : vector<4x10xi32> to vector<4xi32>
    %1066 = vector.shape_cast %1065 : vector<4xi32> to vector<4x1xi32>
    %1067 = vector.broadcast %1066 : vector<4x1xi32> to vector<4x10xi32>
    %1068 = arith.cmpi eq, %2, %1067 : vector<4x10xi32>
    %1069 = arith.extui %1068 : vector<4x10xi1> to vector<4x10xi32>
    %1070 = arith.sitofp %1069 : vector<4x10xi32> to vector<4x10xf32>
    %c0_671 = arith.constant 0 : index
    %c0_672 = arith.constant 0 : index
    %1071 = vector.load %arg3[%c0_671, %c0_672] : memref<10x32xf32, #tpu.memory_space<vmem>>, vector<10x32xf32>
    %cst_673 = arith.constant dense<0.000000e+00> : vector<4x32xf32>
    %1072 = tpu.matmul %1070, %1071, %cst_673 {dimension_numbers = #tpu.dot_dimension_numbers<[1], [0], [0], [1], [0, 0, 1, 1], [], []>} : vector<4x10xf32>, vector<10x32xf32>, vector<4x32xf32> -> vector<4x32xf32>
    %1073 = arith.negf %1072 : vector<4x32xf32>
    %1074 = math.exp %1073 : vector<4x32xf32>
    %cst_674 = arith.constant 1.000000e+00 : f32
    %1075 = vector.broadcast %cst_674 : f32 to vector<4x32xf32>
    %1076 = arith.addf %1075, %1074 : vector<4x32xf32>
    %1077 = arith.divf %1075, %1076 : vector<4x32xf32>
    %1078 = arith.mulf %1072, %1077 : vector<4x32xf32>
    %c0_675 = arith.constant 0 : index
    %c0_676 = arith.constant 0 : index
    %c0_677 = arith.constant 0 : index
    %1079 = vector.load %arg4[%c0_675, %c0_676, %c0_677] : memref<3x32x32xf32, #tpu.memory_space<vmem>>, vector<1x32x32xf32>
    %1080 = vector.shape_cast %1079 : vector<1x32x32xf32> to vector<32x32xf32>
    %cst_678 = arith.constant dense<0.000000e+00> : vector<4x32xf32>
    %1081 = tpu.matmul %1078, %1080, %cst_678 {dimension_numbers = #tpu.dot_dimension_numbers<[1], [0], [0], [1], [0, 0, 1, 1], [], []>} : vector<4x32xf32>, vector<32x32xf32>, vector<4x32xf32> -> vector<4x32xf32>
    %1082 = arith.addf %1081, %8 : vector<4x32xf32>
    %c1_679 = arith.constant 1 : index
    %c0_680 = arith.constant 0 : index
    %c0_681 = arith.constant 0 : index
    %1083 = vector.load %arg4[%c1_679, %c0_680, %c0_681] : memref<3x32x32xf32, #tpu.memory_space<vmem>>, vector<1x32x32xf32>
    %1084 = vector.shape_cast %1083 : vector<1x32x32xf32> to vector<32x32xf32>
    %cst_682 = arith.constant dense<0.000000e+00> : vector<4x32xf32>
    %1085 = tpu.matmul %1078, %1084, %cst_682 {dimension_numbers = #tpu.dot_dimension_numbers<[1], [0], [0], [1], [0, 0, 1, 1], [], []>} : vector<4x32xf32>, vector<32x32xf32>, vector<4x32xf32> -> vector<4x32xf32>
    %1086 = arith.addf %1085, %10 : vector<4x32xf32>
    %c2_683 = arith.constant 2 : index
    %c0_684 = arith.constant 0 : index
    %c0_685 = arith.constant 0 : index
    %1087 = vector.load %arg4[%c2_683, %c0_684, %c0_685] : memref<3x32x32xf32, #tpu.memory_space<vmem>>, vector<1x32x32xf32>
    %1088 = vector.shape_cast %1087 : vector<1x32x32xf32> to vector<32x32xf32>
    %cst_686 = arith.constant dense<0.000000e+00> : vector<4x32xf32>
    %1089 = tpu.matmul %1078, %1088, %cst_686 {dimension_numbers = #tpu.dot_dimension_numbers<[1], [0], [0], [1], [0, 0, 1, 1], [], []>} : vector<4x32xf32>, vector<32x32xf32>, vector<4x32xf32> -> vector<4x32xf32>
    %1090 = arith.addf %1089, %12 : vector<4x32xf32>
    %c0_687 = arith.constant 0 : index
    %c0_688 = arith.constant 0 : index
    %c0_689 = arith.constant 0 : index
    %1091 = vector.load %arg5[%c0_687, %c0_688, %c0_689] : memref<3x32x32xf32, #tpu.memory_space<vmem>>, vector<1x32x32xf32>
    %1092 = vector.shape_cast %1091 : vector<1x32x32xf32> to vector<32x32xf32>
    %cst_690 = arith.constant dense<0.000000e+00> : vector<4x32xf32>
    %1093 = tpu.matmul %980, %1092, %cst_690 {dimension_numbers = #tpu.dot_dimension_numbers<[1], [0], [0], [1], [0, 0, 1, 1], [], []>} : vector<4x32xf32>, vector<32x32xf32>, vector<4x32xf32> -> vector<4x32xf32>
    %c0_691 = arith.constant 0 : index
    %c0_692 = arith.constant 0 : index
    %c0_693 = arith.constant 0 : index
    %1094 = vector.load %arg6[%c0_691, %c0_692, %c0_693] : memref<3x1x32xf32, #tpu.memory_space<vmem>>, vector<1x1x32xf32>
    %1095 = vector.shape_cast %1094 : vector<1x1x32xf32> to vector<1x32xf32>
    %1096 = vector.broadcast %1095 : vector<1x32xf32> to vector<4x32xf32>
    %1097 = arith.addf %1093, %1096 : vector<4x32xf32>
    %c1_694 = arith.constant 1 : index
    %c0_695 = arith.constant 0 : index
    %c0_696 = arith.constant 0 : index
    %1098 = vector.load %arg5[%c1_694, %c0_695, %c0_696] : memref<3x32x32xf32, #tpu.memory_space<vmem>>, vector<1x32x32xf32>
    %1099 = vector.shape_cast %1098 : vector<1x32x32xf32> to vector<32x32xf32>
    %cst_697 = arith.constant dense<0.000000e+00> : vector<4x32xf32>
    %1100 = tpu.matmul %980, %1099, %cst_697 {dimension_numbers = #tpu.dot_dimension_numbers<[1], [0], [0], [1], [0, 0, 1, 1], [], []>} : vector<4x32xf32>, vector<32x32xf32>, vector<4x32xf32> -> vector<4x32xf32>
    %c1_698 = arith.constant 1 : index
    %c0_699 = arith.constant 0 : index
    %c0_700 = arith.constant 0 : index
    %1101 = vector.load %arg6[%c1_698, %c0_699, %c0_700] : memref<3x1x32xf32, #tpu.memory_space<vmem>>, vector<1x1x32xf32>
    %1102 = vector.shape_cast %1101 : vector<1x1x32xf32> to vector<1x32xf32>
    %1103 = vector.broadcast %1102 : vector<1x32xf32> to vector<4x32xf32>
    %1104 = arith.addf %1100, %1103 : vector<4x32xf32>
    %c2_701 = arith.constant 2 : index
    %c0_702 = arith.constant 0 : index
    %c0_703 = arith.constant 0 : index
    %1105 = vector.load %arg5[%c2_701, %c0_702, %c0_703] : memref<3x32x32xf32, #tpu.memory_space<vmem>>, vector<1x32x32xf32>
    %1106 = vector.shape_cast %1105 : vector<1x32x32xf32> to vector<32x32xf32>
    %cst_704 = arith.constant dense<0.000000e+00> : vector<4x32xf32>
    %1107 = tpu.matmul %980, %1106, %cst_704 {dimension_numbers = #tpu.dot_dimension_numbers<[1], [0], [0], [1], [0, 0, 1, 1], [], []>} : vector<4x32xf32>, vector<32x32xf32>, vector<4x32xf32> -> vector<4x32xf32>
    %c2_705 = arith.constant 2 : index
    %c0_706 = arith.constant 0 : index
    %c0_707 = arith.constant 0 : index
    %1108 = vector.load %arg6[%c2_705, %c0_706, %c0_707] : memref<3x1x32xf32, #tpu.memory_space<vmem>>, vector<1x1x32xf32>
    %1109 = vector.shape_cast %1108 : vector<1x1x32xf32> to vector<1x32xf32>
    %1110 = vector.broadcast %1109 : vector<1x32xf32> to vector<4x32xf32>
    %1111 = arith.addf %1107, %1110 : vector<4x32xf32>
    %1112 = arith.addf %1082, %1097 : vector<4x32xf32>
    %1113 = arith.negf %1112 : vector<4x32xf32>
    %1114 = math.exp %1113 : vector<4x32xf32>
    %cst_708 = arith.constant 1.000000e+00 : f32
    %1115 = vector.broadcast %cst_708 : f32 to vector<4x32xf32>
    %1116 = arith.addf %1115, %1114 : vector<4x32xf32>
    %1117 = arith.divf %1115, %1116 : vector<4x32xf32>
    %1118 = arith.addf %1086, %1104 : vector<4x32xf32>
    %1119 = arith.negf %1118 : vector<4x32xf32>
    %1120 = math.exp %1119 : vector<4x32xf32>
    %cst_709 = arith.constant 1.000000e+00 : f32
    %1121 = vector.broadcast %cst_709 : f32 to vector<4x32xf32>
    %1122 = arith.addf %1121, %1120 : vector<4x32xf32>
    %1123 = arith.divf %1121, %1122 : vector<4x32xf32>
    %1124 = arith.mulf %1117, %1111 : vector<4x32xf32>
    %1125 = arith.addf %1090, %1124 : vector<4x32xf32>
    %1126 = math.tanh %1125 : vector<4x32xf32>
    %cst_710 = arith.constant 1.000000e+00 : f32
    %1127 = vector.broadcast %cst_710 : f32 to vector<4x32xf32>
    %1128 = arith.subf %1127, %1123 : vector<4x32xf32>
    %1129 = arith.mulf %1128, %1126 : vector<4x32xf32>
    %1130 = arith.mulf %1123, %980 : vector<4x32xf32>
    %1131 = arith.addf %1129, %1130 : vector<4x32xf32>
    %c0_711 = arith.constant 0 : index
    %c0_712 = arith.constant 0 : index
    %c0_713 = arith.constant 0 : index
    %1132 = vector.load %arg8[%c0_711, %c0_712, %c0_713] : memref<3x1x32xf32, #tpu.memory_space<vmem>>, vector<1x1x32xf32>
    %1133 = vector.shape_cast %1132 : vector<1x1x32xf32> to vector<1x32xf32>
    %c1_714 = arith.constant 1 : index
    %c0_715 = arith.constant 0 : index
    %c0_716 = arith.constant 0 : index
    %1134 = vector.load %arg8[%c1_714, %c0_715, %c0_716] : memref<3x1x32xf32, #tpu.memory_space<vmem>>, vector<1x1x32xf32>
    %1135 = vector.shape_cast %1134 : vector<1x1x32xf32> to vector<1x32xf32>
    %c2_717 = arith.constant 2 : index
    %c0_718 = arith.constant 0 : index
    %c0_719 = arith.constant 0 : index
    %1136 = vector.load %arg8[%c2_717, %c0_718, %c0_719] : memref<3x1x32xf32, #tpu.memory_space<vmem>>, vector<1x1x32xf32>
    %1137 = vector.shape_cast %1136 : vector<1x1x32xf32> to vector<1x32xf32>
    %c0_720 = arith.constant 0 : index
    %c0_721 = arith.constant 0 : index
    %c0_722 = arith.constant 0 : index
    %1138 = vector.load %arg7[%c0_720, %c0_721, %c0_722] : memref<3x32x32xf32, #tpu.memory_space<vmem>>, vector<1x32x32xf32>
    %1139 = vector.shape_cast %1138 : vector<1x32x32xf32> to vector<32x32xf32>
    %cst_723 = arith.constant dense<0.000000e+00> : vector<4x32xf32>
    %1140 = tpu.matmul %1131, %1139, %cst_723 {dimension_numbers = #tpu.dot_dimension_numbers<[1], [0], [0], [1], [0, 0, 1, 1], [], []>} : vector<4x32xf32>, vector<32x32xf32>, vector<4x32xf32> -> vector<4x32xf32>
    %1141 = vector.broadcast %1133 : vector<1x32xf32> to vector<4x32xf32>
    %1142 = arith.addf %1140, %1141 : vector<4x32xf32>
    %c1_724 = arith.constant 1 : index
    %c0_725 = arith.constant 0 : index
    %c0_726 = arith.constant 0 : index
    %1143 = vector.load %arg7[%c1_724, %c0_725, %c0_726] : memref<3x32x32xf32, #tpu.memory_space<vmem>>, vector<1x32x32xf32>
    %1144 = vector.shape_cast %1143 : vector<1x32x32xf32> to vector<32x32xf32>
    %cst_727 = arith.constant dense<0.000000e+00> : vector<4x32xf32>
    %1145 = tpu.matmul %1131, %1144, %cst_727 {dimension_numbers = #tpu.dot_dimension_numbers<[1], [0], [0], [1], [0, 0, 1, 1], [], []>} : vector<4x32xf32>, vector<32x32xf32>, vector<4x32xf32> -> vector<4x32xf32>
    %1146 = vector.broadcast %1135 : vector<1x32xf32> to vector<4x32xf32>
    %1147 = arith.addf %1145, %1146 : vector<4x32xf32>
    %c2_728 = arith.constant 2 : index
    %c0_729 = arith.constant 0 : index
    %c0_730 = arith.constant 0 : index
    %1148 = vector.load %arg7[%c2_728, %c0_729, %c0_730] : memref<3x32x32xf32, #tpu.memory_space<vmem>>, vector<1x32x32xf32>
    %1149 = vector.shape_cast %1148 : vector<1x32x32xf32> to vector<32x32xf32>
    %cst_731 = arith.constant dense<0.000000e+00> : vector<4x32xf32>
    %1150 = tpu.matmul %1131, %1149, %cst_731 {dimension_numbers = #tpu.dot_dimension_numbers<[1], [0], [0], [1], [0, 0, 1, 1], [], []>} : vector<4x32xf32>, vector<32x32xf32>, vector<4x32xf32> -> vector<4x32xf32>
    %1151 = vector.broadcast %1137 : vector<1x32xf32> to vector<4x32xf32>
    %1152 = arith.addf %1150, %1151 : vector<4x32xf32>
    %c0_732 = arith.constant 0 : index
    %c0_733 = arith.constant 0 : index
    %c0_734 = arith.constant 0 : index
    %1153 = vector.load %arg9[%c0_732, %c0_733, %c0_734] : memref<3x32x32xf32, #tpu.memory_space<vmem>>, vector<1x32x32xf32>
    %1154 = vector.shape_cast %1153 : vector<1x32x32xf32> to vector<32x32xf32>
    %cst_735 = arith.constant dense<0.000000e+00> : vector<4x32xf32>
    %1155 = tpu.matmul %1042, %1154, %cst_735 {dimension_numbers = #tpu.dot_dimension_numbers<[1], [0], [0], [1], [0, 0, 1, 1], [], []>} : vector<4x32xf32>, vector<32x32xf32>, vector<4x32xf32> -> vector<4x32xf32>
    %c0_736 = arith.constant 0 : index
    %c0_737 = arith.constant 0 : index
    %c0_738 = arith.constant 0 : index
    %1156 = vector.load %arg10[%c0_736, %c0_737, %c0_738] : memref<3x1x32xf32, #tpu.memory_space<vmem>>, vector<1x1x32xf32>
    %1157 = vector.shape_cast %1156 : vector<1x1x32xf32> to vector<1x32xf32>
    %1158 = vector.broadcast %1157 : vector<1x32xf32> to vector<4x32xf32>
    %1159 = arith.addf %1155, %1158 : vector<4x32xf32>
    %c1_739 = arith.constant 1 : index
    %c0_740 = arith.constant 0 : index
    %c0_741 = arith.constant 0 : index
    %1160 = vector.load %arg9[%c1_739, %c0_740, %c0_741] : memref<3x32x32xf32, #tpu.memory_space<vmem>>, vector<1x32x32xf32>
    %1161 = vector.shape_cast %1160 : vector<1x32x32xf32> to vector<32x32xf32>
    %cst_742 = arith.constant dense<0.000000e+00> : vector<4x32xf32>
    %1162 = tpu.matmul %1042, %1161, %cst_742 {dimension_numbers = #tpu.dot_dimension_numbers<[1], [0], [0], [1], [0, 0, 1, 1], [], []>} : vector<4x32xf32>, vector<32x32xf32>, vector<4x32xf32> -> vector<4x32xf32>
    %c1_743 = arith.constant 1 : index
    %c0_744 = arith.constant 0 : index
    %c0_745 = arith.constant 0 : index
    %1163 = vector.load %arg10[%c1_743, %c0_744, %c0_745] : memref<3x1x32xf32, #tpu.memory_space<vmem>>, vector<1x1x32xf32>
    %1164 = vector.shape_cast %1163 : vector<1x1x32xf32> to vector<1x32xf32>
    %1165 = vector.broadcast %1164 : vector<1x32xf32> to vector<4x32xf32>
    %1166 = arith.addf %1162, %1165 : vector<4x32xf32>
    %c2_746 = arith.constant 2 : index
    %c0_747 = arith.constant 0 : index
    %c0_748 = arith.constant 0 : index
    %1167 = vector.load %arg9[%c2_746, %c0_747, %c0_748] : memref<3x32x32xf32, #tpu.memory_space<vmem>>, vector<1x32x32xf32>
    %1168 = vector.shape_cast %1167 : vector<1x32x32xf32> to vector<32x32xf32>
    %cst_749 = arith.constant dense<0.000000e+00> : vector<4x32xf32>
    %1169 = tpu.matmul %1042, %1168, %cst_749 {dimension_numbers = #tpu.dot_dimension_numbers<[1], [0], [0], [1], [0, 0, 1, 1], [], []>} : vector<4x32xf32>, vector<32x32xf32>, vector<4x32xf32> -> vector<4x32xf32>
    %c2_750 = arith.constant 2 : index
    %c0_751 = arith.constant 0 : index
    %c0_752 = arith.constant 0 : index
    %1170 = vector.load %arg10[%c2_750, %c0_751, %c0_752] : memref<3x1x32xf32, #tpu.memory_space<vmem>>, vector<1x1x32xf32>
    %1171 = vector.shape_cast %1170 : vector<1x1x32xf32> to vector<1x32xf32>
    %1172 = vector.broadcast %1171 : vector<1x32xf32> to vector<4x32xf32>
    %1173 = arith.addf %1169, %1172 : vector<4x32xf32>
    %1174 = arith.addf %1142, %1159 : vector<4x32xf32>
    %1175 = arith.negf %1174 : vector<4x32xf32>
    %1176 = math.exp %1175 : vector<4x32xf32>
    %cst_753 = arith.constant 1.000000e+00 : f32
    %1177 = vector.broadcast %cst_753 : f32 to vector<4x32xf32>
    %1178 = arith.addf %1177, %1176 : vector<4x32xf32>
    %1179 = arith.divf %1177, %1178 : vector<4x32xf32>
    %1180 = arith.addf %1147, %1166 : vector<4x32xf32>
    %1181 = arith.negf %1180 : vector<4x32xf32>
    %1182 = math.exp %1181 : vector<4x32xf32>
    %cst_754 = arith.constant 1.000000e+00 : f32
    %1183 = vector.broadcast %cst_754 : f32 to vector<4x32xf32>
    %1184 = arith.addf %1183, %1182 : vector<4x32xf32>
    %1185 = arith.divf %1183, %1184 : vector<4x32xf32>
    %1186 = arith.mulf %1179, %1173 : vector<4x32xf32>
    %1187 = arith.addf %1152, %1186 : vector<4x32xf32>
    %1188 = math.tanh %1187 : vector<4x32xf32>
    %cst_755 = arith.constant 1.000000e+00 : f32
    %1189 = vector.broadcast %cst_755 : f32 to vector<4x32xf32>
    %1190 = arith.subf %1189, %1185 : vector<4x32xf32>
    %1191 = arith.mulf %1190, %1188 : vector<4x32xf32>
    %1192 = arith.mulf %1185, %1042 : vector<4x32xf32>
    %1193 = arith.addf %1191, %1192 : vector<4x32xf32>
    %c0_756 = arith.constant 0 : index
    %c0_757 = arith.constant 0 : index
    %1194 = vector.load %arg11[%c0_756, %c0_757] : memref<32x10xf32, #tpu.memory_space<vmem>>, vector<32x10xf32>
    %cst_758 = arith.constant dense<0.000000e+00> : vector<4x10xf32>
    %1195 = tpu.matmul %1193, %1194, %cst_758 {dimension_numbers = #tpu.dot_dimension_numbers<[1], [0], [0], [1], [0, 0, 1, 1], [], []>} : vector<4x32xf32>, vector<32x10xf32>, vector<4x10xf32> -> vector<4x10xf32>
    %1196 = arith.addf %1195, %13 : vector<4x10xf32>
    %cst_759 = arith.constant dense<0xFF800000> : vector<4xf32>
    %1197 = vector.multi_reduction <maximumf>, %1196, %cst_759 [1] : vector<4x10xf32> to vector<4xf32>
    %1198 = vector.shape_cast %1197 : vector<4xf32> to vector<4x1xf32>
    %1199 = vector.broadcast %1198 : vector<4x1xf32> to vector<4x10xf32>
    %1200 = arith.subf %1196, %1199 : vector<4x10xf32>
    %1201 = vector.broadcast %1198 : vector<4x1xf32> to vector<4x10xf32>
    %1202 = arith.subf %1196, %1201 : vector<4x10xf32>
    %1203 = math.exp %1202 : vector<4x10xf32>
    %cst_760 = arith.constant dense<0.000000e+00> : vector<4xf32>
    %1204 = vector.multi_reduction <add>, %1203, %cst_760 [1] : vector<4x10xf32> to vector<4xf32>
    %1205 = vector.shape_cast %1204 : vector<4xf32> to vector<4x1xf32>
    %1206 = math.log %1205 : vector<4x1xf32>
    %1207 = vector.broadcast %1206 : vector<4x1xf32> to vector<4x10xf32>
    %1208 = arith.subf %1200, %1207 : vector<4x10xf32>
    %c7 = arith.constant 7 : index
    %c0_761 = arith.constant 0 : index
    %c0_762 = arith.constant 0 : index
    %1209 = vector.load %arg12[%c7, %c0_761, %c0_762] : memref<8x4x10xf32, #tpu.memory_space<vmem>>, vector<1x4x10xf32>
    %1210 = vector.shape_cast %1209 : vector<1x4x10xf32> to vector<4x10xf32>
    %1211 = vector.shape_cast %1208 : vector<4x10xf32> to vector<1x4x10xf32>
    tpu.vector_store %arg12[%c7, %c0_761, %c0_762], %1211 {strides = array<i32>} : memref<8x4x10xf32, #tpu.memory_space<vmem>>, vector<1x4x10xf32>,
    return
  }
}

</mosaic_0001>

<llo_original>
// kernel: text_decoder_forward.1
$region0: #{text_decoder_forward.1}
  #allocation0 [shape = 'u32[]', space=smem, size = 0x4, offset = 0x4, fixed_abs, tag = 'smem constant byte address 0x4 - core index']
  #allocation1 [shape = 'u32[144,128]{1,0:T(1,128)}', space=vmem, size = 0x12000, scoped, tag = 'internal scratch']
  %s0 = inlined_call_operand.vmem [shape: f32[4,32], index: 0, kind: input, shape index: {}]
  %s1 = inlined_call_operand.vmem [shape: f32[3,4,32], index: 1, kind: input, shape index: {}]
  %s2 = inlined_call_operand.vmem [shape: f32[4,10], index: 2, kind: input, shape index: {}]
  %s3 = inlined_call_operand.vmem [shape: f32[10,32], index: 3, kind: input, shape index: {}]
  %s4 = inlined_call_operand.vmem [shape: f32[3,32,32], index: 4, kind: input, shape index: {}]
  %s5 = inlined_call_operand.vmem [shape: f32[3,32,32], index: 5, kind: input, shape index: {}]
  %s6 = inlined_call_operand.vmem [shape: f32[3,1,32], index: 6, kind: input, shape index: {}]
  %s7 = inlined_call_operand.vmem [shape: f32[3,32,32], index: 7, kind: input, shape index: {}]
  %s8 = inlined_call_operand.vmem [shape: f32[3,1,32], index: 8, kind: input, shape index: {}]
  %s9 = inlined_call_operand.vmem [shape: f32[3,32,32], index: 9, kind: input, shape index: {}]
  %s10 = inlined_call_operand.vmem [shape: f32[3,1,32], index: 10, kind: input, shape index: {}]
  %s11 = inlined_call_operand.vmem [shape: f32[32,10], index: 11, kind: input, shape index: {}]
  %s12 = inlined_call_operand.vmem [shape: f32[8,4,10], index: 12, kind: output, shape index: {}]
  %s13 = sld [smem:[#allocation0]]
  $region58: #{text_decoder_forward.1} parent=0
    _
  %s15 = ssub.s32 1, %s13
  %s16 = scalar_select 0, %s15, %s13
  // Predicated region
  $region2: #{text_decoder_forward.1} parent=0 // pred_check
    _
  $region3: #{text_decoder_forward.1} parent=0 // pred_check_branch
    %18 = sbr.rel (0) target = $region5
  $region4: #{text_decoder_forward.1} parent=0 // pred_region
    _
  $region5: #{text_decoder_forward.1} parent=0 // pred_fallthru
    _
  // Predicated region
  $region6: #{text_decoder_forward.1} parent=0 // pred_check
    _
  $region7: #{text_decoder_forward.1} parent=0 // pred_check_branch
    %20 = sbr.rel (0) target = $region9
  $region8: #{text_decoder_forward.1} parent=0 // pred_region
    _
  $region9: #{text_decoder_forward.1} parent=0 // pred_fallthru
    _
  // Predicated region
  $region10: #{text_decoder_forward.1} parent=0 // pred_check
    _
  $region11: #{text_decoder_forward.1} parent=0 // pred_check_branch
    %22 = sbr.rel (0) target = $region13
  $region12: #{text_decoder_forward.1} parent=0 // pred_region
    _
  $region13: #{text_decoder_forward.1} parent=0 // pred_fallthru
    _
  // Predicated region
  $region14: #{text_decoder_forward.1} parent=0 // pred_check
    _
  $region15: #{text_decoder_forward.1} parent=0 // pred_check_branch
    %24 = sbr.rel (0) target = $region17
  $region16: #{text_decoder_forward.1} parent=0 // pred_region
    _
  $region17: #{text_decoder_forward.1} parent=0 // pred_fallthru
    _
  // Predicated region
  $region18: #{text_decoder_forward.1} parent=0 // pred_check
    _
  $region19: #{text_decoder_forward.1} parent=0 // pred_check_branch
    %26 = sbr.rel (0) target = $region21
  $region20: #{text_decoder_forward.1} parent=0 // pred_region
    _
  $region21: #{text_decoder_forward.1} parent=0 // pred_fallthru
    _
  // Predicated region
  $region22: #{text_decoder_forward.1} parent=0 // pred_check
    _
  $region23: #{text_decoder_forward.1} parent=0 // pred_check_branch
    %28 = sbr.rel (0) target = $region25
  $region24: #{text_decoder_forward.1} parent=0 // pred_region
    _
  $region25: #{text_decoder_forward.1} parent=0 // pred_fallthru
    _
  // Predicated region
  $region26: #{text_decoder_forward.1} parent=0 // pred_check
    _
  $region27: #{text_decoder_forward.1} parent=0 // pred_check_branch
    %30 = sbr.rel (0) target = $region29
  $region28: #{text_decoder_forward.1} parent=0 // pred_region
    _
  $region29: #{text_decoder_forward.1} parent=0 // pred_fallthru
    _
  // Predicated region
  $region30: #{text_decoder_forward.1} parent=0 // pred_check
    _
  $region31: #{text_decoder_forward.1} parent=0 // pred_check_branch
    %32 = sbr.rel (0) target = $region33
  $region32: #{text_decoder_forward.1} parent=0 // pred_region
    _
  $region33: #{text_decoder_forward.1} parent=0 // pred_fallthru
    _
  // Predicated region
  $region34: #{text_decoder_forward.1} parent=0 // pred_check
    _
  $region35: #{text_decoder_forward.1} parent=0 // pred_check_branch
    %34 = sbr.rel (0) target = $region37
  $region36: #{text_decoder_forward.1} parent=0 // pred_region
    _
  $region37: #{text_decoder_forward.1} parent=0 // pred_fallthru
    _
  // Predicated region
  $region38: #{text_decoder_forward.1} parent=0 // pred_check
    _
  $region39: #{text_decoder_forward.1} parent=0 // pred_check_branch
    %36 = sbr.rel (0) target = $region41
  $region40: #{text_decoder_forward.1} parent=0 // pred_region
    _
  $region41: #{text_decoder_forward.1} parent=0 // pred_fallthru
    _
  // Predicated region
  $region42: #{text_decoder_forward.1} parent=0 // pred_check
    _
  $region43: #{text_decoder_forward.1} parent=0 // pred_check_branch
    %38 = sbr.rel (0) target = $region45
  $region44: #{text_decoder_forward.1} parent=0 // pred_region
    _
  $region45: #{text_decoder_forward.1} parent=0 // pred_fallthru
    _
  // Predicated region
  $region46: #{text_decoder_forward.1} parent=0 // pred_check
    _
  $region47: #{text_decoder_forward.1} parent=0 // pred_check_branch
    %40 = sbr.rel (0) target = $region49
  $region48: #{text_decoder_forward.1} parent=0 // pred_region
    _
  $region49: #{text_decoder_forward.1} parent=0 // pred_fallthru
    _
  %v41 = vld [vmem:[%s0] sm:$0xf]
  %v42 = vlaneseq
  %v43 = vand.u32 %v42, 127
  %vm44 = vcmp.eq.s32.totalorder %v43, 1
  %v45 = vsel %vm44, 1, 0
  %v46 = vcvt.s32.f32 %v45
  %v47 = vld [vmem:[%s1] sm:$0xf]
  %s48 = scalar_lea.vmem %s1, 4
  %v49 = vld [vmem:[%s48] sm:$0xf]
  %s50 = scalar_lea.vmem %s1, 8
  %v51 = vld [vmem:[%s50] sm:$0xf]
  %v52 = vld [vmem:[%s2] sm:$0xf]
  %v53 = vld [vmem:[%s3] sm:$0xff]
  %v54 = vld [vmem:[%s3 + $0x8] sm:$0x3]
  %vm55 = vcmask 80896
  %v57 = vsel %vm55, %v46, 0
  %vm59 = vcmask 1041408
  %v61 = vsel %vm59, %v54, 0
  %63 = vmatprep.subr.mxu0 0.0
  %64 = vmatpush1.msra.mxu0 %v53
  %65 = vmatprep.subr.mxu0 0.0
  %66 = vmatpush1.msra.mxu0 %v61
  %67 = vmatprep.subr.mxu0 0.0
  %68 = vmatpush1.msra.mxu0 0.0
  %69 = vmatprep.subr.mxu0 0.0
  %70 = vmatpush1.msra.mxu0 0.0
  %71 = vmatprep.subr.mxu0 0.0
  %72 = vmatpush1.msra.mxu0 0.0
  %73 = vmatprep.subr.mxu0 0.0
  %74 = vmatpush1.msra.mxu0 0.0
  %75 = vmatprep.subr.mxu0 0.0
  %76 = vmatpush1.msra.mxu0 0.0
  %77 = vmatprep.subr.mxu0 0.0
  %78 = vmatpush1.msra.mxu0 0.0
  %79 = vmatprep.subr.mxu0 0.0
  %80 = vmatpush1.msra.mxu0 0.0
  %81 = vmatprep.subr.mxu0 0.0
  %82 = vmatpush1.msra.mxu0 0.0
  %83 = vmatprep.subr.mxu0 0.0
  %84 = vmatpush1.msra.mxu0 0.0
  %85 = vmatprep.subr.mxu0 0.0
  %86 = vmatpush1.msra.mxu0 0.0
  %87 = vmatprep.subr.mxu0 0.0
  %88 = vmatpush1.msra.mxu0 0.0
  %89 = vmatprep.subr.mxu0 0.0
  %90 = vmatpush1.msra.mxu0 0.0
  %91 = vmatprep.subr.mxu0 0.0
  %92 = vmatpush1.msra.mxu0 0.0
  %93 = vmatprep.subr.mxu0 0.0
  %94 = vmatpush1.msra.mxu0 0.0
  %95 = vmatprep.subr.mxu0 0.0
  %96 = vmatpush1.msra.mxu0 0.0
  %97 = vmatprep.subr.mxu0 0.0
  %98 = vmatpush1.msra.mxu0 0.0
  %99 = vmatprep.subr.mxu0 0.0
  %100 = vmatpush1.msra.mxu0 0.0
  %101 = vmatprep.subr.mxu0 0.0
  %102 = vmatpush1.msra.mxu0 0.0
  %103 = vmatprep.subr.mxu0 0.0
  %104 = vmatpush1.msra.mxu0 0.0
  %105 = vmatprep.subr.mxu0 0.0
  %106 = vmatpush1.msra.mxu0 0.0
  %107 = vmatprep.subr.mxu0 0.0
  %108 = vmatpush1.msra.mxu0 0.0
  %109 = vmatprep.subr.mxu0 0.0
  %110 = vmatpush1.msra.mxu0 0.0
  %111 = vmatprep.subr.mxu0 0.0
  %112 = vmatpush1.msra.mxu0 0.0
  %113 = vmatprep.subr.mxu0 0.0
  %114 = vmatpush1.msra.mxu0 0.0
  %115 = vmatprep.subr.mxu0 0.0
  %116 = vmatpush1.msra.mxu0 0.0
  %117 = vmatprep.subr.mxu0 0.0
  %118 = vmatpush1.msra.mxu0 0.0
  %119 = vmatprep.subr.mxu0 0.0
  %120 = vmatpush1.msra.mxu0 0.0
  %121 = vmatprep.subr.mxu0 0.0
  %122 = vmatpush1.msra.mxu0 0.0
  %123 = vmatprep.subr.mxu0 0.0
  %124 = vmatpush1.msra.mxu0 0.0
  %125 = vmatprep.subr.mxu0 0.0
  %126 = vmatpush1.msra.mxu0 0.0
  %127 = vmatprep.mubr.f32.mxu0 0.0
  %128 = vmatmul.mubr.f32.gmra.mrb[0].mxu0 %v57
  %v129 = vpop.f32.mrb[0].mxu0
  %v130 = vadd.f32 0.0, %v129
  %v131 = vpop.f32.mrb[0].mxu0
  %132 = vdwg.mxu0
  %v133 = vxor.u32 %v130, 2147483648
  %v134 = vmul.f32 %v133, 1.442695
  %v135 = vpow.pop %v134
  %v136 = vadd.f32 %v135, 1.0
  %v137 = vrcp.pop %v136
  %v138 = vmul.f32 1.0, %v137
  %v139 = vmul.f32 %v130, %v138
  %v140 = vld [vmem:[%s4] sm:$0xff]
  %v141 = vld [vmem:[%s4 + $0x8] sm:$0xff]
  %v142 = vld [vmem:[%s4 + $0x10] sm:$0xff]
  %v143 = vld [vmem:[%s4 + $0x18] sm:$0xff]
  %vm144 = vcmask 261120
  %v146 = vsel %vm144, %v139, 0
  %148 = vmatprep.subr.mxu0 0.0
  %149 = vmatpush1.msra.mxu0 %v140
  %150 = vmatprep.subr.mxu0 0.0
  %151 = vmatpush1.msra.mxu0 %v141
  %152 = vmatprep.subr.mxu0 0.0
  %153 = vmatpush1.msra.mxu0 %v142
  %154 = vmatprep.subr.mxu0 0.0
  %155 = vmatpush1.msra.mxu0 %v143
  %156 = vmatprep.subr.mxu0 0.0
  %157 = vmatpush1.msra.mxu0 0.0
  %158 = vmatprep.subr.mxu0 0.0
  %159 = vmatpush1.msra.mxu0 0.0
  %160 = vmatprep.subr.mxu0 0.0
  %161 = vmatpush1.msra.mxu0 0.0
  %162 = vmatprep.subr.mxu0 0.0
  %163 = vmatpush1.msra.mxu0 0.0
  %164 = vmatprep.subr.mxu0 0.0
  %165 = vmatpush1.msra.mxu0 0.0
  %166 = vmatprep.subr.mxu0 0.0
  %167 = vmatpush1.msra.mxu0 0.0
  %168 = vmatprep.subr.mxu0 0.0
  %169 = vmatpush1.msra.mxu0 0.0
  %170 = vmatprep.subr.mxu0 0.0
  %171 = vmatpush1.msra.mxu0 0.0
  %172 = vmatprep.subr.mxu0 0.0
  %173 = vmatpush1.msra.mxu0 0.0
  %174 = vmatprep.subr.mxu0 0.0
  %175 = vmatpush1.msra.mxu0 0.0
  %176 = vmatprep.subr.mxu0 0.0
  %177 = vmatpush1.msra.mxu0 0.0
  %178 = vmatprep.subr.mxu0 0.0
  %179 = vmatpush1.msra.mxu0 0.0
  %180 = vmatprep.subr.mxu0 0.0
  %181 = vmatpush1.msra.mxu0 0.0
  %182 = vmatprep.subr.mxu0 0.0
  %183 = vmatpush1.msra.mxu0 0.0
  %184 = vmatprep.subr.mxu0 0.0
  %185 = vmatpush1.msra.mxu0 0.0
  %186 = vmatprep.subr.mxu0 0.0
  %187 = vmatpush1.msra.mxu0 0.0
  %188 = vmatprep.subr.mxu0 0.0
  %189 = vmatpush1.msra.mxu0 0.0
  %190 = vmatprep.subr.mxu0 0.0
  %191 = vmatpush1.msra.mxu0 0.0
  %192 = vmatprep.subr.mxu0 0.0
  %193 = vmatpush1.msra.mxu0 0.0
  %194 = vmatprep.subr.mxu0 0.0
  %195 = vmatpush1.msra.mxu0 0.0
  %196 = vmatprep.subr.mxu0 0.0
  %197 = vmatpush1.msra.mxu0 0.0
  %198 = vmatprep.subr.mxu0 0.0
  %199 = vmatpush1.msra.mxu0 0.0
  %200 = vmatprep.subr.mxu0 0.0
  %201 = vmatpush1.msra.mxu0 0.0
  %202 = vmatprep.subr.mxu0 0.0
  %203 = vmatpush1.msra.mxu0 0.0
  %204 = vmatprep.subr.mxu0 0.0
  %205 = vmatpush1.msra.mxu0 0.0
  %206 = vmatprep.subr.mxu0 0.0
  %207 = vmatpush1.msra.mxu0 0.0
  %208 = vmatprep.subr.mxu0 0.0
  %209 = vmatpush1.msra.mxu0 0.0
  %210 = vmatprep.subr.mxu0 0.0
  %211 = vmatpush1.msra.mxu0 0.0
  %212 = vmatprep.mubr.f32.mxu0 0.0
  %213 = vmatmul.mubr.f32.gmra.mrb[0].mxu0 %v146
  %v214 = vpop.f32.mrb[0].mxu0
  %v215 = vadd.f32 %v47, %v214
  %v216 = vpop.f32.mrb[0].mxu0
  %217 = vdwg.mxu0
  %s218 = scalar_lea.vmem %s4, 32
  %v219 = vld [vmem:[%s218] sm:$0xff]
  %v220 = vld [vmem:[%s218 + $0x8] sm:$0xff]
  %v221 = vld [vmem:[%s218 + $0x10] sm:$0xff]
  %v222 = vld [vmem:[%s218 + $0x18] sm:$0xff]
  %223 = vmatprep.subr.mxu0 0.0
  %224 = vmatpush1.msra.mxu0 %v219
  %225 = vmatprep.subr.mxu0 0.0
  %226 = vmatpush1.msra.mxu0 %v220
  %227 = vmatprep.subr.mxu0 0.0
  %228 = vmatpush1.msra.mxu0 %v221
  %229 = vmatprep.subr.mxu0 0.0
  %230 = vmatpush1.msra.mxu0 %v222
  %231 = vmatprep.subr.mxu0 0.0
  %232 = vmatpush1.msra.mxu0 0.0
  %233 = vmatprep.subr.mxu0 0.0
  %234 = vmatpush1.msra.mxu0 0.0
  %235 = vmatprep.subr.mxu0 0.0
  %236 = vmatpush1.msra.mxu0 0.0
  %237 = vmatprep.subr.mxu0 0.0
  %238 = vmatpush1.msra.mxu0 0.0
  %239 = vmatprep.subr.mxu0 0.0
  %240 = vmatpush1.msra.mxu0 0.0
  %241 = vmatprep.subr.mxu0 0.0
  %242 = vmatpush1.msra.mxu0 0.0
  %243 = vmatprep.subr.mxu0 0.0
  %244 = vmatpush1.msra.mxu0 0.0
  %245 = vmatprep.subr.mxu0 0.0
  %246 = vmatpush1.msra.mxu0 0.0
  %247 = vmatprep.subr.mxu0 0.0
  %248 = vmatpush1.msra.mxu0 0.0
  %249 = vmatprep.subr.mxu0 0.0
  %250 = vmatpush1.msra.mxu0 0.0
  %251 = vmatprep.subr.mxu0 0.0
  %252 = vmatpush1.msra.mxu0 0.0
  %253 = vmatprep.subr.mxu0 0.0
  %254 = vmatpush1.msra.mxu0 0.0
  %255 = vmatprep.subr.mxu0 0.0
  %256 = vmatpush1.msra.mxu0 0.0
  %257 = vmatprep.subr.mxu0 0.0
  %258 = vmatpush1.msra.mxu0 0.0
  %259 = vmatprep.subr.mxu0 0.0
  %260 = vmatpush1.msra.mxu0 0.0
  %261 = vmatprep.subr.mxu0 0.0
  %262 = vmatpush1.msra.mxu0 0.0
  %263 = vmatprep.subr.mxu0 0.0
  %264 = vmatpush1.msra.mxu0 0.0
  %265 = vmatprep.subr.mxu0 0.0
  %266 = vmatpush1.msra.mxu0 0.0
  %267 = vmatprep.subr.mxu0 0.0
  %268 = vmatpush1.msra.mxu0 0.0
  %269 = vmatprep.subr.mxu0 0.0
  %270 = vmatpush1.msra.mxu0 0.0
  %271 = vmatprep.subr.mxu0 0.0
  %272 = vmatpush1.msra.mxu0 0.0
  %273 = vmatprep.subr.mxu0 0.0
  %274 = vmatpush1.msra.mxu0 0.0
  %275 = vmatprep.subr.mxu0 0.0
  %276 = vmatpush1.msra.mxu0 0.0
  %277 = vmatprep.subr.mxu0 0.0
  %278 = vmatpush1.msra.mxu0 0.0
  %279 = vmatprep.subr.mxu0 0.0
  %280 = vmatpush1.msra.mxu0 0.0
  %281 = vmatprep.subr.mxu0 0.0
  %282 = vmatpush1.msra.mxu0 0.0
  %283 = vmatprep.subr.mxu0 0.0
  %284 = vmatpush1.msra.mxu0 0.0
  %285 = vmatprep.subr.mxu0 0.0
  %286 = vmatpush1.msra.mxu0 0.0
  %287 = vmatprep.mubr.f32.mxu0 0.0
  %288 = vmatmul.mubr.f32.gmra.mrb[0].mxu0 %v146
  %v289 = vpop.f32.mrb[0].mxu0
  %v290 = vadd.f32 %v49, %v289
  %v291 = vpop.f32.mrb[0].mxu0
  %292 = vdwg.mxu0
  %s293 = scalar_lea.vmem %s4, 64
  %v294 = vld [vmem:[%s293] sm:$0xff]
  %v295 = vld [vmem:[%s293 + $0x8] sm:$0xff]
  %v296 = vld [vmem:[%s293 + $0x10] sm:$0xff]
  %v297 = vld [vmem:[%s293 + $0x18] sm:$0xff]
  %298 = vmatprep.subr.mxu0 0.0
  %299 = vmatpush1.msra.mxu0 %v294
  %300 = vmatprep.subr.mxu0 0.0
  %301 = vmatpush1.msra.mxu0 %v295
  %302 = vmatprep.subr.mxu0 0.0
  %303 = vmatpush1.msra.mxu0 %v296
  %304 = vmatprep.subr.mxu0 0.0
  %305 = vmatpush1.msra.mxu0 %v297
  %306 = vmatprep.subr.mxu0 0.0
  %307 = vmatpush1.msra.mxu0 0.0
  %308 = vmatprep.subr.mxu0 0.0
  %309 = vmatpush1.msra.mxu0 0.0
  %310 = vmatprep.subr.mxu0 0.0
  %311 = vmatpush1.msra.mxu0 0.0
  %312 = vmatprep.subr.mxu0 0.0
  %313 = vmatpush1.msra.mxu0 0.0
  %314 = vmatprep.subr.mxu0 0.0
  %315 = vmatpush1.msra.mxu0 0.0
  %316 = vmatprep.subr.mxu0 0.0
  %317 = vmatpush1.msra.mxu0 0.0
  %318 = vmatprep.subr.mxu0 0.0
  %319 = vmatpush1.msra.mxu0 0.0
  %320 = vmatprep.subr.mxu0 0.0
  %321 = vmatpush1.msra.mxu0 0.0
  %322 = vmatprep.subr.mxu0 0.0
  %323 = vmatpush1.msra.mxu0 0.0
  %324 = vmatprep.subr.mxu0 0.0
  %325 = vmatpush1.msra.mxu0 0.0
  %326 = vmatprep.subr.mxu0 0.0
  %327 = vmatpush1.msra.mxu0 0.0
  %328 = vmatprep.subr.mxu0 0.0
  %329 = vmatpush1.msra.mxu0 0.0
  %330 = vmatprep.subr.mxu0 0.0
  %331 = vmatpush1.msra.mxu0 0.0
  %332 = vmatprep.subr.mxu0 0.0
  %333 = vmatpush1.msra.mxu0 0.0
  %334 = vmatprep.subr.mxu0 0.0
  %335 = vmatpush1.msra.mxu0 0.0
  %336 = vmatprep.subr.mxu0 0.0
  %337 = vmatpush1.msra.mxu0 0.0
  %338 = vmatprep.subr.mxu0 0.0
  %339 = vmatpush1.msra.mxu0 0.0
  %340 = vmatprep.subr.mxu0 0.0
  %341 = vmatpush1.msra.mxu0 0.0
  %342 = vmatprep.subr.mxu0 0.0
  %343 = vmatpush1.msra.mxu0 0.0
  %344 = vmatprep.subr.mxu0 0.0
  %345 = vmatpush1.msra.mxu0 0.0
  %346 = vmatprep.subr.mxu0 0.0
  %347 = vmatpush1.msra.mxu0 0.0
  %348 = vmatprep.subr.mxu0 0.0
  %349 = vmatpush1.msra.mxu0 0.0
  %350 = vmatprep.subr.mxu0 0.0
  %351 = vmatpush1.msra.mxu0 0.0
  %352 = vmatprep.subr.mxu0 0.0
  %353 = vmatpush1.msra.mxu0 0.0
  %354 = vmatprep.subr.mxu0 0.0
  %355 = vmatpush1.msra.mxu0 0.0
  %356 = vmatprep.subr.mxu0 0.0
  %357 = vmatpush1.msra.mxu0 0.0
  %358 = vmatprep.subr.mxu0 0.0
  %359 = vmatpush1.msra.mxu0 0.0
  %360 = vmatprep.subr.mxu0 0.0
  %361 = vmatpush1.msra.mxu0 0.0
  %362 = vmatprep.mubr.f32.mxu0 0.0
  %363 = vmatmul.mubr.f32.gmra.mrb[0].mxu0 %v146
  %v364 = vpop.f32.mrb[0].mxu0
  %v365 = vadd.f32 %v51, %v364
  %v366 = vpop.f32.mrb[0].mxu0
  %367 = vdwg.mxu0
  %v368 = vld [vmem:[%s5] sm:$0xff]
  %v369 = vld [vmem:[%s5 + $0x8] sm:$0xff]
  %v370 = vld [vmem:[%s5 + $0x10] sm:$0xff]
  %v371 = vld [vmem:[%s5 + $0x18] sm:$0xff]
  %v372 = vld [vmem:[%s6] sm:$0x1]
  %v374 = vlaneseq
  %v375 = vshrl.u32 %v374, 7
  %v376 = vsub.s32 0, %v375
  %v377 = vrot.slane %v372, %v376
  %v380 = vsel %vm144, %v41, 0
  %382 = vmatprep.subr.mxu0 0.0
  %383 = vmatpush1.msra.mxu0 %v368
  %384 = vmatprep.subr.mxu0 0.0
  %385 = vmatpush1.msra.mxu0 %v369
  %386 = vmatprep.subr.mxu0 0.0
  %387 = vmatpush1.msra.mxu0 %v370
  %388 = vmatprep.subr.mxu0 0.0
  %389 = vmatpush1.msra.mxu0 %v371
  %390 = vmatprep.subr.mxu0 0.0
  %391 = vmatpush1.msra.mxu0 0.0
  %392 = vmatprep.subr.mxu0 0.0
  %393 = vmatpush1.msra.mxu0 0.0
  %394 = vmatprep.subr.mxu0 0.0
  %395 = vmatpush1.msra.mxu0 0.0
  %396 = vmatprep.subr.mxu0 0.0
  %397 = vmatpush1.msra.mxu0 0.0
  %398 = vmatprep.subr.mxu0 0.0
  %399 = vmatpush1.msra.mxu0 0.0
  %400 = vmatprep.subr.mxu0 0.0
  %401 = vmatpush1.msra.mxu0 0.0
  %402 = vmatprep.subr.mxu0 0.0
  %403 = vmatpush1.msra.mxu0 0.0
  %404 = vmatprep.subr.mxu0 0.0
  %405 = vmatpush1.msra.mxu0 0.0
  %406 = vmatprep.subr.mxu0 0.0
  %407 = vmatpush1.msra.mxu0 0.0
  %408 = vmatprep.subr.mxu0 0.0
  %409 = vmatpush1.msra.mxu0 0.0
  %410 = vmatprep.subr.mxu0 0.0
  %411 = vmatpush1.msra.mxu0 0.0
  %412 = vmatprep.subr.mxu0 0.0
  %413 = vmatpush1.msra.mxu0 0.0
  %414 = vmatprep.subr.mxu0 0.0
  %415 = vmatpush1.msra.mxu0 0.0
  %416 = vmatprep.subr.mxu0 0.0
  %417 = vmatpush1.msra.mxu0 0.0
  %418 = vmatprep.subr.mxu0 0.0
  %419 = vmatpush1.msra.mxu0 0.0
  %420 = vmatprep.subr.mxu0 0.0
  %421 = vmatpush1.msra.mxu0 0.0
  %422 = vmatprep.subr.mxu0 0.0
  %423 = vmatpush1.msra.mxu0 0.0
  %424 = vmatprep.subr.mxu0 0.0
  %425 = vmatpush1.msra.mxu0 0.0
  %426 = vmatprep.subr.mxu0 0.0
  %427 = vmatpush1.msra.mxu0 0.0
  %428 = vmatprep.subr.mxu0 0.0
  %429 = vmatpush1.msra.mxu0 0.0
  %430 = vmatprep.subr.mxu0 0.0
  %431 = vmatpush1.msra.mxu0 0.0
  %432 = vmatprep.subr.mxu0 0.0
  %433 = vmatpush1.msra.mxu0 0.0
  %434 = vmatprep.subr.mxu0 0.0
  %435 = vmatpush1.msra.mxu0 0.0
  %436 = vmatprep.subr.mxu0 0.0
  %437 = vmatpush1.msra.mxu0 0.0
  %438 = vmatprep.subr.mxu0 0.0
  %439 = vmatpush1.msra.mxu0 0.0
  %440 = vmatprep.subr.mxu0 0.0
  %441 = vmatpush1.msra.mxu0 0.0
  %442 = vmatprep.subr.mxu0 0.0
  %443 = vmatpush1.msra.mxu0 0.0
  %444 = vmatprep.subr.mxu0 0.0
  %445 = vmatpush1.msra.mxu0 0.0
  %446 = vmatprep.mubr.f32.mxu0 0.0
  %447 = vmatmul.mubr.f32.gmra.mrb[0].mxu0 %v380
  %v448 = vpop.f32.mrb[0].mxu0
  %v449 = vadd.f32 %v377, %v448
  %v450 = vpop.f32.mrb[0].mxu0
  %451 = vdwg.mxu0
  %s452 = scalar_lea.vmem %s5, 32
  %v453 = vld [vmem:[%s452] sm:$0xff]
  %v454 = vld [vmem:[%s452 + $0x8] sm:$0xff]
  %v455 = vld [vmem:[%s452 + $0x10] sm:$0xff]
  %v456 = vld [vmem:[%s452 + $0x18] sm:$0xff]
  %s457 = scalar_lea.vmem %s6, 1
  %v458 = vld [vmem:[%s457] sm:$0x1]
  %v460 = vlaneseq
  %v461 = vshrl.u32 %v460, 7
  %v462 = vsub.s32 0, %v461
  %v463 = vrot.slane %v458, %v462
  %465 = vmatprep.subr.mxu0 0.0
  %466 = vmatpush1.msra.mxu0 %v453
  %467 = vmatprep.subr.mxu0 0.0
  %468 = vmatpush1.msra.mxu0 %v454
  %469 = vmatprep.subr.mxu0 0.0
  %470 = vmatpush1.msra.mxu0 %v455
  %471 = vmatprep.subr.mxu0 0.0
  %472 = vmatpush1.msra.mxu0 %v456
  %473 = vmatprep.subr.mxu0 0.0
  %474 = vmatpush1.msra.mxu0 0.0
  %475 = vmatprep.subr.mxu0 0.0
  %476 = vmatpush1.msra.mxu0 0.0
  %477 = vmatprep.subr.mxu0 0.0
  %478 = vmatpush1.msra.mxu0 0.0
  %479 = vmatprep.subr.mxu0 0.0
  %480 = vmatpush1.msra.mxu0 0.0
  %481 = vmatprep.subr.mxu0 0.0
  %482 = vmatpush1.msra.mxu0 0.0
  %483 = vmatprep.subr.mxu0 0.0
  %484 = vmatpush1.msra.mxu0 0.0
  %485 = vmatprep.subr.mxu0 0.0
  %486 = vmatpush1.msra.mxu0 0.0
  %487 = vmatprep.subr.mxu0 0.0
  %488 = vmatpush1.msra.mxu0 0.0
  %489 = vmatprep.subr.mxu0 0.0
  %490 = vmatpush1.msra.mxu0 0.0
  %491 = vmatprep.subr.mxu0 0.0
  %492 = vmatpush1.msra.mxu0 0.0
  %493 = vmatprep.subr.mxu0 0.0
  %494 = vmatpush1.msra.mxu0 0.0
  %495 = vmatprep.subr.mxu0 0.0
  %496 = vmatpush1.msra.mxu0 0.0
  %497 = vmatprep.subr.mxu0 0.0
  %498 = vmatpush1.msra.mxu0 0.0
  %499 = vmatprep.subr.mxu0 0.0
  %500 = vmatpush1.msra.mxu0 0.0
  %501 = vmatprep.subr.mxu0 0.0
  %502 = vmatpush1.msra.mxu0 0.0
  %503 = vmatprep.subr.mxu0 0.0
  %504 = vmatpush1.msra.mxu0 0.0
  %505 = vmatprep.subr.mxu0 0.0
  %506 = vmatpush1.msra.mxu0 0.0
  %507 = vmatprep.subr.mxu0 0.0
  %508 = vmatpush1.msra.mxu0 0.0
  %509 = vmatprep.subr.mxu0 0.0
  %510 = vmatpush1.msra.mxu0 0.0
  %511 = vmatprep.subr.mxu0 0.0
  %512 = vmatpush1.msra.mxu0 0.0
  %513 = vmatprep.subr.mxu0 0.0
  %514 = vmatpush1.msra.mxu0 0.0
  %515 = vmatprep.subr.mxu0 0.0
  %516 = vmatpush1.msra.mxu0 0.0
  %517 = vmatprep.subr.mxu0 0.0
  %518 = vmatpush1.msra.mxu0 0.0
  %519 = vmatprep.subr.mxu0 0.0
  %520 = vmatpush1.msra.mxu0 0.0
  %521 = vmatprep.subr.mxu0 0.0
  %522 = vmatpush1.msra.mxu0 0.0
  %523 = vmatprep.subr.mxu0 0.0
  %524 = vmatpush1.msra.mxu0 0.0
  %525 = vmatprep.subr.mxu0 0.0
  %526 = vmatpush1.msra.mxu0 0.0
  %527 = vmatprep.subr.mxu0 0.0
  %528 = vmatpush1.msra.mxu0 0.0
  %529 = vmatprep.mubr.f32.mxu0 0.0
  %530 = vmatmul.mubr.f32.gmra.mrb[0].mxu0 %v380
  %v531 = vpop.f32.mrb[0].mxu0
  %v532 = vadd.f32 %v463, %v531
  %v533 = vpop.f32.mrb[0].mxu0
  %534 = vdwg.mxu0
  %s535 = scalar_lea.vmem %s5, 64
  %v536 = vld [vmem:[%s535] sm:$0xff]
  %v537 = vld [vmem:[%s535 + $0x8] sm:$0xff]
  %v538 = vld [vmem:[%s535 + $0x10] sm:$0xff]
  %v539 = vld [vmem:[%s535 + $0x18] sm:$0xff]
  %s540 = scalar_lea.vmem %s6, 2
  %v541 = vld [vmem:[%s540] sm:$0x1]
  %v543 = vlaneseq
  %v544 = vshrl.u32 %v543, 7
  %v545 = vsub.s32 0, %v544
  %v546 = vrot.slane %v541, %v545
  %548 = vmatprep.subr.mxu0 0.0
  %549 = vmatpush1.msra.mxu0 %v536
  %550 = vmatprep.subr.mxu0 0.0
  %551 = vmatpush1.msra.mxu0 %v537
  %552 = vmatprep.subr.mxu0 0.0
  %553 = vmatpush1.msra.mxu0 %v538
  %554 = vmatprep.subr.mxu0 0.0
  %555 = vmatpush1.msra.mxu0 %v539
  %556 = vmatprep.subr.mxu0 0.0
  %557 = vmatpush1.msra.mxu0 0.0
  %558 = vmatprep.subr.mxu0 0.0
  %559 = vmatpush1.msra.mxu0 0.0
  %560 = vmatprep.subr.mxu0 0.0
  %561 = vmatpush1.msra.mxu0 0.0
  %562 = vmatprep.subr.mxu0 0.0
  %563 = vmatpush1.msra.mxu0 0.0
  %564 = vmatprep.subr.mxu0 0.0
  %565 = vmatpush1.msra.mxu0 0.0
  %566 = vmatprep.subr.mxu0 0.0
  %567 = vmatpush1.msra.mxu0 0.0
  %568 = vmatprep.subr.mxu0 0.0
  %569 = vmatpush1.msra.mxu0 0.0
  %570 = vmatprep.subr.mxu0 0.0
  %571 = vmatpush1.msra.mxu0 0.0
  %572 = vmatprep.subr.mxu0 0.0
  %573 = vmatpush1.msra.mxu0 0.0
  %574 = vmatprep.subr.mxu0 0.0
  %575 = vmatpush1.msra.mxu0 0.0
  %576 = vmatprep.subr.mxu0 0.0
  %577 = vmatpush1.msra.mxu0 0.0
  %578 = vmatprep.subr.mxu0 0.0
  %579 = vmatpush1.msra.mxu0 0.0
  %580 = vmatprep.subr.mxu0 0.0
  %581 = vmatpush1.msra.mxu0 0.0
  %582 = vmatprep.subr.mxu0 0.0
  %583 = vmatpush1.msra.mxu0 0.0
  %584 = vmatprep.subr.mxu0 0.0
  %585 = vmatpush1.msra.mxu0 0.0
  %586 = vmatprep.subr.mxu0 0.0
  %587 = vmatpush1.msra.mxu0 0.0
  %588 = vmatprep.subr.mxu0 0.0
  %589 = vmatpush1.msra.mxu0 0.0
  %590 = vmatprep.subr.mxu0 0.0
  %591 = vmatpush1.msra.mxu0 0.0
  %592 = vmatprep.subr.mxu0 0.0
  %593 = vmatpush1.msra.mxu0 0.0
  %594 = vmatprep.subr.mxu0 0.0
  %595 = vmatpush1.msra.mxu0 0.0
  %596 = vmatprep.subr.mxu0 0.0
  %597 = vmatpush1.msra.mxu0 0.0
  %598 = vmatprep.subr.mxu0 0.0
  %599 = vmatpush1.msra.mxu0 0.0
  %600 = vmatprep.subr.mxu0 0.0
  %601 = vmatpush1.msra.mxu0 0.0
  %602 = vmatprep.subr.mxu0 0.0
  %603 = vmatpush1.msra.mxu0 0.0
  %604 = vmatprep.subr.mxu0 0.0
  %605 = vmatpush1.msra.mxu0 0.0
  %606 = vmatprep.subr.mxu0 0.0
  %607 = vmatpush1.msra.mxu0 0.0
  %608 = vmatprep.subr.mxu0 0.0
  %609 = vmatpush1.msra.mxu0 0.0
  %610 = vmatprep.subr.mxu0 0.0
  %611 = vmatpush1.msra.mxu0 0.0
  %612 = vmatprep.mubr.f32.mxu0 0.0
  %613 = vmatmul.mubr.f32.gmra.mrb[0].mxu0 %v380
  %v614 = vpop.f32.mrb[0].mxu0
  %v615 = vadd.f32 %v546, %v614
  %v616 = vpop.f32.mrb[0].mxu0
  %617 = vdwg.mxu0
  %v618 = vadd.f32 %v215, %v449
  %v619 = vxor.u32 %v618, 2147483648
  %v620 = vmul.f32 %v619, 1.442695
  %v621 = vpow.pop %v620
  %v622 = vadd.f32 %v621, 1.0
  %v623 = vrcp.pop %v622
  %v624 = vmul.f32 1.0, %v623
  %v625 = vadd.f32 %v290, %v532
  %v626 = vxor.u32 %v625, 2147483648
  %v627 = vmul.f32 %v626, 1.442695
  %v628 = vpow.pop %v627
  %v629 = vadd.f32 %v628, 1.0
  %v630 = vrcp.pop %v629
  %v631 = vmul.f32 1.0, %v630
  %v632 = vmul.f32 %v624, %v615
  %v633 = vadd.f32 %v365, %v632
  %v634 = vtanh.pop %v633
  %v635 = vsub.f32 1.0, %v631
  %v636 = vmul.f32 %v635, %v634
  %v637 = vmul.f32 %v631, %v41
  %v638 = vadd.f32 %v636, %v637
  %v639 = vld [vmem:[%s8] sm:$0x1]
  %s640 = scalar_lea.vmem %s8, 1
  %v641 = vld [vmem:[%s640] sm:$0x1]
  %s642 = scalar_lea.vmem %s8, 2
  %v643 = vld [vmem:[%s642] sm:$0x1]
  %v644 = vld [vmem:[%s7] sm:$0xff]
  %v645 = vld [vmem:[%s7 + $0x8] sm:$0xff]
  %v646 = vld [vmem:[%s7 + $0x10] sm:$0xff]
  %v647 = vld [vmem:[%s7 + $0x18] sm:$0xff]
  %v649 = vlaneseq
  %v650 = vshrl.u32 %v649, 7
  %v651 = vsub.s32 0, %v650
  %v652 = vrot.slane %v639, %v651
  %v655 = vsel %vm144, %v638, 0
  %657 = vmatprep.subr.mxu0 0.0
  %658 = vmatpush1.msra.mxu0 %v644
  %659 = vmatprep.subr.mxu0 0.0
  %660 = vmatpush1.msra.mxu0 %v645
  %661 = vmatprep.subr.mxu0 0.0
  %662 = vmatpush1.msra.mxu0 %v646
  %663 = vmatprep.subr.mxu0 0.0
  %664 = vmatpush1.msra.mxu0 %v647
  %665 = vmatprep.subr.mxu0 0.0
  %666 = vmatpush1.msra.mxu0 0.0
  %667 = vmatprep.subr.mxu0 0.0
  %668 = vmatpush1.msra.mxu0 0.0
  %669 = vmatprep.subr.mxu0 0.0
  %670 = vmatpush1.msra.mxu0 0.0
  %671 = vmatprep.subr.mxu0 0.0
  %672 = vmatpush1.msra.mxu0 0.0
  %673 = vmatprep.subr.mxu0 0.0
  %674 = vmatpush1.msra.mxu0 0.0
  %675 = vmatprep.subr.mxu0 0.0
  %676 = vmatpush1.msra.mxu0 0.0
  %677 = vmatprep.subr.mxu0 0.0
  %678 = vmatpush1.msra.mxu0 0.0
  %679 = vmatprep.subr.mxu0 0.0
  %680 = vmatpush1.msra.mxu0 0.0
  %681 = vmatprep.subr.mxu0 0.0
  %682 = vmatpush1.msra.mxu0 0.0
  %683 = vmatprep.subr.mxu0 0.0
  %684 = vmatpush1.msra.mxu0 0.0
  %685 = vmatprep.subr.mxu0 0.0
  %686 = vmatpush1.msra.mxu0 0.0
  %687 = vmatprep.subr.mxu0 0.0
  %688 = vmatpush1.msra.mxu0 0.0
  %689 = vmatprep.subr.mxu0 0.0
  %690 = vmatpush1.msra.mxu0 0.0
  %691 = vmatprep.subr.mxu0 0.0
  %692 = vmatpush1.msra.mxu0 0.0
  %693 = vmatprep.subr.mxu0 0.0
  %694 = vmatpush1.msra.mxu0 0.0
  %695 = vmatprep.subr.mxu0 0.0
  %696 = vmatpush1.msra.mxu0 0.0
  %697 = vmatprep.subr.mxu0 0.0
  %698 = vmatpush1.msra.mxu0 0.0
  %699 = vmatprep.subr.mxu0 0.0
  %700 = vmatpush1.msra.mxu0 0.0
  %701 = vmatprep.subr.mxu0 0.0
  %702 = vmatpush1.msra.mxu0 0.0
  %703 = vmatprep.subr.mxu0 0.0
  %704 = vmatpush1.msra.mxu0 0.0
  %705 = vmatprep.subr.mxu0 0.0
  %706 = vmatpush1.msra.mxu0 0.0
  %707 = vmatprep.subr.mxu0 0.0
  %708 = vmatpush1.msra.mxu0 0.0
  %709 = vmatprep.subr.mxu0 0.0
  %710 = vmatpush1.msra.mxu0 0.0
  %711 = vmatprep.subr.mxu0 0.0
  %712 = vmatpush1.msra.mxu0 0.0
  %713 = vmatprep.subr.mxu0 0.0
  %714 = vmatpush1.msra.mxu0 0.0
  %715 = vmatprep.subr.mxu0 0.0
  %716 = vmatpush1.msra.mxu0 0.0
  %717 = vmatprep.subr.mxu0 0.0
  %718 = vmatpush1.msra.mxu0 0.0
  %719 = vmatprep.subr.mxu0 0.0
  %720 = vmatpush1.msra.mxu0 0.0
  %721 = vmatprep.mubr.f32.mxu0 0.0
  %722 = vmatmul.mubr.f32.gmra.mrb[0].mxu0 %v655
  %v723 = vpop.f32.mrb[0].mxu0
  %v724 = vadd.f32 %v652, %v723
  %v725 = vpop.f32.mrb[0].mxu0
  %726 = vdwg.mxu0
  %s727 = scalar_lea.vmem %s7, 32
  %v728 = vld [vmem:[%s727] sm:$0xff]
  %v729 = vld [vmem:[%s727 + $0x8] sm:$0xff]
  %v730 = vld [vmem:[%s727 + $0x10] sm:$0xff]
  %v731 = vld [vmem:[%s727 + $0x18] sm:$0xff]
  %v733 = vlaneseq
  %v734 = vshrl.u32 %v733, 7
  %v735 = vsub.s32 0, %v734
  %v736 = vrot.slane %v641, %v735
  %738 = vmatprep.subr.mxu0 0.0
  %739 = vmatpush1.msra.mxu0 %v728
  %740 = vmatprep.subr.mxu0 0.0
  %741 = vmatpush1.msra.mxu0 %v729
  %742 = vmatprep.subr.mxu0 0.0
  %743 = vmatpush1.msra.mxu0 %v730
  %744 = vmatprep.subr.mxu0 0.0
  %745 = vmatpush1.msra.mxu0 %v731
  %746 = vmatprep.subr.mxu0 0.0
  %747 = vmatpush1.msra.mxu0 0.0
  %748 = vmatprep.subr.mxu0 0.0
  %749 = vmatpush1.msra.mxu0 0.0
  %750 = vmatprep.subr.mxu0 0.0
  %751 = vmatpush1.msra.mxu0 0.0
  %752 = vmatprep.subr.mxu0 0.0
  %753 = vmatpush1.msra.mxu0 0.0
  %754 = vmatprep.subr.mxu0 0.0
  %755 = vmatpush1.msra.mxu0 0.0
  %756 = vmatprep.subr.mxu0 0.0
  %757 = vmatpush1.msra.mxu0 0.0
  %758 = vmatprep.subr.mxu0 0.0
  %759 = vmatpush1.msra.mxu0 0.0
  %760 = vmatprep.subr.mxu0 0.0
  %761 = vmatpush1.msra.mxu0 0.0
  %762 = vmatprep.subr.mxu0 0.0
  %763 = vmatpush1.msra.mxu0 0.0
  %764 = vmatprep.subr.mxu0 0.0
  %765 = vmatpush1.msra.mxu0 0.0
  %766 = vmatprep.subr.mxu0 0.0
  %767 = vmatpush1.msra.mxu0 0.0
  %768 = vmatprep.subr.mxu0 0.0
  %769 = vmatpush1.msra.mxu0 0.0
  %770 = vmatprep.subr.mxu0 0.0
  %771 = vmatpush1.msra.mxu0 0.0
  %772 = vmatprep.subr.mxu0 0.0
  %773 = vmatpush1.msra.mxu0 0.0
  %774 = vmatprep.subr.mxu0 0.0
  %775 = vmatpush1.msra.mxu0 0.0
  %776 = vmatprep.subr.mxu0 0.0
  %777 = vmatpush1.msra.mxu0 0.0
  %778 = vmatprep.subr.mxu0 0.0
  %779 = vmatpush1.msra.mxu0 0.0
  %780 = vmatprep.subr.mxu0 0.0
  %781 = vmatpush1.msra.mxu0 0.0
  %782 = vmatprep.subr.mxu0 0.0
  %783 = vmatpush1.msra.mxu0 0.0
  %784 = vmatprep.subr.mxu0 0.0
  %785 = vmatpush1.msra.mxu0 0.0
  %786 = vmatprep.subr.mxu0 0.0
  %787 = vmatpush1.msra.mxu0 0.0
  %788 = vmatprep.subr.mxu0 0.0
  %789 = vmatpush1.msra.mxu0 0.0
  %790 = vmatprep.subr.mxu0 0.0
  %791 = vmatpush1.msra.mxu0 0.0
  %792 = vmatprep.subr.mxu0 0.0
  %793 = vmatpush1.msra.mxu0 0.0
  %794 = vmatprep.subr.mxu0 0.0
  %795 = vmatpush1.msra.mxu0 0.0
  %796 = vmatprep.subr.mxu0 0.0
  %797 = vmatpush1.msra.mxu0 0.0
  %798 = vmatprep.subr.mxu0 0.0
  %799 = vmatpush1.msra.mxu0 0.0
  %800 = vmatprep.subr.mxu0 0.0
  %801 = vmatpush1.msra.mxu0 0.0
  %802 = vmatprep.mubr.f32.mxu0 0.0
  %803 = vmatmul.mubr.f32.gmra.mrb[0].mxu0 %v655
  %v804 = vpop.f32.mrb[0].mxu0
  %v805 = vadd.f32 %v736, %v804
  %v806 = vpop.f32.mrb[0].mxu0
  %807 = vdwg.mxu0
  %s808 = scalar_lea.vmem %s7, 64
  %v809 = vld [vmem:[%s808] sm:$0xff]
  %v810 = vld [vmem:[%s808 + $0x8] sm:$0xff]
  %v811 = vld [vmem:[%s808 + $0x10] sm:$0xff]
  %v812 = vld [vmem:[%s808 + $0x18] sm:$0xff]
  %v814 = vlaneseq
  %v815 = vshrl.u32 %v814, 7
  %v816 = vsub.s32 0, %v815
  %v817 = vrot.slane %v643, %v816
  %819 = vmatprep.subr.mxu0 0.0
  %820 = vmatpush1.msra.mxu0 %v809
  %821 = vmatprep.subr.mxu0 0.0
  %822 = vmatpush1.msra.mxu0 %v810
  %823 = vmatprep.subr.mxu0 0.0
  %824 = vmatpush1.msra.mxu0 %v811
  %825 = vmatprep.subr.mxu0 0.0
  %826 = vmatpush1.msra.mxu0 %v812
  %827 = vmatprep.subr.mxu0 0.0
  %828 = vmatpush1.msra.mxu0 0.0
  %829 = vmatprep.subr.mxu0 0.0
  %830 = vmatpush1.msra.mxu0 0.0
  %831 = vmatprep.subr.mxu0 0.0
  %832 = vmatpush1.msra.mxu0 0.0
  %833 = vmatprep.subr.mxu0 0.0
  %834 = vmatpush1.msra.mxu0 0.0
  %835 = vmatprep.subr.mxu0 0.0
  %836 = vmatpush1.msra.mxu0 0.0
  %837 = vmatprep.subr.mxu0 0.0
  %838 = vmatpush1.msra.mxu0 0.0
  %839 = vmatprep.subr.mxu0 0.0
  %840 = vmatpush1.msra.mxu0 0.0
  %841 = vmatprep.subr.mxu0 0.0
  %842 = vmatpush1.msra.mxu0 0.0
  %843 = vmatprep.subr.mxu0 0.0
  %844 = vmatpush1.msra.mxu0 0.0
  %845 = vmatprep.subr.mxu0 0.0
  %846 = vmatpush1.msra.mxu0 0.0
  %847 = vmatprep.subr.mxu0 0.0
  %848 = vmatpush1.msra.mxu0 0.0
  %849 = vmatprep.subr.mxu0 0.0
  %850 = vmatpush1.msra.mxu0 0.0
  %851 = vmatprep.subr.mxu0 0.0
  %852 = vmatpush1.msra.mxu0 0.0
  %853 = vmatprep.subr.mxu0 0.0
  %854 = vmatpush1.msra.mxu0 0.0
  %855 = vmatprep.subr.mxu0 0.0
  %856 = vmatpush1.msra.mxu0 0.0
  %857 = vmatprep.subr.mxu0 0.0
  %858 = vmatpush1.msra.mxu0 0.0
  %859 = vmatprep.subr.mxu0 0.0
  %860 = vmatpush1.msra.mxu0 0.0
  %861 = vmatprep.subr.mxu0 0.0
  %862 = vmatpush1.msra.mxu0 0.0
  %863 = vmatprep.subr.mxu0 0.0
  %864 = vmatpush1.msra.mxu0 0.0
  %865 = vmatprep.subr.mxu0 0.0
  %866 = vmatpush1.msra.mxu0 0.0
  %867 = vmatprep.subr.mxu0 0.0
  %868 = vmatpush1.msra.mxu0 0.0
  %869 = vmatprep.subr.mxu0 0.0
  %870 = vmatpush1.msra.mxu0 0.0
  %871 = vmatprep.subr.mxu0 0.0
  %872 = vmatpush1.msra.mxu0 0.0
  %873 = vmatprep.subr.mxu0 0.0
  %874 = vmatpush1.msra.mxu0 0.0
  %875 = vmatprep.subr.mxu0 0.0
  %876 = vmatpush1.msra.mxu0 0.0
  %877 = vmatprep.subr.mxu0 0.0
  %878 = vmatpush1.msra.mxu0 0.0
  %879 = vmatprep.subr.mxu0 0.0
  %880 = vmatpush1.msra.mxu0 0.0
  %881 = vmatprep.subr.mxu0 0.0
  %882 = vmatpush1.msra.mxu0 0.0
  %883 = vmatprep.mubr.f32.mxu0 0.0
  %884 = vmatmul.mubr.f32.gmra.mrb[0].mxu0 %v655
  %v885 = vpop.f32.mrb[0].mxu0
  %v886 = vadd.f32 %v817, %v885
  %v887 = vpop.f32.mrb[0].mxu0
  %888 = vdwg.mxu0
  %v889 = vld [vmem:[%s9] sm:$0xff]
  %v890 = vld [vmem:[%s9 + $0x8] sm:$0xff]
  %v891 = vld [vmem:[%s9 + $0x10] sm:$0xff]
  %v892 = vld [vmem:[%s9 + $0x18] sm:$0xff]
  %v893 = vld [vmem:[%s10] sm:$0x1]
  %v895 = vlaneseq
  %v896 = vshrl.u32 %v895, 7
  %v897 = vsub.s32 0, %v896
  %v898 = vrot.slane %v893, %v897
  %900 = vmatprep.subr.mxu0 0.0
  %901 = vmatpush1.msra.mxu0 %v889
  %902 = vmatprep.subr.mxu0 0.0
  %903 = vmatpush1.msra.mxu0 %v890
  %904 = vmatprep.subr.mxu0 0.0
  %905 = vmatpush1.msra.mxu0 %v891
  %906 = vmatprep.subr.mxu0 0.0
  %907 = vmatpush1.msra.mxu0 %v892
  %908 = vmatprep.subr.mxu0 0.0
  %909 = vmatpush1.msra.mxu0 0.0
  %910 = vmatprep.subr.mxu0 0.0
  %911 = vmatpush1.msra.mxu0 0.0
  %912 = vmatprep.subr.mxu0 0.0
  %913 = vmatpush1.msra.mxu0 0.0
  %914 = vmatprep.subr.mxu0 0.0
  %915 = vmatpush1.msra.mxu0 0.0
  %916 = vmatprep.subr.mxu0 0.0
  %917 = vmatpush1.msra.mxu0 0.0
  %918 = vmatprep.subr.mxu0 0.0
  %919 = vmatpush1.msra.mxu0 0.0
  %920 = vmatprep.subr.mxu0 0.0
  %921 = vmatpush1.msra.mxu0 0.0
  %922 = vmatprep.subr.mxu0 0.0
  %923 = vmatpush1.msra.mxu0 0.0
  %924 = vmatprep.subr.mxu0 0.0
  %925 = vmatpush1.msra.mxu0 0.0
  %926 = vmatprep.subr.mxu0 0.0
  %927 = vmatpush1.msra.mxu0 0.0
  %928 = vmatprep.subr.mxu0 0.0
  %929 = vmatpush1.msra.mxu0 0.0
  %930 = vmatprep.subr.mxu0 0.0
  %931 = vmatpush1.msra.mxu0 0.0
  %932 = vmatprep.subr.mxu0 0.0
  %933 = vmatpush1.msra.mxu0 0.0
  %934 = vmatprep.subr.mxu0 0.0
  %935 = vmatpush1.msra.mxu0 0.0
  %936 = vmatprep.subr.mxu0 0.0
  %937 = vmatpush1.msra.mxu0 0.0
  %938 = vmatprep.subr.mxu0 0.0
  %939 = vmatpush1.msra.mxu0 0.0
  %940 = vmatprep.subr.mxu0 0.0
  %941 = vmatpush1.msra.mxu0 0.0
  %942 = vmatprep.subr.mxu0 0.0
  %943 = vmatpush1.msra.mxu0 0.0
  %944 = vmatprep.subr.mxu0 0.0
  %945 = vmatpush1.msra.mxu0 0.0
  %946 = vmatprep.subr.mxu0 0.0
  %947 = vmatpush1.msra.mxu0 0.0
  %948 = vmatprep.subr.mxu0 0.0
  %949 = vmatpush1.msra.mxu0 0.0
  %950 = vmatprep.subr.mxu0 0.0
  %951 = vmatpush1.msra.mxu0 0.0
  %952 = vmatprep.subr.mxu0 0.0
  %953 = vmatpush1.msra.mxu0 0.0
  %954 = vmatprep.subr.mxu0 0.0
  %955 = vmatpush1.msra.mxu0 0.0
  %956 = vmatprep.subr.mxu0 0.0
  %957 = vmatpush1.msra.mxu0 0.0
  %958 = vmatprep.subr.mxu0 0.0
  %959 = vmatpush1.msra.mxu0 0.0
  %960 = vmatprep.subr.mxu0 0.0
  %961 = vmatpush1.msra.mxu0 0.0
  %962 = vmatprep.subr.mxu0 0.0
  %963 = vmatpush1.msra.mxu0 0.0
  %964 = vmatprep.mubr.f32.mxu0 0.0
  %965 = vmatmul.mubr.f32.gmra.mrb[0].mxu0 %v380
  %v966 = vpop.f32.mrb[0].mxu0
  %v967 = vadd.f32 %v898, %v966
  %v968 = vpop.f32.mrb[0].mxu0
  %969 = vdwg.mxu0
  %s970 = scalar_lea.vmem %s9, 32
  %v971 = vld [vmem:[%s970] sm:$0xff]
  %v972 = vld [vmem:[%s970 + $0x8] sm:$0xff]
  %v973 = vld [vmem:[%s970 + $0x10] sm:$0xff]
  %v974 = vld [vmem:[%s970 + $0x18] sm:$0xff]
  %s975 = scalar_lea.vmem %s10, 1
  %v976 = vld [vmem:[%s975] sm:$0x1]
  %v978 = vlaneseq
  %v979 = vshrl.u32 %v978, 7
  %v980 = vsub.s32 0, %v979
  %v981 = vrot.slane %v976, %v980
  %983 = vmatprep.subr.mxu0 0.0
  %984 = vmatpush1.msra.mxu0 %v971
  %985 = vmatprep.subr.mxu0 0.0
  %986 = vmatpush1.msra.mxu0 %v972
  %987 = vmatprep.subr.mxu0 0.0
  %988 = vmatpush1.msra.mxu0 %v973
  %989 = vmatprep.subr.mxu0 0.0
  %990 = vmatpush1.msra.mxu0 %v974
  %991 = vmatprep.subr.mxu0 0.0
  %992 = vmatpush1.msra.mxu0 0.0
  %993 = vmatprep.subr.mxu0 0.0
  %994 = vmatpush1.msra.mxu0 0.0
  %995 = vmatprep.subr.mxu0 0.0
  %996 = vmatpush1.msra.mxu0 0.0
  %997 = vmatprep.subr.mxu0 0.0
  %998 = vmatpush1.msra.mxu0 0.0
  %999 = vmatprep.subr.mxu0 0.0
  %1000 = vmatpush1.msra.mxu0 0.0
  %1001 = vmatprep.subr.mxu0 0.0
  %1002 = vmatpush1.msra.mxu0 0.0
  %1003 = vmatprep.subr.mxu0 0.0
  %1004 = vmatpush1.msra.mxu0 0.0
  %1005 = vmatprep.subr.mxu0 0.0
  %1006 = vmatpush1.msra.mxu0 0.0
  %1007 = vmatprep.subr.mxu0 0.0
  %1008 = vmatpush1.msra.mxu0 0.0
  %1009 = vmatprep.subr.mxu0 0.0
  %1010 = vmatpush1.msra.mxu0 0.0
  %1011 = vmatprep.subr.mxu0 0.0
  %1012 = vmatpush1.msra.mxu0 0.0
  %1013 = vmatprep.subr.mxu0 0.0
  %1014 = vmatpush1.msra.mxu0 0.0
  %1015 = vmatprep.subr.mxu0 0.0
  %1016 = vmatpush1.msra.mxu0 0.0
  %1017 = vmatprep.subr.mxu0 0.0
  %1018 = vmatpush1.msra.mxu0 0.0
  %1019 = vmatprep.subr.mxu0 0.0
  %1020 = vmatpush1.msra.mxu0 0.0
  %1021 = vmatprep.subr.mxu0 0.0
  %1022 = vmatpush1.msra.mxu0 0.0
  %1023 = vmatprep.subr.mxu0 0.0
  %1024 = vmatpush1.msra.mxu0 0.0
  %1025 = vmatprep.subr.mxu0 0.0
  %1026 = vmatpush1.msra.mxu0 0.0
  %1027 = vmatprep.subr.mxu0 0.0
  %1028 = vmatpush1.msra.mxu0 0.0
  %1029 = vmatprep.subr.mxu0 0.0
  %1030 = vmatpush1.msra.mxu0 0.0
  %1031 = vmatprep.subr.mxu0 0.0
  %1032 = vmatpush1.msra.mxu0 0.0
  %1033 = vmatprep.subr.mxu0 0.0
  %1034 = vmatpush1.msra.mxu0 0.0
  %1035 = vmatprep.subr.mxu0 0.0
  %1036 = vmatpush1.msra.mxu0 0.0
  %1037 = vmatprep.subr.mxu0 0.0
  %1038 = vmatpush1.msra.mxu0 0.0
  %1039 = vmatprep.subr.mxu0 0.0
  %1040 = vmatpush1.msra.mxu0 0.0
  %1041 = vmatprep.subr.mxu0 0.0
  %1042 = vmatpush1.msra.mxu0 0.0
  %1043 = vmatprep.subr.mxu0 0.0
  %1044 = vmatpush1.msra.mxu0 0.0
  %1045 = vmatprep.subr.mxu0 0.0
  %1046 = vmatpush1.msra.mxu0 0.0
  %1047 = vmatprep.mubr.f32.mxu0 0.0
  %1048 = vmatmul.mubr.f32.gmra.mrb[0].mxu0 %v380
  %v1049 = vpop.f32.mrb[0].mxu0
  %v1050 = vadd.f32 %v981, %v1049
  %v1051 = vpop.f32.mrb[0].mxu0
  %1052 = vdwg.mxu0
  %s1053 = scalar_lea.vmem %s9, 64
  %v1054 = vld [vmem:[%s1053] sm:$0xff]
  %v1055 = vld [vmem:[%s1053 + $0x8] sm:$0xff]
  %v1056 = vld [vmem:[%s1053 + $0x10] sm:$0xff]
  %v1057 = vld [vmem:[%s1053 + $0x18] sm:$0xff]
  %s1058 = scalar_lea.vmem %s10, 2
  %v1059 = vld [vmem:[%s1058] sm:$0x1]
  %v1061 = vlaneseq
  %v1062 = vshrl.u32 %v1061, 7
  %v1063 = vsub.s32 0, %v1062
  %v1064 = vrot.slane %v1059, %v1063
  %1066 = vmatprep.subr.mxu0 0.0
  %1067 = vmatpush1.msra.mxu0 %v1054
  %1068 = vmatprep.subr.mxu0 0.0
  %1069 = vmatpush1.msra.mxu0 %v1055
  %1070 = vmatprep.subr.mxu0 0.0
  %1071 = vmatpush1.msra.mxu0 %v1056
  %1072 = vmatprep.subr.mxu0 0.0
  %1073 = vmatpush1.msra.mxu0 %v1057
  %1074 = vmatprep.subr.mxu0 0.0
  %1075 = vmatpush1.msra.mxu0 0.0
  %1076 = vmatprep.subr.mxu0 0.0
  %1077 = vmatpush1.msra.mxu0 0.0
  %1078 = vmatprep.subr.mxu0 0.0
  %1079 = vmatpush1.msra.mxu0 0.0
  %1080 = vmatprep.subr.mxu0 0.0
  %1081 = vmatpush1.msra.mxu0 0.0
  %1082 = vmatprep.subr.mxu0 0.0
  %1083 = vmatpush1.msra.mxu0 0.0
  %1084 = vmatprep.subr.mxu0 0.0
  %1085 = vmatpush1.msra.mxu0 0.0
  %1086 = vmatprep.subr.mxu0 0.0
  %1087 = vmatpush1.msra.mxu0 0.0
  %1088 = vmatprep.subr.mxu0 0.0
  %1089 = vmatpush1.msra.mxu0 0.0
  %1090 = vmatprep.subr.mxu0 0.0
  %1091 = vmatpush1.msra.mxu0 0.0
  %1092 = vmatprep.subr.mxu0 0.0
  %1093 = vmatpush1.msra.mxu0 0.0
  %1094 = vmatprep.subr.mxu0 0.0
  %1095 = vmatpush1.msra.mxu0 0.0
  %1096 = vmatprep.subr.mxu0 0.0
  %1097 = vmatpush1.msra.mxu0 0.0
  %1098 = vmatprep.subr.mxu0 0.0
  %1099 = vmatpush1.msra.mxu0 0.0
  %1100 = vmatprep.subr.mxu0 0.0
  %1101 = vmatpush1.msra.mxu0 0.0
  %1102 = vmatprep.subr.mxu0 0.0
  %1103 = vmatpush1.msra.mxu0 0.0
  %1104 = vmatprep.subr.mxu0 0.0
  %1105 = vmatpush1.msra.mxu0 0.0
  %1106 = vmatprep.subr.mxu0 0.0
  %1107 = vmatpush1.msra.mxu0 0.0
  %1108 = vmatprep.subr.mxu0 0.0
  %1109 = vmatpush1.msra.mxu0 0.0
  %1110 = vmatprep.subr.mxu0 0.0
  %1111 = vmatpush1.msra.mxu0 0.0
  %1112 = vmatprep.subr.mxu0 0.0
  %1113 = vmatpush1.msra.mxu0 0.0
  %1114 = vmatprep.subr.mxu0 0.0
  %1115 = vmatpush1.msra.mxu0 0.0
  %1116 = vmatprep.subr.mxu0 0.0
  %1117 = vmatpush1.msra.mxu0 0.0
  %1118 = vmatprep.subr.mxu0 0.0
  %1119 = vmatpush1.msra.mxu0 0.0
  %1120 = vmatprep.subr.mxu0 0.0
  %1121 = vmatpush1.msra.mxu0 0.0
  %1122 = vmatprep.subr.mxu0 0.0
  %1123 = vmatpush1.msra.mxu0 0.0
  %1124 = vmatprep.subr.mxu0 0.0
  %1125 = vmatpush1.msra.mxu0 0.0
  %1126 = vmatprep.subr.mxu0 0.0
  %1127 = vmatpush1.msra.mxu0 0.0
  %1128 = vmatprep.subr.mxu0 0.0
  %1129 = vmatpush1.msra.mxu0 0.0
  %1130 = vmatprep.mubr.f32.mxu0 0.0
  %1131 = vmatmul.mubr.f32.gmra.mrb[0].mxu0 %v380
  %v1132 = vpop.f32.mrb[0].mxu0
  %v1133 = vadd.f32 %v1064, %v1132
  %v1134 = vpop.f32.mrb[0].mxu0
  %1135 = vdwg.mxu0
  %v1136 = vadd.f32 %v724, %v967
  %v1137 = vxor.u32 %v1136, 2147483648
  %v1138 = vmul.f32 %v1137, 1.442695
  %v1139 = vpow.pop %v1138
  %v1140 = vadd.f32 %v1139, 1.0
  %v1141 = vrcp.pop %v1140
  %v1142 = vmul.f32 1.0, %v1141
  %v1143 = vadd.f32 %v805, %v1050
  %v1144 = vxor.u32 %v1143, 2147483648
  %v1145 = vmul.f32 %v1144, 1.442695
  %v1146 = vpow.pop %v1145
  %v1147 = vadd.f32 %v1146, 1.0
  %v1148 = vrcp.pop %v1147
  %v1149 = vmul.f32 1.0, %v1148
  %v1150 = vmul.f32 %v1142, %v1133
  %v1151 = vadd.f32 %v886, %v1150
  %v1152 = vtanh.pop %v1151
  %v1153 = vsub.f32 1.0, %v1149
  %v1154 = vmul.f32 %v1153, %v1152
  %v1155 = vmul.f32 %v1149, %v41
  %v1156 = vadd.f32 %v1154, %v1155
  %v1157 = vld [vmem:[%s11] sm:$0xff]
  %v1158 = vld [vmem:[%s11 + $0x8] sm:$0xff]
  %v1159 = vld [vmem:[%s11 + $0x10] sm:$0xff]
  %v1160 = vld [vmem:[%s11 + $0x18] sm:$0xff]
  %v1162 = vsel %vm144, %v1156, 0
  %1164 = vmatprep.subr.mxu0 0.0
  %1165 = vmatpush1.msra.mxu0 %v1157
  %1166 = vmatprep.subr.mxu0 0.0
  %1167 = vmatpush1.msra.mxu0 %v1158
  %1168 = vmatprep.subr.mxu0 0.0
  %1169 = vmatpush1.msra.mxu0 %v1159
  %1170 = vmatprep.subr.mxu0 0.0
  %1171 = vmatpush1.msra.mxu0 %v1160
  %1172 = vmatprep.subr.mxu0 0.0
  %1173 = vmatpush1.msra.mxu0 0.0
  %1174 = vmatprep.subr.mxu0 0.0
  %1175 = vmatpush1.msra.mxu0 0.0
  %1176 = vmatprep.subr.mxu0 0.0
  %1177 = vmatpush1.msra.mxu0 0.0
  %1178 = vmatprep.subr.mxu0 0.0
  %1179 = vmatpush1.msra.mxu0 0.0
  %1180 = vmatprep.subr.mxu0 0.0
  %1181 = vmatpush1.msra.mxu0 0.0
  %1182 = vmatprep.subr.mxu0 0.0
  %1183 = vmatpush1.msra.mxu0 0.0
  %1184 = vmatprep.subr.mxu0 0.0
  %1185 = vmatpush1.msra.mxu0 0.0
  %1186 = vmatprep.subr.mxu0 0.0
  %1187 = vmatpush1.msra.mxu0 0.0
  %1188 = vmatprep.subr.mxu0 0.0
  %1189 = vmatpush1.msra.mxu0 0.0
  %1190 = vmatprep.subr.mxu0 0.0
  %1191 = vmatpush1.msra.mxu0 0.0
  %1192 = vmatprep.subr.mxu0 0.0
  %1193 = vmatpush1.msra.mxu0 0.0
  %1194 = vmatprep.subr.mxu0 0.0
  %1195 = vmatpush1.msra.mxu0 0.0
  %1196 = vmatprep.subr.mxu0 0.0
  %1197 = vmatpush1.msra.mxu0 0.0
  %1198 = vmatprep.subr.mxu0 0.0
  %1199 = vmatpush1.msra.mxu0 0.0
  %1200 = vmatprep.subr.mxu0 0.0
  %1201 = vmatpush1.msra.mxu0 0.0
  %1202 = vmatprep.subr.mxu0 0.0
  %1203 = vmatpush1.msra.mxu0 0.0
  %1204 = vmatprep.subr.mxu0 0.0
  %1205 = vmatpush1.msra.mxu0 0.0
  %1206 = vmatprep.subr.mxu0 0.0
  %1207 = vmatpush1.msra.mxu0 0.0
  %1208 = vmatprep.subr.mxu0 0.0
  %1209 = vmatpush1.msra.mxu0 0.0
  %1210 = vmatprep.subr.mxu0 0.0
  %1211 = vmatpush1.msra.mxu0 0.0
  %1212 = vmatprep.subr.mxu0 0.0
  %1213 = vmatpush1.msra.mxu0 0.0
  %1214 = vmatprep.subr.mxu0 0.0
  %1215 = vmatpush1.msra.mxu0 0.0
  %1216 = vmatprep.subr.mxu0 0.0
  %1217 = vmatpush1.msra.mxu0 0.0
  %1218 = vmatprep.subr.mxu0 0.0
  %1219 = vmatpush1.msra.mxu0 0.0
  %1220 = vmatprep.subr.mxu0 0.0
  %1221 = vmatpush1.msra.mxu0 0.0
  %1222 = vmatprep.subr.mxu0 0.0
  %1223 = vmatpush1.msra.mxu0 0.0
  %1224 = vmatprep.subr.mxu0 0.0
  %1225 = vmatpush1.msra.mxu0 0.0
  %1226 = vmatprep.subr.mxu0 0.0
  %1227 = vmatpush1.msra.mxu0 0.0
  %1228 = vmatprep.mubr.f32.mxu0 0.0
  %1229 = vmatmul.mubr.f32.gmra.mrb[0].mxu0 %v1162
  %v1230 = vpop.f32.mrb[0].mxu0
  %v1231 = vadd.f32 %v52, %v1230
  %v1232 = vpop.f32.mrb[0].mxu0
  %1233 = vdwg.mxu0
  %vm1234 = vcmask 76800
  %v1235 = vsel %vm1234, %v1231, -inf
  %1236 = vmax.xlane.f32.xlu0 %v1235
  %v1237 = vpop.xlane.xlu0 %1236
  %v1238 = vsub.f32 %v1231, %v1237
  %v1239 = vmul.f32 %v1238, 1.442695
  %v1240 = vpow.pop %v1239
  %v1241 = vsel %vm1234, %v1240, 0.0
  %1242 = vadd.xlane.f32.xlu0 %v1241
  %v1243 = vpop.xlane.xlu0 %1242
  %v1244 = vlog2.pop %v1243
  %v1245 = vmul.f32 %v1244, 0.6931472
  %v1246 = vsub.f32 %v1238, %v1245
  %1247 = vst.msk [vmem:[%s12] sm:$0xf] %vm1234, %v1246
  %vm1248 = vcmp.eq.f32.partialorder %v1231, %v1237
  %v1249 = vsel %vm1248, %v43, 10
  %v1250 = vsel %vm1234, %v1249, 2147483647
  %v1251 = vand.u32 %v1250, 65535
  %v1252 = vshra.s32 %v1250, 16
  %v1253 = vcvt.s32.f32 %v1251
  %v1254 = vcvt.s32.f32 %v1252
  %1255 = vmin.xlane.f32.xlu0 %v1254
  %v1256 = vpop.xlane.xlu0 %1255
  %vm1257 = vcmp.eq.f32.partialorder %v1254, %v1256
  %v1258 = vsel %vm1257, %v1253, inf
  %1259 = vmin.xlane.f32.xlu0 %v1258
  %v1260 = vpop.xlane.xlu0 %1259
  %v1261 = vcvt.f32.s32 %v1260
  %v1262 = vcvt.f32.s32 %v1256
  %v1263 = vshll.u32 %v1262, 16
  %v1264 = vadd.s32 %v1263, %v1261
  %vm1265 = vcmp.eq.s32.totalorder %v43, %v1264
  %v1266 = vsel %vm1265, 1, 0
  %v1267 = vcvt.s32.f32 %v1266
  %v1268 = vld [vmem:[%s3] sm:$0xff]
  %v1269 = vld [vmem:[%s3 + $0x8] sm:$0x3]
  %v1271 = vsel %vm55, %v1267, 0
  %v1274 = vsel %vm59, %v1269, 0
  %1276 = vmatprep.subr.mxu0 0.0
  %1277 = vmatpush1.msra.mxu0 %v1268
  %1278 = vmatprep.subr.mxu0 0.0
  %1279 = vmatpush1.msra.mxu0 %v1274
  %1280 = vmatprep.subr.mxu0 0.0
  %1281 = vmatpush1.msra.mxu0 0.0
  %1282 = vmatprep.subr.mxu0 0.0
  %1283 = vmatpush1.msra.mxu0 0.0
  %1284 = vmatprep.subr.mxu0 0.0
  %1285 = vmatpush1.msra.mxu0 0.0
  %1286 = vmatprep.subr.mxu0 0.0
  %1287 = vmatpush1.msra.mxu0 0.0
  %1288 = vmatprep.subr.mxu0 0.0
  %1289 = vmatpush1.msra.mxu0 0.0
  %1290 = vmatprep.subr.mxu0 0.0
  %1291 = vmatpush1.msra.mxu0 0.0
  %1292 = vmatprep.subr.mxu0 0.0
  %1293 = vmatpush1.msra.mxu0 0.0
  %1294 = vmatprep.subr.mxu0 0.0
  %1295 = vmatpush1.msra.mxu0 0.0
  %1296 = vmatprep.subr.mxu0 0.0
  %1297 = vmatpush1.msra.mxu0 0.0
  %1298 = vmatprep.subr.mxu0 0.0
  %1299 = vmatpush1.msra.mxu0 0.0
  %1300 = vmatprep.subr.mxu0 0.0
  %1301 = vmatpush1.msra.mxu0 0.0
  %1302 = vmatprep.subr.mxu0 0.0
  %1303 = vmatpush1.msra.mxu0 0.0
  %1304 = vmatprep.subr.mxu0 0.0
  %1305 = vmatpush1.msra.mxu0 0.0
  %1306 = vmatprep.subr.mxu0 0.0
  %1307 = vmatpush1.msra.mxu0 0.0
  %1308 = vmatprep.subr.mxu0 0.0
  %1309 = vmatpush1.msra.mxu0 0.0
  %1310 = vmatprep.subr.mxu0 0.0
  %1311 = vmatpush1.msra.mxu0 0.0
  %1312 = vmatprep.subr.mxu0 0.0
  %1313 = vmatpush1.msra.mxu0 0.0
  %1314 = vmatprep.subr.mxu0 0.0
  %1315 = vmatpush1.msra.mxu0 0.0
  %1316 = vmatprep.subr.mxu0 0.0
  %1317 = vmatpush1.msra.mxu0 0.0
  %1318 = vmatprep.subr.mxu0 0.0
  %1319 = vmatpush1.msra.mxu0 0.0
  %1320 = vmatprep.subr.mxu0 0.0
  %1321 = vmatpush1.msra.mxu0 0.0
  %1322 = vmatprep.subr.mxu0 0.0
  %1323 = vmatpush1.msra.mxu0 0.0
  %1324 = vmatprep.subr.mxu0 0.0
  %1325 = vmatpush1.msra.mxu0 0.0
  %1326 = vmatprep.subr.mxu0 0.0
  %1327 = vmatpush1.msra.mxu0 0.0
  %1328 = vmatprep.subr.mxu0 0.0
  %1329 = vmatpush1.msra.mxu0 0.0
  %1330 = vmatprep.subr.mxu0 0.0
  %1331 = vmatpush1.msra.mxu0 0.0
  %1332 = vmatprep.subr.mxu0 0.0
  %1333 = vmatpush1.msra.mxu0 0.0
  %1334 = vmatprep.subr.mxu0 0.0
  %1335 = vmatpush1.msra.mxu0 0.0
  %1336 = vmatprep.subr.mxu0 0.0
  %1337 = vmatpush1.msra.mxu0 0.0
  %1338 = vmatprep.subr.mxu0 0.0
  %1339 = vmatpush1.msra.mxu0 0.0
  %1340 = vmatprep.mubr.f32.mxu0 0.0
  %1341 = vmatmul.mubr.f32.gmra.mrb[0].mxu0 %v1271
  %v1342 = vpop.f32.mrb[0].mxu0
  %v1343 = vadd.f32 0.0, %v1342
  %v1344 = vpop.f32.mrb[0].mxu0
  %1345 = vdwg.mxu0
  %v1346 = vxor.u32 %v1343, 2147483648
  %v1347 = vmul.f32 %v1346, 1.442695
  %v1348 = vpow.pop %v1347
  %v1349 = vadd.f32 %v1348, 1.0
  %v1350 = vrcp.pop %v1349
  %v1351 = vmul.f32 1.0, %v1350
  %v1352 = vmul.f32 %v1343, %v1351
  %v1353 = vld [vmem:[%s4] sm:$0xff]
  %v1354 = vld [vmem:[%s4 + $0x8] sm:$0xff]
  %v1355 = vld [vmem:[%s4 + $0x10] sm:$0xff]
  %v1356 = vld [vmem:[%s4 + $0x18] sm:$0xff]
  %v1358 = vsel %vm144, %v1352, 0
  %1360 = vmatprep.subr.mxu0 0.0
  %1361 = vmatpush1.msra.mxu0 %v1353
  %1362 = vmatprep.subr.mxu0 0.0
  %1363 = vmatpush1.msra.mxu0 %v1354
  %1364 = vmatprep.subr.mxu0 0.0
  %1365 = vmatpush1.msra.mxu0 %v1355
  %1366 = vmatprep.subr.mxu0 0.0
  %1367 = vmatpush1.msra.mxu0 %v1356
  %1368 = vmatprep.subr.mxu0 0.0
  %1369 = vmatpush1.msra.mxu0 0.0
  %1370 = vmatprep.subr.mxu0 0.0
  %1371 = vmatpush1.msra.mxu0 0.0
  %1372 = vmatprep.subr.mxu0 0.0
  %1373 = vmatpush1.msra.mxu0 0.0
  %1374 = vmatprep.subr.mxu0 0.0
  %1375 = vmatpush1.msra.mxu0 0.0
  %1376 = vmatprep.subr.mxu0 0.0
  %1377 = vmatpush1.msra.mxu0 0.0
  %1378 = vmatprep.subr.mxu0 0.0
  %1379 = vmatpush1.msra.mxu0 0.0
  %1380 = vmatprep.subr.mxu0 0.0
  %1381 = vmatpush1.msra.mxu0 0.0
  %1382 = vmatprep.subr.mxu0 0.0
  %1383 = vmatpush1.msra.mxu0 0.0
  %1384 = vmatprep.subr.mxu0 0.0
  %1385 = vmatpush1.msra.mxu0 0.0
  %1386 = vmatprep.subr.mxu0 0.0
  %1387 = vmatpush1.msra.mxu0 0.0
  %1388 = vmatprep.subr.mxu0 0.0
  %1389 = vmatpush1.msra.mxu0 0.0
  %1390 = vmatprep.subr.mxu0 0.0
  %1391 = vmatpush1.msra.mxu0 0.0
  %1392 = vmatprep.subr.mxu0 0.0
  %1393 = vmatpush1.msra.mxu0 0.0
  %1394 = vmatprep.subr.mxu0 0.0
  %1395 = vmatpush1.msra.mxu0 0.0
  %1396 = vmatprep.subr.mxu0 0.0
  %1397 = vmatpush1.msra.mxu0 0.0
  %1398 = vmatprep.subr.mxu0 0.0
  %1399 = vmatpush1.msra.mxu0 0.0
  %1400 = vmatprep.subr.mxu0 0.0
  %1401 = vmatpush1.msra.mxu0 0.0
  %1402 = vmatprep.subr.mxu0 0.0
  %1403 = vmatpush1.msra.mxu0 0.0
  %1404 = vmatprep.subr.mxu0 0.0
  %1405 = vmatpush1.msra.mxu0 0.0
  %1406 = vmatprep.subr.mxu0 0.0
  %1407 = vmatpush1.msra.mxu0 0.0
  %1408 = vmatprep.subr.mxu0 0.0
  %1409 = vmatpush1.msra.mxu0 0.0
  %1410 = vmatprep.subr.mxu0 0.0
  %1411 = vmatpush1.msra.mxu0 0.0
  %1412 = vmatprep.subr.mxu0 0.0
  %1413 = vmatpush1.msra.mxu0 0.0
  %1414 = vmatprep.subr.mxu0 0.0
  %1415 = vmatpush1.msra.mxu0 0.0
  %1416 = vmatprep.subr.mxu0 0.0
  %1417 = vmatpush1.msra.mxu0 0.0
  %1418 = vmatprep.subr.mxu0 0.0
  %1419 = vmatpush1.msra.mxu0 0.0
  %1420 = vmatprep.subr.mxu0 0.0
  %1421 = vmatpush1.msra.mxu0 0.0
  %1422 = vmatprep.subr.mxu0 0.0
  %1423 = vmatpush1.msra.mxu0 0.0
  %1424 = vmatprep.mubr.f32.mxu0 0.0
  %1425 = vmatmul.mubr.f32.gmra.mrb[0].mxu0 %v1358
  %v1426 = vpop.f32.mrb[0].mxu0
  %v1427 = vadd.f32 %v47, %v1426
  %v1428 = vpop.f32.mrb[0].mxu0
  %1429 = vdwg.mxu0
  %v1430 = vld [vmem:[%s218] sm:$0xff]
  %v1431 = vld [vmem:[%s218 + $0x8] sm:$0xff]
  %v1432 = vld [vmem:[%s218 + $0x10] sm:$0xff]
  %v1433 = vld [vmem:[%s218 + $0x18] sm:$0xff]
  %1434 = vmatprep.subr.mxu0 0.0
  %1435 = vmatpush1.msra.mxu0 %v1430
  %1436 = vmatprep.subr.mxu0 0.0
  %1437 = vmatpush1.msra.mxu0 %v1431
  %1438 = vmatprep.subr.mxu0 0.0
  %1439 = vmatpush1.msra.mxu0 %v1432
  %1440 = vmatprep.subr.mxu0 0.0
  %1441 = vmatpush1.msra.mxu0 %v1433
  %1442 = vmatprep.subr.mxu0 0.0
  %1443 = vmatpush1.msra.mxu0 0.0
  %1444 = vmatprep.subr.mxu0 0.0
  %1445 = vmatpush1.msra.mxu0 0.0
  %1446 = vmatprep.subr.mxu0 0.0
  %1447 = vmatpush1.msra.mxu0 0.0
  %1448 = vmatprep.subr.mxu0 0.0
  %1449 = vmatpush1.msra.mxu0 0.0
  %1450 = vmatprep.subr.mxu0 0.0
  %1451 = vmatpush1.msra.mxu0 0.0
  %1452 = vmatprep.subr.mxu0 0.0
  %1453 = vmatpush1.msra.mxu0 0.0
  %1454 = vmatprep.subr.mxu0 0.0
  %1455 = vmatpush1.msra.mxu0 0.0
  %1456 = vmatprep.subr.mxu0 0.0
  %1457 = vmatpush1.msra.mxu0 0.0
  %1458 = vmatprep.subr.mxu0 0.0
  %1459 = vmatpush1.msra.mxu0 0.0
  %1460 = vmatprep.subr.mxu0 0.0
  %1461 = vmatpush1.msra.mxu0 0.0
  %1462 = vmatprep.subr.mxu0 0.0
  %1463 = vmatpush1.msra.mxu0 0.0
  %1464 = vmatprep.subr.mxu0 0.0
  %1465 = vmatpush1.msra.mxu0 0.0
  %1466 = vmatprep.subr.mxu0 0.0
  %1467 = vmatpush1.msra.mxu0 0.0
  %1468 = vmatprep.subr.mxu0 0.0
  %1469 = vmatpush1.msra.mxu0 0.0
  %1470 = vmatprep.subr.mxu0 0.0
  %1471 = vmatpush1.msra.mxu0 0.0
  %1472 = vmatprep.subr.mxu0 0.0
  %1473 = vmatpush1.msra.mxu0 0.0
  %1474 = vmatprep.subr.mxu0 0.0
  %1475 = vmatpush1.msra.mxu0 0.0
  %1476 = vmatprep.subr.mxu0 0.0
  %1477 = vmatpush1.msra.mxu0 0.0
  %1478 = vmatprep.subr.mxu0 0.0
  %1479 = vmatpush1.msra.mxu0 0.0
  %1480 = vmatprep.subr.mxu0 0.0
  %1481 = vmatpush1.msra.mxu0 0.0
  %1482 = vmatprep.subr.mxu0 0.0
  %1483 = vmatpush1.msra.mxu0 0.0
  %1484 = vmatprep.subr.mxu0 0.0
  %1485 = vmatpush1.msra.mxu0 0.0
  %1486 = vmatprep.subr.mxu0 0.0
  %1487 = vmatpush1.msra.mxu0 0.0
  %1488 = vmatprep.subr.mxu0 0.0
  %1489 = vmatpush1.msra.mxu0 0.0
  %1490 = vmatprep.subr.mxu0 0.0
  %1491 = vmatpush1.msra.mxu0 0.0
  %1492 = vmatprep.subr.mxu0 0.0
  %1493 = vmatpush1.msra.mxu0 0.0
  %1494 = vmatprep.subr.mxu0 0.0
  %1495 = vmatpush1.msra.mxu0 0.0
  %1496 = vmatprep.subr.mxu0 0.0
  %1497 = vmatpush1.msra.mxu0 0.0
  %1498 = vmatprep.mubr.f32.mxu0 0.0
  %1499 = vmatmul.mubr.f32.gmra.mrb[0].mxu0 %v1358
  %v1500 = vpop.f32.mrb[0].mxu0
  %v1501 = vadd.f32 %v49, %v1500
  %v1502 = vpop.f32.mrb[0].mxu0
  %1503 = vdwg.mxu0
  %v1504 = vld [vmem:[%s293] sm:$0xff]
  %v1505 = vld [vmem:[%s293 + $0x8] sm:$0xff]
  %v1506 = vld [vmem:[%s293 + $0x10] sm:$0xff]
  %v1507 = vld [vmem:[%s293 + $0x18] sm:$0xff]
  %1508 = vmatprep.subr.mxu0 0.0
  %1509 = vmatpush1.msra.mxu0 %v1504
  %1510 = vmatprep.subr.mxu0 0.0
  %1511 = vmatpush1.msra.mxu0 %v1505
  %1512 = vmatprep.subr.mxu0 0.0
  %1513 = vmatpush1.msra.mxu0 %v1506
  %1514 = vmatprep.subr.mxu0 0.0
  %1515 = vmatpush1.msra.mxu0 %v1507
  %1516 = vmatprep.subr.mxu0 0.0
  %1517 = vmatpush1.msra.mxu0 0.0
  %1518 = vmatprep.subr.mxu0 0.0
  %1519 = vmatpush1.msra.mxu0 0.0
  %1520 = vmatprep.subr.mxu0 0.0
  %1521 = vmatpush1.msra.mxu0 0.0
  %1522 = vmatprep.subr.mxu0 0.0
  %1523 = vmatpush1.msra.mxu0 0.0
  %1524 = vmatprep.subr.mxu0 0.0
  %1525 = vmatpush1.msra.mxu0 0.0
  %1526 = vmatprep.subr.mxu0 0.0
  %1527 = vmatpush1.msra.mxu0 0.0
  %1528 = vmatprep.subr.mxu0 0.0
  %1529 = vmatpush1.msra.mxu0 0.0
  %1530 = vmatprep.subr.mxu0 0.0
  %1531 = vmatpush1.msra.mxu0 0.0
  %1532 = vmatprep.subr.mxu0 0.0
  %1533 = vmatpush1.msra.mxu0 0.0
  %1534 = vmatprep.subr.mxu0 0.0
  %1535 = vmatpush1.msra.mxu0 0.0
  %1536 = vmatprep.subr.mxu0 0.0
  %1537 = vmatpush1.msra.mxu0 0.0
  %1538 = vmatprep.subr.mxu0 0.0
  %1539 = vmatpush1.msra.mxu0 0.0
  %1540 = vmatprep.subr.mxu0 0.0
  %1541 = vmatpush1.msra.mxu0 0.0
  %1542 = vmatprep.subr.mxu0 0.0
  %1543 = vmatpush1.msra.mxu0 0.0
  %1544 = vmatprep.subr.mxu0 0.0
  %1545 = vmatpush1.msra.mxu0 0.0
  %1546 = vmatprep.subr.mxu0 0.0
  %1547 = vmatpush1.msra.mxu0 0.0
  %1548 = vmatprep.subr.mxu0 0.0
  %1549 = vmatpush1.msra.mxu0 0.0
  %1550 = vmatprep.subr.mxu0 0.0
  %1551 = vmatpush1.msra.mxu0 0.0
  %1552 = vmatprep.subr.mxu0 0.0
  %1553 = vmatpush1.msra.mxu0 0.0
  %1554 = vmatprep.subr.mxu0 0.0
  %1555 = vmatpush1.msra.mxu0 0.0
  %1556 = vmatprep.subr.mxu0 0.0
  %1557 = vmatpush1.msra.mxu0 0.0
  %1558 = vmatprep.subr.mxu0 0.0
  %1559 = vmatpush1.msra.mxu0 0.0
  %1560 = vmatprep.subr.mxu0 0.0
  %1561 = vmatpush1.msra.mxu0 0.0
  %1562 = vmatprep.subr.mxu0 0.0
  %1563 = vmatpush1.msra.mxu0 0.0
  %1564 = vmatprep.subr.mxu0 0.0
  %1565 = vmatpush1.msra.mxu0 0.0
  %1566 = vmatprep.subr.mxu0 0.0
  %1567 = vmatpush1.msra.mxu0 0.0
  %1568 = vmatprep.subr.mxu0 0.0
  %1569 = vmatpush1.msra.mxu0 0.0
  %1570 = vmatprep.subr.mxu0 0.0
  %1571 = vmatpush1.msra.mxu0 0.0
  %1572 = vmatprep.mubr.f32.mxu0 0.0
  %1573 = vmatmul.mubr.f32.gmra.mrb[0].mxu0 %v1358
  %v1574 = vpop.f32.mrb[0].mxu0
  %v1575 = vadd.f32 %v51, %v1574
  %v1576 = vpop.f32.mrb[0].mxu0
  %1577 = vdwg.mxu0
  %v1578 = vld [vmem:[%s5] sm:$0xff]
  %v1579 = vld [vmem:[%s5 + $0x8] sm:$0xff]
  %v1580 = vld [vmem:[%s5 + $0x10] sm:$0xff]
  %v1581 = vld [vmem:[%s5 + $0x18] sm:$0xff]
  %v1582 = vld [vmem:[%s6] sm:$0x1]
  %v1584 = vlaneseq
  %v1585 = vshrl.u32 %v1584, 7
  %v1586 = vsub.s32 0, %v1585
  %v1587 = vrot.slane %v1582, %v1586
  %1589 = vmatprep.subr.mxu0 0.0
  %1590 = vmatpush1.msra.mxu0 %v1578
  %1591 = vmatprep.subr.mxu0 0.0
  %1592 = vmatpush1.msra.mxu0 %v1579
  %1593 = vmatprep.subr.mxu0 0.0
  %1594 = vmatpush1.msra.mxu0 %v1580
  %1595 = vmatprep.subr.mxu0 0.0
  %1596 = vmatpush1.msra.mxu0 %v1581
  %1597 = vmatprep.subr.mxu0 0.0
  %1598 = vmatpush1.msra.mxu0 0.0
  %1599 = vmatprep.subr.mxu0 0.0
  %1600 = vmatpush1.msra.mxu0 0.0
  %1601 = vmatprep.subr.mxu0 0.0
  %1602 = vmatpush1.msra.mxu0 0.0
  %1603 = vmatprep.subr.mxu0 0.0
  %1604 = vmatpush1.msra.mxu0 0.0
  %1605 = vmatprep.subr.mxu0 0.0
  %1606 = vmatpush1.msra.mxu0 0.0
  %1607 = vmatprep.subr.mxu0 0.0
  %1608 = vmatpush1.msra.mxu0 0.0
  %1609 = vmatprep.subr.mxu0 0.0
  %1610 = vmatpush1.msra.mxu0 0.0
  %1611 = vmatprep.subr.mxu0 0.0
  %1612 = vmatpush1.msra.mxu0 0.0
  %1613 = vmatprep.subr.mxu0 0.0
  %1614 = vmatpush1.msra.mxu0 0.0
  %1615 = vmatprep.subr.mxu0 0.0
  %1616 = vmatpush1.msra.mxu0 0.0
  %1617 = vmatprep.subr.mxu0 0.0
  %1618 = vmatpush1.msra.mxu0 0.0
  %1619 = vmatprep.subr.mxu0 0.0
  %1620 = vmatpush1.msra.mxu0 0.0
  %1621 = vmatprep.subr.mxu0 0.0
  %1622 = vmatpush1.msra.mxu0 0.0
  %1623 = vmatprep.subr.mxu0 0.0
  %1624 = vmatpush1.msra.mxu0 0.0
  %1625 = vmatprep.subr.mxu0 0.0
  %1626 = vmatpush1.msra.mxu0 0.0
  %1627 = vmatprep.subr.mxu0 0.0
  %1628 = vmatpush1.msra.mxu0 0.0
  %1629 = vmatprep.subr.mxu0 0.0
  %1630 = vmatpush1.msra.mxu0 0.0
  %1631 = vmatprep.subr.mxu0 0.0
  %1632 = vmatpush1.msra.mxu0 0.0
  %1633 = vmatprep.subr.mxu0 0.0
  %1634 = vmatpush1.msra.mxu0 0.0
  %1635 = vmatprep.subr.mxu0 0.0
  %1636 = vmatpush1.msra.mxu0 0.0
  %1637 = vmatprep.subr.mxu0 0.0
  %1638 = vmatpush1.msra.mxu0 0.0
  %1639 = vmatprep.subr.mxu0 0.0
  %1640 = vmatpush1.msra.mxu0 0.0
  %1641 = vmatprep.subr.mxu0 0.0
  %1642 = vmatpush1.msra.mxu0 0.0
  %1643 = vmatprep.subr.mxu0 0.0
  %1644 = vmatpush1.msra.mxu0 0.0
  %1645 = vmatprep.subr.mxu0 0.0
  %1646 = vmatpush1.msra.mxu0 0.0
  %1647 = vmatprep.subr.mxu0 0.0
  %1648 = vmatpush1.msra.mxu0 0.0
  %1649 = vmatprep.subr.mxu0 0.0
  %1650 = vmatpush1.msra.mxu0 0.0
  %1651 = vmatprep.subr.mxu0 0.0
  %1652 = vmatpush1.msra.mxu0 0.0
  %1653 = vmatprep.mubr.f32.mxu0 0.0
  %1654 = vmatmul.mubr.f32.gmra.mrb[0].mxu0 %v655
  %v1655 = vpop.f32.mrb[0].mxu0
  %v1656 = vadd.f32 %v1587, %v1655
  %v1657 = vpop.f32.mrb[0].mxu0
  %1658 = vdwg.mxu0
  %v1659 = vld [vmem:[%s452] sm:$0xff]
  %v1660 = vld [vmem:[%s452 + $0x8] sm:$0xff]
  %v1661 = vld [vmem:[%s452 + $0x10] sm:$0xff]
  %v1662 = vld [vmem:[%s452 + $0x18] sm:$0xff]
  %v1663 = vld [vmem:[%s457] sm:$0x1]
  %v1665 = vlaneseq
  %v1666 = vshrl.u32 %v1665, 7
  %v1667 = vsub.s32 0, %v1666
  %v1668 = vrot.slane %v1663, %v1667
  %1670 = vmatprep.subr.mxu0 0.0
  %1671 = vmatpush1.msra.mxu0 %v1659
  %1672 = vmatprep.subr.mxu0 0.0
  %1673 = vmatpush1.msra.mxu0 %v1660
  %1674 = vmatprep.subr.mxu0 0.0
  %1675 = vmatpush1.msra.mxu0 %v1661
  %1676 = vmatprep.subr.mxu0 0.0
  %1677 = vmatpush1.msra.mxu0 %v1662
  %1678 = vmatprep.subr.mxu0 0.0
  %1679 = vmatpush1.msra.mxu0 0.0
  %1680 = vmatprep.subr.mxu0 0.0
  %1681 = vmatpush1.msra.mxu0 0.0
  %1682 = vmatprep.subr.mxu0 0.0
  %1683 = vmatpush1.msra.mxu0 0.0
  %1684 = vmatprep.subr.mxu0 0.0
  %1685 = vmatpush1.msra.mxu0 0.0
  %1686 = vmatprep.subr.mxu0 0.0
  %1687 = vmatpush1.msra.mxu0 0.0
  %1688 = vmatprep.subr.mxu0 0.0
  %1689 = vmatpush1.msra.mxu0 0.0
  %1690 = vmatprep.subr.mxu0 0.0
  %1691 = vmatpush1.msra.mxu0 0.0
  %1692 = vmatprep.subr.mxu0 0.0
  %1693 = vmatpush1.msra.mxu0 0.0
  %1694 = vmatprep.subr.mxu0 0.0
  %1695 = vmatpush1.msra.mxu0 0.0
  %1696 = vmatprep.subr.mxu0 0.0
  %1697 = vmatpush1.msra.mxu0 0.0
  %1698 = vmatprep.subr.mxu0 0.0
  %1699 = vmatpush1.msra.mxu0 0.0
  %1700 = vmatprep.subr.mxu0 0.0
  %1701 = vmatpush1.msra.mxu0 0.0
  %1702 = vmatprep.subr.mxu0 0.0
  %1703 = vmatpush1.msra.mxu0 0.0
  %1704 = vmatprep.subr.mxu0 0.0
  %1705 = vmatpush1.msra.mxu0 0.0
  %1706 = vmatprep.subr.mxu0 0.0
  %1707 = vmatpush1.msra.mxu0 0.0
  %1708 = vmatprep.subr.mxu0 0.0
  %1709 = vmatpush1.msra.mxu0 0.0
  %1710 = vmatprep.subr.mxu0 0.0
  %1711 = vmatpush1.msra.mxu0 0.0
  %1712 = vmatprep.subr.mxu0 0.0
  %1713 = vmatpush1.msra.mxu0 0.0
  %1714 = vmatprep.subr.mxu0 0.0
  %1715 = vmatpush1.msra.mxu0 0.0
  %1716 = vmatprep.subr.mxu0 0.0
  %1717 = vmatpush1.msra.mxu0 0.0
  %1718 = vmatprep.subr.mxu0 0.0
  %1719 = vmatpush1.msra.mxu0 0.0
  %1720 = vmatprep.subr.mxu0 0.0
  %1721 = vmatpush1.msra.mxu0 0.0
  %1722 = vmatprep.subr.mxu0 0.0
  %1723 = vmatpush1.msra.mxu0 0.0
  %1724 = vmatprep.subr.mxu0 0.0
  %1725 = vmatpush1.msra.mxu0 0.0
  %1726 = vmatprep.subr.mxu0 0.0
  %1727 = vmatpush1.msra.mxu0 0.0
  %1728 = vmatprep.subr.mxu0 0.0
  %1729 = vmatpush1.msra.mxu0 0.0
  %1730 = vmatprep.subr.mxu0 0.0
  %1731 = vmatpush1.msra.mxu0 0.0
  %1732 = vmatprep.subr.mxu0 0.0
  %1733 = vmatpush1.msra.mxu0 0.0
  %1734 = vmatprep.mubr.f32.mxu0 0.0
  %1735 = vmatmul.mubr.f32.gmra.mrb[0].mxu0 %v655
  %v1736 = vpop.f32.mrb[0].mxu0
  %v1737 = vadd.f32 %v1668, %v1736
  %v1738 = vpop.f32.mrb[0].mxu0
  %1739 = vdwg.mxu0
  %v1740 = vld [vmem:[%s535] sm:$0xff]
  %v1741 = vld [vmem:[%s535 + $0x8] sm:$0xff]
  %v1742 = vld [vmem:[%s535 + $0x10] sm:$0xff]
  %v1743 = vld [vmem:[%s535 + $0x18] sm:$0xff]
  %v1744 = vld [vmem:[%s540] sm:$0x1]
  %v1746 = vlaneseq
  %v1747 = vshrl.u32 %v1746, 7
  %v1748 = vsub.s32 0, %v1747
  %v1749 = vrot.slane %v1744, %v1748
  %1751 = vmatprep.subr.mxu0 0.0
  %1752 = vmatpush1.msra.mxu0 %v1740
  %1753 = vmatprep.subr.mxu0 0.0
  %1754 = vmatpush1.msra.mxu0 %v1741
  %1755 = vmatprep.subr.mxu0 0.0
  %1756 = vmatpush1.msra.mxu0 %v1742
  %1757 = vmatprep.subr.mxu0 0.0
  %1758 = vmatpush1.msra.mxu0 %v1743
  %1759 = vmatprep.subr.mxu0 0.0
  %1760 = vmatpush1.msra.mxu0 0.0
  %1761 = vmatprep.subr.mxu0 0.0
  %1762 = vmatpush1.msra.mxu0 0.0
  %1763 = vmatprep.subr.mxu0 0.0
  %1764 = vmatpush1.msra.mxu0 0.0
  %1765 = vmatprep.subr.mxu0 0.0
  %1766 = vmatpush1.msra.mxu0 0.0
  %1767 = vmatprep.subr.mxu0 0.0
  %1768 = vmatpush1.msra.mxu0 0.0
  %1769 = vmatprep.subr.mxu0 0.0
  %1770 = vmatpush1.msra.mxu0 0.0
  %1771 = vmatprep.subr.mxu0 0.0
  %1772 = vmatpush1.msra.mxu0 0.0
  %1773 = vmatprep.subr.mxu0 0.0
  %1774 = vmatpush1.msra.mxu0 0.0
  %1775 = vmatprep.subr.mxu0 0.0
  %1776 = vmatpush1.msra.mxu0 0.0
  %1777 = vmatprep.subr.mxu0 0.0
  %1778 = vmatpush1.msra.mxu0 0.0
  %1779 = vmatprep.subr.mxu0 0.0
  %1780 = vmatpush1.msra.mxu0 0.0
  %1781 = vmatprep.subr.mxu0 0.0
  %1782 = vmatpush1.msra.mxu0 0.0
  %1783 = vmatprep.subr.mxu0 0.0
  %1784 = vmatpush1.msra.mxu0 0.0
  %1785 = vmatprep.subr.mxu0 0.0
  %1786 = vmatpush1.msra.mxu0 0.0
  %1787 = vmatprep.subr.mxu0 0.0
  %1788 = vmatpush1.msra.mxu0 0.0
  %1789 = vmatprep.subr.mxu0 0.0
  %1790 = vmatpush1.msra.mxu0 0.0
  %1791 = vmatprep.subr.mxu0 0.0
  %1792 = vmatpush1.msra.mxu0 0.0
  %1793 = vmatprep.subr.mxu0 0.0
  %1794 = vmatpush1.msra.mxu0 0.0
  %1795 = vmatprep.subr.mxu0 0.0
  %1796 = vmatpush1.msra.mxu0 0.0
  %1797 = vmatprep.subr.mxu0 0.0
  %1798 = vmatpush1.msra.mxu0 0.0
  %1799 = vmatprep.subr.mxu0 0.0
  %1800 = vmatpush1.msra.mxu0 0.0
  %1801 = vmatprep.subr.mxu0 0.0
  %1802 = vmatpush1.msra.mxu0 0.0
  %1803 = vmatprep.subr.mxu0 0.0
  %1804 = vmatpush1.msra.mxu0 0.0
  %1805 = vmatprep.subr.mxu0 0.0
  %1806 = vmatpush1.msra.mxu0 0.0
  %1807 = vmatprep.subr.mxu0 0.0
  %1808 = vmatpush1.msra.mxu0 0.0
  %1809 = vmatprep.subr.mxu0 0.0
  %1810 = vmatpush1.msra.mxu0 0.0
  %1811 = vmatprep.subr.mxu0 0.0
  %1812 = vmatpush1.msra.mxu0 0.0
  %1813 = vmatprep.subr.mxu0 0.0
  %1814 = vmatpush1.msra.mxu0 0.0
  %1815 = vmatprep.mubr.f32.mxu0 0.0
  %1816 = vmatmul.mubr.f32.gmra.mrb[0].mxu0 %v655
  %v1817 = vpop.f32.mrb[0].mxu0
  %v1818 = vadd.f32 %v1749, %v1817
  %v1819 = vpop.f32.mrb[0].mxu0
  %1820 = vdwg.mxu0
  %v1821 = vadd.f32 %v1427, %v1656
  %v1822 = vxor.u32 %v1821, 2147483648
  %v1823 = vmul.f32 %v1822, 1.442695
  %v1824 = vpow.pop %v1823
  %v1825 = vadd.f32 %v1824, 1.0
  %v1826 = vrcp.pop %v1825
  %v1827 = vmul.f32 1.0, %v1826
  %v1828 = vadd.f32 %v1501, %v1737
  %v1829 = vxor.u32 %v1828, 2147483648
  %v1830 = vmul.f32 %v1829, 1.442695
  %v1831 = vpow.pop %v1830
  %v1832 = vadd.f32 %v1831, 1.0
  %v1833 = vrcp.pop %v1832
  %v1834 = vmul.f32 1.0, %v1833
  %v1835 = vmul.f32 %v1827, %v1818
  %v1836 = vadd.f32 %v1575, %v1835
  %v1837 = vtanh.pop %v1836
  %v1838 = vsub.f32 1.0, %v1834
  %v1839 = vmul.f32 %v1838, %v1837
  %v1840 = vmul.f32 %v1834, %v638
  %v1841 = vadd.f32 %v1839, %v1840
  %v1842 = vld [vmem:[%s8] sm:$0x1]
  %v1843 = vld [vmem:[%s640] sm:$0x1]
  %v1844 = vld [vmem:[%s642] sm:$0x1]
  %v1845 = vld [vmem:[%s7] sm:$0xff]
  %v1846 = vld [vmem:[%s7 + $0x8] sm:$0xff]
  %v1847 = vld [vmem:[%s7 + $0x10] sm:$0xff]
  %v1848 = vld [vmem:[%s7 + $0x18] sm:$0xff]
  %v1850 = vlaneseq
  %v1851 = vshrl.u32 %v1850, 7
  %v1852 = vsub.s32 0, %v1851
  %v1853 = vrot.slane %v1842, %v1852
  %v1856 = vsel %vm144, %v1841, 0
  %1858 = vmatprep.subr.mxu0 0.0
  %1859 = vmatpush1.msra.mxu0 %v1845
  %1860 = vmatprep.subr.mxu0 0.0
  %1861 = vmatpush1.msra.mxu0 %v1846
  %1862 = vmatprep.subr.mxu0 0.0
  %1863 = vmatpush1.msra.mxu0 %v1847
  %1864 = vmatprep.subr.mxu0 0.0
  %1865 = vmatpush1.msra.mxu0 %v1848
  %1866 = vmatprep.subr.mxu0 0.0
  %1867 = vmatpush1.msra.mxu0 0.0
  %1868 = vmatprep.subr.mxu0 0.0
  %1869 = vmatpush1.msra.mxu0 0.0
  %1870 = vmatprep.subr.mxu0 0.0
  %1871 = vmatpush1.msra.mxu0 0.0
  %1872 = vmatprep.subr.mxu0 0.0
  %1873 = vmatpush1.msra.mxu0 0.0
  %1874 = vmatprep.subr.mxu0 0.0
  %1875 = vmatpush1.msra.mxu0 0.0
  %1876 = vmatprep.subr.mxu0 0.0
  %1877 = vmatpush1.msra.mxu0 0.0
  %1878 = vmatprep.subr.mxu0 0.0
  %1879 = vmatpush1.msra.mxu0 0.0
  %1880 = vmatprep.subr.mxu0 0.0
  %1881 = vmatpush1.msra.mxu0 0.0
  %1882 = vmatprep.subr.mxu0 0.0
  %1883 = vmatpush1.msra.mxu0 0.0
  %1884 = vmatprep.subr.mxu0 0.0
  %1885 = vmatpush1.msra.mxu0 0.0
  %1886 = vmatprep.subr.mxu0 0.0
  %1887 = vmatpush1.msra.mxu0 0.0
  %1888 = vmatprep.subr.mxu0 0.0
  %1889 = vmatpush1.msra.mxu0 0.0
  %1890 = vmatprep.subr.mxu0 0.0
  %1891 = vmatpush1.msra.mxu0 0.0
  %1892 = vmatprep.subr.mxu0 0.0
  %1893 = vmatpush1.msra.mxu0 0.0
  %1894 = vmatprep.subr.mxu0 0.0
  %1895 = vmatpush1.msra.mxu0 0.0
  %1896 = vmatprep.subr.mxu0 0.0
  %1897 = vmatpush1.msra.mxu0 0.0
  %1898 = vmatprep.subr.mxu0 0.0
  %1899 = vmatpush1.msra.mxu0 0.0
  %1900 = vmatprep.subr.mxu0 0.0
  %1901 = vmatpush1.msra.mxu0 0.0
  %1902 = vmatprep.subr.mxu0 0.0
  %1903 = vmatpush1.msra.mxu0 0.0
  %1904 = vmatprep.subr.mxu0 0.0
  %1905 = vmatpush1.msra.mxu0 0.0
  %1906 = vmatprep.subr.mxu0 0.0
  %1907 = vmatpush1.msra.mxu0 0.0
  %1908 = vmatprep.subr.mxu0 0.0
  %1909 = vmatpush1.msra.mxu0 0.0
  %1910 = vmatprep.subr.mxu0 0.0
  %1911 = vmatpush1.msra.mxu0 0.0
  %1912 = vmatprep.subr.mxu0 0.0
  %1913 = vmatpush1.msra.mxu0 0.0
  %1914 = vmatprep.subr.mxu0 0.0
  %1915 = vmatpush1.msra.mxu0 0.0
  %1916 = vmatprep.subr.mxu0 0.0
  %1917 = vmatpush1.msra.mxu0 0.0
  %1918 = vmatprep.subr.mxu0 0.0
  %1919 = vmatpush1.msra.mxu0 0.0
  %1920 = vmatprep.subr.mxu0 0.0
  %1921 = vmatpush1.msra.mxu0 0.0
  %1922 = vmatprep.mubr.f32.mxu0 0.0
  %1923 = vmatmul.mubr.f32.gmra.mrb[0].mxu0 %v1856
  %v1924 = vpop.f32.mrb[0].mxu0
  %v1925 = vadd.f32 %v1853, %v1924
  %v1926 = vpop.f32.mrb[0].mxu0
  %1927 = vdwg.mxu0
  %v1928 = vld [vmem:[%s727] sm:$0xff]
  %v1929 = vld [vmem:[%s727 + $0x8] sm:$0xff]
  %v1930 = vld [vmem:[%s727 + $0x10] sm:$0xff]
  %v1931 = vld [vmem:[%s727 + $0x18] sm:$0xff]
  %v1933 = vlaneseq
  %v1934 = vshrl.u32 %v1933, 7
  %v1935 = vsub.s32 0, %v1934
  %v1936 = vrot.slane %v1843, %v1935
  %1938 = vmatprep.subr.mxu0 0.0
  %1939 = vmatpush1.msra.mxu0 %v1928
  %1940 = vmatprep.subr.mxu0 0.0
  %1941 = vmatpush1.msra.mxu0 %v1929
  %1942 = vmatprep.subr.mxu0 0.0
  %1943 = vmatpush1.msra.mxu0 %v1930
  %1944 = vmatprep.subr.mxu0 0.0
  %1945 = vmatpush1.msra.mxu0 %v1931
  %1946 = vmatprep.subr.mxu0 0.0
  %1947 = vmatpush1.msra.mxu0 0.0
  %1948 = vmatprep.subr.mxu0 0.0
  %1949 = vmatpush1.msra.mxu0 0.0
  %1950 = vmatprep.subr.mxu0 0.0
  %1951 = vmatpush1.msra.mxu0 0.0
  %1952 = vmatprep.subr.mxu0 0.0
  %1953 = vmatpush1.msra.mxu0 0.0
  %1954 = vmatprep.subr.mxu0 0.0
  %1955 = vmatpush1.msra.mxu0 0.0
  %1956 = vmatprep.subr.mxu0 0.0
  %1957 = vmatpush1.msra.mxu0 0.0
  %1958 = vmatprep.subr.mxu0 0.0
  %1959 = vmatpush1.msra.mxu0 0.0
  %1960 = vmatprep.subr.mxu0 0.0
  %1961 = vmatpush1.msra.mxu0 0.0
  %1962 = vmatprep.subr.mxu0 0.0
  %1963 = vmatpush1.msra.mxu0 0.0
  %1964 = vmatprep.subr.mxu0 0.0
  %1965 = vmatpush1.msra.mxu0 0.0
  %1966 = vmatprep.subr.mxu0 0.0
  %1967 = vmatpush1.msra.mxu0 0.0
  %1968 = vmatprep.subr.mxu0 0.0
  %1969 = vmatpush1.msra.mxu0 0.0
  %1970 = vmatprep.subr.mxu0 0.0
  %1971 = vmatpush1.msra.mxu0 0.0
  %1972 = vmatprep.subr.mxu0 0.0
  %1973 = vmatpush1.msra.mxu0 0.0
  %1974 = vmatprep.subr.mxu0 0.0
  %1975 = vmatpush1.msra.mxu0 0.0
  %1976 = vmatprep.subr.mxu0 0.0
  %1977 = vmatpush1.msra.mxu0 0.0
  %1978 = vmatprep.subr.mxu0 0.0
  %1979 = vmatpush1.msra.mxu0 0.0
  %1980 = vmatprep.subr.mxu0 0.0
  %1981 = vmatpush1.msra.mxu0 0.0
  %1982 = vmatprep.subr.mxu0 0.0
  %1983 = vmatpush1.msra.mxu0 0.0
  %1984 = vmatprep.subr.mxu0 0.0
  %1985 = vmatpush1.msra.mxu0 0.0
  %1986 = vmatprep.subr.mxu0 0.0
  %1987 = vmatpush1.msra.mxu0 0.0
  %1988 = vmatprep.subr.mxu0 0.0
  %1989 = vmatpush1.msra.mxu0 0.0
  %1990 = vmatprep.subr.mxu0 0.0
  %1991 = vmatpush1.msra.mxu0 0.0
  %1992 = vmatprep.subr.mxu0 0.0
  %1993 = vmatpush1.msra.mxu0 0.0
  %1994 = vmatprep.subr.mxu0 0.0
  %1995 = vmatpush1.msra.mxu0 0.0
  %1996 = vmatprep.subr.mxu0 0.0
  %1997 = vmatpush1.msra.mxu0 0.0
  %1998 = vmatprep.subr.mxu0 0.0
  %1999 = vmatpush1.msra.mxu0 0.0
  %2000 = vmatprep.subr.mxu0 0.0
  %2001 = vmatpush1.msra.mxu0 0.0
  %2002 = vmatprep.mubr.f32.mxu0 0.0
  %2003 = vmatmul.mubr.f32.gmra.mrb[0].mxu0 %v1856
  %v2004 = vpop.f32.mrb[0].mxu0
  %v2005 = vadd.f32 %v1936, %v2004
  %v2006 = vpop.f32.mrb[0].mxu0
  %2007 = vdwg.mxu0
  %v2008 = vld [vmem:[%s808] sm:$0xff]
  %v2009 = vld [vmem:[%s808 + $0x8] sm:$0xff]
  %v2010 = vld [vmem:[%s808 + $0x10] sm:$0xff]
  %v2011 = vld [vmem:[%s808 + $0x18] sm:$0xff]
  %v2013 = vlaneseq
  %v2014 = vshrl.u32 %v2013, 7
  %v2015 = vsub.s32 0, %v2014
  %v2016 = vrot.slane %v1844, %v2015
  %2018 = vmatprep.subr.mxu0 0.0
  %2019 = vmatpush1.msra.mxu0 %v2008
  %2020 = vmatprep.subr.mxu0 0.0
  %2021 = vmatpush1.msra.mxu0 %v2009
  %2022 = vmatprep.subr.mxu0 0.0
  %2023 = vmatpush1.msra.mxu0 %v2010
  %2024 = vmatprep.subr.mxu0 0.0
  %2025 = vmatpush1.msra.mxu0 %v2011
  %2026 = vmatprep.subr.mxu0 0.0
  %2027 = vmatpush1.msra.mxu0 0.0
  %2028 = vmatprep.subr.mxu0 0.0
  %2029 = vmatpush1.msra.mxu0 0.0
  %2030 = vmatprep.subr.mxu0 0.0
  %2031 = vmatpush1.msra.mxu0 0.0
  %2032 = vmatprep.subr.mxu0 0.0
  %2033 = vmatpush1.msra.mxu0 0.0
  %2034 = vmatprep.subr.mxu0 0.0
  %2035 = vmatpush1.msra.mxu0 0.0
  %2036 = vmatprep.subr.mxu0 0.0
  %2037 = vmatpush1.msra.mxu0 0.0
  %2038 = vmatprep.subr.mxu0 0.0
  %2039 = vmatpush1.msra.mxu0 0.0
  %2040 = vmatprep.subr.mxu0 0.0
  %2041 = vmatpush1.msra.mxu0 0.0
  %2042 = vmatprep.subr.mxu0 0.0
  %2043 = vmatpush1.msra.mxu0 0.0
  %2044 = vmatprep.subr.mxu0 0.0
  %2045 = vmatpush1.msra.mxu0 0.0
  %2046 = vmatprep.subr.mxu0 0.0
  %2047 = vmatpush1.msra.mxu0 0.0
  %2048 = vmatprep.subr.mxu0 0.0
  %2049 = vmatpush1.msra.mxu0 0.0
  %2050 = vmatprep.subr.mxu0 0.0
  %2051 = vmatpush1.msra.mxu0 0.0
  %2052 = vmatprep.subr.mxu0 0.0
  %2053 = vmatpush1.msra.mxu0 0.0
  %2054 = vmatprep.subr.mxu0 0.0
  %2055 = vmatpush1.msra.mxu0 0.0
  %2056 = vmatprep.subr.mxu0 0.0
  %2057 = vmatpush1.msra.mxu0 0.0
  %2058 = vmatprep.subr.mxu0 0.0
  %2059 = vmatpush1.msra.mxu0 0.0
  %2060 = vmatprep.subr.mxu0 0.0
  %2061 = vmatpush1.msra.mxu0 0.0
  %2062 = vmatprep.subr.mxu0 0.0
  %2063 = vmatpush1.msra.mxu0 0.0
  %2064 = vmatprep.subr.mxu0 0.0
  %2065 = vmatpush1.msra.mxu0 0.0
  %2066 = vmatprep.subr.mxu0 0.0
  %2067 = vmatpush1.msra.mxu0 0.0
  %2068 = vmatprep.subr.mxu0 0.0
  %2069 = vmatpush1.msra.mxu0 0.0
  %2070 = vmatprep.subr.mxu0 0.0
  %2071 = vmatpush1.msra.mxu0 0.0
  %2072 = vmatprep.subr.mxu0 0.0
  %2073 = vmatpush1.msra.mxu0 0.0
  %2074 = vmatprep.subr.mxu0 0.0
  %2075 = vmatpush1.msra.mxu0 0.0
  %2076 = vmatprep.subr.mxu0 0.0
  %2077 = vmatpush1.msra.mxu0 0.0
  %2078 = vmatprep.subr.mxu0 0.0
  %2079 = vmatpush1.msra.mxu0 0.0
  %2080 = vmatprep.subr.mxu0 0.0
  %2081 = vmatpush1.msra.mxu0 0.0
  %2082 = vmatprep.mubr.f32.mxu0 0.0
  %2083 = vmatmul.mubr.f32.gmra.mrb[0].mxu0 %v1856
  %v2084 = vpop.f32.mrb[0].mxu0
  %v2085 = vadd.f32 %v2016, %v2084
  %v2086 = vpop.f32.mrb[0].mxu0
  %2087 = vdwg.mxu0
  %v2088 = vld [vmem:[%s9] sm:$0xff]
  %v2089 = vld [vmem:[%s9 + $0x8] sm:$0xff]
  %v2090 = vld [vmem:[%s9 + $0x10] sm:$0xff]
  %v2091 = vld [vmem:[%s9 + $0x18] sm:$0xff]
  %v2092 = vld [vmem:[%s10] sm:$0x1]
  %v2094 = vlaneseq
  %v2095 = vshrl.u32 %v2094, 7
  %v2096 = vsub.s32 0, %v2095
  %v2097 = vrot.slane %v2092, %v2096
  %2099 = vmatprep.subr.mxu0 0.0
  %2100 = vmatpush1.msra.mxu0 %v2088
  %2101 = vmatprep.subr.mxu0 0.0
  %2102 = vmatpush1.msra.mxu0 %v2089
  %2103 = vmatprep.subr.mxu0 0.0
  %2104 = vmatpush1.msra.mxu0 %v2090
  %2105 = vmatprep.subr.mxu0 0.0
  %2106 = vmatpush1.msra.mxu0 %v2091
  %2107 = vmatprep.subr.mxu0 0.0
  %2108 = vmatpush1.msra.mxu0 0.0
  %2109 = vmatprep.subr.mxu0 0.0
  %2110 = vmatpush1.msra.mxu0 0.0
  %2111 = vmatprep.subr.mxu0 0.0
  %2112 = vmatpush1.msra.mxu0 0.0
  %2113 = vmatprep.subr.mxu0 0.0
  %2114 = vmatpush1.msra.mxu0 0.0
  %2115 = vmatprep.subr.mxu0 0.0
  %2116 = vmatpush1.msra.mxu0 0.0
  %2117 = vmatprep.subr.mxu0 0.0
  %2118 = vmatpush1.msra.mxu0 0.0
  %2119 = vmatprep.subr.mxu0 0.0
  %2120 = vmatpush1.msra.mxu0 0.0
  %2121 = vmatprep.subr.mxu0 0.0
  %2122 = vmatpush1.msra.mxu0 0.0
  %2123 = vmatprep.subr.mxu0 0.0
  %2124 = vmatpush1.msra.mxu0 0.0
  %2125 = vmatprep.subr.mxu0 0.0
  %2126 = vmatpush1.msra.mxu0 0.0
  %2127 = vmatprep.subr.mxu0 0.0
  %2128 = vmatpush1.msra.mxu0 0.0
  %2129 = vmatprep.subr.mxu0 0.0
  %2130 = vmatpush1.msra.mxu0 0.0
  %2131 = vmatprep.subr.mxu0 0.0
  %2132 = vmatpush1.msra.mxu0 0.0
  %2133 = vmatprep.subr.mxu0 0.0
  %2134 = vmatpush1.msra.mxu0 0.0
  %2135 = vmatprep.subr.mxu0 0.0
  %2136 = vmatpush1.msra.mxu0 0.0
  %2137 = vmatprep.subr.mxu0 0.0
  %2138 = vmatpush1.msra.mxu0 0.0
  %2139 = vmatprep.subr.mxu0 0.0
  %2140 = vmatpush1.msra.mxu0 0.0
  %2141 = vmatprep.subr.mxu0 0.0
  %2142 = vmatpush1.msra.mxu0 0.0
  %2143 = vmatprep.subr.mxu0 0.0
  %2144 = vmatpush1.msra.mxu0 0.0
  %2145 = vmatprep.subr.mxu0 0.0
  %2146 = vmatpush1.msra.mxu0 0.0
  %2147 = vmatprep.subr.mxu0 0.0
  %2148 = vmatpush1.msra.mxu0 0.0
  %2149 = vmatprep.subr.mxu0 0.0
  %2150 = vmatpush1.msra.mxu0 0.0
  %2151 = vmatprep.subr.mxu0 0.0
  %2152 = vmatpush1.msra.mxu0 0.0
  %2153 = vmatprep.subr.mxu0 0.0
  %2154 = vmatpush1.msra.mxu0 0.0
  %2155 = vmatprep.subr.mxu0 0.0
  %2156 = vmatpush1.msra.mxu0 0.0
  %2157 = vmatprep.subr.mxu0 0.0
  %2158 = vmatpush1.msra.mxu0 0.0
  %2159 = vmatprep.subr.mxu0 0.0
  %2160 = vmatpush1.msra.mxu0 0.0
  %2161 = vmatprep.subr.mxu0 0.0
  %2162 = vmatpush1.msra.mxu0 0.0
  %2163 = vmatprep.mubr.f32.mxu0 0.0
  %2164 = vmatmul.mubr.f32.gmra.mrb[0].mxu0 %v1162
  %v2165 = vpop.f32.mrb[0].mxu0
  %v2166 = vadd.f32 %v2097, %v2165
  %v2167 = vpop.f32.mrb[0].mxu0
  %2168 = vdwg.mxu0
  %v2169 = vld [vmem:[%s970] sm:$0xff]
  %v2170 = vld [vmem:[%s970 + $0x8] sm:$0xff]
  %v2171 = vld [vmem:[%s970 + $0x10] sm:$0xff]
  %v2172 = vld [vmem:[%s970 + $0x18] sm:$0xff]
  %v2173 = vld [vmem:[%s975] sm:$0x1]
  %v2175 = vlaneseq
  %v2176 = vshrl.u32 %v2175, 7
  %v2177 = vsub.s32 0, %v2176
  %v2178 = vrot.slane %v2173, %v2177
  %2180 = vmatprep.subr.mxu0 0.0
  %2181 = vmatpush1.msra.mxu0 %v2169
  %2182 = vmatprep.subr.mxu0 0.0
  %2183 = vmatpush1.msra.mxu0 %v2170
  %2184 = vmatprep.subr.mxu0 0.0
  %2185 = vmatpush1.msra.mxu0 %v2171
  %2186 = vmatprep.subr.mxu0 0.0
  %2187 = vmatpush1.msra.mxu0 %v2172
  %2188 = vmatprep.subr.mxu0 0.0
  %2189 = vmatpush1.msra.mxu0 0.0
  %2190 = vmatprep.subr.mxu0 0.0
  %2191 = vmatpush1.msra.mxu0 0.0
  %2192 = vmatprep.subr.mxu0 0.0
  %2193 = vmatpush1.msra.mxu0 0.0
  %2194 = vmatprep.subr.mxu0 0.0
  %2195 = vmatpush1.msra.mxu0 0.0
  %2196 = vmatprep.subr.mxu0 0.0
  %2197 = vmatpush1.msra.mxu0 0.0
  %2198 = vmatprep.subr.mxu0 0.0
  %2199 = vmatpush1.msra.mxu0 0.0
  %2200 = vmatprep.subr.mxu0 0.0
  %2201 = vmatpush1.msra.mxu0 0.0
  %2202 = vmatprep.subr.mxu0 0.0
  %2203 = vmatpush1.msra.mxu0 0.0
  %2204 = vmatprep.subr.mxu0 0.0
  %2205 = vmatpush1.msra.mxu0 0.0
  %2206 = vmatprep.subr.mxu0 0.0
  %2207 = vmatpush1.msra.mxu0 0.0
  %2208 = vmatprep.subr.mxu0 0.0
  %2209 = vmatpush1.msra.mxu0 0.0
  %2210 = vmatprep.subr.mxu0 0.0
  %2211 = vmatpush1.msra.mxu0 0.0
  %2212 = vmatprep.subr.mxu0 0.0
  %2213 = vmatpush1.msra.mxu0 0.0
  %2214 = vmatprep.subr.mxu0 0.0
  %2215 = vmatpush1.msra.mxu0 0.0
  %2216 = vmatprep.subr.mxu0 0.0
  %2217 = vmatpush1.msra.mxu0 0.0
  %2218 = vmatprep.subr.mxu0 0.0
  %2219 = vmatpush1.msra.mxu0 0.0
  %2220 = vmatprep.subr.mxu0 0.0
  %2221 = vmatpush1.msra.mxu0 0.0
  %2222 = vmatprep.subr.mxu0 0.0
  %2223 = vmatpush1.msra.mxu0 0.0
  %2224 = vmatprep.subr.mxu0 0.0
  %2225 = vmatpush1.msra.mxu0 0.0
  %2226 = vmatprep.subr.mxu0 0.0
  %2227 = vmatpush1.msra.mxu0 0.0
  %2228 = vmatprep.subr.mxu0 0.0
  %2229 = vmatpush1.msra.mxu0 0.0
  %2230 = vmatprep.subr.mxu0 0.0
  %2231 = vmatpush1.msra.mxu0 0.0
  %2232 = vmatprep.subr.mxu0 0.0
  %2233 = vmatpush1.msra.mxu0 0.0
  %2234 = vmatprep.subr.mxu0 0.0
  %2235 = vmatpush1.msra.mxu0 0.0
  %2236 = vmatprep.subr.mxu0 0.0
  %2237 = vmatpush1.msra.mxu0 0.0
  %2238 = vmatprep.subr.mxu0 0.0
  %2239 = vmatpush1.msra.mxu0 0.0
  %2240 = vmatprep.subr.mxu0 0.0
  %2241 = vmatpush1.msra.mxu0 0.0
  %2242 = vmatprep.subr.mxu0 0.0
  %2243 = vmatpush1.msra.mxu0 0.0
  %2244 = vmatprep.mubr.f32.mxu0 0.0
  %2245 = vmatmul.mubr.f32.gmra.mrb[0].mxu0 %v1162
  %v2246 = vpop.f32.mrb[0].mxu0
  %v2247 = vadd.f32 %v2178, %v2246
  %v2248 = vpop.f32.mrb[0].mxu0
  %2249 = vdwg.mxu0
  %v2250 = vld [vmem:[%s1053] sm:$0xff]
  %v2251 = vld [vmem:[%s1053 + $0x8] sm:$0xff]
  %v2252 = vld [vmem:[%s1053 + $0x10] sm:$0xff]
  %v2253 = vld [vmem:[%s1053 + $0x18] sm:$0xff]
  %v2254 = vld [vmem:[%s1058] sm:$0x1]
  %v2256 = vlaneseq
  %v2257 = vshrl.u32 %v2256, 7
  %v2258 = vsub.s32 0, %v2257
  %v2259 = vrot.slane %v2254, %v2258
  %2261 = vmatprep.subr.mxu0 0.0
  %2262 = vmatpush1.msra.mxu0 %v2250
  %2263 = vmatprep.subr.mxu0 0.0
  %2264 = vmatpush1.msra.mxu0 %v2251
  %2265 = vmatprep.subr.mxu0 0.0
  %2266 = vmatpush1.msra.mxu0 %v2252
  %2267 = vmatprep.subr.mxu0 0.0
  %2268 = vmatpush1.msra.mxu0 %v2253
  %2269 = vmatprep.subr.mxu0 0.0
  %2270 = vmatpush1.msra.mxu0 0.0
  %2271 = vmatprep.subr.mxu0 0.0
  %2272 = vmatpush1.msra.mxu0 0.0
  %2273 = vmatprep.subr.mxu0 0.0
  %2274 = vmatpush1.msra.mxu0 0.0
  %2275 = vmatprep.subr.mxu0 0.0
  %2276 = vmatpush1.msra.mxu0 0.0
  %2277 = vmatprep.subr.mxu0 0.0
  %2278 = vmatpush1.msra.mxu0 0.0
  %2279 = vmatprep.subr.mxu0 0.0
  %2280 = vmatpush1.msra.mxu0 0.0
  %2281 = vmatprep.subr.mxu0 0.0
  %2282 = vmatpush1.msra.mxu0 0.0
  %2283 = vmatprep.subr.mxu0 0.0
  %2284 = vmatpush1.msra.mxu0 0.0
  %2285 = vmatprep.subr.mxu0 0.0
  %2286 = vmatpush1.msra.mxu0 0.0
  %2287 = vmatprep.subr.mxu0 0.0
  %2288 = vmatpush1.msra.mxu0 0.0
  %2289 = vmatprep.subr.mxu0 0.0
  %2290 = vmatpush1.msra.mxu0 0.0
  %2291 = vmatprep.subr.mxu0 0.0
  %2292 = vmatpush1.msra.mxu0 0.0
  %2293 = vmatprep.subr.mxu0 0.0
  %2294 = vmatpush1.msra.mxu0 0.0
  %2295 = vmatprep.subr.mxu0 0.0
  %2296 = vmatpush1.msra.mxu0 0.0
  %2297 = vmatprep.subr.mxu0 0.0
  %2298 = vmatpush1.msra.mxu0 0.0
  %2299 = vmatprep.subr.mxu0 0.0
  %2300 = vmatpush1.msra.mxu0 0.0
  %2301 = vmatprep.subr.mxu0 0.0
  %2302 = vmatpush1.msra.mxu0 0.0
  %2303 = vmatprep.subr.mxu0 0.0
  %2304 = vmatpush1.msra.mxu0 0.0
  %2305 = vmatprep.subr.mxu0 0.0
  %2306 = vmatpush1.msra.mxu0 0.0
  %2307 = vmatprep.subr.mxu0 0.0
  %2308 = vmatpush1.msra.mxu0 0.0
  %2309 = vmatprep.subr.mxu0 0.0
  %2310 = vmatpush1.msra.mxu0 0.0
  %2311 = vmatprep.subr.mxu0 0.0
  %2312 = vmatpush1.msra.mxu0 0.0
  %2313 = vmatprep.subr.mxu0 0.0
  %2314 = vmatpush1.msra.mxu0 0.0
  %2315 = vmatprep.subr.mxu0 0.0
  %2316 = vmatpush1.msra.mxu0 0.0
  %2317 = vmatprep.subr.mxu0 0.0
  %2318 = vmatpush1.msra.mxu0 0.0
  %2319 = vmatprep.subr.mxu0 0.0
  %2320 = vmatpush1.msra.mxu0 0.0
  %2321 = vmatprep.subr.mxu0 0.0
  %2322 = vmatpush1.msra.mxu0 0.0
  %2323 = vmatprep.subr.mxu0 0.0
  %2324 = vmatpush1.msra.mxu0 0.0
  %2325 = vmatprep.mubr.f32.mxu0 0.0
  %2326 = vmatmul.mubr.f32.gmra.mrb[0].mxu0 %v1162
  %v2327 = vpop.f32.mrb[0].mxu0
  %v2328 = vadd.f32 %v2259, %v2327
  %v2329 = vpop.f32.mrb[0].mxu0
  %2330 = vdwg.mxu0
  %v2331 = vadd.f32 %v1925, %v2166
  %v2332 = vxor.u32 %v2331, 2147483648
  %v2333 = vmul.f32 %v2332, 1.442695
  %v2334 = vpow.pop %v2333
  %v2335 = vadd.f32 %v2334, 1.0
  %v2336 = vrcp.pop %v2335
  %v2337 = vmul.f32 1.0, %v2336
  %v2338 = vadd.f32 %v2005, %v2247
  %v2339 = vxor.u32 %v2338, 2147483648
  %v2340 = vmul.f32 %v2339, 1.442695
  %v2341 = vpow.pop %v2340
  %v2342 = vadd.f32 %v2341, 1.0
  %v2343 = vrcp.pop %v2342
  %v2344 = vmul.f32 1.0, %v2343
  %v2345 = vmul.f32 %v2337, %v2328
  %v2346 = vadd.f32 %v2085, %v2345
  %v2347 = vtanh.pop %v2346
  %v2348 = vsub.f32 1.0, %v2344
  %v2349 = vmul.f32 %v2348, %v2347
  %v2350 = vmul.f32 %v2344, %v1156
  %v2351 = vadd.f32 %v2349, %v2350
  %v2352 = vld [vmem:[%s11] sm:$0xff]
  %v2353 = vld [vmem:[%s11 + $0x8] sm:$0xff]
  %v2354 = vld [vmem:[%s11 + $0x10] sm:$0xff]
  %v2355 = vld [vmem:[%s11 + $0x18] sm:$0xff]
  %v2357 = vsel %vm144, %v2351, 0
  %2359 = vmatprep.subr.mxu0 0.0
  %2360 = vmatpush1.msra.mxu0 %v2352
  %2361 = vmatprep.subr.mxu0 0.0
  %2362 = vmatpush1.msra.mxu0 %v2353
  %2363 = vmatprep.subr.mxu0 0.0
  %2364 = vmatpush1.msra.mxu0 %v2354
  %2365 = vmatprep.subr.mxu0 0.0
  %2366 = vmatpush1.msra.mxu0 %v2355
  %2367 = vmatprep.subr.mxu0 0.0
  %2368 = vmatpush1.msra.mxu0 0.0
  %2369 = vmatprep.subr.mxu0 0.0
  %2370 = vmatpush1.msra.mxu0 0.0
  %2371 = vmatprep.subr.mxu0 0.0
  %2372 = vmatpush1.msra.mxu0 0.0
  %2373 = vmatprep.subr.mxu0 0.0
  %2374 = vmatpush1.msra.mxu0 0.0
  %2375 = vmatprep.subr.mxu0 0.0
  %2376 = vmatpush1.msra.mxu0 0.0
  %2377 = vmatprep.subr.mxu0 0.0
  %2378 = vmatpush1.msra.mxu0 0.0
  %2379 = vmatprep.subr.mxu0 0.0
  %2380 = vmatpush1.msra.mxu0 0.0
  %2381 = vmatprep.subr.mxu0 0.0
  %2382 = vmatpush1.msra.mxu0 0.0
  %2383 = vmatprep.subr.mxu0 0.0
  %2384 = vmatpush1.msra.mxu0 0.0
  %2385 = vmatprep.subr.mxu0 0.0
  %2386 = vmatpush1.msra.mxu0 0.0
  %2387 = vmatprep.subr.mxu0 0.0
  %2388 = vmatpush1.msra.mxu0 0.0
  %2389 = vmatprep.subr.mxu0 0.0
  %2390 = vmatpush1.msra.mxu0 0.0
  %2391 = vmatprep.subr.mxu0 0.0
  %2392 = vmatpush1.msra.mxu0 0.0
  %2393 = vmatprep.subr.mxu0 0.0
  %2394 = vmatpush1.msra.mxu0 0.0
  %2395 = vmatprep.subr.mxu0 0.0
  %2396 = vmatpush1.msra.mxu0 0.0
  %2397 = vmatprep.subr.mxu0 0.0
  %2398 = vmatpush1.msra.mxu0 0.0
  %2399 = vmatprep.subr.mxu0 0.0
  %2400 = vmatpush1.msra.mxu0 0.0
  %2401 = vmatprep.subr.mxu0 0.0
  %2402 = vmatpush1.msra.mxu0 0.0
  %2403 = vmatprep.subr.mxu0 0.0
  %2404 = vmatpush1.msra.mxu0 0.0
  %2405 = vmatprep.subr.mxu0 0.0
  %2406 = vmatpush1.msra.mxu0 0.0
  %2407 = vmatprep.subr.mxu0 0.0
  %2408 = vmatpush1.msra.mxu0 0.0
  %2409 = vmatprep.subr.mxu0 0.0
  %2410 = vmatpush1.msra.mxu0 0.0
  %2411 = vmatprep.subr.mxu0 0.0
  %2412 = vmatpush1.msra.mxu0 0.0
  %2413 = vmatprep.subr.mxu0 0.0
  %2414 = vmatpush1.msra.mxu0 0.0
  %2415 = vmatprep.subr.mxu0 0.0
  %2416 = vmatpush1.msra.mxu0 0.0
  %2417 = vmatprep.subr.mxu0 0.0
  %2418 = vmatpush1.msra.mxu0 0.0
  %2419 = vmatprep.subr.mxu0 0.0
  %2420 = vmatpush1.msra.mxu0 0.0
  %2421 = vmatprep.subr.mxu0 0.0
  %2422 = vmatpush1.msra.mxu0 0.0
  %2423 = vmatprep.mubr.f32.mxu0 0.0
  %2424 = vmatmul.mubr.f32.gmra.mrb[0].mxu0 %v2357
  %v2425 = vpop.f32.mrb[0].mxu0
  %v2426 = vadd.f32 %v52, %v2425
  %v2427 = vpop.f32.mrb[0].mxu0
  %2428 = vdwg.mxu0
  %v2429 = vsel %vm1234, %v2426, -inf
  %2430 = vmax.xlane.f32.xlu0 %v2429
  %v2431 = vpop.xlane.xlu0 %2430
  %v2432 = vsub.f32 %v2426, %v2431
  %v2433 = vmul.f32 %v2432, 1.442695
  %v2434 = vpow.pop %v2433
  %v2435 = vsel %vm1234, %v2434, 0.0
  %2436 = vadd.xlane.f32.xlu0 %v2435
  %v2437 = vpop.xlane.xlu0 %2436
  %v2438 = vlog2.pop %v2437
  %v2439 = vmul.f32 %v2438, 0.6931472
  %v2440 = vsub.f32 %v2432, %v2439
  %s2441 = scalar_lea.vmem %s12, 4
  %2442 = vst.msk [vmem:[%s2441] sm:$0xf] %vm1234, %v2440
  %vm2443 = vcmp.eq.f32.partialorder %v2426, %v2431
  %v2444 = vsel %vm2443, %v43, 10
  %v2445 = vsel %vm1234, %v2444, 2147483647
  %v2446 = vand.u32 %v2445, 65535
  %v2447 = vshra.s32 %v2445, 16
  %v2448 = vcvt.s32.f32 %v2446
  %v2449 = vcvt.s32.f32 %v2447
  %2450 = vmin.xlane.f32.xlu0 %v2449
  %v2451 = vpop.xlane.xlu0 %2450
  %vm2452 = vcmp.eq.f32.partialorder %v2449, %v2451
  %v2453 = vsel %vm2452, %v2448, inf
  %2454 = vmin.xlane.f32.xlu0 %v2453
  %v2455 = vpop.xlane.xlu0 %2454
  %v2456 = vcvt.f32.s32 %v2455
  %v2457 = vcvt.f32.s32 %v2451
  %v2458 = vshll.u32 %v2457, 16
  %v2459 = vadd.s32 %v2458, %v2456
  %vm2460 = vcmp.eq.s32.totalorder %v43, %v2459
  %v2461 = vsel %vm2460, 1, 0
  %v2462 = vcvt.s32.f32 %v2461
  %v2463 = vld [vmem:[%s3] sm:$0xff]
  %v2464 = vld [vmem:[%s3 + $0x8] sm:$0x3]
  %v2466 = vsel %vm55, %v2462, 0
  %v2469 = vsel %vm59, %v2464, 0
  %2471 = vmatprep.subr.mxu0 0.0
  %2472 = vmatpush1.msra.mxu0 %v2463
  %2473 = vmatprep.subr.mxu0 0.0
  %2474 = vmatpush1.msra.mxu0 %v2469
  %2475 = vmatprep.subr.mxu0 0.0
  %2476 = vmatpush1.msra.mxu0 0.0
  %2477 = vmatprep.subr.mxu0 0.0
  %2478 = vmatpush1.msra.mxu0 0.0
  %2479 = vmatprep.subr.mxu0 0.0
  %2480 = vmatpush1.msra.mxu0 0.0
  %2481 = vmatprep.subr.mxu0 0.0
  %2482 = vmatpush1.msra.mxu0 0.0
  %2483 = vmatprep.subr.mxu0 0.0
  %2484 = vmatpush1.msra.mxu0 0.0
  %2485 = vmatprep.subr.mxu0 0.0
  %2486 = vmatpush1.msra.mxu0 0.0
  %2487 = vmatprep.subr.mxu0 0.0
  %2488 = vmatpush1.msra.mxu0 0.0
  %2489 = vmatprep.subr.mxu0 0.0
  %2490 = vmatpush1.msra.mxu0 0.0
  %2491 = vmatprep.subr.mxu0 0.0
  %2492 = vmatpush1.msra.mxu0 0.0
  %2493 = vmatprep.subr.mxu0 0.0
  %2494 = vmatpush1.msra.mxu0 0.0
  %2495 = vmatprep.subr.mxu0 0.0
  %2496 = vmatpush1.msra.mxu0 0.0
  %2497 = vmatprep.subr.mxu0 0.0
  %2498 = vmatpush1.msra.mxu0 0.0
  %2499 = vmatprep.subr.mxu0 0.0
  %2500 = vmatpush1.msra.mxu0 0.0
  %2501 = vmatprep.subr.mxu0 0.0
  %2502 = vmatpush1.msra.mxu0 0.0
  %2503 = vmatprep.subr.mxu0 0.0
  %2504 = vmatpush1.msra.mxu0 0.0
  %2505 = vmatprep.subr.mxu0 0.0
  %2506 = vmatpush1.msra.mxu0 0.0
  %2507 = vmatprep.subr.mxu0 0.0
  %2508 = vmatpush1.msra.mxu0 0.0
  %2509 = vmatprep.subr.mxu0 0.0
  %2510 = vmatpush1.msra.mxu0 0.0
  %2511 = vmatprep.subr.mxu0 0.0
  %2512 = vmatpush1.msra.mxu0 0.0
  %2513 = vmatprep.subr.mxu0 0.0
  %2514 = vmatpush1.msra.mxu0 0.0
  %2515 = vmatprep.subr.mxu0 0.0
  %2516 = vmatpush1.msra.mxu0 0.0
  %2517 = vmatprep.subr.mxu0 0.0
  %2518 = vmatpush1.msra.mxu0 0.0
  %2519 = vmatprep.subr.mxu0 0.0
  %2520 = vmatpush1.msra.mxu0 0.0
  %2521 = vmatprep.subr.mxu0 0.0
  %2522 = vmatpush1.msra.mxu0 0.0
  %2523 = vmatprep.subr.mxu0 0.0
  %2524 = vmatpush1.msra.mxu0 0.0
  %2525 = vmatprep.subr.mxu0 0.0
  %2526 = vmatpush1.msra.mxu0 0.0
  %2527 = vmatprep.subr.mxu0 0.0
  %2528 = vmatpush1.msra.mxu0 0.0
  %2529 = vmatprep.subr.mxu0 0.0
  %2530 = vmatpush1.msra.mxu0 0.0
  %2531 = vmatprep.subr.mxu0 0.0
  %2532 = vmatpush1.msra.mxu0 0.0
  %2533 = vmatprep.subr.mxu0 0.0
  %2534 = vmatpush1.msra.mxu0 0.0
  %2535 = vmatprep.mubr.f32.mxu0 0.0
  %2536 = vmatmul.mubr.f32.gmra.mrb[0].mxu0 %v2466
  %v2537 = vpop.f32.mrb[0].mxu0
  %v2538 = vadd.f32 0.0, %v2537
  %v2539 = vpop.f32.mrb[0].mxu0
  %2540 = vdwg.mxu0
  %v2541 = vxor.u32 %v2538, 2147483648
  %v2542 = vmul.f32 %v2541, 1.442695
  %v2543 = vpow.pop %v2542
  %v2544 = vadd.f32 %v2543, 1.0
  %v2545 = vrcp.pop %v2544
  %v2546 = vmul.f32 1.0, %v2545
  %v2547 = vmul.f32 %v2538, %v2546
  %v2548 = vld [vmem:[%s4] sm:$0xff]
  %v2549 = vld [vmem:[%s4 + $0x8] sm:$0xff]
  %v2550 = vld [vmem:[%s4 + $0x10] sm:$0xff]
  %v2551 = vld [vmem:[%s4 + $0x18] sm:$0xff]
  %v2553 = vsel %vm144, %v2547, 0
  %2555 = vmatprep.subr.mxu0 0.0
  %2556 = vmatpush1.msra.mxu0 %v2548
  %2557 = vmatprep.subr.mxu0 0.0
  %2558 = vmatpush1.msra.mxu0 %v2549
  %2559 = vmatprep.subr.mxu0 0.0
  %2560 = vmatpush1.msra.mxu0 %v2550
  %2561 = vmatprep.subr.mxu0 0.0
  %2562 = vmatpush1.msra.mxu0 %v2551
  %2563 = vmatprep.subr.mxu0 0.0
  %2564 = vmatpush1.msra.mxu0 0.0
  %2565 = vmatprep.subr.mxu0 0.0
  %2566 = vmatpush1.msra.mxu0 0.0
  %2567 = vmatprep.subr.mxu0 0.0
  %2568 = vmatpush1.msra.mxu0 0.0
  %2569 = vmatprep.subr.mxu0 0.0
  %2570 = vmatpush1.msra.mxu0 0.0
  %2571 = vmatprep.subr.mxu0 0.0
  %2572 = vmatpush1.msra.mxu0 0.0
  %2573 = vmatprep.subr.mxu0 0.0
  %2574 = vmatpush1.msra.mxu0 0.0
  %2575 = vmatprep.subr.mxu0 0.0
  %2576 = vmatpush1.msra.mxu0 0.0
  %2577 = vmatprep.subr.mxu0 0.0
  %2578 = vmatpush1.msra.mxu0 0.0
  %2579 = vmatprep.subr.mxu0 0.0
  %2580 = vmatpush1.msra.mxu0 0.0
  %2581 = vmatprep.subr.mxu0 0.0
  %2582 = vmatpush1.msra.mxu0 0.0
  %2583 = vmatprep.subr.mxu0 0.0
  %2584 = vmatpush1.msra.mxu0 0.0
  %2585 = vmatprep.subr.mxu0 0.0
  %2586 = vmatpush1.msra.mxu0 0.0
  %2587 = vmatprep.subr.mxu0 0.0
  %2588 = vmatpush1.msra.mxu0 0.0
  %2589 = vmatprep.subr.mxu0 0.0
  %2590 = vmatpush1.msra.mxu0 0.0
  %2591 = vmatprep.subr.mxu0 0.0
  %2592 = vmatpush1.msra.mxu0 0.0
  %2593 = vmatprep.subr.mxu0 0.0
  %2594 = vmatpush1.msra.mxu0 0.0
  %2595 = vmatprep.subr.mxu0 0.0
  %2596 = vmatpush1.msra.mxu0 0.0
  %2597 = vmatprep.subr.mxu0 0.0
  %2598 = vmatpush1.msra.mxu0 0.0
  %2599 = vmatprep.subr.mxu0 0.0
  %2600 = vmatpush1.msra.mxu0 0.0
  %2601 = vmatprep.subr.mxu0 0.0
  %2602 = vmatpush1.msra.mxu0 0.0
  %2603 = vmatprep.subr.mxu0 0.0
  %2604 = vmatpush1.msra.mxu0 0.0
  %2605 = vmatprep.subr.mxu0 0.0
  %2606 = vmatpush1.msra.mxu0 0.0
  %2607 = vmatprep.subr.mxu0 0.0
  %2608 = vmatpush1.msra.mxu0 0.0
  %2609 = vmatprep.subr.mxu0 0.0
  %2610 = vmatpush1.msra.mxu0 0.0
  %2611 = vmatprep.subr.mxu0 0.0
  %2612 = vmatpush1.msra.mxu0 0.0
  %2613 = vmatprep.subr.mxu0 0.0
  %2614 = vmatpush1.msra.mxu0 0.0
  %2615 = vmatprep.subr.mxu0 0.0
  %2616 = vmatpush1.msra.mxu0 0.0
  %2617 = vmatprep.subr.mxu0 0.0
  %2618 = vmatpush1.msra.mxu0 0.0
  %2619 = vmatprep.mubr.f32.mxu0 0.0
  %2620 = vmatmul.mubr.f32.gmra.mrb[0].mxu0 %v2553
  %v2621 = vpop.f32.mrb[0].mxu0
  %v2622 = vadd.f32 %v47, %v2621
  %v2623 = vpop.f32.mrb[0].mxu0
  %2624 = vdwg.mxu0
  %v2625 = vld [vmem:[%s218] sm:$0xff]
  %v2626 = vld [vmem:[%s218 + $0x8] sm:$0xff]
  %v2627 = vld [vmem:[%s218 + $0x10] sm:$0xff]
  %v2628 = vld [vmem:[%s218 + $0x18] sm:$0xff]
  %2629 = vmatprep.subr.mxu0 0.0
  %2630 = vmatpush1.msra.mxu0 %v2625
  %2631 = vmatprep.subr.mxu0 0.0
  %2632 = vmatpush1.msra.mxu0 %v2626
  %2633 = vmatprep.subr.mxu0 0.0
  %2634 = vmatpush1.msra.mxu0 %v2627
  %2635 = vmatprep.subr.mxu0 0.0
  %2636 = vmatpush1.msra.mxu0 %v2628
  %2637 = vmatprep.subr.mxu0 0.0
  %2638 = vmatpush1.msra.mxu0 0.0
  %2639 = vmatprep.subr.mxu0 0.0
  %2640 = vmatpush1.msra.mxu0 0.0
  %2641 = vmatprep.subr.mxu0 0.0
  %2642 = vmatpush1.msra.mxu0 0.0
  %2643 = vmatprep.subr.mxu0 0.0
  %2644 = vmatpush1.msra.mxu0 0.0
  %2645 = vmatprep.subr.mxu0 0.0
  %2646 = vmatpush1.msra.mxu0 0.0
  %2647 = vmatprep.subr.mxu0 0.0
  %2648 = vmatpush1.msra.mxu0 0.0
  %2649 = vmatprep.subr.mxu0 0.0
  %2650 = vmatpush1.msra.mxu0 0.0
  %2651 = vmatprep.subr.mxu0 0.0
  %2652 = vmatpush1.msra.mxu0 0.0
  %2653 = vmatprep.subr.mxu0 0.0
  %2654 = vmatpush1.msra.mxu0 0.0
  %2655 = vmatprep.subr.mxu0 0.0
  %2656 = vmatpush1.msra.mxu0 0.0
  %2657 = vmatprep.subr.mxu0 0.0
  %2658 = vmatpush1.msra.mxu0 0.0
  %2659 = vmatprep.subr.mxu0 0.0
  %2660 = vmatpush1.msra.mxu0 0.0
  %2661 = vmatprep.subr.mxu0 0.0
  %2662 = vmatpush1.msra.mxu0 0.0
  %2663 = vmatprep.subr.mxu0 0.0
  %2664 = vmatpush1.msra.mxu0 0.0
  %2665 = vmatprep.subr.mxu0 0.0
  %2666 = vmatpush1.msra.mxu0 0.0
  %2667 = vmatprep.subr.mxu0 0.0
  %2668 = vmatpush1.msra.mxu0 0.0
  %2669 = vmatprep.subr.mxu0 0.0
  %2670 = vmatpush1.msra.mxu0 0.0
  %2671 = vmatprep.subr.mxu0 0.0
  %2672 = vmatpush1.msra.mxu0 0.0
  %2673 = vmatprep.subr.mxu0 0.0
  %2674 = vmatpush1.msra.mxu0 0.0
  %2675 = vmatprep.subr.mxu0 0.0
  %2676 = vmatpush1.msra.mxu0 0.0
  %2677 = vmatprep.subr.mxu0 0.0
  %2678 = vmatpush1.msra.mxu0 0.0
  %2679 = vmatprep.subr.mxu0 0.0
  %2680 = vmatpush1.msra.mxu0 0.0
  %2681 = vmatprep.subr.mxu0 0.0
  %2682 = vmatpush1.msra.mxu0 0.0
  %2683 = vmatprep.subr.mxu0 0.0
  %2684 = vmatpush1.msra.mxu0 0.0
  %2685 = vmatprep.subr.mxu0 0.0
  %2686 = vmatpush1.msra.mxu0 0.0
  %2687 = vmatprep.subr.mxu0 0.0
  %2688 = vmatpush1.msra.mxu0 0.0
  %2689 = vmatprep.subr.mxu0 0.0
  %2690 = vmatpush1.msra.mxu0 0.0
  %2691 = vmatprep.subr.mxu0 0.0
  %2692 = vmatpush1.msra.mxu0 0.0
  %2693 = vmatprep.mubr.f32.mxu0 0.0
  %2694 = vmatmul.mubr.f32.gmra.mrb[0].mxu0 %v2553
  %v2695 = vpop.f32.mrb[0].mxu0
  %v2696 = vadd.f32 %v49, %v2695
  %v2697 = vpop.f32.mrb[0].mxu0
  %2698 = vdwg.mxu0
  %v2699 = vld [vmem:[%s293] sm:$0xff]
  %v2700 = vld [vmem:[%s293 + $0x8] sm:$0xff]
  %v2701 = vld [vmem:[%s293 + $0x10] sm:$0xff]
  %v2702 = vld [vmem:[%s293 + $0x18] sm:$0xff]
  %2703 = vmatprep.subr.mxu0 0.0
  %2704 = vmatpush1.msra.mxu0 %v2699
  %2705 = vmatprep.subr.mxu0 0.0
  %2706 = vmatpush1.msra.mxu0 %v2700
  %2707 = vmatprep.subr.mxu0 0.0
  %2708 = vmatpush1.msra.mxu0 %v2701
  %2709 = vmatprep.subr.mxu0 0.0
  %2710 = vmatpush1.msra.mxu0 %v2702
  %2711 = vmatprep.subr.mxu0 0.0
  %2712 = vmatpush1.msra.mxu0 0.0
  %2713 = vmatprep.subr.mxu0 0.0
  %2714 = vmatpush1.msra.mxu0 0.0
  %2715 = vmatprep.subr.mxu0 0.0
  %2716 = vmatpush1.msra.mxu0 0.0
  %2717 = vmatprep.subr.mxu0 0.0
  %2718 = vmatpush1.msra.mxu0 0.0
  %2719 = vmatprep.subr.mxu0 0.0
  %2720 = vmatpush1.msra.mxu0 0.0
  %2721 = vmatprep.subr.mxu0 0.0
  %2722 = vmatpush1.msra.mxu0 0.0
  %2723 = vmatprep.subr.mxu0 0.0
  %2724 = vmatpush1.msra.mxu0 0.0
  %2725 = vmatprep.subr.mxu0 0.0
  %2726 = vmatpush1.msra.mxu0 0.0
  %2727 = vmatprep.subr.mxu0 0.0
  %2728 = vmatpush1.msra.mxu0 0.0
  %2729 = vmatprep.subr.mxu0 0.0
  %2730 = vmatpush1.msra.mxu0 0.0
  %2731 = vmatprep.subr.mxu0 0.0
  %2732 = vmatpush1.msra.mxu0 0.0
  %2733 = vmatprep.subr.mxu0 0.0
  %2734 = vmatpush1.msra.mxu0 0.0
  %2735 = vmatprep.subr.mxu0 0.0
  %2736 = vmatpush1.msra.mxu0 0.0
  %2737 = vmatprep.subr.mxu0 0.0
  %2738 = vmatpush1.msra.mxu0 0.0
  %2739 = vmatprep.subr.mxu0 0.0
  %2740 = vmatpush1.msra.mxu0 0.0
  %2741 = vmatprep.subr.mxu0 0.0
  %2742 = vmatpush1.msra.mxu0 0.0
  %2743 = vmatprep.subr.mxu0 0.0
  %2744 = vmatpush1.msra.mxu0 0.0
  %2745 = vmatprep.subr.mxu0 0.0
  %2746 = vmatpush1.msra.mxu0 0.0
  %2747 = vmatprep.subr.mxu0 0.0
  %2748 = vmatpush1.msra.mxu0 0.0
  %2749 = vmatprep.subr.mxu0 0.0
  %2750 = vmatpush1.msra.mxu0 0.0
  %2751 = vmatprep.subr.mxu0 0.0
  %2752 = vmatpush1.msra.mxu0 0.0
  %2753 = vmatprep.subr.mxu0 0.0
  %2754 = vmatpush1.msra.mxu0 0.0
  %2755 = vmatprep.subr.mxu0 0.0
  %2756 = vmatpush1.msra.mxu0 0.0
  %2757 = vmatprep.subr.mxu0 0.0
  %2758 = vmatpush1.msra.mxu0 0.0
  %2759 = vmatprep.subr.mxu0 0.0
  %2760 = vmatpush1.msra.mxu0 0.0
  %2761 = vmatprep.subr.mxu0 0.0
  %2762 = vmatpush1.msra.mxu0 0.0
  %2763 = vmatprep.subr.mxu0 0.0
  %2764 = vmatpush1.msra.mxu0 0.0
  %2765 = vmatprep.subr.mxu0 0.0
  %2766 = vmatpush1.msra.mxu0 0.0
  %2767 = vmatprep.mubr.f32.mxu0 0.0
  %2768 = vmatmul.mubr.f32.gmra.mrb[0].mxu0 %v2553
  %v2769 = vpop.f32.mrb[0].mxu0
  %v2770 = vadd.f32 %v51, %v2769
  %v2771 = vpop.f32.mrb[0].mxu0
  %2772 = vdwg.mxu0
  %v2773 = vld [vmem:[%s5] sm:$0xff]
  %v2774 = vld [vmem:[%s5 + $0x8] sm:$0xff]
  %v2775 = vld [vmem:[%s5 + $0x10] sm:$0xff]
  %v2776 = vld [vmem:[%s5 + $0x18] sm:$0xff]
  %v2777 = vld [vmem:[%s6] sm:$0x1]
  %v2779 = vlaneseq
  %v2780 = vshrl.u32 %v2779, 7
  %v2781 = vsub.s32 0, %v2780
  %v2782 = vrot.slane %v2777, %v2781
  %2784 = vmatprep.subr.mxu0 0.0
  %2785 = vmatpush1.msra.mxu0 %v2773
  %2786 = vmatprep.subr.mxu0 0.0
  %2787 = vmatpush1.msra.mxu0 %v2774
  %2788 = vmatprep.subr.mxu0 0.0
  %2789 = vmatpush1.msra.mxu0 %v2775
  %2790 = vmatprep.subr.mxu0 0.0
  %2791 = vmatpush1.msra.mxu0 %v2776
  %2792 = vmatprep.subr.mxu0 0.0
  %2793 = vmatpush1.msra.mxu0 0.0
  %2794 = vmatprep.subr.mxu0 0.0
  %2795 = vmatpush1.msra.mxu0 0.0
  %2796 = vmatprep.subr.mxu0 0.0
  %2797 = vmatpush1.msra.mxu0 0.0
  %2798 = vmatprep.subr.mxu0 0.0
  %2799 = vmatpush1.msra.mxu0 0.0
  %2800 = vmatprep.subr.mxu0 0.0
  %2801 = vmatpush1.msra.mxu0 0.0
  %2802 = vmatprep.subr.mxu0 0.0
  %2803 = vmatpush1.msra.mxu0 0.0
  %2804 = vmatprep.subr.mxu0 0.0
  %2805 = vmatpush1.msra.mxu0 0.0
  %2806 = vmatprep.subr.mxu0 0.0
  %2807 = vmatpush1.msra.mxu0 0.0
  %2808 = vmatprep.subr.mxu0 0.0
  %2809 = vmatpush1.msra.mxu0 0.0
  %2810 = vmatprep.subr.mxu0 0.0
  %2811 = vmatpush1.msra.mxu0 0.0
  %2812 = vmatprep.subr.mxu0 0.0
  %2813 = vmatpush1.msra.mxu0 0.0
  %2814 = vmatprep.subr.mxu0 0.0
  %2815 = vmatpush1.msra.mxu0 0.0
  %2816 = vmatprep.subr.mxu0 0.0
  %2817 = vmatpush1.msra.mxu0 0.0
  %2818 = vmatprep.subr.mxu0 0.0
  %2819 = vmatpush1.msra.mxu0 0.0
  %2820 = vmatprep.subr.mxu0 0.0
  %2821 = vmatpush1.msra.mxu0 0.0
  %2822 = vmatprep.subr.mxu0 0.0
  %2823 = vmatpush1.msra.mxu0 0.0
  %2824 = vmatprep.subr.mxu0 0.0
  %2825 = vmatpush1.msra.mxu0 0.0
  %2826 = vmatprep.subr.mxu0 0.0
  %2827 = vmatpush1.msra.mxu0 0.0
  %2828 = vmatprep.subr.mxu0 0.0
  %2829 = vmatpush1.msra.mxu0 0.0
  %2830 = vmatprep.subr.mxu0 0.0
  %2831 = vmatpush1.msra.mxu0 0.0
  %2832 = vmatprep.subr.mxu0 0.0
  %2833 = vmatpush1.msra.mxu0 0.0
  %2834 = vmatprep.subr.mxu0 0.0
  %2835 = vmatpush1.msra.mxu0 0.0
  %2836 = vmatprep.subr.mxu0 0.0
  %2837 = vmatpush1.msra.mxu0 0.0
  %2838 = vmatprep.subr.mxu0 0.0
  %2839 = vmatpush1.msra.mxu0 0.0
  %2840 = vmatprep.subr.mxu0 0.0
  %2841 = vmatpush1.msra.mxu0 0.0
  %2842 = vmatprep.subr.mxu0 0.0
  %2843 = vmatpush1.msra.mxu0 0.0
  %2844 = vmatprep.subr.mxu0 0.0
  %2845 = vmatpush1.msra.mxu0 0.0
  %2846 = vmatprep.subr.mxu0 0.0
  %2847 = vmatpush1.msra.mxu0 0.0
  %2848 = vmatprep.mubr.f32.mxu0 0.0
  %2849 = vmatmul.mubr.f32.gmra.mrb[0].mxu0 %v1856
  %v2850 = vpop.f32.mrb[0].mxu0
  %v2851 = vadd.f32 %v2782, %v2850
  %v2852 = vpop.f32.mrb[0].mxu0
  %2853 = vdwg.mxu0
  %v2854 = vld [vmem:[%s452] sm:$0xff]
  %v2855 = vld [vmem:[%s452 + $0x8] sm:$0xff]
  %v2856 = vld [vmem:[%s452 + $0x10] sm:$0xff]
  %v2857 = vld [vmem:[%s452 + $0x18] sm:$0xff]
  %v2858 = vld [vmem:[%s457] sm:$0x1]
  %v2860 = vlaneseq
  %v2861 = vshrl.u32 %v2860, 7
  %v2862 = vsub.s32 0, %v2861
  %v2863 = vrot.slane %v2858, %v2862
  %2865 = vmatprep.subr.mxu0 0.0
  %2866 = vmatpush1.msra.mxu0 %v2854
  %2867 = vmatprep.subr.mxu0 0.0
  %2868 = vmatpush1.msra.mxu0 %v2855
  %2869 = vmatprep.subr.mxu0 0.0
  %2870 = vmatpush1.msra.mxu0 %v2856
  %2871 = vmatprep.subr.mxu0 0.0
  %2872 = vmatpush1.msra.mxu0 %v2857
  %2873 = vmatprep.subr.mxu0 0.0
  %2874 = vmatpush1.msra.mxu0 0.0
  %2875 = vmatprep.subr.mxu0 0.0
  %2876 = vmatpush1.msra.mxu0 0.0
  %2877 = vmatprep.subr.mxu0 0.0
  %2878 = vmatpush1.msra.mxu0 0.0
  %2879 = vmatprep.subr.mxu0 0.0
  %2880 = vmatpush1.msra.mxu0 0.0
  %2881 = vmatprep.subr.mxu0 0.0
  %2882 = vmatpush1.msra.mxu0 0.0
  %2883 = vmatprep.subr.mxu0 0.0
  %2884 = vmatpush1.msra.mxu0 0.0
  %2885 = vmatprep.subr.mxu0 0.0
  %2886 = vmatpush1.msra.mxu0 0.0
  %2887 = vmatprep.subr.mxu0 0.0
  %2888 = vmatpush1.msra.mxu0 0.0
  %2889 = vmatprep.subr.mxu0 0.0
  %2890 = vmatpush1.msra.mxu0 0.0
  %2891 = vmatprep.subr.mxu0 0.0
  %2892 = vmatpush1.msra.mxu0 0.0
  %2893 = vmatprep.subr.mxu0 0.0
  %2894 = vmatpush1.msra.mxu0 0.0
  %2895 = vmatprep.subr.mxu0 0.0
  %2896 = vmatpush1.msra.mxu0 0.0
  %2897 = vmatprep.subr.mxu0 0.0
  %2898 = vmatpush1.msra.mxu0 0.0
  %2899 = vmatprep.subr.mxu0 0.0
  %2900 = vmatpush1.msra.mxu0 0.0
  %2901 = vmatprep.subr.mxu0 0.0
  %2902 = vmatpush1.msra.mxu0 0.0
  %2903 = vmatprep.subr.mxu0 0.0
  %2904 = vmatpush1.msra.mxu0 0.0
  %2905 = vmatprep.subr.mxu0 0.0
  %2906 = vmatpush1.msra.mxu0 0.0
  %2907 = vmatprep.subr.mxu0 0.0
  %2908 = vmatpush1.msra.mxu0 0.0
  %2909 = vmatprep.subr.mxu0 0.0
  %2910 = vmatpush1.msra.mxu0 0.0
  %2911 = vmatprep.subr.mxu0 0.0
  %2912 = vmatpush1.msra.mxu0 0.0
  %2913 = vmatprep.subr.mxu0 0.0
  %2914 = vmatpush1.msra.mxu0 0.0
  %2915 = vmatprep.subr.mxu0 0.0
  %2916 = vmatpush1.msra.mxu0 0.0
  %2917 = vmatprep.subr.mxu0 0.0
  %2918 = vmatpush1.msra.mxu0 0.0
  %2919 = vmatprep.subr.mxu0 0.0
  %2920 = vmatpush1.msra.mxu0 0.0
  %2921 = vmatprep.subr.mxu0 0.0
  %2922 = vmatpush1.msra.mxu0 0.0
  %2923 = vmatprep.subr.mxu0 0.0
  %2924 = vmatpush1.msra.mxu0 0.0
  %2925 = vmatprep.subr.mxu0 0.0
  %2926 = vmatpush1.msra.mxu0 0.0
  %2927 = vmatprep.subr.mxu0 0.0
  %2928 = vmatpush1.msra.mxu0 0.0
  %2929 = vmatprep.mubr.f32.mxu0 0.0
  %2930 = vmatmul.mubr.f32.gmra.mrb[0].mxu0 %v1856
  %v2931 = vpop.f32.mrb[0].mxu0
  %v2932 = vadd.f32 %v2863, %v2931
  %v2933 = vpop.f32.mrb[0].mxu0
  %2934 = vdwg.mxu0
  %v2935 = vld [vmem:[%s535] sm:$0xff]
  %v2936 = vld [vmem:[%s535 + $0x8] sm:$0xff]
  %v2937 = vld [vmem:[%s535 + $0x10] sm:$0xff]
  %v2938 = vld [vmem:[%s535 + $0x18] sm:$0xff]
  %v2939 = vld [vmem:[%s540] sm:$0x1]
  %v2941 = vlaneseq
  %v2942 = vshrl.u32 %v2941, 7
  %v2943 = vsub.s32 0, %v2942
  %v2944 = vrot.slane %v2939, %v2943
  %2946 = vmatprep.subr.mxu0 0.0
  %2947 = vmatpush1.msra.mxu0 %v2935
  %2948 = vmatprep.subr.mxu0 0.0
  %2949 = vmatpush1.msra.mxu0 %v2936
  %2950 = vmatprep.subr.mxu0 0.0
  %2951 = vmatpush1.msra.mxu0 %v2937
  %2952 = vmatprep.subr.mxu0 0.0
  %2953 = vmatpush1.msra.mxu0 %v2938
  %2954 = vmatprep.subr.mxu0 0.0
  %2955 = vmatpush1.msra.mxu0 0.0
  %2956 = vmatprep.subr.mxu0 0.0
  %2957 = vmatpush1.msra.mxu0 0.0
  %2958 = vmatprep.subr.mxu0 0.0
  %2959 = vmatpush1.msra.mxu0 0.0
  %2960 = vmatprep.subr.mxu0 0.0
  %2961 = vmatpush1.msra.mxu0 0.0
  %2962 = vmatprep.subr.mxu0 0.0
  %2963 = vmatpush1.msra.mxu0 0.0
  %2964 = vmatprep.subr.mxu0 0.0
  %2965 = vmatpush1.msra.mxu0 0.0
  %2966 = vmatprep.subr.mxu0 0.0
  %2967 = vmatpush1.msra.mxu0 0.0
  %2968 = vmatprep.subr.mxu0 0.0
  %2969 = vmatpush1.msra.mxu0 0.0
  %2970 = vmatprep.subr.mxu0 0.0
  %2971 = vmatpush1.msra.mxu0 0.0
  %2972 = vmatprep.subr.mxu0 0.0
  %2973 = vmatpush1.msra.mxu0 0.0
  %2974 = vmatprep.subr.mxu0 0.0
  %2975 = vmatpush1.msra.mxu0 0.0
  %2976 = vmatprep.subr.mxu0 0.0
  %2977 = vmatpush1.msra.mxu0 0.0
  %2978 = vmatprep.subr.mxu0 0.0
  %2979 = vmatpush1.msra.mxu0 0.0
  %2980 = vmatprep.subr.mxu0 0.0
  %2981 = vmatpush1.msra.mxu0 0.0
  %2982 = vmatprep.subr.mxu0 0.0
  %2983 = vmatpush1.msra.mxu0 0.0
  %2984 = vmatprep.subr.mxu0 0.0
  %2985 = vmatpush1.msra.mxu0 0.0
  %2986 = vmatprep.subr.mxu0 0.0
  %2987 = vmatpush1.msra.mxu0 0.0
  %2988 = vmatprep.subr.mxu0 0.0
  %2989 = vmatpush1.msra.mxu0 0.0
  %2990 = vmatprep.subr.mxu0 0.0
  %2991 = vmatpush1.msra.mxu0 0.0
  %2992 = vmatprep.subr.mxu0 0.0
  %2993 = vmatpush1.msra.mxu0 0.0
  %2994 = vmatprep.subr.mxu0 0.0
  %2995 = vmatpush1.msra.mxu0 0.0
  %2996 = vmatprep.subr.mxu0 0.0
  %2997 = vmatpush1.msra.mxu0 0.0
  %2998 = vmatprep.subr.mxu0 0.0
  %2999 = vmatpush1.msra.mxu0 0.0
  %3000 = vmatprep.subr.mxu0 0.0
  %3001 = vmatpush1.msra.mxu0 0.0
  %3002 = vmatprep.subr.mxu0 0.0
  %3003 = vmatpush1.msra.mxu0 0.0
  %3004 = vmatprep.subr.mxu0 0.0
  %3005 = vmatpush1.msra.mxu0 0.0
  %3006 = vmatprep.subr.mxu0 0.0
  %3007 = vmatpush1.msra.mxu0 0.0
  %3008 = vmatprep.subr.mxu0 0.0
  %3009 = vmatpush1.msra.mxu0 0.0
  %3010 = vmatprep.mubr.f32.mxu0 0.0
  %3011 = vmatmul.mubr.f32.gmra.mrb[0].mxu0 %v1856
  %v3012 = vpop.f32.mrb[0].mxu0
  %v3013 = vadd.f32 %v2944, %v3012
  %v3014 = vpop.f32.mrb[0].mxu0
  %3015 = vdwg.mxu0
  %v3016 = vadd.f32 %v2622, %v2851
  %v3017 = vxor.u32 %v3016, 2147483648
  %v3018 = vmul.f32 %v3017, 1.442695
  %v3019 = vpow.pop %v3018
  %v3020 = vadd.f32 %v3019, 1.0
  %v3021 = vrcp.pop %v3020
  %v3022 = vmul.f32 1.0, %v3021
  %v3023 = vadd.f32 %v2696, %v2932
  %v3024 = vxor.u32 %v3023, 2147483648
  %v3025 = vmul.f32 %v3024, 1.442695
  %v3026 = vpow.pop %v3025
  %v3027 = vadd.f32 %v3026, 1.0
  %v3028 = vrcp.pop %v3027
  %v3029 = vmul.f32 1.0, %v3028
  %v3030 = vmul.f32 %v3022, %v3013
  %v3031 = vadd.f32 %v2770, %v3030
  %v3032 = vtanh.pop %v3031
  %v3033 = vsub.f32 1.0, %v3029
  %v3034 = vmul.f32 %v3033, %v3032
  %v3035 = vmul.f32 %v3029, %v1841
  %v3036 = vadd.f32 %v3034, %v3035
  %v3037 = vld [vmem:[%s8] sm:$0x1]
  %v3038 = vld [vmem:[%s640] sm:$0x1]
  %v3039 = vld [vmem:[%s642] sm:$0x1]
  %v3040 = vld [vmem:[%s7] sm:$0xff]
  %v3041 = vld [vmem:[%s7 + $0x8] sm:$0xff]
  %v3042 = vld [vmem:[%s7 + $0x10] sm:$0xff]
  %v3043 = vld [vmem:[%s7 + $0x18] sm:$0xff]
  %v3045 = vlaneseq
  %v3046 = vshrl.u32 %v3045, 7
  %v3047 = vsub.s32 0, %v3046
  %v3048 = vrot.slane %v3037, %v3047
  %v3051 = vsel %vm144, %v3036, 0
  %3053 = vmatprep.subr.mxu0 0.0
  %3054 = vmatpush1.msra.mxu0 %v3040
  %3055 = vmatprep.subr.mxu0 0.0
  %3056 = vmatpush1.msra.mxu0 %v3041
  %3057 = vmatprep.subr.mxu0 0.0
  %3058 = vmatpush1.msra.mxu0 %v3042
  %3059 = vmatprep.subr.mxu0 0.0
  %3060 = vmatpush1.msra.mxu0 %v3043
  %3061 = vmatprep.subr.mxu0 0.0
  %3062 = vmatpush1.msra.mxu0 0.0
  %3063 = vmatprep.subr.mxu0 0.0
  %3064 = vmatpush1.msra.mxu0 0.0
  %3065 = vmatprep.subr.mxu0 0.0
  %3066 = vmatpush1.msra.mxu0 0.0
  %3067 = vmatprep.subr.mxu0 0.0
  %3068 = vmatpush1.msra.mxu0 0.0
  %3069 = vmatprep.subr.mxu0 0.0
  %3070 = vmatpush1.msra.mxu0 0.0
  %3071 = vmatprep.subr.mxu0 0.0
  %3072 = vmatpush1.msra.mxu0 0.0
  %3073 = vmatprep.subr.mxu0 0.0
  %3074 = vmatpush1.msra.mxu0 0.0
  %3075 = vmatprep.subr.mxu0 0.0
  %3076 = vmatpush1.msra.mxu0 0.0
  %3077 = vmatprep.subr.mxu0 0.0
  %3078 = vmatpush1.msra.mxu0 0.0
  %3079 = vmatprep.subr.mxu0 0.0
  %3080 = vmatpush1.msra.mxu0 0.0
  %3081 = vmatprep.subr.mxu0 0.0
  %3082 = vmatpush1.msra.mxu0 0.0
  %3083 = vmatprep.subr.mxu0 0.0
  %3084 = vmatpush1.msra.mxu0 0.0
  %3085 = vmatprep.subr.mxu0 0.0
  %3086 = vmatpush1.msra.mxu0 0.0
  %3087 = vmatprep.subr.mxu0 0.0
  %3088 = vmatpush1.msra.mxu0 0.0
  %3089 = vmatprep.subr.mxu0 0.0
  %3090 = vmatpush1.msra.mxu0 0.0
  %3091 = vmatprep.subr.mxu0 0.0
  %3092 = vmatpush1.msra.mxu0 0.0
  %3093 = vmatprep.subr.mxu0 0.0
  %3094 = vmatpush1.msra.mxu0 0.0
  %3095 = vmatprep.subr.mxu0 0.0
  %3096 = vmatpush1.msra.mxu0 0.0
  %3097 = vmatprep.subr.mxu0 0.0
  %3098 = vmatpush1.msra.mxu0 0.0
  %3099 = vmatprep.subr.mxu0 0.0
  %3100 = vmatpush1.msra.mxu0 0.0
  %3101 = vmatprep.subr.mxu0 0.0
  %3102 = vmatpush1.msra.mxu0 0.0
  %3103 = vmatprep.subr.mxu0 0.0
  %3104 = vmatpush1.msra.mxu0 0.0
  %3105 = vmatprep.subr.mxu0 0.0
  %3106 = vmatpush1.msra.mxu0 0.0
  %3107 = vmatprep.subr.mxu0 0.0
  %3108 = vmatpush1.msra.mxu0 0.0
  %3109 = vmatprep.subr.mxu0 0.0
  %3110 = vmatpush1.msra.mxu0 0.0
  %3111 = vmatprep.subr.mxu0 0.0
  %3112 = vmatpush1.msra.mxu0 0.0
  %3113 = vmatprep.subr.mxu0 0.0
  %3114 = vmatpush1.msra.mxu0 0.0
  %3115 = vmatprep.subr.mxu0 0.0
  %3116 = vmatpush1.msra.mxu0 0.0
  %3117 = vmatprep.mubr.f32.mxu0 0.0
  %3118 = vmatmul.mubr.f32.gmra.mrb[0].mxu0 %v3051
  %v3119 = vpop.f32.mrb[0].mxu0
  %v3120 = vadd.f32 %v3048, %v3119
  %v3121 = vpop.f32.mrb[0].mxu0
  %3122 = vdwg.mxu0
  %v3123 = vld [vmem:[%s727] sm:$0xff]
  %v3124 = vld [vmem:[%s727 + $0x8] sm:$0xff]
  %v3125 = vld [vmem:[%s727 + $0x10] sm:$0xff]
  %v3126 = vld [vmem:[%s727 + $0x18] sm:$0xff]
  %v3128 = vlaneseq
  %v3129 = vshrl.u32 %v3128, 7
  %v3130 = vsub.s32 0, %v3129
  %v3131 = vrot.slane %v3038, %v3130
  %3133 = vmatprep.subr.mxu0 0.0
  %3134 = vmatpush1.msra.mxu0 %v3123
  %3135 = vmatprep.subr.mxu0 0.0
  %3136 = vmatpush1.msra.mxu0 %v3124
  %3137 = vmatprep.subr.mxu0 0.0
  %3138 = vmatpush1.msra.mxu0 %v3125
  %3139 = vmatprep.subr.mxu0 0.0
  %3140 = vmatpush1.msra.mxu0 %v3126
  %3141 = vmatprep.subr.mxu0 0.0
  %3142 = vmatpush1.msra.mxu0 0.0
  %3143 = vmatprep.subr.mxu0 0.0
  %3144 = vmatpush1.msra.mxu0 0.0
  %3145 = vmatprep.subr.mxu0 0.0
  %3146 = vmatpush1.msra.mxu0 0.0
  %3147 = vmatprep.subr.mxu0 0.0
  %3148 = vmatpush1.msra.mxu0 0.0
  %3149 = vmatprep.subr.mxu0 0.0
  %3150 = vmatpush1.msra.mxu0 0.0
  %3151 = vmatprep.subr.mxu0 0.0
  %3152 = vmatpush1.msra.mxu0 0.0
  %3153 = vmatprep.subr.mxu0 0.0
  %3154 = vmatpush1.msra.mxu0 0.0
  %3155 = vmatprep.subr.mxu0 0.0
  %3156 = vmatpush1.msra.mxu0 0.0
  %3157 = vmatprep.subr.mxu0 0.0
  %3158 = vmatpush1.msra.mxu0 0.0
  %3159 = vmatprep.subr.mxu0 0.0
  %3160 = vmatpush1.msra.mxu0 0.0
  %3161 = vmatprep.subr.mxu0 0.0
  %3162 = vmatpush1.msra.mxu0 0.0
  %3163 = vmatprep.subr.mxu0 0.0
  %3164 = vmatpush1.msra.mxu0 0.0
  %3165 = vmatprep.subr.mxu0 0.0
  %3166 = vmatpush1.msra.mxu0 0.0
  %3167 = vmatprep.subr.mxu0 0.0
  %3168 = vmatpush1.msra.mxu0 0.0
  %3169 = vmatprep.subr.mxu0 0.0
  %3170 = vmatpush1.msra.mxu0 0.0
  %3171 = vmatprep.subr.mxu0 0.0
  %3172 = vmatpush1.msra.mxu0 0.0
  %3173 = vmatprep.subr.mxu0 0.0
  %3174 = vmatpush1.msra.mxu0 0.0
  %3175 = vmatprep.subr.mxu0 0.0
  %3176 = vmatpush1.msra.mxu0 0.0
  %3177 = vmatprep.subr.mxu0 0.0
  %3178 = vmatpush1.msra.mxu0 0.0
  %3179 = vmatprep.subr.mxu0 0.0
  %3180 = vmatpush1.msra.mxu0 0.0
  %3181 = vmatprep.subr.mxu0 0.0
  %3182 = vmatpush1.msra.mxu0 0.0
  %3183 = vmatprep.subr.mxu0 0.0
  %3184 = vmatpush1.msra.mxu0 0.0
  %3185 = vmatprep.subr.mxu0 0.0
  %3186 = vmatpush1.msra.mxu0 0.0
  %3187 = vmatprep.subr.mxu0 0.0
  %3188 = vmatpush1.msra.mxu0 0.0
  %3189 = vmatprep.subr.mxu0 0.0
  %3190 = vmatpush1.msra.mxu0 0.0
  %3191 = vmatprep.subr.mxu0 0.0
  %3192 = vmatpush1.msra.mxu0 0.0
  %3193 = vmatprep.subr.mxu0 0.0
  %3194 = vmatpush1.msra.mxu0 0.0
  %3195 = vmatprep.subr.mxu0 0.0
  %3196 = vmatpush1.msra.mxu0 0.0
  %3197 = vmatprep.mubr.f32.mxu0 0.0
  %3198 = vmatmul.mubr.f32.gmra.mrb[0].mxu0 %v3051
  %v3199 = vpop.f32.mrb[0].mxu0
  %v3200 = vadd.f32 %v3131, %v3199
  %v3201 = vpop.f32.mrb[0].mxu0
  %3202 = vdwg.mxu0
  %v3203 = vld [vmem:[%s808] sm:$0xff]
  %v3204 = vld [vmem:[%s808 + $0x8] sm:$0xff]
  %v3205 = vld [vmem:[%s808 + $0x10] sm:$0xff]
  %v3206 = vld [vmem:[%s808 + $0x18] sm:$0xff]
  %v3208 = vlaneseq
  %v3209 = vshrl.u32 %v3208, 7
  %v3210 = vsub.s32 0, %v3209
  %v3211 = vrot.slane %v3039, %v3210
  %3213 = vmatprep.subr.mxu0 0.0
  %3214 = vmatpush1.msra.mxu0 %v3203
  %3215 = vmatprep.subr.mxu0 0.0
  %3216 = vmatpush1.msra.mxu0 %v3204
  %3217 = vmatprep.subr.mxu0 0.0
  %3218 = vmatpush1.msra.mxu0 %v3205
  %3219 = vmatprep.subr.mxu0 0.0
  %3220 = vmatpush1.msra.mxu0 %v3206
  %3221 = vmatprep.subr.mxu0 0.0
  %3222 = vmatpush1.msra.mxu0 0.0
  %3223 = vmatprep.subr.mxu0 0.0
  %3224 = vmatpush1.msra.mxu0 0.0
  %3225 = vmatprep.subr.mxu0 0.0
  %3226 = vmatpush1.msra.mxu0 0.0
  %3227 = vmatprep.subr.mxu0 0.0
  %3228 = vmatpush1.msra.mxu0 0.0
  %3229 = vmatprep.subr.mxu0 0.0
  %3230 = vmatpush1.msra.mxu0 0.0
  %3231 = vmatprep.subr.mxu0 0.0
  %3232 = vmatpush1.msra.mxu0 0.0
  %3233 = vmatprep.subr.mxu0 0.0
  %3234 = vmatpush1.msra.mxu0 0.0
  %3235 = vmatprep.subr.mxu0 0.0
  %3236 = vmatpush1.msra.mxu0 0.0
  %3237 = vmatprep.subr.mxu0 0.0
  %3238 = vmatpush1.msra.mxu0 0.0
  %3239 = vmatprep.subr.mxu0 0.0
  %3240 = vmatpush1.msra.mxu0 0.0
  %3241 = vmatprep.subr.mxu0 0.0
  %3242 = vmatpush1.msra.mxu0 0.0
  %3243 = vmatprep.subr.mxu0 0.0
  %3244 = vmatpush1.msra.mxu0 0.0
  %3245 = vmatprep.subr.mxu0 0.0
  %3246 = vmatpush1.msra.mxu0 0.0
  %3247 = vmatprep.subr.mxu0 0.0
  %3248 = vmatpush1.msra.mxu0 0.0
  %3249 = vmatprep.subr.mxu0 0.0
  %3250 = vmatpush1.msra.mxu0 0.0
  %3251 = vmatprep.subr.mxu0 0.0
  %3252 = vmatpush1.msra.mxu0 0.0
  %3253 = vmatprep.subr.mxu0 0.0
  %3254 = vmatpush1.msra.mxu0 0.0
  %3255 = vmatprep.subr.mxu0 0.0
  %3256 = vmatpush1.msra.mxu0 0.0
  %3257 = vmatprep.subr.mxu0 0.0
  %3258 = vmatpush1.msra.mxu0 0.0
  %3259 = vmatprep.subr.mxu0 0.0
  %3260 = vmatpush1.msra.mxu0 0.0
  %3261 = vmatprep.subr.mxu0 0.0
  %3262 = vmatpush1.msra.mxu0 0.0
  %3263 = vmatprep.subr.mxu0 0.0
  %3264 = vmatpush1.msra.mxu0 0.0
  %3265 = vmatprep.subr.mxu0 0.0
  %3266 = vmatpush1.msra.mxu0 0.0
  %3267 = vmatprep.subr.mxu0 0.0
  %3268 = vmatpush1.msra.mxu0 0.0
  %3269 = vmatprep.subr.mxu0 0.0
  %3270 = vmatpush1.msra.mxu0 0.0
  %3271 = vmatprep.subr.mxu0 0.0
  %3272 = vmatpush1.msra.mxu0 0.0
  %3273 = vmatprep.subr.mxu0 0.0
  %3274 = vmatpush1.msra.mxu0 0.0
  %3275 = vmatprep.subr.mxu0 0.0
  %3276 = vmatpush1.msra.mxu0 0.0
  %3277 = vmatprep.mubr.f32.mxu0 0.0
  %3278 = vmatmul.mubr.f32.gmra.mrb[0].mxu0 %v3051
  %v3279 = vpop.f32.mrb[0].mxu0
  %v3280 = vadd.f32 %v3211, %v3279
  %v3281 = vpop.f32.mrb[0].mxu0
  %3282 = vdwg.mxu0
  %v3283 = vld [vmem:[%s9] sm:$0xff]
  %v3284 = vld [vmem:[%s9 + $0x8] sm:$0xff]
  %v3285 = vld [vmem:[%s9 + $0x10] sm:$0xff]
  %v3286 = vld [vmem:[%s9 + $0x18] sm:$0xff]
  %v3287 = vld [vmem:[%s10] sm:$0x1]
  %v3289 = vlaneseq
  %v3290 = vshrl.u32 %v3289, 7
  %v3291 = vsub.s32 0, %v3290
  %v3292 = vrot.slane %v3287, %v3291
  %3294 = vmatprep.subr.mxu0 0.0
  %3295 = vmatpush1.msra.mxu0 %v3283
  %3296 = vmatprep.subr.mxu0 0.0
  %3297 = vmatpush1.msra.mxu0 %v3284
  %3298 = vmatprep.subr.mxu0 0.0
  %3299 = vmatpush1.msra.mxu0 %v3285
  %3300 = vmatprep.subr.mxu0 0.0
  %3301 = vmatpush1.msra.mxu0 %v3286
  %3302 = vmatprep.subr.mxu0 0.0
  %3303 = vmatpush1.msra.mxu0 0.0
  %3304 = vmatprep.subr.mxu0 0.0
  %3305 = vmatpush1.msra.mxu0 0.0
  %3306 = vmatprep.subr.mxu0 0.0
  %3307 = vmatpush1.msra.mxu0 0.0
  %3308 = vmatprep.subr.mxu0 0.0
  %3309 = vmatpush1.msra.mxu0 0.0
  %3310 = vmatprep.subr.mxu0 0.0
  %3311 = vmatpush1.msra.mxu0 0.0
  %3312 = vmatprep.subr.mxu0 0.0
  %3313 = vmatpush1.msra.mxu0 0.0
  %3314 = vmatprep.subr.mxu0 0.0
  %3315 = vmatpush1.msra.mxu0 0.0
  %3316 = vmatprep.subr.mxu0 0.0
  %3317 = vmatpush1.msra.mxu0 0.0
  %3318 = vmatprep.subr.mxu0 0.0
  %3319 = vmatpush1.msra.mxu0 0.0
  %3320 = vmatprep.subr.mxu0 0.0
  %3321 = vmatpush1.msra.mxu0 0.0
  %3322 = vmatprep.subr.mxu0 0.0
  %3323 = vmatpush1.msra.mxu0 0.0
  %3324 = vmatprep.subr.mxu0 0.0
  %3325 = vmatpush1.msra.mxu0 0.0
  %3326 = vmatprep.subr.mxu0 0.0
  %3327 = vmatpush1.msra.mxu0 0.0
  %3328 = vmatprep.subr.mxu0 0.0
  %3329 = vmatpush1.msra.mxu0 0.0
  %3330 = vmatprep.subr.mxu0 0.0
  %3331 = vmatpush1.msra.mxu0 0.0
  %3332 = vmatprep.subr.mxu0 0.0
  %3333 = vmatpush1.msra.mxu0 0.0
  %3334 = vmatprep.subr.mxu0 0.0
  %3335 = vmatpush1.msra.mxu0 0.0
  %3336 = vmatprep.subr.mxu0 0.0
  %3337 = vmatpush1.msra.mxu0 0.0
  %3338 = vmatprep.subr.mxu0 0.0
  %3339 = vmatpush1.msra.mxu0 0.0
  %3340 = vmatprep.subr.mxu0 0.0
  %3341 = vmatpush1.msra.mxu0 0.0
  %3342 = vmatprep.subr.mxu0 0.0
  %3343 = vmatpush1.msra.mxu0 0.0
  %3344 = vmatprep.subr.mxu0 0.0
  %3345 = vmatpush1.msra.mxu0 0.0
  %3346 = vmatprep.subr.mxu0 0.0
  %3347 = vmatpush1.msra.mxu0 0.0
  %3348 = vmatprep.subr.mxu0 0.0
  %3349 = vmatpush1.msra.mxu0 0.0
  %3350 = vmatprep.subr.mxu0 0.0
  %3351 = vmatpush1.msra.mxu0 0.0
  %3352 = vmatprep.subr.mxu0 0.0
  %3353 = vmatpush1.msra.mxu0 0.0
  %3354 = vmatprep.subr.mxu0 0.0
  %3355 = vmatpush1.msra.mxu0 0.0
  %3356 = vmatprep.subr.mxu0 0.0
  %3357 = vmatpush1.msra.mxu0 0.0
  %3358 = vmatprep.mubr.f32.mxu0 0.0
  %3359 = vmatmul.mubr.f32.gmra.mrb[0].mxu0 %v2357
  %v3360 = vpop.f32.mrb[0].mxu0
  %v3361 = vadd.f32 %v3292, %v3360
  %v3362 = vpop.f32.mrb[0].mxu0
  %3363 = vdwg.mxu0
  %v3364 = vld [vmem:[%s970] sm:$0xff]
  %v3365 = vld [vmem:[%s970 + $0x8] sm:$0xff]
  %v3366 = vld [vmem:[%s970 + $0x10] sm:$0xff]
  %v3367 = vld [vmem:[%s970 + $0x18] sm:$0xff]
  %v3368 = vld [vmem:[%s975] sm:$0x1]
  %v3370 = vlaneseq
  %v3371 = vshrl.u32 %v3370, 7
  %v3372 = vsub.s32 0, %v3371
  %v3373 = vrot.slane %v3368, %v3372
  %3375 = vmatprep.subr.mxu0 0.0
  %3376 = vmatpush1.msra.mxu0 %v3364
  %3377 = vmatprep.subr.mxu0 0.0
  %3378 = vmatpush1.msra.mxu0 %v3365
  %3379 = vmatprep.subr.mxu0 0.0
  %3380 = vmatpush1.msra.mxu0 %v3366
  %3381 = vmatprep.subr.mxu0 0.0
  %3382 = vmatpush1.msra.mxu0 %v3367
  %3383 = vmatprep.subr.mxu0 0.0
  %3384 = vmatpush1.msra.mxu0 0.0
  %3385 = vmatprep.subr.mxu0 0.0
  %3386 = vmatpush1.msra.mxu0 0.0
  %3387 = vmatprep.subr.mxu0 0.0
  %3388 = vmatpush1.msra.mxu0 0.0
  %3389 = vmatprep.subr.mxu0 0.0
  %3390 = vmatpush1.msra.mxu0 0.0
  %3391 = vmatprep.subr.mxu0 0.0
  %3392 = vmatpush1.msra.mxu0 0.0
  %3393 = vmatprep.subr.mxu0 0.0
  %3394 = vmatpush1.msra.mxu0 0.0
  %3395 = vmatprep.subr.mxu0 0.0
  %3396 = vmatpush1.msra.mxu0 0.0
  %3397 = vmatprep.subr.mxu0 0.0
  %3398 = vmatpush1.msra.mxu0 0.0
  %3399 = vmatprep.subr.mxu0 0.0
  %3400 = vmatpush1.msra.mxu0 0.0
  %3401 = vmatprep.subr.mxu0 0.0
  %3402 = vmatpush1.msra.mxu0 0.0
  %3403 = vmatprep.subr.mxu0 0.0
  %3404 = vmatpush1.msra.mxu0 0.0
  %3405 = vmatprep.subr.mxu0 0.0
  %3406 = vmatpush1.msra.mxu0 0.0
  %3407 = vmatprep.subr.mxu0 0.0
  %3408 = vmatpush1.msra.mxu0 0.0
  %3409 = vmatprep.subr.mxu0 0.0
  %3410 = vmatpush1.msra.mxu0 0.0
  %3411 = vmatprep.subr.mxu0 0.0
  %3412 = vmatpush1.msra.mxu0 0.0
  %3413 = vmatprep.subr.mxu0 0.0
  %3414 = vmatpush1.msra.mxu0 0.0
  %3415 = vmatprep.subr.mxu0 0.0
  %3416 = vmatpush1.msra.mxu0 0.0
  %3417 = vmatprep.subr.mxu0 0.0
  %3418 = vmatpush1.msra.mxu0 0.0
  %3419 = vmatprep.subr.mxu0 0.0
  %3420 = vmatpush1.msra.mxu0 0.0
  %3421 = vmatprep.subr.mxu0 0.0
  %3422 = vmatpush1.msra.mxu0 0.0
  %3423 = vmatprep.subr.mxu0 0.0
  %3424 = vmatpush1.msra.mxu0 0.0
  %3425 = vmatprep.subr.mxu0 0.0
  %3426 = vmatpush1.msra.mxu0 0.0
  %3427 = vmatprep.subr.mxu0 0.0
  %3428 = vmatpush1.msra.mxu0 0.0
  %3429 = vmatprep.subr.mxu0 0.0
  %3430 = vmatpush1.msra.mxu0 0.0
  %3431 = vmatprep.subr.mxu0 0.0
  %3432 = vmatpush1.msra.mxu0 0.0
  %3433 = vmatprep.subr.mxu0 0.0
  %3434 = vmatpush1.msra.mxu0 0.0
  %3435 = vmatprep.subr.mxu0 0.0
  %3436 = vmatpush1.msra.mxu0 0.0
  %3437 = vmatprep.subr.mxu0 0.0
  %3438 = vmatpush1.msra.mxu0 0.0
  %3439 = vmatprep.mubr.f32.mxu0 0.0
  %3440 = vmatmul.mubr.f32.gmra.mrb[0].mxu0 %v2357
  %v3441 = vpop.f32.mrb[0].mxu0
  %v3442 = vadd.f32 %v3373, %v3441
  %v3443 = vpop.f32.mrb[0].mxu0
  %3444 = vdwg.mxu0
  %v3445 = vld [vmem:[%s1053] sm:$0xff]
  %v3446 = vld [vmem:[%s1053 + $0x8] sm:$0xff]
  %v3447 = vld [vmem:[%s1053 + $0x10] sm:$0xff]
  %v3448 = vld [vmem:[%s1053 + $0x18] sm:$0xff]
  %v3449 = vld [vmem:[%s1058] sm:$0x1]
  %v3451 = vlaneseq
  %v3452 = vshrl.u32 %v3451, 7
  %v3453 = vsub.s32 0, %v3452
  %v3454 = vrot.slane %v3449, %v3453
  %3456 = vmatprep.subr.mxu0 0.0
  %3457 = vmatpush1.msra.mxu0 %v3445
  %3458 = vmatprep.subr.mxu0 0.0
  %3459 = vmatpush1.msra.mxu0 %v3446
  %3460 = vmatprep.subr.mxu0 0.0
  %3461 = vmatpush1.msra.mxu0 %v3447
  %3462 = vmatprep.subr.mxu0 0.0
  %3463 = vmatpush1.msra.mxu0 %v3448
  %3464 = vmatprep.subr.mxu0 0.0
  %3465 = vmatpush1.msra.mxu0 0.0
  %3466 = vmatprep.subr.mxu0 0.0
  %3467 = vmatpush1.msra.mxu0 0.0
  %3468 = vmatprep.subr.mxu0 0.0
  %3469 = vmatpush1.msra.mxu0 0.0
  %3470 = vmatprep.subr.mxu0 0.0
  %3471 = vmatpush1.msra.mxu0 0.0
  %3472 = vmatprep.subr.mxu0 0.0
  %3473 = vmatpush1.msra.mxu0 0.0
  %3474 = vmatprep.subr.mxu0 0.0
  %3475 = vmatpush1.msra.mxu0 0.0
  %3476 = vmatprep.subr.mxu0 0.0
  %3477 = vmatpush1.msra.mxu0 0.0
  %3478 = vmatprep.subr.mxu0 0.0
  %3479 = vmatpush1.msra.mxu0 0.0
  %3480 = vmatprep.subr.mxu0 0.0
  %3481 = vmatpush1.msra.mxu0 0.0
  %3482 = vmatprep.subr.mxu0 0.0
  %3483 = vmatpush1.msra.mxu0 0.0
  %3484 = vmatprep.subr.mxu0 0.0
  %3485 = vmatpush1.msra.mxu0 0.0
  %3486 = vmatprep.subr.mxu0 0.0
  %3487 = vmatpush1.msra.mxu0 0.0
  %3488 = vmatprep.subr.mxu0 0.0
  %3489 = vmatpush1.msra.mxu0 0.0
  %3490 = vmatprep.subr.mxu0 0.0
  %3491 = vmatpush1.msra.mxu0 0.0
  %3492 = vmatprep.subr.mxu0 0.0
  %3493 = vmatpush1.msra.mxu0 0.0
  %3494 = vmatprep.subr.mxu0 0.0
  %3495 = vmatpush1.msra.mxu0 0.0
  %3496 = vmatprep.subr.mxu0 0.0
  %3497 = vmatpush1.msra.mxu0 0.0
  %3498 = vmatprep.subr.mxu0 0.0
  %3499 = vmatpush1.msra.mxu0 0.0
  %3500 = vmatprep.subr.mxu0 0.0
  %3501 = vmatpush1.msra.mxu0 0.0
  %3502 = vmatprep.subr.mxu0 0.0
  %3503 = vmatpush1.msra.mxu0 0.0
  %3504 = vmatprep.subr.mxu0 0.0
  %3505 = vmatpush1.msra.mxu0 0.0
  %3506 = vmatprep.subr.mxu0 0.0
  %3507 = vmatpush1.msra.mxu0 0.0
  %3508 = vmatprep.subr.mxu0 0.0
  %3509 = vmatpush1.msra.mxu0 0.0
  %3510 = vmatprep.subr.mxu0 0.0
  %3511 = vmatpush1.msra.mxu0 0.0
  %3512 = vmatprep.subr.mxu0 0.0
  %3513 = vmatpush1.msra.mxu0 0.0
  %3514 = vmatprep.subr.mxu0 0.0
  %3515 = vmatpush1.msra.mxu0 0.0
  %3516 = vmatprep.subr.mxu0 0.0
  %3517 = vmatpush1.msra.mxu0 0.0
  %3518 = vmatprep.subr.mxu0 0.0
  %3519 = vmatpush1.msra.mxu0 0.0
  %3520 = vmatprep.mubr.f32.mxu0 0.0
  %3521 = vmatmul.mubr.f32.gmra.mrb[0].mxu0 %v2357
  %v3522 = vpop.f32.mrb[0].mxu0
  %v3523 = vadd.f32 %v3454, %v3522
  %v3524 = vpop.f32.mrb[0].mxu0
  %3525 = vdwg.mxu0
  %v3526 = vadd.f32 %v3120, %v3361
  %v3527 = vxor.u32 %v3526, 2147483648
  %v3528 = vmul.f32 %v3527, 1.442695
  %v3529 = vpow.pop %v3528
  %v3530 = vadd.f32 %v3529, 1.0
  %v3531 = vrcp.pop %v3530
  %v3532 = vmul.f32 1.0, %v3531
  %v3533 = vadd.f32 %v3200, %v3442
  %v3534 = vxor.u32 %v3533, 2147483648
  %v3535 = vmul.f32 %v3534, 1.442695
  %v3536 = vpow.pop %v3535
  %v3537 = vadd.f32 %v3536, 1.0
  %v3538 = vrcp.pop %v3537
  %v3539 = vmul.f32 1.0, %v3538
  %v3540 = vmul.f32 %v3532, %v3523
  %v3541 = vadd.f32 %v3280, %v3540
  %v3542 = vtanh.pop %v3541
  %v3543 = vsub.f32 1.0, %v3539
  %v3544 = vmul.f32 %v3543, %v3542
  %v3545 = vmul.f32 %v3539, %v2351
  %v3546 = vadd.f32 %v3544, %v3545
  %v3547 = vld [vmem:[%s11] sm:$0xff]
  %v3548 = vld [vmem:[%s11 + $0x8] sm:$0xff]
  %v3549 = vld [vmem:[%s11 + $0x10] sm:$0xff]
  %v3550 = vld [vmem:[%s11 + $0x18] sm:$0xff]
  %v3552 = vsel %vm144, %v3546, 0
  %3554 = vmatprep.subr.mxu0 0.0
  %3555 = vmatpush1.msra.mxu0 %v3547
  %3556 = vmatprep.subr.mxu0 0.0
  %3557 = vmatpush1.msra.mxu0 %v3548
  %3558 = vmatprep.subr.mxu0 0.0
  %3559 = vmatpush1.msra.mxu0 %v3549
  %3560 = vmatprep.subr.mxu0 0.0
  %3561 = vmatpush1.msra.mxu0 %v3550
  %3562 = vmatprep.subr.mxu0 0.0
  %3563 = vmatpush1.msra.mxu0 0.0
  %3564 = vmatprep.subr.mxu0 0.0
  %3565 = vmatpush1.msra.mxu0 0.0
  %3566 = vmatprep.subr.mxu0 0.0
  %3567 = vmatpush1.msra.mxu0 0.0
  %3568 = vmatprep.subr.mxu0 0.0
  %3569 = vmatpush1.msra.mxu0 0.0
  %3570 = vmatprep.subr.mxu0 0.0
  %3571 = vmatpush1.msra.mxu0 0.0
  %3572 = vmatprep.subr.mxu0 0.0
  %3573 = vmatpush1.msra.mxu0 0.0
  %3574 = vmatprep.subr.mxu0 0.0
  %3575 = vmatpush1.msra.mxu0 0.0
  %3576 = vmatprep.subr.mxu0 0.0
  %3577 = vmatpush1.msra.mxu0 0.0
  %3578 = vmatprep.subr.mxu0 0.0
  %3579 = vmatpush1.msra.mxu0 0.0
  %3580 = vmatprep.subr.mxu0 0.0
  %3581 = vmatpush1.msra.mxu0 0.0
  %3582 = vmatprep.subr.mxu0 0.0
  %3583 = vmatpush1.msra.mxu0 0.0
  %3584 = vmatprep.subr.mxu0 0.0
  %3585 = vmatpush1.msra.mxu0 0.0
  %3586 = vmatprep.subr.mxu0 0.0
  %3587 = vmatpush1.msra.mxu0 0.0
  %3588 = vmatprep.subr.mxu0 0.0
  %3589 = vmatpush1.msra.mxu0 0.0
  %3590 = vmatprep.subr.mxu0 0.0
  %3591 = vmatpush1.msra.mxu0 0.0
  %3592 = vmatprep.subr.mxu0 0.0
  %3593 = vmatpush1.msra.mxu0 0.0
  %3594 = vmatprep.subr.mxu0 0.0
  %3595 = vmatpush1.msra.mxu0 0.0
  %3596 = vmatprep.subr.mxu0 0.0
  %3597 = vmatpush1.msra.mxu0 0.0
  %3598 = vmatprep.subr.mxu0 0.0
  %3599 = vmatpush1.msra.mxu0 0.0
  %3600 = vmatprep.subr.mxu0 0.0
  %3601 = vmatpush1.msra.mxu0 0.0
  %3602 = vmatprep.subr.mxu0 0.0
  %3603 = vmatpush1.msra.mxu0 0.0
  %3604 = vmatprep.subr.mxu0 0.0
  %3605 = vmatpush1.msra.mxu0 0.0
  %3606 = vmatprep.subr.mxu0 0.0
  %3607 = vmatpush1.msra.mxu0 0.0
  %3608 = vmatprep.subr.mxu0 0.0
  %3609 = vmatpush1.msra.mxu0 0.0
  %3610 = vmatprep.subr.mxu0 0.0
  %3611 = vmatpush1.msra.mxu0 0.0
  %3612 = vmatprep.subr.mxu0 0.0
  %3613 = vmatpush1.msra.mxu0 0.0
  %3614 = vmatprep.subr.mxu0 0.0
  %3615 = vmatpush1.msra.mxu0 0.0
  %3616 = vmatprep.subr.mxu0 0.0
  %3617 = vmatpush1.msra.mxu0 0.0
  %3618 = vmatprep.mubr.f32.mxu0 0.0
  %3619 = vmatmul.mubr.f32.gmra.mrb[0].mxu0 %v3552
  %v3620 = vpop.f32.mrb[0].mxu0
  %v3621 = vadd.f32 %v52, %v3620
  %v3622 = vpop.f32.mrb[0].mxu0
  %3623 = vdwg.mxu0
  %v3624 = vsel %vm1234, %v3621, -inf
  %3625 = vmax.xlane.f32.xlu0 %v3624
  %v3626 = vpop.xlane.xlu0 %3625
  %v3627 = vsub.f32 %v3621, %v3626
  %v3628 = vmul.f32 %v3627, 1.442695
  %v3629 = vpow.pop %v3628
  %v3630 = vsel %vm1234, %v3629, 0.0
  %3631 = vadd.xlane.f32.xlu0 %v3630
  %v3632 = vpop.xlane.xlu0 %3631
  %v3633 = vlog2.pop %v3632
  %v3634 = vmul.f32 %v3633, 0.6931472
  %v3635 = vsub.f32 %v3627, %v3634
  %s3636 = scalar_lea.vmem %s12, 8
  %3637 = vst.msk [vmem:[%s3636] sm:$0xf] %vm1234, %v3635
  %vm3638 = vcmp.eq.f32.partialorder %v3621, %v3626
  %v3639 = vsel %vm3638, %v43, 10
  %v3640 = vsel %vm1234, %v3639, 2147483647
  %v3641 = vand.u32 %v3640, 65535
  %v3642 = vshra.s32 %v3640, 16
  %v3643 = vcvt.s32.f32 %v3641
  %v3644 = vcvt.s32.f32 %v3642
  %3645 = vmin.xlane.f32.xlu0 %v3644
  %v3646 = vpop.xlane.xlu0 %3645
  %vm3647 = vcmp.eq.f32.partialorder %v3644, %v3646
  %v3648 = vsel %vm3647, %v3643, inf
  %3649 = vmin.xlane.f32.xlu0 %v3648
  %v3650 = vpop.xlane.xlu0 %3649
  %v3651 = vcvt.f32.s32 %v3650
  %v3652 = vcvt.f32.s32 %v3646
  %v3653 = vshll.u32 %v3652, 16
  %v3654 = vadd.s32 %v3653, %v3651
  %vm3655 = vcmp.eq.s32.totalorder %v43, %v3654
  %v3656 = vsel %vm3655, 1, 0
  %v3657 = vcvt.s32.f32 %v3656
  %v3658 = vld [vmem:[%s3] sm:$0xff]
  %v3659 = vld [vmem:[%s3 + $0x8] sm:$0x3]
  %v3661 = vsel %vm55, %v3657, 0
  %v3664 = vsel %vm59, %v3659, 0
  %3666 = vmatprep.subr.mxu0 0.0
  %3667 = vmatpush1.msra.mxu0 %v3658
  %3668 = vmatprep.subr.mxu0 0.0
  %3669 = vmatpush1.msra.mxu0 %v3664
  %3670 = vmatprep.subr.mxu0 0.0
  %3671 = vmatpush1.msra.mxu0 0.0
  %3672 = vmatprep.subr.mxu0 0.0
  %3673 = vmatpush1.msra.mxu0 0.0
  %3674 = vmatprep.subr.mxu0 0.0
  %3675 = vmatpush1.msra.mxu0 0.0
  %3676 = vmatprep.subr.mxu0 0.0
  %3677 = vmatpush1.msra.mxu0 0.0
  %3678 = vmatprep.subr.mxu0 0.0
  %3679 = vmatpush1.msra.mxu0 0.0
  %3680 = vmatprep.subr.mxu0 0.0
  %3681 = vmatpush1.msra.mxu0 0.0
  %3682 = vmatprep.subr.mxu0 0.0
  %3683 = vmatpush1.msra.mxu0 0.0
  %3684 = vmatprep.subr.mxu0 0.0
  %3685 = vmatpush1.msra.mxu0 0.0
  %3686 = vmatprep.subr.mxu0 0.0
  %3687 = vmatpush1.msra.mxu0 0.0
  %3688 = vmatprep.subr.mxu0 0.0
  %3689 = vmatpush1.msra.mxu0 0.0
  %3690 = vmatprep.subr.mxu0 0.0
  %3691 = vmatpush1.msra.mxu0 0.0
  %3692 = vmatprep.subr.mxu0 0.0
  %3693 = vmatpush1.msra.mxu0 0.0
  %3694 = vmatprep.subr.mxu0 0.0
  %3695 = vmatpush1.msra.mxu0 0.0
  %3696 = vmatprep.subr.mxu0 0.0
  %3697 = vmatpush1.msra.mxu0 0.0
  %3698 = vmatprep.subr.mxu0 0.0
  %3699 = vmatpush1.msra.mxu0 0.0
  %3700 = vmatprep.subr.mxu0 0.0
  %3701 = vmatpush1.msra.mxu0 0.0
  %3702 = vmatprep.subr.mxu0 0.0
  %3703 = vmatpush1.msra.mxu0 0.0
  %3704 = vmatprep.subr.mxu0 0.0
  %3705 = vmatpush1.msra.mxu0 0.0
  %3706 = vmatprep.subr.mxu0 0.0
  %3707 = vmatpush1.msra.mxu0 0.0
  %3708 = vmatprep.subr.mxu0 0.0
  %3709 = vmatpush1.msra.mxu0 0.0
  %3710 = vmatprep.subr.mxu0 0.0
  %3711 = vmatpush1.msra.mxu0 0.0
  %3712 = vmatprep.subr.mxu0 0.0
  %3713 = vmatpush1.msra.mxu0 0.0
  %3714 = vmatprep.subr.mxu0 0.0
  %3715 = vmatpush1.msra.mxu0 0.0
  %3716 = vmatprep.subr.mxu0 0.0
  %3717 = vmatpush1.msra.mxu0 0.0
  %3718 = vmatprep.subr.mxu0 0.0
  %3719 = vmatpush1.msra.mxu0 0.0
  %3720 = vmatprep.subr.mxu0 0.0
  %3721 = vmatpush1.msra.mxu0 0.0
  %3722 = vmatprep.subr.mxu0 0.0
  %3723 = vmatpush1.msra.mxu0 0.0
  %3724 = vmatprep.subr.mxu0 0.0
  %3725 = vmatpush1.msra.mxu0 0.0
  %3726 = vmatprep.subr.mxu0 0.0
  %3727 = vmatpush1.msra.mxu0 0.0
  %3728 = vmatprep.subr.mxu0 0.0
  %3729 = vmatpush1.msra.mxu0 0.0
  %3730 = vmatprep.mubr.f32.mxu0 0.0
  %3731 = vmatmul.mubr.f32.gmra.mrb[0].mxu0 %v3661
  %v3732 = vpop.f32.mrb[0].mxu0
  %v3733 = vadd.f32 0.0, %v3732
  %v3734 = vpop.f32.mrb[0].mxu0
  %3735 = vdwg.mxu0
  %v3736 = vxor.u32 %v3733, 2147483648
  %v3737 = vmul.f32 %v3736, 1.442695
  %v3738 = vpow.pop %v3737
  %v3739 = vadd.f32 %v3738, 1.0
  %v3740 = vrcp.pop %v3739
  %v3741 = vmul.f32 1.0, %v3740
  %v3742 = vmul.f32 %v3733, %v3741
  %v3743 = vld [vmem:[%s4] sm:$0xff]
  %v3744 = vld [vmem:[%s4 + $0x8] sm:$0xff]
  %v3745 = vld [vmem:[%s4 + $0x10] sm:$0xff]
  %v3746 = vld [vmem:[%s4 + $0x18] sm:$0xff]
  %v3748 = vsel %vm144, %v3742, 0
  %3750 = vmatprep.subr.mxu0 0.0
  %3751 = vmatpush1.msra.mxu0 %v3743
  %3752 = vmatprep.subr.mxu0 0.0
  %3753 = vmatpush1.msra.mxu0 %v3744
  %3754 = vmatprep.subr.mxu0 0.0
  %3755 = vmatpush1.msra.mxu0 %v3745
  %3756 = vmatprep.subr.mxu0 0.0
  %3757 = vmatpush1.msra.mxu0 %v3746
  %3758 = vmatprep.subr.mxu0 0.0
  %3759 = vmatpush1.msra.mxu0 0.0
  %3760 = vmatprep.subr.mxu0 0.0
  %3761 = vmatpush1.msra.mxu0 0.0
  %3762 = vmatprep.subr.mxu0 0.0
  %3763 = vmatpush1.msra.mxu0 0.0
  %3764 = vmatprep.subr.mxu0 0.0
  %3765 = vmatpush1.msra.mxu0 0.0
  %3766 = vmatprep.subr.mxu0 0.0
  %3767 = vmatpush1.msra.mxu0 0.0
  %3768 = vmatprep.subr.mxu0 0.0
  %3769 = vmatpush1.msra.mxu0 0.0
  %3770 = vmatprep.subr.mxu0 0.0
  %3771 = vmatpush1.msra.mxu0 0.0
  %3772 = vmatprep.subr.mxu0 0.0
  %3773 = vmatpush1.msra.mxu0 0.0
  %3774 = vmatprep.subr.mxu0 0.0
  %3775 = vmatpush1.msra.mxu0 0.0
  %3776 = vmatprep.subr.mxu0 0.0
  %3777 = vmatpush1.msra.mxu0 0.0
  %3778 = vmatprep.subr.mxu0 0.0
  %3779 = vmatpush1.msra.mxu0 0.0
  %3780 = vmatprep.subr.mxu0 0.0
  %3781 = vmatpush1.msra.mxu0 0.0
  %3782 = vmatprep.subr.mxu0 0.0
  %3783 = vmatpush1.msra.mxu0 0.0
  %3784 = vmatprep.subr.mxu0 0.0
  %3785 = vmatpush1.msra.mxu0 0.0
  %3786 = vmatprep.subr.mxu0 0.0
  %3787 = vmatpush1.msra.mxu0 0.0
  %3788 = vmatprep.subr.mxu0 0.0
  %3789 = vmatpush1.msra.mxu0 0.0
  %3790 = vmatprep.subr.mxu0 0.0
  %3791 = vmatpush1.msra.mxu0 0.0
  %3792 = vmatprep.subr.mxu0 0.0
  %3793 = vmatpush1.msra.mxu0 0.0
  %3794 = vmatprep.subr.mxu0 0.0
  %3795 = vmatpush1.msra.mxu0 0.0
  %3796 = vmatprep.subr.mxu0 0.0
  %3797 = vmatpush1.msra.mxu0 0.0
  %3798 = vmatprep.subr.mxu0 0.0
  %3799 = vmatpush1.msra.mxu0 0.0
  %3800 = vmatprep.subr.mxu0 0.0
  %3801 = vmatpush1.msra.mxu0 0.0
  %3802 = vmatprep.subr.mxu0 0.0
  %3803 = vmatpush1.msra.mxu0 0.0
  %3804 = vmatprep.subr.mxu0 0.0
  %3805 = vmatpush1.msra.mxu0 0.0
  %3806 = vmatprep.subr.mxu0 0.0
  %3807 = vmatpush1.msra.mxu0 0.0
  %3808 = vmatprep.subr.mxu0 0.0
  %3809 = vmatpush1.msra.mxu0 0.0
  %3810 = vmatprep.subr.mxu0 0.0
  %3811 = vmatpush1.msra.mxu0 0.0
  %3812 = vmatprep.subr.mxu0 0.0
  %3813 = vmatpush1.msra.mxu0 0.0
  %3814 = vmatprep.mubr.f32.mxu0 0.0
  %3815 = vmatmul.mubr.f32.gmra.mrb[0].mxu0 %v3748
  %v3816 = vpop.f32.mrb[0].mxu0
  %v3817 = vadd.f32 %v47, %v3816
  %v3818 = vpop.f32.mrb[0].mxu0
  %3819 = vdwg.mxu0
  %v3820 = vld [vmem:[%s218] sm:$0xff]
  %v3821 = vld [vmem:[%s218 + $0x8] sm:$0xff]
  %v3822 = vld [vmem:[%s218 + $0x10] sm:$0xff]
  %v3823 = vld [vmem:[%s218 + $0x18] sm:$0xff]
  %3824 = vmatprep.subr.mxu0 0.0
  %3825 = vmatpush1.msra.mxu0 %v3820
  %3826 = vmatprep.subr.mxu0 0.0
  %3827 = vmatpush1.msra.mxu0 %v3821
  %3828 = vmatprep.subr.mxu0 0.0
  %3829 = vmatpush1.msra.mxu0 %v3822
  %3830 = vmatprep.subr.mxu0 0.0
  %3831 = vmatpush1.msra.mxu0 %v3823
  %3832 = vmatprep.subr.mxu0 0.0
  %3833 = vmatpush1.msra.mxu0 0.0
  %3834 = vmatprep.subr.mxu0 0.0
  %3835 = vmatpush1.msra.mxu0 0.0
  %3836 = vmatprep.subr.mxu0 0.0
  %3837 = vmatpush1.msra.mxu0 0.0
  %3838 = vmatprep.subr.mxu0 0.0
  %3839 = vmatpush1.msra.mxu0 0.0
  %3840 = vmatprep.subr.mxu0 0.0
  %3841 = vmatpush1.msra.mxu0 0.0
  %3842 = vmatprep.subr.mxu0 0.0
  %3843 = vmatpush1.msra.mxu0 0.0
  %3844 = vmatprep.subr.mxu0 0.0
  %3845 = vmatpush1.msra.mxu0 0.0
  %3846 = vmatprep.subr.mxu0 0.0
  %3847 = vmatpush1.msra.mxu0 0.0
  %3848 = vmatprep.subr.mxu0 0.0
  %3849 = vmatpush1.msra.mxu0 0.0
  %3850 = vmatprep.subr.mxu0 0.0
  %3851 = vmatpush1.msra.mxu0 0.0
  %3852 = vmatprep.subr.mxu0 0.0
  %3853 = vmatpush1.msra.mxu0 0.0
  %3854 = vmatprep.subr.mxu0 0.0
  %3855 = vmatpush1.msra.mxu0 0.0
  %3856 = vmatprep.subr.mxu0 0.0
  %3857 = vmatpush1.msra.mxu0 0.0
  %3858 = vmatprep.subr.mxu0 0.0
  %3859 = vmatpush1.msra.mxu0 0.0
  %3860 = vmatprep.subr.mxu0 0.0
  %3861 = vmatpush1.msra.mxu0 0.0
  %3862 = vmatprep.subr.mxu0 0.0
  %3863 = vmatpush1.msra.mxu0 0.0
  %3864 = vmatprep.subr.mxu0 0.0
  %3865 = vmatpush1.msra.mxu0 0.0
  %3866 = vmatprep.subr.mxu0 0.0
  %3867 = vmatpush1.msra.mxu0 0.0
  %3868 = vmatprep.subr.mxu0 0.0
  %3869 = vmatpush1.msra.mxu0 0.0
  %3870 = vmatprep.subr.mxu0 0.0
  %3871 = vmatpush1.msra.mxu0 0.0
  %3872 = vmatprep.subr.mxu0 0.0
  %3873 = vmatpush1.msra.mxu0 0.0
  %3874 = vmatprep.subr.mxu0 0.0
  %3875 = vmatpush1.msra.mxu0 0.0
  %3876 = vmatprep.subr.mxu0 0.0
  %3877 = vmatpush1.msra.mxu0 0.0
  %3878 = vmatprep.subr.mxu0 0.0
  %3879 = vmatpush1.msra.mxu0 0.0
  %3880 = vmatprep.subr.mxu0 0.0
  %3881 = vmatpush1.msra.mxu0 0.0
  %3882 = vmatprep.subr.mxu0 0.0
  %3883 = vmatpush1.msra.mxu0 0.0
  %3884 = vmatprep.subr.mxu0 0.0
  %3885 = vmatpush1.msra.mxu0 0.0
  %3886 = vmatprep.subr.mxu0 0.0
  %3887 = vmatpush1.msra.mxu0 0.0
  %3888 = vmatprep.mubr.f32.mxu0 0.0
  %3889 = vmatmul.mubr.f32.gmra.mrb[0].mxu0 %v3748
  %v3890 = vpop.f32.mrb[0].mxu0
  %v3891 = vadd.f32 %v49, %v3890
  %v3892 = vpop.f32.mrb[0].mxu0
  %3893 = vdwg.mxu0
  %v3894 = vld [vmem:[%s293] sm:$0xff]
  %v3895 = vld [vmem:[%s293 + $0x8] sm:$0xff]
  %v3896 = vld [vmem:[%s293 + $0x10] sm:$0xff]
  %v3897 = vld [vmem:[%s293 + $0x18] sm:$0xff]
  %3898 = vmatprep.subr.mxu0 0.0
  %3899 = vmatpush1.msra.mxu0 %v3894
  %3900 = vmatprep.subr.mxu0 0.0
  %3901 = vmatpush1.msra.mxu0 %v3895
  %3902 = vmatprep.subr.mxu0 0.0
  %3903 = vmatpush1.msra.mxu0 %v3896
  %3904 = vmatprep.subr.mxu0 0.0
  %3905 = vmatpush1.msra.mxu0 %v3897
  %3906 = vmatprep.subr.mxu0 0.0
  %3907 = vmatpush1.msra.mxu0 0.0
  %3908 = vmatprep.subr.mxu0 0.0
  %3909 = vmatpush1.msra.mxu0 0.0
  %3910 = vmatprep.subr.mxu0 0.0
  %3911 = vmatpush1.msra.mxu0 0.0
  %3912 = vmatprep.subr.mxu0 0.0
  %3913 = vmatpush1.msra.mxu0 0.0
  %3914 = vmatprep.subr.mxu0 0.0
  %3915 = vmatpush1.msra.mxu0 0.0
  %3916 = vmatprep.subr.mxu0 0.0
  %3917 = vmatpush1.msra.mxu0 0.0
  %3918 = vmatprep.subr.mxu0 0.0
  %3919 = vmatpush1.msra.mxu0 0.0
  %3920 = vmatprep.subr.mxu0 0.0
  %3921 = vmatpush1.msra.mxu0 0.0
  %3922 = vmatprep.subr.mxu0 0.0
  %3923 = vmatpush1.msra.mxu0 0.0
  %3924 = vmatprep.subr.mxu0 0.0
  %3925 = vmatpush1.msra.mxu0 0.0
  %3926 = vmatprep.subr.mxu0 0.0
  %3927 = vmatpush1.msra.mxu0 0.0
  %3928 = vmatprep.subr.mxu0 0.0
  %3929 = vmatpush1.msra.mxu0 0.0
  %3930 = vmatprep.subr.mxu0 0.0
  %3931 = vmatpush1.msra.mxu0 0.0
  %3932 = vmatprep.subr.mxu0 0.0
  %3933 = vmatpush1.msra.mxu0 0.0
  %3934 = vmatprep.subr.mxu0 0.0
  %3935 = vmatpush1.msra.mxu0 0.0
  %3936 = vmatprep.subr.mxu0 0.0
  %3937 = vmatpush1.msra.mxu0 0.0
  %3938 = vmatprep.subr.mxu0 0.0
  %3939 = vmatpush1.msra.mxu0 0.0
  %3940 = vmatprep.subr.mxu0 0.0
  %3941 = vmatpush1.msra.mxu0 0.0
  %3942 = vmatprep.subr.mxu0 0.0
  %3943 = vmatpush1.msra.mxu0 0.0
  %3944 = vmatprep.subr.mxu0 0.0
  %3945 = vmatpush1.msra.mxu0 0.0
  %3946 = vmatprep.subr.mxu0 0.0
  %3947 = vmatpush1.msra.mxu0 0.0
  %3948 = vmatprep.subr.mxu0 0.0
  %3949 = vmatpush1.msra.mxu0 0.0
  %3950 = vmatprep.subr.mxu0 0.0
  %3951 = vmatpush1.msra.mxu0 0.0
  %3952 = vmatprep.subr.mxu0 0.0
  %3953 = vmatpush1.msra.mxu0 0.0
  %3954 = vmatprep.subr.mxu0 0.0
  %3955 = vmatpush1.msra.mxu0 0.0
  %3956 = vmatprep.subr.mxu0 0.0
  %3957 = vmatpush1.msra.mxu0 0.0
  %3958 = vmatprep.subr.mxu0 0.0
  %3959 = vmatpush1.msra.mxu0 0.0
  %3960 = vmatprep.subr.mxu0 0.0
  %3961 = vmatpush1.msra.mxu0 0.0
  %3962 = vmatprep.mubr.f32.mxu0 0.0
  %3963 = vmatmul.mubr.f32.gmra.mrb[0].mxu0 %v3748
  %v3964 = vpop.f32.mrb[0].mxu0
  %v3965 = vadd.f32 %v51, %v3964
  %v3966 = vpop.f32.mrb[0].mxu0
  %3967 = vdwg.mxu0
  %v3968 = vld [vmem:[%s5] sm:$0xff]
  %v3969 = vld [vmem:[%s5 + $0x8] sm:$0xff]
  %v3970 = vld [vmem:[%s5 + $0x10] sm:$0xff]
  %v3971 = vld [vmem:[%s5 + $0x18] sm:$0xff]
  %v3972 = vld [vmem:[%s6] sm:$0x1]
  %v3974 = vlaneseq
  %v3975 = vshrl.u32 %v3974, 7
  %v3976 = vsub.s32 0, %v3975
  %v3977 = vrot.slane %v3972, %v3976
  %3979 = vmatprep.subr.mxu0 0.0
  %3980 = vmatpush1.msra.mxu0 %v3968
  %3981 = vmatprep.subr.mxu0 0.0
  %3982 = vmatpush1.msra.mxu0 %v3969
  %3983 = vmatprep.subr.mxu0 0.0
  %3984 = vmatpush1.msra.mxu0 %v3970
  %3985 = vmatprep.subr.mxu0 0.0
  %3986 = vmatpush1.msra.mxu0 %v3971
  %3987 = vmatprep.subr.mxu0 0.0
  %3988 = vmatpush1.msra.mxu0 0.0
  %3989 = vmatprep.subr.mxu0 0.0
  %3990 = vmatpush1.msra.mxu0 0.0
  %3991 = vmatprep.subr.mxu0 0.0
  %3992 = vmatpush1.msra.mxu0 0.0
  %3993 = vmatprep.subr.mxu0 0.0
  %3994 = vmatpush1.msra.mxu0 0.0
  %3995 = vmatprep.subr.mxu0 0.0
  %3996 = vmatpush1.msra.mxu0 0.0
  %3997 = vmatprep.subr.mxu0 0.0
  %3998 = vmatpush1.msra.mxu0 0.0
  %3999 = vmatprep.subr.mxu0 0.0
  %4000 = vmatpush1.msra.mxu0 0.0
  %4001 = vmatprep.subr.mxu0 0.0
  %4002 = vmatpush1.msra.mxu0 0.0
  %4003 = vmatprep.subr.mxu0 0.0
  %4004 = vmatpush1.msra.mxu0 0.0
  %4005 = vmatprep.subr.mxu0 0.0
  %4006 = vmatpush1.msra.mxu0 0.0
  %4007 = vmatprep.subr.mxu0 0.0
  %4008 = vmatpush1.msra.mxu0 0.0
  %4009 = vmatprep.subr.mxu0 0.0
  %4010 = vmatpush1.msra.mxu0 0.0
  %4011 = vmatprep.subr.mxu0 0.0
  %4012 = vmatpush1.msra.mxu0 0.0
  %4013 = vmatprep.subr.mxu0 0.0
  %4014 = vmatpush1.msra.mxu0 0.0
  %4015 = vmatprep.subr.mxu0 0.0
  %4016 = vmatpush1.msra.mxu0 0.0
  %4017 = vmatprep.subr.mxu0 0.0
  %4018 = vmatpush1.msra.mxu0 0.0
  %4019 = vmatprep.subr.mxu0 0.0
  %4020 = vmatpush1.msra.mxu0 0.0
  %4021 = vmatprep.subr.mxu0 0.0
  %4022 = vmatpush1.msra.mxu0 0.0
  %4023 = vmatprep.subr.mxu0 0.0
  %4024 = vmatpush1.msra.mxu0 0.0
  %4025 = vmatprep.subr.mxu0 0.0
  %4026 = vmatpush1.msra.mxu0 0.0
  %4027 = vmatprep.subr.mxu0 0.0
  %4028 = vmatpush1.msra.mxu0 0.0
  %4029 = vmatprep.subr.mxu0 0.0
  %4030 = vmatpush1.msra.mxu0 0.0
  %4031 = vmatprep.subr.mxu0 0.0
  %4032 = vmatpush1.msra.mxu0 0.0
  %4033 = vmatprep.subr.mxu0 0.0
  %4034 = vmatpush1.msra.mxu0 0.0
  %4035 = vmatprep.subr.mxu0 0.0
  %4036 = vmatpush1.msra.mxu0 0.0
  %4037 = vmatprep.subr.mxu0 0.0
  %4038 = vmatpush1.msra.mxu0 0.0
  %4039 = vmatprep.subr.mxu0 0.0
  %4040 = vmatpush1.msra.mxu0 0.0
  %4041 = vmatprep.subr.mxu0 0.0
  %4042 = vmatpush1.msra.mxu0 0.0
  %4043 = vmatprep.mubr.f32.mxu0 0.0
  %4044 = vmatmul.mubr.f32.gmra.mrb[0].mxu0 %v3051
  %v4045 = vpop.f32.mrb[0].mxu0
  %v4046 = vadd.f32 %v3977, %v4045
  %v4047 = vpop.f32.mrb[0].mxu0
  %4048 = vdwg.mxu0
  %v4049 = vld [vmem:[%s452] sm:$0xff]
  %v4050 = vld [vmem:[%s452 + $0x8] sm:$0xff]
  %v4051 = vld [vmem:[%s452 + $0x10] sm:$0xff]
  %v4052 = vld [vmem:[%s452 + $0x18] sm:$0xff]
  %v4053 = vld [vmem:[%s457] sm:$0x1]
  %v4055 = vlaneseq
  %v4056 = vshrl.u32 %v4055, 7
  %v4057 = vsub.s32 0, %v4056
  %v4058 = vrot.slane %v4053, %v4057
  %4060 = vmatprep.subr.mxu0 0.0
  %4061 = vmatpush1.msra.mxu0 %v4049
  %4062 = vmatprep.subr.mxu0 0.0
  %4063 = vmatpush1.msra.mxu0 %v4050
  %4064 = vmatprep.subr.mxu0 0.0
  %4065 = vmatpush1.msra.mxu0 %v4051
  %4066 = vmatprep.subr.mxu0 0.0
  %4067 = vmatpush1.msra.mxu0 %v4052
  %4068 = vmatprep.subr.mxu0 0.0
  %4069 = vmatpush1.msra.mxu0 0.0
  %4070 = vmatprep.subr.mxu0 0.0
  %4071 = vmatpush1.msra.mxu0 0.0
  %4072 = vmatprep.subr.mxu0 0.0
  %4073 = vmatpush1.msra.mxu0 0.0
  %4074 = vmatprep.subr.mxu0 0.0
  %4075 = vmatpush1.msra.mxu0 0.0
  %4076 = vmatprep.subr.mxu0 0.0
  %4077 = vmatpush1.msra.mxu0 0.0
  %4078 = vmatprep.subr.mxu0 0.0
  %4079 = vmatpush1.msra.mxu0 0.0
  %4080 = vmatprep.subr.mxu0 0.0
  %4081 = vmatpush1.msra.mxu0 0.0
  %4082 = vmatprep.subr.mxu0 0.0
  %4083 = vmatpush1.msra.mxu0 0.0
  %4084 = vmatprep.subr.mxu0 0.0
  %4085 = vmatpush1.msra.mxu0 0.0
  %4086 = vmatprep.subr.mxu0 0.0
  %4087 = vmatpush1.msra.mxu0 0.0
  %4088 = vmatprep.subr.mxu0 0.0
  %4089 = vmatpush1.msra.mxu0 0.0
  %4090 = vmatprep.subr.mxu0 0.0
  %4091 = vmatpush1.msra.mxu0 0.0
  %4092 = vmatprep.subr.mxu0 0.0
  %4093 = vmatpush1.msra.mxu0 0.0
  %4094 = vmatprep.subr.mxu0 0.0
  %4095 = vmatpush1.msra.mxu0 0.0
  %4096 = vmatprep.subr.mxu0 0.0
  %4097 = vmatpush1.msra.mxu0 0.0
  %4098 = vmatprep.subr.mxu0 0.0
  %4099 = vmatpush1.msra.mxu0 0.0
  %4100 = vmatprep.subr.mxu0 0.0
  %4101 = vmatpush1.msra.mxu0 0.0
  %4102 = vmatprep.subr.mxu0 0.0
  %4103 = vmatpush1.msra.mxu0 0.0
  %4104 = vmatprep.subr.mxu0 0.0
  %4105 = vmatpush1.msra.mxu0 0.0
  %4106 = vmatprep.subr.mxu0 0.0
  %4107 = vmatpush1.msra.mxu0 0.0
  %4108 = vmatprep.subr.mxu0 0.0
  %4109 = vmatpush1.msra.mxu0 0.0
  %4110 = vmatprep.subr.mxu0 0.0
  %4111 = vmatpush1.msra.mxu0 0.0
  %4112 = vmatprep.subr.mxu0 0.0
  %4113 = vmatpush1.msra.mxu0 0.0
  %4114 = vmatprep.subr.mxu0 0.0
  %4115 = vmatpush1.msra.mxu0 0.0
  %4116 = vmatprep.subr.mxu0 0.0
  %4117 = vmatpush1.msra.mxu0 0.0
  %4118 = vmatprep.subr.mxu0 0.0
  %4119 = vmatpush1.msra.mxu0 0.0
  %4120 = vmatprep.subr.mxu0 0.0
  %4121 = vmatpush1.msra.mxu0 0.0
  %4122 = vmatprep.subr.mxu0 0.0
  %4123 = vmatpush1.msra.mxu0 0.0
  %4124 = vmatprep.mubr.f32.mxu0 0.0
  %4125 = vmatmul.mubr.f32.gmra.mrb[0].mxu0 %v3051
  %v4126 = vpop.f32.mrb[0].mxu0
  %v4127 = vadd.f32 %v4058, %v4126
  %v4128 = vpop.f32.mrb[0].mxu0
  %4129 = vdwg.mxu0
  %v4130 = vld [vmem:[%s535] sm:$0xff]
  %v4131 = vld [vmem:[%s535 + $0x8] sm:$0xff]
  %v4132 = vld [vmem:[%s535 + $0x10] sm:$0xff]
  %v4133 = vld [vmem:[%s535 + $0x18] sm:$0xff]
  %v4134 = vld [vmem:[%s540] sm:$0x1]
  %v4136 = vlaneseq
  %v4137 = vshrl.u32 %v4136, 7
  %v4138 = vsub.s32 0, %v4137
  %v4139 = vrot.slane %v4134, %v4138
  %4141 = vmatprep.subr.mxu0 0.0
  %4142 = vmatpush1.msra.mxu0 %v4130
  %4143 = vmatprep.subr.mxu0 0.0
  %4144 = vmatpush1.msra.mxu0 %v4131
  %4145 = vmatprep.subr.mxu0 0.0
  %4146 = vmatpush1.msra.mxu0 %v4132
  %4147 = vmatprep.subr.mxu0 0.0
  %4148 = vmatpush1.msra.mxu0 %v4133
  %4149 = vmatprep.subr.mxu0 0.0
  %4150 = vmatpush1.msra.mxu0 0.0
  %4151 = vmatprep.subr.mxu0 0.0
  %4152 = vmatpush1.msra.mxu0 0.0
  %4153 = vmatprep.subr.mxu0 0.0
  %4154 = vmatpush1.msra.mxu0 0.0
  %4155 = vmatprep.subr.mxu0 0.0
  %4156 = vmatpush1.msra.mxu0 0.0
  %4157 = vmatprep.subr.mxu0 0.0
  %4158 = vmatpush1.msra.mxu0 0.0
  %4159 = vmatprep.subr.mxu0 0.0
  %4160 = vmatpush1.msra.mxu0 0.0
  %4161 = vmatprep.subr.mxu0 0.0
  %4162 = vmatpush1.msra.mxu0 0.0
  %4163 = vmatprep.subr.mxu0 0.0
  %4164 = vmatpush1.msra.mxu0 0.0
  %4165 = vmatprep.subr.mxu0 0.0
  %4166 = vmatpush1.msra.mxu0 0.0
  %4167 = vmatprep.subr.mxu0 0.0
  %4168 = vmatpush1.msra.mxu0 0.0
  %4169 = vmatprep.subr.mxu0 0.0
  %4170 = vmatpush1.msra.mxu0 0.0
  %4171 = vmatprep.subr.mxu0 0.0
  %4172 = vmatpush1.msra.mxu0 0.0
  %4173 = vmatprep.subr.mxu0 0.0
  %4174 = vmatpush1.msra.mxu0 0.0
  %4175 = vmatprep.subr.mxu0 0.0
  %4176 = vmatpush1.msra.mxu0 0.0
  %4177 = vmatprep.subr.mxu0 0.0
  %4178 = vmatpush1.msra.mxu0 0.0
  %4179 = vmatprep.subr.mxu0 0.0
  %4180 = vmatpush1.msra.mxu0 0.0
  %4181 = vmatprep.subr.mxu0 0.0
  %4182 = vmatpush1.msra.mxu0 0.0
  %4183 = vmatprep.subr.mxu0 0.0
  %4184 = vmatpush1.msra.mxu0 0.0
  %4185 = vmatprep.subr.mxu0 0.0
  %4186 = vmatpush1.msra.mxu0 0.0
  %4187 = vmatprep.subr.mxu0 0.0
  %4188 = vmatpush1.msra.mxu0 0.0
  %4189 = vmatprep.subr.mxu0 0.0
  %4190 = vmatpush1.msra.mxu0 0.0
  %4191 = vmatprep.subr.mxu0 0.0
  %4192 = vmatpush1.msra.mxu0 0.0
  %4193 = vmatprep.subr.mxu0 0.0
  %4194 = vmatpush1.msra.mxu0 0.0
  %4195 = vmatprep.subr.mxu0 0.0
  %4196 = vmatpush1.msra.mxu0 0.0
  %4197 = vmatprep.subr.mxu0 0.0
  %4198 = vmatpush1.msra.mxu0 0.0
  %4199 = vmatprep.subr.mxu0 0.0
  %4200 = vmatpush1.msra.mxu0 0.0
  %4201 = vmatprep.subr.mxu0 0.0
  %4202 = vmatpush1.msra.mxu0 0.0
  %4203 = vmatprep.subr.mxu0 0.0
  %4204 = vmatpush1.msra.mxu0 0.0
  %4205 = vmatprep.mubr.f32.mxu0 0.0
  %4206 = vmatmul.mubr.f32.gmra.mrb[0].mxu0 %v3051
  %v4207 = vpop.f32.mrb[0].mxu0
  %v4208 = vadd.f32 %v4139, %v4207
  %v4209 = vpop.f32.mrb[0].mxu0
  %4210 = vdwg.mxu0
  %v4211 = vadd.f32 %v3817, %v4046
  %v4212 = vxor.u32 %v4211, 2147483648
  %v4213 = vmul.f32 %v4212, 1.442695
  %v4214 = vpow.pop %v4213
  %v4215 = vadd.f32 %v4214, 1.0
  %v4216 = vrcp.pop %v4215
  %v4217 = vmul.f32 1.0, %v4216
  %v4218 = vadd.f32 %v3891, %v4127
  %v4219 = vxor.u32 %v4218, 2147483648
  %v4220 = vmul.f32 %v4219, 1.442695
  %v4221 = vpow.pop %v4220
  %v4222 = vadd.f32 %v4221, 1.0
  %v4223 = vrcp.pop %v4222
  %v4224 = vmul.f32 1.0, %v4223
  %v4225 = vmul.f32 %v4217, %v4208
  %v4226 = vadd.f32 %v3965, %v4225
  %v4227 = vtanh.pop %v4226
  %v4228 = vsub.f32 1.0, %v4224
  %v4229 = vmul.f32 %v4228, %v4227
  %v4230 = vmul.f32 %v4224, %v3036
  %v4231 = vadd.f32 %v4229, %v4230
  %v4232 = vld [vmem:[%s8] sm:$0x1]
  %v4233 = vld [vmem:[%s640] sm:$0x1]
  %v4234 = vld [vmem:[%s642] sm:$0x1]
  %v4235 = vld [vmem:[%s7] sm:$0xff]
  %v4236 = vld [vmem:[%s7 + $0x8] sm:$0xff]
  %v4237 = vld [vmem:[%s7 + $0x10] sm:$0xff]
  %v4238 = vld [vmem:[%s7 + $0x18] sm:$0xff]
  %v4240 = vlaneseq
  %v4241 = vshrl.u32 %v4240, 7
  %v4242 = vsub.s32 0, %v4241
  %v4243 = vrot.slane %v4232, %v4242
  %v4246 = vsel %vm144, %v4231, 0
  %4248 = vmatprep.subr.mxu0 0.0
  %4249 = vmatpush1.msra.mxu0 %v4235
  %4250 = vmatprep.subr.mxu0 0.0
  %4251 = vmatpush1.msra.mxu0 %v4236
  %4252 = vmatprep.subr.mxu0 0.0
  %4253 = vmatpush1.msra.mxu0 %v4237
  %4254 = vmatprep.subr.mxu0 0.0
  %4255 = vmatpush1.msra.mxu0 %v4238
  %4256 = vmatprep.subr.mxu0 0.0
  %4257 = vmatpush1.msra.mxu0 0.0
  %4258 = vmatprep.subr.mxu0 0.0
  %4259 = vmatpush1.msra.mxu0 0.0
  %4260 = vmatprep.subr.mxu0 0.0
  %4261 = vmatpush1.msra.mxu0 0.0
  %4262 = vmatprep.subr.mxu0 0.0
  %4263 = vmatpush1.msra.mxu0 0.0
  %4264 = vmatprep.subr.mxu0 0.0
  %4265 = vmatpush1.msra.mxu0 0.0
  %4266 = vmatprep.subr.mxu0 0.0
  %4267 = vmatpush1.msra.mxu0 0.0
  %4268 = vmatprep.subr.mxu0 0.0
  %4269 = vmatpush1.msra.mxu0 0.0
  %4270 = vmatprep.subr.mxu0 0.0
  %4271 = vmatpush1.msra.mxu0 0.0
  %4272 = vmatprep.subr.mxu0 0.0
  %4273 = vmatpush1.msra.mxu0 0.0
  %4274 = vmatprep.subr.mxu0 0.0
  %4275 = vmatpush1.msra.mxu0 0.0
  %4276 = vmatprep.subr.mxu0 0.0
  %4277 = vmatpush1.msra.mxu0 0.0
  %4278 = vmatprep.subr.mxu0 0.0
  %4279 = vmatpush1.msra.mxu0 0.0
  %4280 = vmatprep.subr.mxu0 0.0
  %4281 = vmatpush1.msra.mxu0 0.0
  %4282 = vmatprep.subr.mxu0 0.0
  %4283 = vmatpush1.msra.mxu0 0.0
  %4284 = vmatprep.subr.mxu0 0.0
  %4285 = vmatpush1.msra.mxu0 0.0
  %4286 = vmatprep.subr.mxu0 0.0
  %4287 = vmatpush1.msra.mxu0 0.0
  %4288 = vmatprep.subr.mxu0 0.0
  %4289 = vmatpush1.msra.mxu0 0.0
  %4290 = vmatprep.subr.mxu0 0.0
  %4291 = vmatpush1.msra.mxu0 0.0
  %4292 = vmatprep.subr.mxu0 0.0
  %4293 = vmatpush1.msra.mxu0 0.0
  %4294 = vmatprep.subr.mxu0 0.0
  %4295 = vmatpush1.msra.mxu0 0.0
  %4296 = vmatprep.subr.mxu0 0.0
  %4297 = vmatpush1.msra.mxu0 0.0
  %4298 = vmatprep.subr.mxu0 0.0
  %4299 = vmatpush1.msra.mxu0 0.0
  %4300 = vmatprep.subr.mxu0 0.0
  %4301 = vmatpush1.msra.mxu0 0.0
  %4302 = vmatprep.subr.mxu0 0.0
  %4303 = vmatpush1.msra.mxu0 0.0
  %4304 = vmatprep.subr.mxu0 0.0
  %4305 = vmatpush1.msra.mxu0 0.0
  %4306 = vmatprep.subr.mxu0 0.0
  %4307 = vmatpush1.msra.mxu0 0.0
  %4308 = vmatprep.subr.mxu0 0.0
  %4309 = vmatpush1.msra.mxu0 0.0
  %4310 = vmatprep.subr.mxu0 0.0
  %4311 = vmatpush1.msra.mxu0 0.0
  %4312 = vmatprep.mubr.f32.mxu0 0.0
  %4313 = vmatmul.mubr.f32.gmra.mrb[0].mxu0 %v4246
  %v4314 = vpop.f32.mrb[0].mxu0
  %v4315 = vadd.f32 %v4243, %v4314
  %v4316 = vpop.f32.mrb[0].mxu0
  %4317 = vdwg.mxu0
  %v4318 = vld [vmem:[%s727] sm:$0xff]
  %v4319 = vld [vmem:[%s727 + $0x8] sm:$0xff]
  %v4320 = vld [vmem:[%s727 + $0x10] sm:$0xff]
  %v4321 = vld [vmem:[%s727 + $0x18] sm:$0xff]
  %v4323 = vlaneseq
  %v4324 = vshrl.u32 %v4323, 7
  %v4325 = vsub.s32 0, %v4324
  %v4326 = vrot.slane %v4233, %v4325
  %4328 = vmatprep.subr.mxu0 0.0
  %4329 = vmatpush1.msra.mxu0 %v4318
  %4330 = vmatprep.subr.mxu0 0.0
  %4331 = vmatpush1.msra.mxu0 %v4319
  %4332 = vmatprep.subr.mxu0 0.0
  %4333 = vmatpush1.msra.mxu0 %v4320
  %4334 = vmatprep.subr.mxu0 0.0
  %4335 = vmatpush1.msra.mxu0 %v4321
  %4336 = vmatprep.subr.mxu0 0.0
  %4337 = vmatpush1.msra.mxu0 0.0
  %4338 = vmatprep.subr.mxu0 0.0
  %4339 = vmatpush1.msra.mxu0 0.0
  %4340 = vmatprep.subr.mxu0 0.0
  %4341 = vmatpush1.msra.mxu0 0.0
  %4342 = vmatprep.subr.mxu0 0.0
  %4343 = vmatpush1.msra.mxu0 0.0
  %4344 = vmatprep.subr.mxu0 0.0
  %4345 = vmatpush1.msra.mxu0 0.0
  %4346 = vmatprep.subr.mxu0 0.0
  %4347 = vmatpush1.msra.mxu0 0.0
  %4348 = vmatprep.subr.mxu0 0.0
  %4349 = vmatpush1.msra.mxu0 0.0
  %4350 = vmatprep.subr.mxu0 0.0
  %4351 = vmatpush1.msra.mxu0 0.0
  %4352 = vmatprep.subr.mxu0 0.0
  %4353 = vmatpush1.msra.mxu0 0.0
  %4354 = vmatprep.subr.mxu0 0.0
  %4355 = vmatpush1.msra.mxu0 0.0
  %4356 = vmatprep.subr.mxu0 0.0
  %4357 = vmatpush1.msra.mxu0 0.0
  %4358 = vmatprep.subr.mxu0 0.0
  %4359 = vmatpush1.msra.mxu0 0.0
  %4360 = vmatprep.subr.mxu0 0.0
  %4361 = vmatpush1.msra.mxu0 0.0
  %4362 = vmatprep.subr.mxu0 0.0
  %4363 = vmatpush1.msra.mxu0 0.0
  %4364 = vmatprep.subr.mxu0 0.0
  %4365 = vmatpush1.msra.mxu0 0.0
  %4366 = vmatprep.subr.mxu0 0.0
  %4367 = vmatpush1.msra.mxu0 0.0
  %4368 = vmatprep.subr.mxu0 0.0
  %4369 = vmatpush1.msra.mxu0 0.0
  %4370 = vmatprep.subr.mxu0 0.0
  %4371 = vmatpush1.msra.mxu0 0.0
  %4372 = vmatprep.subr.mxu0 0.0
  %4373 = vmatpush1.msra.mxu0 0.0
  %4374 = vmatprep.subr.mxu0 0.0
  %4375 = vmatpush1.msra.mxu0 0.0
  %4376 = vmatprep.subr.mxu0 0.0
  %4377 = vmatpush1.msra.mxu0 0.0
  %4378 = vmatprep.subr.mxu0 0.0
  %4379 = vmatpush1.msra.mxu0 0.0
  %4380 = vmatprep.subr.mxu0 0.0
  %4381 = vmatpush1.msra.mxu0 0.0
  %4382 = vmatprep.subr.mxu0 0.0
  %4383 = vmatpush1.msra.mxu0 0.0
  %4384 = vmatprep.subr.mxu0 0.0
  %4385 = vmatpush1.msra.mxu0 0.0
  %4386 = vmatprep.subr.mxu0 0.0
  %4387 = vmatpush1.msra.mxu0 0.0
  %4388 = vmatprep.subr.mxu0 0.0
  %4389 = vmatpush1.msra.mxu0 0.0
  %4390 = vmatprep.subr.mxu0 0.0
  %4391 = vmatpush1.msra.mxu0 0.0
  %4392 = vmatprep.mubr.f32.mxu0 0.0
  %4393 = vmatmul.mubr.f32.gmra.mrb[0].mxu0 %v4246
  %v4394 = vpop.f32.mrb[0].mxu0
  %v4395 = vadd.f32 %v4326, %v4394
  %v4396 = vpop.f32.mrb[0].mxu0
  %4397 = vdwg.mxu0
  %v4398 = vld [vmem:[%s808] sm:$0xff]
  %v4399 = vld [vmem:[%s808 + $0x8] sm:$0xff]
  %v4400 = vld [vmem:[%s808 + $0x10] sm:$0xff]
  %v4401 = vld [vmem:[%s808 + $0x18] sm:$0xff]
  %v4403 = vlaneseq
  %v4404 = vshrl.u32 %v4403, 7
  %v4405 = vsub.s32 0, %v4404
  %v4406 = vrot.slane %v4234, %v4405
  %4408 = vmatprep.subr.mxu0 0.0
  %4409 = vmatpush1.msra.mxu0 %v4398
  %4410 = vmatprep.subr.mxu0 0.0
  %4411 = vmatpush1.msra.mxu0 %v4399
  %4412 = vmatprep.subr.mxu0 0.0
  %4413 = vmatpush1.msra.mxu0 %v4400
  %4414 = vmatprep.subr.mxu0 0.0
  %4415 = vmatpush1.msra.mxu0 %v4401
  %4416 = vmatprep.subr.mxu0 0.0
  %4417 = vmatpush1.msra.mxu0 0.0
  %4418 = vmatprep.subr.mxu0 0.0
  %4419 = vmatpush1.msra.mxu0 0.0
  %4420 = vmatprep.subr.mxu0 0.0
  %4421 = vmatpush1.msra.mxu0 0.0
  %4422 = vmatprep.subr.mxu0 0.0
  %4423 = vmatpush1.msra.mxu0 0.0
  %4424 = vmatprep.subr.mxu0 0.0
  %4425 = vmatpush1.msra.mxu0 0.0
  %4426 = vmatprep.subr.mxu0 0.0
  %4427 = vmatpush1.msra.mxu0 0.0
  %4428 = vmatprep.subr.mxu0 0.0
  %4429 = vmatpush1.msra.mxu0 0.0
  %4430 = vmatprep.subr.mxu0 0.0
  %4431 = vmatpush1.msra.mxu0 0.0
  %4432 = vmatprep.subr.mxu0 0.0
  %4433 = vmatpush1.msra.mxu0 0.0
  %4434 = vmatprep.subr.mxu0 0.0
  %4435 = vmatpush1.msra.mxu0 0.0
  %4436 = vmatprep.subr.mxu0 0.0
  %4437 = vmatpush1.msra.mxu0 0.0
  %4438 = vmatprep.subr.mxu0 0.0
  %4439 = vmatpush1.msra.mxu0 0.0
  %4440 = vmatprep.subr.mxu0 0.0
  %4441 = vmatpush1.msra.mxu0 0.0
  %4442 = vmatprep.subr.mxu0 0.0
  %4443 = vmatpush1.msra.mxu0 0.0
  %4444 = vmatprep.subr.mxu0 0.0
  %4445 = vmatpush1.msra.mxu0 0.0
  %4446 = vmatprep.subr.mxu0 0.0
  %4447 = vmatpush1.msra.mxu0 0.0
  %4448 = vmatprep.subr.mxu0 0.0
  %4449 = vmatpush1.msra.mxu0 0.0
  %4450 = vmatprep.subr.mxu0 0.0
  %4451 = vmatpush1.msra.mxu0 0.0
  %4452 = vmatprep.subr.mxu0 0.0
  %4453 = vmatpush1.msra.mxu0 0.0
  %4454 = vmatprep.subr.mxu0 0.0
  %4455 = vmatpush1.msra.mxu0 0.0
  %4456 = vmatprep.subr.mxu0 0.0
  %4457 = vmatpush1.msra.mxu0 0.0
  %4458 = vmatprep.subr.mxu0 0.0
  %4459 = vmatpush1.msra.mxu0 0.0
  %4460 = vmatprep.subr.mxu0 0.0
  %4461 = vmatpush1.msra.mxu0 0.0
  %4462 = vmatprep.subr.mxu0 0.0
  %4463 = vmatpush1.msra.mxu0 0.0
  %4464 = vmatprep.subr.mxu0 0.0
  %4465 = vmatpush1.msra.mxu0 0.0
  %4466 = vmatprep.subr.mxu0 0.0
  %4467 = vmatpush1.msra.mxu0 0.0
  %4468 = vmatprep.subr.mxu0 0.0
  %4469 = vmatpush1.msra.mxu0 0.0
  %4470 = vmatprep.subr.mxu0 0.0
  %4471 = vmatpush1.msra.mxu0 0.0
  %4472 = vmatprep.mubr.f32.mxu0 0.0
  %4473 = vmatmul.mubr.f32.gmra.mrb[0].mxu0 %v4246
  %v4474 = vpop.f32.mrb[0].mxu0
  %v4475 = vadd.f32 %v4406, %v4474
  %v4476 = vpop.f32.mrb[0].mxu0
  %4477 = vdwg.mxu0
  %v4478 = vld [vmem:[%s9] sm:$0xff]
  %v4479 = vld [vmem:[%s9 + $0x8] sm:$0xff]
  %v4480 = vld [vmem:[%s9 + $0x10] sm:$0xff]
  %v4481 = vld [vmem:[%s9 + $0x18] sm:$0xff]
  %v4482 = vld [vmem:[%s10] sm:$0x1]
  %v4484 = vlaneseq
  %v4485 = vshrl.u32 %v4484, 7
  %v4486 = vsub.s32 0, %v4485
  %v4487 = vrot.slane %v4482, %v4486
  %4489 = vmatprep.subr.mxu0 0.0
  %4490 = vmatpush1.msra.mxu0 %v4478
  %4491 = vmatprep.subr.mxu0 0.0
  %4492 = vmatpush1.msra.mxu0 %v4479
  %4493 = vmatprep.subr.mxu0 0.0
  %4494 = vmatpush1.msra.mxu0 %v4480
  %4495 = vmatprep.subr.mxu0 0.0
  %4496 = vmatpush1.msra.mxu0 %v4481
  %4497 = vmatprep.subr.mxu0 0.0
  %4498 = vmatpush1.msra.mxu0 0.0
  %4499 = vmatprep.subr.mxu0 0.0
  %4500 = vmatpush1.msra.mxu0 0.0
  %4501 = vmatprep.subr.mxu0 0.0
  %4502 = vmatpush1.msra.mxu0 0.0
  %4503 = vmatprep.subr.mxu0 0.0
  %4504 = vmatpush1.msra.mxu0 0.0
  %4505 = vmatprep.subr.mxu0 0.0
  %4506 = vmatpush1.msra.mxu0 0.0
  %4507 = vmatprep.subr.mxu0 0.0
  %4508 = vmatpush1.msra.mxu0 0.0
  %4509 = vmatprep.subr.mxu0 0.0
  %4510 = vmatpush1.msra.mxu0 0.0
  %4511 = vmatprep.subr.mxu0 0.0
  %4512 = vmatpush1.msra.mxu0 0.0
  %4513 = vmatprep.subr.mxu0 0.0
  %4514 = vmatpush1.msra.mxu0 0.0
  %4515 = vmatprep.subr.mxu0 0.0
  %4516 = vmatpush1.msra.mxu0 0.0
  %4517 = vmatprep.subr.mxu0 0.0
  %4518 = vmatpush1.msra.mxu0 0.0
  %4519 = vmatprep.subr.mxu0 0.0
  %4520 = vmatpush1.msra.mxu0 0.0
  %4521 = vmatprep.subr.mxu0 0.0
  %4522 = vmatpush1.msra.mxu0 0.0
  %4523 = vmatprep.subr.mxu0 0.0
  %4524 = vmatpush1.msra.mxu0 0.0
  %4525 = vmatprep.subr.mxu0 0.0
  %4526 = vmatpush1.msra.mxu0 0.0
  %4527 = vmatprep.subr.mxu0 0.0
  %4528 = vmatpush1.msra.mxu0 0.0
  %4529 = vmatprep.subr.mxu0 0.0
  %4530 = vmatpush1.msra.mxu0 0.0
  %4531 = vmatprep.subr.mxu0 0.0
  %4532 = vmatpush1.msra.mxu0 0.0
  %4533 = vmatprep.subr.mxu0 0.0
  %4534 = vmatpush1.msra.mxu0 0.0
  %4535 = vmatprep.subr.mxu0 0.0
  %4536 = vmatpush1.msra.mxu0 0.0
  %4537 = vmatprep.subr.mxu0 0.0
  %4538 = vmatpush1.msra.mxu0 0.0
  %4539 = vmatprep.subr.mxu0 0.0
  %4540 = vmatpush1.msra.mxu0 0.0
  %4541 = vmatprep.subr.mxu0 0.0
  %4542 = vmatpush1.msra.mxu0 0.0
  %4543 = vmatprep.subr.mxu0 0.0
  %4544 = vmatpush1.msra.mxu0 0.0
  %4545 = vmatprep.subr.mxu0 0.0
  %4546 = vmatpush1.msra.mxu0 0.0
  %4547 = vmatprep.subr.mxu0 0.0
  %4548 = vmatpush1.msra.mxu0 0.0
  %4549 = vmatprep.subr.mxu0 0.0
  %4550 = vmatpush1.msra.mxu0 0.0
  %4551 = vmatprep.subr.mxu0 0.0
  %4552 = vmatpush1.msra.mxu0 0.0
  %4553 = vmatprep.mubr.f32.mxu0 0.0
  %4554 = vmatmul.mubr.f32.gmra.mrb[0].mxu0 %v3552
  %v4555 = vpop.f32.mrb[0].mxu0
  %v4556 = vadd.f32 %v4487, %v4555
  %v4557 = vpop.f32.mrb[0].mxu0
  %4558 = vdwg.mxu0
  %v4559 = vld [vmem:[%s970] sm:$0xff]
  %v4560 = vld [vmem:[%s970 + $0x8] sm:$0xff]
  %v4561 = vld [vmem:[%s970 + $0x10] sm:$0xff]
  %v4562 = vld [vmem:[%s970 + $0x18] sm:$0xff]
  %v4563 = vld [vmem:[%s975] sm:$0x1]
  %v4565 = vlaneseq
  %v4566 = vshrl.u32 %v4565, 7
  %v4567 = vsub.s32 0, %v4566
  %v4568 = vrot.slane %v4563, %v4567
  %4570 = vmatprep.subr.mxu0 0.0
  %4571 = vmatpush1.msra.mxu0 %v4559
  %4572 = vmatprep.subr.mxu0 0.0
  %4573 = vmatpush1.msra.mxu0 %v4560
  %4574 = vmatprep.subr.mxu0 0.0
  %4575 = vmatpush1.msra.mxu0 %v4561
  %4576 = vmatprep.subr.mxu0 0.0
  %4577 = vmatpush1.msra.mxu0 %v4562
  %4578 = vmatprep.subr.mxu0 0.0
  %4579 = vmatpush1.msra.mxu0 0.0
  %4580 = vmatprep.subr.mxu0 0.0
  %4581 = vmatpush1.msra.mxu0 0.0
  %4582 = vmatprep.subr.mxu0 0.0
  %4583 = vmatpush1.msra.mxu0 0.0
  %4584 = vmatprep.subr.mxu0 0.0
  %4585 = vmatpush1.msra.mxu0 0.0
  %4586 = vmatprep.subr.mxu0 0.0
  %4587 = vmatpush1.msra.mxu0 0.0
  %4588 = vmatprep.subr.mxu0 0.0
  %4589 = vmatpush1.msra.mxu0 0.0
  %4590 = vmatprep.subr.mxu0 0.0
  %4591 = vmatpush1.msra.mxu0 0.0
  %4592 = vmatprep.subr.mxu0 0.0
  %4593 = vmatpush1.msra.mxu0 0.0
  %4594 = vmatprep.subr.mxu0 0.0
  %4595 = vmatpush1.msra.mxu0 0.0
  %4596 = vmatprep.subr.mxu0 0.0
  %4597 = vmatpush1.msra.mxu0 0.0
  %4598 = vmatprep.subr.mxu0 0.0
  %4599 = vmatpush1.msra.mxu0 0.0
  %4600 = vmatprep.subr.mxu0 0.0
  %4601 = vmatpush1.msra.mxu0 0.0
  %4602 = vmatprep.subr.mxu0 0.0
  %4603 = vmatpush1.msra.mxu0 0.0
  %4604 = vmatprep.subr.mxu0 0.0
  %4605 = vmatpush1.msra.mxu0 0.0
  %4606 = vmatprep.subr.mxu0 0.0
  %4607 = vmatpush1.msra.mxu0 0.0
  %4608 = vmatprep.subr.mxu0 0.0
  %4609 = vmatpush1.msra.mxu0 0.0
  %4610 = vmatprep.subr.mxu0 0.0
  %4611 = vmatpush1.msra.mxu0 0.0
  %4612 = vmatprep.subr.mxu0 0.0
  %4613 = vmatpush1.msra.mxu0 0.0
  %4614 = vmatprep.subr.mxu0 0.0
  %4615 = vmatpush1.msra.mxu0 0.0
  %4616 = vmatprep.subr.mxu0 0.0
  %4617 = vmatpush1.msra.mxu0 0.0
  %4618 = vmatprep.subr.mxu0 0.0
  %4619 = vmatpush1.msra.mxu0 0.0
  %4620 = vmatprep.subr.mxu0 0.0
  %4621 = vmatpush1.msra.mxu0 0.0
  %4622 = vmatprep.subr.mxu0 0.0
  %4623 = vmatpush1.msra.mxu0 0.0
  %4624 = vmatprep.subr.mxu0 0.0
  %4625 = vmatpush1.msra.mxu0 0.0
  %4626 = vmatprep.subr.mxu0 0.0
  %4627 = vmatpush1.msra.mxu0 0.0
  %4628 = vmatprep.subr.mxu0 0.0
  %4629 = vmatpush1.msra.mxu0 0.0
  %4630 = vmatprep.subr.mxu0 0.0
  %4631 = vmatpush1.msra.mxu0 0.0
  %4632 = vmatprep.subr.mxu0 0.0
  %4633 = vmatpush1.msra.mxu0 0.0
  %4634 = vmatprep.mubr.f32.mxu0 0.0
  %4635 = vmatmul.mubr.f32.gmra.mrb[0].mxu0 %v3552
  %v4636 = vpop.f32.mrb[0].mxu0
  %v4637 = vadd.f32 %v4568, %v4636
  %v4638 = vpop.f32.mrb[0].mxu0
  %4639 = vdwg.mxu0
  %v4640 = vld [vmem:[%s1053] sm:$0xff]
  %v4641 = vld [vmem:[%s1053 + $0x8] sm:$0xff]
  %v4642 = vld [vmem:[%s1053 + $0x10] sm:$0xff]
  %v4643 = vld [vmem:[%s1053 + $0x18] sm:$0xff]
  %v4644 = vld [vmem:[%s1058] sm:$0x1]
  %v4646 = vlaneseq
  %v4647 = vshrl.u32 %v4646, 7
  %v4648 = vsub.s32 0, %v4647
  %v4649 = vrot.slane %v4644, %v4648
  %4651 = vmatprep.subr.mxu0 0.0
  %4652 = vmatpush1.msra.mxu0 %v4640
  %4653 = vmatprep.subr.mxu0 0.0
  %4654 = vmatpush1.msra.mxu0 %v4641
  %4655 = vmatprep.subr.mxu0 0.0
  %4656 = vmatpush1.msra.mxu0 %v4642
  %4657 = vmatprep.subr.mxu0 0.0
  %4658 = vmatpush1.msra.mxu0 %v4643
  %4659 = vmatprep.subr.mxu0 0.0
  %4660 = vmatpush1.msra.mxu0 0.0
  %4661 = vmatprep.subr.mxu0 0.0
  %4662 = vmatpush1.msra.mxu0 0.0
  %4663 = vmatprep.subr.mxu0 0.0
  %4664 = vmatpush1.msra.mxu0 0.0
  %4665 = vmatprep.subr.mxu0 0.0
  %4666 = vmatpush1.msra.mxu0 0.0
  %4667 = vmatprep.subr.mxu0 0.0
  %4668 = vmatpush1.msra.mxu0 0.0
  %4669 = vmatprep.subr.mxu0 0.0
  %4670 = vmatpush1.msra.mxu0 0.0
  %4671 = vmatprep.subr.mxu0 0.0
  %4672 = vmatpush1.msra.mxu0 0.0
  %4673 = vmatprep.subr.mxu0 0.0
  %4674 = vmatpush1.msra.mxu0 0.0
  %4675 = vmatprep.subr.mxu0 0.0
  %4676 = vmatpush1.msra.mxu0 0.0
  %4677 = vmatprep.subr.mxu0 0.0
  %4678 = vmatpush1.msra.mxu0 0.0
  %4679 = vmatprep.subr.mxu0 0.0
  %4680 = vmatpush1.msra.mxu0 0.0
  %4681 = vmatprep.subr.mxu0 0.0
  %4682 = vmatpush1.msra.mxu0 0.0
  %4683 = vmatprep.subr.mxu0 0.0
  %4684 = vmatpush1.msra.mxu0 0.0
  %4685 = vmatprep.subr.mxu0 0.0
  %4686 = vmatpush1.msra.mxu0 0.0
  %4687 = vmatprep.subr.mxu0 0.0
  %4688 = vmatpush1.msra.mxu0 0.0
  %4689 = vmatprep.subr.mxu0 0.0
  %4690 = vmatpush1.msra.mxu0 0.0
  %4691 = vmatprep.subr.mxu0 0.0
  %4692 = vmatpush1.msra.mxu0 0.0
  %4693 = vmatprep.subr.mxu0 0.0
  %4694 = vmatpush1.msra.mxu0 0.0
  %4695 = vmatprep.subr.mxu0 0.0
  %4696 = vmatpush1.msra.mxu0 0.0
  %4697 = vmatprep.subr.mxu0 0.0
  %4698 = vmatpush1.msra.mxu0 0.0
  %4699 = vmatprep.subr.mxu0 0.0
  %4700 = vmatpush1.msra.mxu0 0.0
  %4701 = vmatprep.subr.mxu0 0.0
  %4702 = vmatpush1.msra.mxu0 0.0
  %4703 = vmatprep.subr.mxu0 0.0
  %4704 = vmatpush1.msra.mxu0 0.0
  %4705 = vmatprep.subr.mxu0 0.0
  %4706 = vmatpush1.msra.mxu0 0.0
  %4707 = vmatprep.subr.mxu0 0.0
  %4708 = vmatpush1.msra.mxu0 0.0
  %4709 = vmatprep.subr.mxu0 0.0
  %4710 = vmatpush1.msra.mxu0 0.0
  %4711 = vmatprep.subr.mxu0 0.0
  %4712 = vmatpush1.msra.mxu0 0.0
  %4713 = vmatprep.subr.mxu0 0.0
  %4714 = vmatpush1.msra.mxu0 0.0
  %4715 = vmatprep.mubr.f32.mxu0 0.0
  %4716 = vmatmul.mubr.f32.gmra.mrb[0].mxu0 %v3552
  %v4717 = vpop.f32.mrb[0].mxu0
  %v4718 = vadd.f32 %v4649, %v4717
  %v4719 = vpop.f32.mrb[0].mxu0
  %4720 = vdwg.mxu0
  %v4721 = vadd.f32 %v4315, %v4556
  %v4722 = vxor.u32 %v4721, 2147483648
  %v4723 = vmul.f32 %v4722, 1.442695
  %v4724 = vpow.pop %v4723
  %v4725 = vadd.f32 %v4724, 1.0
  %v4726 = vrcp.pop %v4725
  %v4727 = vmul.f32 1.0, %v4726
  %v4728 = vadd.f32 %v4395, %v4637
  %v4729 = vxor.u32 %v4728, 2147483648
  %v4730 = vmul.f32 %v4729, 1.442695
  %v4731 = vpow.pop %v4730
  %v4732 = vadd.f32 %v4731, 1.0
  %v4733 = vrcp.pop %v4732
  %v4734 = vmul.f32 1.0, %v4733
  %v4735 = vmul.f32 %v4727, %v4718
  %v4736 = vadd.f32 %v4475, %v4735
  %v4737 = vtanh.pop %v4736
  %v4738 = vsub.f32 1.0, %v4734
  %v4739 = vmul.f32 %v4738, %v4737
  %v4740 = vmul.f32 %v4734, %v3546
  %v4741 = vadd.f32 %v4739, %v4740
  %v4742 = vld [vmem:[%s11] sm:$0xff]
  %v4743 = vld [vmem:[%s11 + $0x8] sm:$0xff]
  %v4744 = vld [vmem:[%s11 + $0x10] sm:$0xff]
  %v4745 = vld [vmem:[%s11 + $0x18] sm:$0xff]
  %v4747 = vsel %vm144, %v4741, 0
  %4749 = vmatprep.subr.mxu0 0.0
  %4750 = vmatpush1.msra.mxu0 %v4742
  %4751 = vmatprep.subr.mxu0 0.0
  %4752 = vmatpush1.msra.mxu0 %v4743
  %4753 = vmatprep.subr.mxu0 0.0
  %4754 = vmatpush1.msra.mxu0 %v4744
  %4755 = vmatprep.subr.mxu0 0.0
  %4756 = vmatpush1.msra.mxu0 %v4745
  %4757 = vmatprep.subr.mxu0 0.0
  %4758 = vmatpush1.msra.mxu0 0.0
  %4759 = vmatprep.subr.mxu0 0.0
  %4760 = vmatpush1.msra.mxu0 0.0
  %4761 = vmatprep.subr.mxu0 0.0
  %4762 = vmatpush1.msra.mxu0 0.0
  %4763 = vmatprep.subr.mxu0 0.0
  %4764 = vmatpush1.msra.mxu0 0.0
  %4765 = vmatprep.subr.mxu0 0.0
  %4766 = vmatpush1.msra.mxu0 0.0
  %4767 = vmatprep.subr.mxu0 0.0
  %4768 = vmatpush1.msra.mxu0 0.0
  %4769 = vmatprep.subr.mxu0 0.0
  %4770 = vmatpush1.msra.mxu0 0.0
  %4771 = vmatprep.subr.mxu0 0.0
  %4772 = vmatpush1.msra.mxu0 0.0
  %4773 = vmatprep.subr.mxu0 0.0
  %4774 = vmatpush1.msra.mxu0 0.0
  %4775 = vmatprep.subr.mxu0 0.0
  %4776 = vmatpush1.msra.mxu0 0.0
  %4777 = vmatprep.subr.mxu0 0.0
  %4778 = vmatpush1.msra.mxu0 0.0
  %4779 = vmatprep.subr.mxu0 0.0
  %4780 = vmatpush1.msra.mxu0 0.0
  %4781 = vmatprep.subr.mxu0 0.0
  %4782 = vmatpush1.msra.mxu0 0.0
  %4783 = vmatprep.subr.mxu0 0.0
  %4784 = vmatpush1.msra.mxu0 0.0
  %4785 = vmatprep.subr.mxu0 0.0
  %4786 = vmatpush1.msra.mxu0 0.0
  %4787 = vmatprep.subr.mxu0 0.0
  %4788 = vmatpush1.msra.mxu0 0.0
  %4789 = vmatprep.subr.mxu0 0.0
  %4790 = vmatpush1.msra.mxu0 0.0
  %4791 = vmatprep.subr.mxu0 0.0
  %4792 = vmatpush1.msra.mxu0 0.0
  %4793 = vmatprep.subr.mxu0 0.0
  %4794 = vmatpush1.msra.mxu0 0.0
  %4795 = vmatprep.subr.mxu0 0.0
  %4796 = vmatpush1.msra.mxu0 0.0
  %4797 = vmatprep.subr.mxu0 0.0
  %4798 = vmatpush1.msra.mxu0 0.0
  %4799 = vmatprep.subr.mxu0 0.0
  %4800 = vmatpush1.msra.mxu0 0.0
  %4801 = vmatprep.subr.mxu0 0.0
  %4802 = vmatpush1.msra.mxu0 0.0
  %4803 = vmatprep.subr.mxu0 0.0
  %4804 = vmatpush1.msra.mxu0 0.0
  %4805 = vmatprep.subr.mxu0 0.0
  %4806 = vmatpush1.msra.mxu0 0.0
  %4807 = vmatprep.subr.mxu0 0.0
  %4808 = vmatpush1.msra.mxu0 0.0
  %4809 = vmatprep.subr.mxu0 0.0
  %4810 = vmatpush1.msra.mxu0 0.0
  %4811 = vmatprep.subr.mxu0 0.0
  %4812 = vmatpush1.msra.mxu0 0.0
  %4813 = vmatprep.mubr.f32.mxu0 0.0
  %4814 = vmatmul.mubr.f32.gmra.mrb[0].mxu0 %v4747
  %v4815 = vpop.f32.mrb[0].mxu0
  %v4816 = vadd.f32 %v52, %v4815
  %v4817 = vpop.f32.mrb[0].mxu0
  %4818 = vdwg.mxu0
  %v4819 = vsel %vm1234, %v4816, -inf
  %4820 = vmax.xlane.f32.xlu0 %v4819
  %v4821 = vpop.xlane.xlu0 %4820
  %v4822 = vsub.f32 %v4816, %v4821
  %v4823 = vmul.f32 %v4822, 1.442695
  %v4824 = vpow.pop %v4823
  %v4825 = vsel %vm1234, %v4824, 0.0
  %4826 = vadd.xlane.f32.xlu0 %v4825
  %v4827 = vpop.xlane.xlu0 %4826
  %v4828 = vlog2.pop %v4827
  %v4829 = vmul.f32 %v4828, 0.6931472
  %v4830 = vsub.f32 %v4822, %v4829
  %s4831 = scalar_lea.vmem %s12, 12
  %4832 = vst.msk [vmem:[%s4831] sm:$0xf] %vm1234, %v4830
  %vm4833 = vcmp.eq.f32.partialorder %v4816, %v4821
  %v4834 = vsel %vm4833, %v43, 10
  %v4835 = vsel %vm1234, %v4834, 2147483647
  %v4836 = vand.u32 %v4835, 65535
  %v4837 = vshra.s32 %v4835, 16
  %v4838 = vcvt.s32.f32 %v4836
  %v4839 = vcvt.s32.f32 %v4837
  %4840 = vmin.xlane.f32.xlu0 %v4839
  %v4841 = vpop.xlane.xlu0 %4840
  %vm4842 = vcmp.eq.f32.partialorder %v4839, %v4841
  %v4843 = vsel %vm4842, %v4838, inf
  %4844 = vmin.xlane.f32.xlu0 %v4843
  %v4845 = vpop.xlane.xlu0 %4844
  %v4846 = vcvt.f32.s32 %v4845
  %v4847 = vcvt.f32.s32 %v4841
  %v4848 = vshll.u32 %v4847, 16
  %v4849 = vadd.s32 %v4848, %v4846
  %vm4850 = vcmp.eq.s32.totalorder %v43, %v4849
  %v4851 = vsel %vm4850, 1, 0
  %v4852 = vcvt.s32.f32 %v4851
  %v4853 = vld [vmem:[%s3] sm:$0xff]
  %v4854 = vld [vmem:[%s3 + $0x8] sm:$0x3]
  %v4856 = vsel %vm55, %v4852, 0
  %v4859 = vsel %vm59, %v4854, 0
  %4861 = vmatprep.subr.mxu0 0.0
  %4862 = vmatpush1.msra.mxu0 %v4853
  %4863 = vmatprep.subr.mxu0 0.0
  %4864 = vmatpush1.msra.mxu0 %v4859
  %4865 = vmatprep.subr.mxu0 0.0
  %4866 = vmatpush1.msra.mxu0 0.0
  %4867 = vmatprep.subr.mxu0 0.0
  %4868 = vmatpush1.msra.mxu0 0.0
  %4869 = vmatprep.subr.mxu0 0.0
  %4870 = vmatpush1.msra.mxu0 0.0
  %4871 = vmatprep.subr.mxu0 0.0
  %4872 = vmatpush1.msra.mxu0 0.0
  %4873 = vmatprep.subr.mxu0 0.0
  %4874 = vmatpush1.msra.mxu0 0.0
  %4875 = vmatprep.subr.mxu0 0.0
  %4876 = vmatpush1.msra.mxu0 0.0
  %4877 = vmatprep.subr.mxu0 0.0
  %4878 = vmatpush1.msra.mxu0 0.0
  %4879 = vmatprep.subr.mxu0 0.0
  %4880 = vmatpush1.msra.mxu0 0.0
  %4881 = vmatprep.subr.mxu0 0.0
  %4882 = vmatpush1.msra.mxu0 0.0
  %4883 = vmatprep.subr.mxu0 0.0
  %4884 = vmatpush1.msra.mxu0 0.0
  %4885 = vmatprep.subr.mxu0 0.0
  %4886 = vmatpush1.msra.mxu0 0.0
  %4887 = vmatprep.subr.mxu0 0.0
  %4888 = vmatpush1.msra.mxu0 0.0
  %4889 = vmatprep.subr.mxu0 0.0
  %4890 = vmatpush1.msra.mxu0 0.0
  %4891 = vmatprep.subr.mxu0 0.0
  %4892 = vmatpush1.msra.mxu0 0.0
  %4893 = vmatprep.subr.mxu0 0.0
  %4894 = vmatpush1.msra.mxu0 0.0
  %4895 = vmatprep.subr.mxu0 0.0
  %4896 = vmatpush1.msra.mxu0 0.0
  %4897 = vmatprep.subr.mxu0 0.0
  %4898 = vmatpush1.msra.mxu0 0.0
  %4899 = vmatprep.subr.mxu0 0.0
  %4900 = vmatpush1.msra.mxu0 0.0
  %4901 = vmatprep.subr.mxu0 0.0
  %4902 = vmatpush1.msra.mxu0 0.0
  %4903 = vmatprep.subr.mxu0 0.0
  %4904 = vmatpush1.msra.mxu0 0.0
  %4905 = vmatprep.subr.mxu0 0.0
  %4906 = vmatpush1.msra.mxu0 0.0
  %4907 = vmatprep.subr.mxu0 0.0
  %4908 = vmatpush1.msra.mxu0 0.0
  %4909 = vmatprep.subr.mxu0 0.0
  %4910 = vmatpush1.msra.mxu0 0.0
  %4911 = vmatprep.subr.mxu0 0.0
  %4912 = vmatpush1.msra.mxu0 0.0
  %4913 = vmatprep.subr.mxu0 0.0
  %4914 = vmatpush1.msra.mxu0 0.0
  %4915 = vmatprep.subr.mxu0 0.0
  %4916 = vmatpush1.msra.mxu0 0.0
  %4917 = vmatprep.subr.mxu0 0.0
  %4918 = vmatpush1.msra.mxu0 0.0
  %4919 = vmatprep.subr.mxu0 0.0
  %4920 = vmatpush1.msra.mxu0 0.0
  %4921 = vmatprep.subr.mxu0 0.0
  %4922 = vmatpush1.msra.mxu0 0.0
  %4923 = vmatprep.subr.mxu0 0.0
  %4924 = vmatpush1.msra.mxu0 0.0
  %4925 = vmatprep.mubr.f32.mxu0 0.0
  %4926 = vmatmul.mubr.f32.gmra.mrb[0].mxu0 %v4856
  %v4927 = vpop.f32.mrb[0].mxu0
  %v4928 = vadd.f32 0.0, %v4927
  %v4929 = vpop.f32.mrb[0].mxu0
  %4930 = vdwg.mxu0
  %v4931 = vxor.u32 %v4928, 2147483648
  %v4932 = vmul.f32 %v4931, 1.442695
  %v4933 = vpow.pop %v4932
  %v4934 = vadd.f32 %v4933, 1.0
  %v4935 = vrcp.pop %v4934
  %v4936 = vmul.f32 1.0, %v4935
  %v4937 = vmul.f32 %v4928, %v4936
  %v4938 = vld [vmem:[%s4] sm:$0xff]
  %v4939 = vld [vmem:[%s4 + $0x8] sm:$0xff]
  %v4940 = vld [vmem:[%s4 + $0x10] sm:$0xff]
  %v4941 = vld [vmem:[%s4 + $0x18] sm:$0xff]
  %v4943 = vsel %vm144, %v4937, 0
  %4945 = vmatprep.subr.mxu0 0.0
  %4946 = vmatpush1.msra.mxu0 %v4938
  %4947 = vmatprep.subr.mxu0 0.0
  %4948 = vmatpush1.msra.mxu0 %v4939
  %4949 = vmatprep.subr.mxu0 0.0
  %4950 = vmatpush1.msra.mxu0 %v4940
  %4951 = vmatprep.subr.mxu0 0.0
  %4952 = vmatpush1.msra.mxu0 %v4941
  %4953 = vmatprep.subr.mxu0 0.0
  %4954 = vmatpush1.msra.mxu0 0.0
  %4955 = vmatprep.subr.mxu0 0.0
  %4956 = vmatpush1.msra.mxu0 0.0
  %4957 = vmatprep.subr.mxu0 0.0
  %4958 = vmatpush1.msra.mxu0 0.0
  %4959 = vmatprep.subr.mxu0 0.0
  %4960 = vmatpush1.msra.mxu0 0.0
  %4961 = vmatprep.subr.mxu0 0.0
  %4962 = vmatpush1.msra.mxu0 0.0
  %4963 = vmatprep.subr.mxu0 0.0
  %4964 = vmatpush1.msra.mxu0 0.0
  %4965 = vmatprep.subr.mxu0 0.0
  %4966 = vmatpush1.msra.mxu0 0.0
  %4967 = vmatprep.subr.mxu0 0.0
  %4968 = vmatpush1.msra.mxu0 0.0
  %4969 = vmatprep.subr.mxu0 0.0
  %4970 = vmatpush1.msra.mxu0 0.0
  %4971 = vmatprep.subr.mxu0 0.0
  %4972 = vmatpush1.msra.mxu0 0.0
  %4973 = vmatprep.subr.mxu0 0.0
  %4974 = vmatpush1.msra.mxu0 0.0
  %4975 = vmatprep.subr.mxu0 0.0
  %4976 = vmatpush1.msra.mxu0 0.0
  %4977 = vmatprep.subr.mxu0 0.0
  %4978 = vmatpush1.msra.mxu0 0.0
  %4979 = vmatprep.subr.mxu0 0.0
  %4980 = vmatpush1.msra.mxu0 0.0
  %4981 = vmatprep.subr.mxu0 0.0
  %4982 = vmatpush1.msra.mxu0 0.0
  %4983 = vmatprep.subr.mxu0 0.0
  %4984 = vmatpush1.msra.mxu0 0.0
  %4985 = vmatprep.subr.mxu0 0.0
  %4986 = vmatpush1.msra.mxu0 0.0
  %4987 = vmatprep.subr.mxu0 0.0
  %4988 = vmatpush1.msra.mxu0 0.0
  %4989 = vmatprep.subr.mxu0 0.0
  %4990 = vmatpush1.msra.mxu0 0.0
  %4991 = vmatprep.subr.mxu0 0.0
  %4992 = vmatpush1.msra.mxu0 0.0
  %4993 = vmatprep.subr.mxu0 0.0
  %4994 = vmatpush1.msra.mxu0 0.0
  %4995 = vmatprep.subr.mxu0 0.0
  %4996 = vmatpush1.msra.mxu0 0.0
  %4997 = vmatprep.subr.mxu0 0.0
  %4998 = vmatpush1.msra.mxu0 0.0
  %4999 = vmatprep.subr.mxu0 0.0
  %5000 = vmatpush1.msra.mxu0 0.0
  %5001 = vmatprep.subr.mxu0 0.0
  %5002 = vmatpush1.msra.mxu0 0.0
  %5003 = vmatprep.subr.mxu0 0.0
  %5004 = vmatpush1.msra.mxu0 0.0
  %5005 = vmatprep.subr.mxu0 0.0
  %5006 = vmatpush1.msra.mxu0 0.0
  %5007 = vmatprep.subr.mxu0 0.0
  %5008 = vmatpush1.msra.mxu0 0.0
  %5009 = vmatprep.mubr.f32.mxu0 0.0
  %5010 = vmatmul.mubr.f32.gmra.mrb[0].mxu0 %v4943
  %v5011 = vpop.f32.mrb[0].mxu0
  %v5012 = vadd.f32 %v47, %v5011
  %v5013 = vpop.f32.mrb[0].mxu0
  %5014 = vdwg.mxu0
  %v5015 = vld [vmem:[%s218] sm:$0xff]
  %v5016 = vld [vmem:[%s218 + $0x8] sm:$0xff]
  %v5017 = vld [vmem:[%s218 + $0x10] sm:$0xff]
  %v5018 = vld [vmem:[%s218 + $0x18] sm:$0xff]
  %5019 = vmatprep.subr.mxu0 0.0
  %5020 = vmatpush1.msra.mxu0 %v5015
  %5021 = vmatprep.subr.mxu0 0.0
  %5022 = vmatpush1.msra.mxu0 %v5016
  %5023 = vmatprep.subr.mxu0 0.0
  %5024 = vmatpush1.msra.mxu0 %v5017
  %5025 = vmatprep.subr.mxu0 0.0
  %5026 = vmatpush1.msra.mxu0 %v5018
  %5027 = vmatprep.subr.mxu0 0.0
  %5028 = vmatpush1.msra.mxu0 0.0
  %5029 = vmatprep.subr.mxu0 0.0
  %5030 = vmatpush1.msra.mxu0 0.0
  %5031 = vmatprep.subr.mxu0 0.0
  %5032 = vmatpush1.msra.mxu0 0.0
  %5033 = vmatprep.subr.mxu0 0.0
  %5034 = vmatpush1.msra.mxu0 0.0
  %5035 = vmatprep.subr.mxu0 0.0
  %5036 = vmatpush1.msra.mxu0 0.0
  %5037 = vmatprep.subr.mxu0 0.0
  %5038 = vmatpush1.msra.mxu0 0.0
  %5039 = vmatprep.subr.mxu0 0.0
  %5040 = vmatpush1.msra.mxu0 0.0
  %5041 = vmatprep.subr.mxu0 0.0
  %5042 = vmatpush1.msra.mxu0 0.0
  %5043 = vmatprep.subr.mxu0 0.0
  %5044 = vmatpush1.msra.mxu0 0.0
  %5045 = vmatprep.subr.mxu0 0.0
  %5046 = vmatpush1.msra.mxu0 0.0
  %5047 = vmatprep.subr.mxu0 0.0
  %5048 = vmatpush1.msra.mxu0 0.0
  %5049 = vmatprep.subr.mxu0 0.0
  %5050 = vmatpush1.msra.mxu0 0.0
  %5051 = vmatprep.subr.mxu0 0.0
  %5052 = vmatpush1.msra.mxu0 0.0
  %5053 = vmatprep.subr.mxu0 0.0
  %5054 = vmatpush1.msra.mxu0 0.0
  %5055 = vmatprep.subr.mxu0 0.0
  %5056 = vmatpush1.msra.mxu0 0.0
  %5057 = vmatprep.subr.mxu0 0.0
  %5058 = vmatpush1.msra.mxu0 0.0
  %5059 = vmatprep.subr.mxu0 0.0
  %5060 = vmatpush1.msra.mxu0 0.0
  %5061 = vmatprep.subr.mxu0 0.0
  %5062 = vmatpush1.msra.mxu0 0.0
  %5063 = vmatprep.subr.mxu0 0.0
  %5064 = vmatpush1.msra.mxu0 0.0
  %5065 = vmatprep.subr.mxu0 0.0
  %5066 = vmatpush1.msra.mxu0 0.0
  %5067 = vmatprep.subr.mxu0 0.0
  %5068 = vmatpush1.msra.mxu0 0.0
  %5069 = vmatprep.subr.mxu0 0.0
  %5070 = vmatpush1.msra.mxu0 0.0
  %5071 = vmatprep.subr.mxu0 0.0
  %5072 = vmatpush1.msra.mxu0 0.0
  %5073 = vmatprep.subr.mxu0 0.0
  %5074 = vmatpush1.msra.mxu0 0.0
  %5075 = vmatprep.subr.mxu0 0.0
  %5076 = vmatpush1.msra.mxu0 0.0
  %5077 = vmatprep.subr.mxu0 0.0
  %5078 = vmatpush1.msra.mxu0 0.0
  %5079 = vmatprep.subr.mxu0 0.0
  %5080 = vmatpush1.msra.mxu0 0.0
  %5081 = vmatprep.subr.mxu0 0.0
  %5082 = vmatpush1.msra.mxu0 0.0
  %5083 = vmatprep.mubr.f32.mxu0 0.0
  %5084 = vmatmul.mubr.f32.gmra.mrb[0].mxu0 %v4943
  %v5085 = vpop.f32.mrb[0].mxu0
  %v5086 = vadd.f32 %v49, %v5085
  %v5087 = vpop.f32.mrb[0].mxu0
  %5088 = vdwg.mxu0
  %v5089 = vld [vmem:[%s293] sm:$0xff]
  %v5090 = vld [vmem:[%s293 + $0x8] sm:$0xff]
  %v5091 = vld [vmem:[%s293 + $0x10] sm:$0xff]
  %v5092 = vld [vmem:[%s293 + $0x18] sm:$0xff]
  %5093 = vmatprep.subr.mxu0 0.0
  %5094 = vmatpush1.msra.mxu0 %v5089
  %5095 = vmatprep.subr.mxu0 0.0
  %5096 = vmatpush1.msra.mxu0 %v5090
  %5097 = vmatprep.subr.mxu0 0.0
  %5098 = vmatpush1.msra.mxu0 %v5091
  %5099 = vmatprep.subr.mxu0 0.0
  %5100 = vmatpush1.msra.mxu0 %v5092
  %5101 = vmatprep.subr.mxu0 0.0
  %5102 = vmatpush1.msra.mxu0 0.0
  %5103 = vmatprep.subr.mxu0 0.0
  %5104 = vmatpush1.msra.mxu0 0.0
  %5105 = vmatprep.subr.mxu0 0.0
  %5106 = vmatpush1.msra.mxu0 0.0
  %5107 = vmatprep.subr.mxu0 0.0
  %5108 = vmatpush1.msra.mxu0 0.0
  %5109 = vmatprep.subr.mxu0 0.0
  %5110 = vmatpush1.msra.mxu0 0.0
  %5111 = vmatprep.subr.mxu0 0.0
  %5112 = vmatpush1.msra.mxu0 0.0
  %5113 = vmatprep.subr.mxu0 0.0
  %5114 = vmatpush1.msra.mxu0 0.0
  %5115 = vmatprep.subr.mxu0 0.0
  %5116 = vmatpush1.msra.mxu0 0.0
  %5117 = vmatprep.subr.mxu0 0.0
  %5118 = vmatpush1.msra.mxu0 0.0
  %5119 = vmatprep.subr.mxu0 0.0
  %5120 = vmatpush1.msra.mxu0 0.0
  %5121 = vmatprep.subr.mxu0 0.0
  %5122 = vmatpush1.msra.mxu0 0.0
  %5123 = vmatprep.subr.mxu0 0.0
  %5124 = vmatpush1.msra.mxu0 0.0
  %5125 = vmatprep.subr.mxu0 0.0
  %5126 = vmatpush1.msra.mxu0 0.0
  %5127 = vmatprep.subr.mxu0 0.0
  %5128 = vmatpush1.msra.mxu0 0.0
  %5129 = vmatprep.subr.mxu0 0.0
  %5130 = vmatpush1.msra.mxu0 0.0
  %5131 = vmatprep.subr.mxu0 0.0
  %5132 = vmatpush1.msra.mxu0 0.0
  %5133 = vmatprep.subr.mxu0 0.0
  %5134 = vmatpush1.msra.mxu0 0.0
  %5135 = vmatprep.subr.mxu0 0.0
  %5136 = vmatpush1.msra.mxu0 0.0
  %5137 = vmatprep.subr.mxu0 0.0
  %5138 = vmatpush1.msra.mxu0 0.0
  %5139 = vmatprep.subr.mxu0 0.0
  %5140 = vmatpush1.msra.mxu0 0.0
  %5141 = vmatprep.subr.mxu0 0.0
  %5142 = vmatpush1.msra.mxu0 0.0
  %5143 = vmatprep.subr.mxu0 0.0
  %5144 = vmatpush1.msra.mxu0 0.0
  %5145 = vmatprep.subr.mxu0 0.0
  %5146 = vmatpush1.msra.mxu0 0.0
  %5147 = vmatprep.subr.mxu0 0.0
  %5148 = vmatpush1.msra.mxu0 0.0
  %5149 = vmatprep.subr.mxu0 0.0
  %5150 = vmatpush1.msra.mxu0 0.0
  %5151 = vmatprep.subr.mxu0 0.0
  %5152 = vmatpush1.msra.mxu0 0.0
  %5153 = vmatprep.subr.mxu0 0.0
  %5154 = vmatpush1.msra.mxu0 0.0
  %5155 = vmatprep.subr.mxu0 0.0
  %5156 = vmatpush1.msra.mxu0 0.0
  %5157 = vmatprep.mubr.f32.mxu0 0.0
  %5158 = vmatmul.mubr.f32.gmra.mrb[0].mxu0 %v4943
  %v5159 = vpop.f32.mrb[0].mxu0
  %v5160 = vadd.f32 %v51, %v5159
  %v5161 = vpop.f32.mrb[0].mxu0
  %5162 = vdwg.mxu0
  %v5163 = vld [vmem:[%s5] sm:$0xff]
  %v5164 = vld [vmem:[%s5 + $0x8] sm:$0xff]
  %v5165 = vld [vmem:[%s5 + $0x10] sm:$0xff]
  %v5166 = vld [vmem:[%s5 + $0x18] sm:$0xff]
  %v5167 = vld [vmem:[%s6] sm:$0x1]
  %v5169 = vlaneseq
  %v5170 = vshrl.u32 %v5169, 7
  %v5171 = vsub.s32 0, %v5170
  %v5172 = vrot.slane %v5167, %v5171
  %5174 = vmatprep.subr.mxu0 0.0
  %5175 = vmatpush1.msra.mxu0 %v5163
  %5176 = vmatprep.subr.mxu0 0.0
  %5177 = vmatpush1.msra.mxu0 %v5164
  %5178 = vmatprep.subr.mxu0 0.0
  %5179 = vmatpush1.msra.mxu0 %v5165
  %5180 = vmatprep.subr.mxu0 0.0
  %5181 = vmatpush1.msra.mxu0 %v5166
  %5182 = vmatprep.subr.mxu0 0.0
  %5183 = vmatpush1.msra.mxu0 0.0
  %5184 = vmatprep.subr.mxu0 0.0
  %5185 = vmatpush1.msra.mxu0 0.0
  %5186 = vmatprep.subr.mxu0 0.0
  %5187 = vmatpush1.msra.mxu0 0.0
  %5188 = vmatprep.subr.mxu0 0.0
  %5189 = vmatpush1.msra.mxu0 0.0
  %5190 = vmatprep.subr.mxu0 0.0
  %5191 = vmatpush1.msra.mxu0 0.0
  %5192 = vmatprep.subr.mxu0 0.0
  %5193 = vmatpush1.msra.mxu0 0.0
  %5194 = vmatprep.subr.mxu0 0.0
  %5195 = vmatpush1.msra.mxu0 0.0
  %5196 = vmatprep.subr.mxu0 0.0
  %5197 = vmatpush1.msra.mxu0 0.0
  %5198 = vmatprep.subr.mxu0 0.0
  %5199 = vmatpush1.msra.mxu0 0.0
  %5200 = vmatprep.subr.mxu0 0.0
  %5201 = vmatpush1.msra.mxu0 0.0
  %5202 = vmatprep.subr.mxu0 0.0
  %5203 = vmatpush1.msra.mxu0 0.0
  %5204 = vmatprep.subr.mxu0 0.0
  %5205 = vmatpush1.msra.mxu0 0.0
  %5206 = vmatprep.subr.mxu0 0.0
  %5207 = vmatpush1.msra.mxu0 0.0
  %5208 = vmatprep.subr.mxu0 0.0
  %5209 = vmatpush1.msra.mxu0 0.0
  %5210 = vmatprep.subr.mxu0 0.0
  %5211 = vmatpush1.msra.mxu0 0.0
  %5212 = vmatprep.subr.mxu0 0.0
  %5213 = vmatpush1.msra.mxu0 0.0
  %5214 = vmatprep.subr.mxu0 0.0
  %5215 = vmatpush1.msra.mxu0 0.0
  %5216 = vmatprep.subr.mxu0 0.0
  %5217 = vmatpush1.msra.mxu0 0.0
  %5218 = vmatprep.subr.mxu0 0.0
  %5219 = vmatpush1.msra.mxu0 0.0
  %5220 = vmatprep.subr.mxu0 0.0
  %5221 = vmatpush1.msra.mxu0 0.0
  %5222 = vmatprep.subr.mxu0 0.0
  %5223 = vmatpush1.msra.mxu0 0.0
  %5224 = vmatprep.subr.mxu0 0.0
  %5225 = vmatpush1.msra.mxu0 0.0
  %5226 = vmatprep.subr.mxu0 0.0
  %5227 = vmatpush1.msra.mxu0 0.0
  %5228 = vmatprep.subr.mxu0 0.0
  %5229 = vmatpush1.msra.mxu0 0.0
  %5230 = vmatprep.subr.mxu0 0.0
  %5231 = vmatpush1.msra.mxu0 0.0
  %5232 = vmatprep.subr.mxu0 0.0
  %5233 = vmatpush1.msra.mxu0 0.0
  %5234 = vmatprep.subr.mxu0 0.0
  %5235 = vmatpush1.msra.mxu0 0.0
  %5236 = vmatprep.subr.mxu0 0.0
  %5237 = vmatpush1.msra.mxu0 0.0
  %5238 = vmatprep.mubr.f32.mxu0 0.0
  %5239 = vmatmul.mubr.f32.gmra.mrb[0].mxu0 %v4246
  %v5240 = vpop.f32.mrb[0].mxu0
  %v5241 = vadd.f32 %v5172, %v5240
  %v5242 = vpop.f32.mrb[0].mxu0
  %5243 = vdwg.mxu0
  %v5244 = vld [vmem:[%s452] sm:$0xff]
  %v5245 = vld [vmem:[%s452 + $0x8] sm:$0xff]
  %v5246 = vld [vmem:[%s452 + $0x10] sm:$0xff]
  %v5247 = vld [vmem:[%s452 + $0x18] sm:$0xff]
  %v5248 = vld [vmem:[%s457] sm:$0x1]
  %v5250 = vlaneseq
  %v5251 = vshrl.u32 %v5250, 7
  %v5252 = vsub.s32 0, %v5251
  %v5253 = vrot.slane %v5248, %v5252
  %5255 = vmatprep.subr.mxu0 0.0
  %5256 = vmatpush1.msra.mxu0 %v5244
  %5257 = vmatprep.subr.mxu0 0.0
  %5258 = vmatpush1.msra.mxu0 %v5245
  %5259 = vmatprep.subr.mxu0 0.0
  %5260 = vmatpush1.msra.mxu0 %v5246
  %5261 = vmatprep.subr.mxu0 0.0
  %5262 = vmatpush1.msra.mxu0 %v5247
  %5263 = vmatprep.subr.mxu0 0.0
  %5264 = vmatpush1.msra.mxu0 0.0
  %5265 = vmatprep.subr.mxu0 0.0
  %5266 = vmatpush1.msra.mxu0 0.0
  %5267 = vmatprep.subr.mxu0 0.0
  %5268 = vmatpush1.msra.mxu0 0.0
  %5269 = vmatprep.subr.mxu0 0.0
  %5270 = vmatpush1.msra.mxu0 0.0
  %5271 = vmatprep.subr.mxu0 0.0
  %5272 = vmatpush1.msra.mxu0 0.0
  %5273 = vmatprep.subr.mxu0 0.0
  %5274 = vmatpush1.msra.mxu0 0.0
  %5275 = vmatprep.subr.mxu0 0.0
  %5276 = vmatpush1.msra.mxu0 0.0
  %5277 = vmatprep.subr.mxu0 0.0
  %5278 = vmatpush1.msra.mxu0 0.0
  %5279 = vmatprep.subr.mxu0 0.0
  %5280 = vmatpush1.msra.mxu0 0.0
  %5281 = vmatprep.subr.mxu0 0.0
  %5282 = vmatpush1.msra.mxu0 0.0
  %5283 = vmatprep.subr.mxu0 0.0
  %5284 = vmatpush1.msra.mxu0 0.0
  %5285 = vmatprep.subr.mxu0 0.0
  %5286 = vmatpush1.msra.mxu0 0.0
  %5287 = vmatprep.subr.mxu0 0.0
  %5288 = vmatpush1.msra.mxu0 0.0
  %5289 = vmatprep.subr.mxu0 0.0
  %5290 = vmatpush1.msra.mxu0 0.0
  %5291 = vmatprep.subr.mxu0 0.0
  %5292 = vmatpush1.msra.mxu0 0.0
  %5293 = vmatprep.subr.mxu0 0.0
  %5294 = vmatpush1.msra.mxu0 0.0
  %5295 = vmatprep.subr.mxu0 0.0
  %5296 = vmatpush1.msra.mxu0 0.0
  %5297 = vmatprep.subr.mxu0 0.0
  %5298 = vmatpush1.msra.mxu0 0.0
  %5299 = vmatprep.subr.mxu0 0.0
  %5300 = vmatpush1.msra.mxu0 0.0
  %5301 = vmatprep.subr.mxu0 0.0
  %5302 = vmatpush1.msra.mxu0 0.0
  %5303 = vmatprep.subr.mxu0 0.0
  %5304 = vmatpush1.msra.mxu0 0.0
  %5305 = vmatprep.subr.mxu0 0.0
  %5306 = vmatpush1.msra.mxu0 0.0
  %5307 = vmatprep.subr.mxu0 0.0
  %5308 = vmatpush1.msra.mxu0 0.0
  %5309 = vmatprep.subr.mxu0 0.0
  %5310 = vmatpush1.msra.mxu0 0.0
  %5311 = vmatprep.subr.mxu0 0.0
  %5312 = vmatpush1.msra.mxu0 0.0
  %5313 = vmatprep.subr.mxu0 0.0
  %5314 = vmatpush1.msra.mxu0 0.0
  %5315 = vmatprep.subr.mxu0 0.0
  %5316 = vmatpush1.msra.mxu0 0.0
  %5317 = vmatprep.subr.mxu0 0.0
  %5318 = vmatpush1.msra.mxu0 0.0
  %5319 = vmatprep.mubr.f32.mxu0 0.0
  %5320 = vmatmul.mubr.f32.gmra.mrb[0].mxu0 %v4246
  %v5321 = vpop.f32.mrb[0].mxu0
  %v5322 = vadd.f32 %v5253, %v5321
  %v5323 = vpop.f32.mrb[0].mxu0
  %5324 = vdwg.mxu0
  %v5325 = vld [vmem:[%s535] sm:$0xff]
  %v5326 = vld [vmem:[%s535 + $0x8] sm:$0xff]
  %v5327 = vld [vmem:[%s535 + $0x10] sm:$0xff]
  %v5328 = vld [vmem:[%s535 + $0x18] sm:$0xff]
  %v5329 = vld [vmem:[%s540] sm:$0x1]
  %v5331 = vlaneseq
  %v5332 = vshrl.u32 %v5331, 7
  %v5333 = vsub.s32 0, %v5332
  %v5334 = vrot.slane %v5329, %v5333
  %5336 = vmatprep.subr.mxu0 0.0
  %5337 = vmatpush1.msra.mxu0 %v5325
  %5338 = vmatprep.subr.mxu0 0.0
  %5339 = vmatpush1.msra.mxu0 %v5326
  %5340 = vmatprep.subr.mxu0 0.0
  %5341 = vmatpush1.msra.mxu0 %v5327
  %5342 = vmatprep.subr.mxu0 0.0
  %5343 = vmatpush1.msra.mxu0 %v5328
  %5344 = vmatprep.subr.mxu0 0.0
  %5345 = vmatpush1.msra.mxu0 0.0
  %5346 = vmatprep.subr.mxu0 0.0
  %5347 = vmatpush1.msra.mxu0 0.0
  %5348 = vmatprep.subr.mxu0 0.0
  %5349 = vmatpush1.msra.mxu0 0.0
  %5350 = vmatprep.subr.mxu0 0.0
  %5351 = vmatpush1.msra.mxu0 0.0
  %5352 = vmatprep.subr.mxu0 0.0
  %5353 = vmatpush1.msra.mxu0 0.0
  %5354 = vmatprep.subr.mxu0 0.0
  %5355 = vmatpush1.msra.mxu0 0.0
  %5356 = vmatprep.subr.mxu0 0.0
  %5357 = vmatpush1.msra.mxu0 0.0
  %5358 = vmatprep.subr.mxu0 0.0
  %5359 = vmatpush1.msra.mxu0 0.0
  %5360 = vmatprep.subr.mxu0 0.0
  %5361 = vmatpush1.msra.mxu0 0.0
  %5362 = vmatprep.subr.mxu0 0.0
  %5363 = vmatpush1.msra.mxu0 0.0
  %5364 = vmatprep.subr.mxu0 0.0
  %5365 = vmatpush1.msra.mxu0 0.0
  %5366 = vmatprep.subr.mxu0 0.0
  %5367 = vmatpush1.msra.mxu0 0.0
  %5368 = vmatprep.subr.mxu0 0.0
  %5369 = vmatpush1.msra.mxu0 0.0
  %5370 = vmatprep.subr.mxu0 0.0
  %5371 = vmatpush1.msra.mxu0 0.0
  %5372 = vmatprep.subr.mxu0 0.0
  %5373 = vmatpush1.msra.mxu0 0.0
  %5374 = vmatprep.subr.mxu0 0.0
  %5375 = vmatpush1.msra.mxu0 0.0
  %5376 = vmatprep.subr.mxu0 0.0
  %5377 = vmatpush1.msra.mxu0 0.0
  %5378 = vmatprep.subr.mxu0 0.0
  %5379 = vmatpush1.msra.mxu0 0.0
  %5380 = vmatprep.subr.mxu0 0.0
  %5381 = vmatpush1.msra.mxu0 0.0
  %5382 = vmatprep.subr.mxu0 0.0
  %5383 = vmatpush1.msra.mxu0 0.0
  %5384 = vmatprep.subr.mxu0 0.0
  %5385 = vmatpush1.msra.mxu0 0.0
  %5386 = vmatprep.subr.mxu0 0.0
  %5387 = vmatpush1.msra.mxu0 0.0
  %5388 = vmatprep.subr.mxu0 0.0
  %5389 = vmatpush1.msra.mxu0 0.0
  %5390 = vmatprep.subr.mxu0 0.0
  %5391 = vmatpush1.msra.mxu0 0.0
  %5392 = vmatprep.subr.mxu0 0.0
  %5393 = vmatpush1.msra.mxu0 0.0
  %5394 = vmatprep.subr.mxu0 0.0
  %5395 = vmatpush1.msra.mxu0 0.0
  %5396 = vmatprep.subr.mxu0 0.0
  %5397 = vmatpush1.msra.mxu0 0.0
  %5398 = vmatprep.subr.mxu0 0.0
  %5399 = vmatpush1.msra.mxu0 0.0
  %5400 = vmatprep.mubr.f32.mxu0 0.0
  %5401 = vmatmul.mubr.f32.gmra.mrb[0].mxu0 %v4246
  %v5402 = vpop.f32.mrb[0].mxu0
  %v5403 = vadd.f32 %v5334, %v5402
  %v5404 = vpop.f32.mrb[0].mxu0
  %5405 = vdwg.mxu0
  %v5406 = vadd.f32 %v5012, %v5241
  %v5407 = vxor.u32 %v5406, 2147483648
  %v5408 = vmul.f32 %v5407, 1.442695
  %v5409 = vpow.pop %v5408
  %v5410 = vadd.f32 %v5409, 1.0
  %v5411 = vrcp.pop %v5410
  %v5412 = vmul.f32 1.0, %v5411
  %v5413 = vadd.f32 %v5086, %v5322
  %v5414 = vxor.u32 %v5413, 2147483648
  %v5415 = vmul.f32 %v5414, 1.442695
  %v5416 = vpow.pop %v5415
  %v5417 = vadd.f32 %v5416, 1.0
  %v5418 = vrcp.pop %v5417
  %v5419 = vmul.f32 1.0, %v5418
  %v5420 = vmul.f32 %v5412, %v5403
  %v5421 = vadd.f32 %v5160, %v5420
  %v5422 = vtanh.pop %v5421
  %v5423 = vsub.f32 1.0, %v5419
  %v5424 = vmul.f32 %v5423, %v5422
  %v5425 = vmul.f32 %v5419, %v4231
  %v5426 = vadd.f32 %v5424, %v5425
  %v5427 = vld [vmem:[%s8] sm:$0x1]
  %v5428 = vld [vmem:[%s640] sm:$0x1]
  %v5429 = vld [vmem:[%s642] sm:$0x1]
  %v5430 = vld [vmem:[%s7] sm:$0xff]
  %v5431 = vld [vmem:[%s7 + $0x8] sm:$0xff]
  %v5432 = vld [vmem:[%s7 + $0x10] sm:$0xff]
  %v5433 = vld [vmem:[%s7 + $0x18] sm:$0xff]
  %v5435 = vlaneseq
  %v5436 = vshrl.u32 %v5435, 7
  %v5437 = vsub.s32 0, %v5436
  %v5438 = vrot.slane %v5427, %v5437
  %v5441 = vsel %vm144, %v5426, 0
  %5443 = vmatprep.subr.mxu0 0.0
  %5444 = vmatpush1.msra.mxu0 %v5430
  %5445 = vmatprep.subr.mxu0 0.0
  %5446 = vmatpush1.msra.mxu0 %v5431
  %5447 = vmatprep.subr.mxu0 0.0
  %5448 = vmatpush1.msra.mxu0 %v5432
  %5449 = vmatprep.subr.mxu0 0.0
  %5450 = vmatpush1.msra.mxu0 %v5433
  %5451 = vmatprep.subr.mxu0 0.0
  %5452 = vmatpush1.msra.mxu0 0.0
  %5453 = vmatprep.subr.mxu0 0.0
  %5454 = vmatpush1.msra.mxu0 0.0
  %5455 = vmatprep.subr.mxu0 0.0
  %5456 = vmatpush1.msra.mxu0 0.0
  %5457 = vmatprep.subr.mxu0 0.0
  %5458 = vmatpush1.msra.mxu0 0.0
  %5459 = vmatprep.subr.mxu0 0.0
  %5460 = vmatpush1.msra.mxu0 0.0
  %5461 = vmatprep.subr.mxu0 0.0
  %5462 = vmatpush1.msra.mxu0 0.0
  %5463 = vmatprep.subr.mxu0 0.0
  %5464 = vmatpush1.msra.mxu0 0.0
  %5465 = vmatprep.subr.mxu0 0.0
  %5466 = vmatpush1.msra.mxu0 0.0
  %5467 = vmatprep.subr.mxu0 0.0
  %5468 = vmatpush1.msra.mxu0 0.0
  %5469 = vmatprep.subr.mxu0 0.0
  %5470 = vmatpush1.msra.mxu0 0.0
  %5471 = vmatprep.subr.mxu0 0.0
  %5472 = vmatpush1.msra.mxu0 0.0
  %5473 = vmatprep.subr.mxu0 0.0
  %5474 = vmatpush1.msra.mxu0 0.0
  %5475 = vmatprep.subr.mxu0 0.0
  %5476 = vmatpush1.msra.mxu0 0.0
  %5477 = vmatprep.subr.mxu0 0.0
  %5478 = vmatpush1.msra.mxu0 0.0
  %5479 = vmatprep.subr.mxu0 0.0
  %5480 = vmatpush1.msra.mxu0 0.0
  %5481 = vmatprep.subr.mxu0 0.0
  %5482 = vmatpush1.msra.mxu0 0.0
  %5483 = vmatprep.subr.mxu0 0.0
  %5484 = vmatpush1.msra.mxu0 0.0
  %5485 = vmatprep.subr.mxu0 0.0
  %5486 = vmatpush1.msra.mxu0 0.0
  %5487 = vmatprep.subr.mxu0 0.0
  %5488 = vmatpush1.msra.mxu0 0.0
  %5489 = vmatprep.subr.mxu0 0.0
  %5490 = vmatpush1.msra.mxu0 0.0
  %5491 = vmatprep.subr.mxu0 0.0
  %5492 = vmatpush1.msra.mxu0 0.0
  %5493 = vmatprep.subr.mxu0 0.0
  %5494 = vmatpush1.msra.mxu0 0.0
  %5495 = vmatprep.subr.mxu0 0.0
  %5496 = vmatpush1.msra.mxu0 0.0
  %5497 = vmatprep.subr.mxu0 0.0
  %5498 = vmatpush1.msra.mxu0 0.0
  %5499 = vmatprep.subr.mxu0 0.0
  %5500 = vmatpush1.msra.mxu0 0.0
  %5501 = vmatprep.subr.mxu0 0.0
  %5502 = vmatpush1.msra.mxu0 0.0
  %5503 = vmatprep.subr.mxu0 0.0
  %5504 = vmatpush1.msra.mxu0 0.0
  %5505 = vmatprep.subr.mxu0 0.0
  %5506 = vmatpush1.msra.mxu0 0.0
  %5507 = vmatprep.mubr.f32.mxu0 0.0
  %5508 = vmatmul.mubr.f32.gmra.mrb[0].mxu0 %v5441
  %v5509 = vpop.f32.mrb[0].mxu0
  %v5510 = vadd.f32 %v5438, %v5509
  %v5511 = vpop.f32.mrb[0].mxu0
  %5512 = vdwg.mxu0
  %v5513 = vld [vmem:[%s727] sm:$0xff]
  %v5514 = vld [vmem:[%s727 + $0x8] sm:$0xff]
  %v5515 = vld [vmem:[%s727 + $0x10] sm:$0xff]
  %v5516 = vld [vmem:[%s727 + $0x18] sm:$0xff]
  %v5518 = vlaneseq
  %v5519 = vshrl.u32 %v5518, 7
  %v5520 = vsub.s32 0, %v5519
  %v5521 = vrot.slane %v5428, %v5520
  %5523 = vmatprep.subr.mxu0 0.0
  %5524 = vmatpush1.msra.mxu0 %v5513
  %5525 = vmatprep.subr.mxu0 0.0
  %5526 = vmatpush1.msra.mxu0 %v5514
  %5527 = vmatprep.subr.mxu0 0.0
  %5528 = vmatpush1.msra.mxu0 %v5515
  %5529 = vmatprep.subr.mxu0 0.0
  %5530 = vmatpush1.msra.mxu0 %v5516
  %5531 = vmatprep.subr.mxu0 0.0
  %5532 = vmatpush1.msra.mxu0 0.0
  %5533 = vmatprep.subr.mxu0 0.0
  %5534 = vmatpush1.msra.mxu0 0.0
  %5535 = vmatprep.subr.mxu0 0.0
  %5536 = vmatpush1.msra.mxu0 0.0
  %5537 = vmatprep.subr.mxu0 0.0
  %5538 = vmatpush1.msra.mxu0 0.0
  %5539 = vmatprep.subr.mxu0 0.0
  %5540 = vmatpush1.msra.mxu0 0.0
  %5541 = vmatprep.subr.mxu0 0.0
  %5542 = vmatpush1.msra.mxu0 0.0
  %5543 = vmatprep.subr.mxu0 0.0
  %5544 = vmatpush1.msra.mxu0 0.0
  %5545 = vmatprep.subr.mxu0 0.0
  %5546 = vmatpush1.msra.mxu0 0.0
  %5547 = vmatprep.subr.mxu0 0.0
  %5548 = vmatpush1.msra.mxu0 0.0
  %5549 = vmatprep.subr.mxu0 0.0
  %5550 = vmatpush1.msra.mxu0 0.0
  %5551 = vmatprep.subr.mxu0 0.0
  %5552 = vmatpush1.msra.mxu0 0.0
  %5553 = vmatprep.subr.mxu0 0.0
  %5554 = vmatpush1.msra.mxu0 0.0
  %5555 = vmatprep.subr.mxu0 0.0
  %5556 = vmatpush1.msra.mxu0 0.0
  %5557 = vmatprep.subr.mxu0 0.0
  %5558 = vmatpush1.msra.mxu0 0.0
  %5559 = vmatprep.subr.mxu0 0.0
  %5560 = vmatpush1.msra.mxu0 0.0
  %5561 = vmatprep.subr.mxu0 0.0
  %5562 = vmatpush1.msra.mxu0 0.0
  %5563 = vmatprep.subr.mxu0 0.0
  %5564 = vmatpush1.msra.mxu0 0.0
  %5565 = vmatprep.subr.mxu0 0.0
  %5566 = vmatpush1.msra.mxu0 0.0
  %5567 = vmatprep.subr.mxu0 0.0
  %5568 = vmatpush1.msra.mxu0 0.0
  %5569 = vmatprep.subr.mxu0 0.0
  %5570 = vmatpush1.msra.mxu0 0.0
  %5571 = vmatprep.subr.mxu0 0.0
  %5572 = vmatpush1.msra.mxu0 0.0
  %5573 = vmatprep.subr.mxu0 0.0
  %5574 = vmatpush1.msra.mxu0 0.0
  %5575 = vmatprep.subr.mxu0 0.0
  %5576 = vmatpush1.msra.mxu0 0.0
  %5577 = vmatprep.subr.mxu0 0.0
  %5578 = vmatpush1.msra.mxu0 0.0
  %5579 = vmatprep.subr.mxu0 0.0
  %5580 = vmatpush1.msra.mxu0 0.0
  %5581 = vmatprep.subr.mxu0 0.0
  %5582 = vmatpush1.msra.mxu0 0.0
  %5583 = vmatprep.subr.mxu0 0.0
  %5584 = vmatpush1.msra.mxu0 0.0
  %5585 = vmatprep.subr.mxu0 0.0
  %5586 = vmatpush1.msra.mxu0 0.0
  %5587 = vmatprep.mubr.f32.mxu0 0.0
  %5588 = vmatmul.mubr.f32.gmra.mrb[0].mxu0 %v5441
  %v5589 = vpop.f32.mrb[0].mxu0
  %v5590 = vadd.f32 %v5521, %v5589
  %v5591 = vpop.f32.mrb[0].mxu0
  %5592 = vdwg.mxu0
  %v5593 = vld [vmem:[%s808] sm:$0xff]
  %v5594 = vld [vmem:[%s808 + $0x8] sm:$0xff]
  %v5595 = vld [vmem:[%s808 + $0x10] sm:$0xff]
  %v5596 = vld [vmem:[%s808 + $0x18] sm:$0xff]
  %v5598 = vlaneseq
  %v5599 = vshrl.u32 %v5598, 7
  %v5600 = vsub.s32 0, %v5599
  %v5601 = vrot.slane %v5429, %v5600
  %5603 = vmatprep.subr.mxu0 0.0
  %5604 = vmatpush1.msra.mxu0 %v5593
  %5605 = vmatprep.subr.mxu0 0.0
  %5606 = vmatpush1.msra.mxu0 %v5594
  %5607 = vmatprep.subr.mxu0 0.0
  %5608 = vmatpush1.msra.mxu0 %v5595
  %5609 = vmatprep.subr.mxu0 0.0
  %5610 = vmatpush1.msra.mxu0 %v5596
  %5611 = vmatprep.subr.mxu0 0.0
  %5612 = vmatpush1.msra.mxu0 0.0
  %5613 = vmatprep.subr.mxu0 0.0
  %5614 = vmatpush1.msra.mxu0 0.0
  %5615 = vmatprep.subr.mxu0 0.0
  %5616 = vmatpush1.msra.mxu0 0.0
  %5617 = vmatprep.subr.mxu0 0.0
  %5618 = vmatpush1.msra.mxu0 0.0
  %5619 = vmatprep.subr.mxu0 0.0
  %5620 = vmatpush1.msra.mxu0 0.0
  %5621 = vmatprep.subr.mxu0 0.0
  %5622 = vmatpush1.msra.mxu0 0.0
  %5623 = vmatprep.subr.mxu0 0.0
  %5624 = vmatpush1.msra.mxu0 0.0
  %5625 = vmatprep.subr.mxu0 0.0
  %5626 = vmatpush1.msra.mxu0 0.0
  %5627 = vmatprep.subr.mxu0 0.0
  %5628 = vmatpush1.msra.mxu0 0.0
  %5629 = vmatprep.subr.mxu0 0.0
  %5630 = vmatpush1.msra.mxu0 0.0
  %5631 = vmatprep.subr.mxu0 0.0
  %5632 = vmatpush1.msra.mxu0 0.0
  %5633 = vmatprep.subr.mxu0 0.0
  %5634 = vmatpush1.msra.mxu0 0.0
  %5635 = vmatprep.subr.mxu0 0.0
  %5636 = vmatpush1.msra.mxu0 0.0
  %5637 = vmatprep.subr.mxu0 0.0
  %5638 = vmatpush1.msra.mxu0 0.0
  %5639 = vmatprep.subr.mxu0 0.0
  %5640 = vmatpush1.msra.mxu0 0.0
  %5641 = vmatprep.subr.mxu0 0.0
  %5642 = vmatpush1.msra.mxu0 0.0
  %5643 = vmatprep.subr.mxu0 0.0
  %5644 = vmatpush1.msra.mxu0 0.0
  %5645 = vmatprep.subr.mxu0 0.0
  %5646 = vmatpush1.msra.mxu0 0.0
  %5647 = vmatprep.subr.mxu0 0.0
  %5648 = vmatpush1.msra.mxu0 0.0
  %5649 = vmatprep.subr.mxu0 0.0
  %5650 = vmatpush1.msra.mxu0 0.0
  %5651 = vmatprep.subr.mxu0 0.0
  %5652 = vmatpush1.msra.mxu0 0.0
  %5653 = vmatprep.subr.mxu0 0.0
  %5654 = vmatpush1.msra.mxu0 0.0
  %5655 = vmatprep.subr.mxu0 0.0
  %5656 = vmatpush1.msra.mxu0 0.0
  %5657 = vmatprep.subr.mxu0 0.0
  %5658 = vmatpush1.msra.mxu0 0.0
  %5659 = vmatprep.subr.mxu0 0.0
  %5660 = vmatpush1.msra.mxu0 0.0
  %5661 = vmatprep.subr.mxu0 0.0
  %5662 = vmatpush1.msra.mxu0 0.0
  %5663 = vmatprep.subr.mxu0 0.0
  %5664 = vmatpush1.msra.mxu0 0.0
  %5665 = vmatprep.subr.mxu0 0.0
  %5666 = vmatpush1.msra.mxu0 0.0
  %5667 = vmatprep.mubr.f32.mxu0 0.0
  %5668 = vmatmul.mubr.f32.gmra.mrb[0].mxu0 %v5441
  %v5669 = vpop.f32.mrb[0].mxu0
  %v5670 = vadd.f32 %v5601, %v5669
  %v5671 = vpop.f32.mrb[0].mxu0
  %5672 = vdwg.mxu0
  %v5673 = vld [vmem:[%s9] sm:$0xff]
  %v5674 = vld [vmem:[%s9 + $0x8] sm:$0xff]
  %v5675 = vld [vmem:[%s9 + $0x10] sm:$0xff]
  %v5676 = vld [vmem:[%s9 + $0x18] sm:$0xff]
  %v5677 = vld [vmem:[%s10] sm:$0x1]
  %v5679 = vlaneseq
  %v5680 = vshrl.u32 %v5679, 7
  %v5681 = vsub.s32 0, %v5680
  %v5682 = vrot.slane %v5677, %v5681
  %5684 = vmatprep.subr.mxu0 0.0
  %5685 = vmatpush1.msra.mxu0 %v5673
  %5686 = vmatprep.subr.mxu0 0.0
  %5687 = vmatpush1.msra.mxu0 %v5674
  %5688 = vmatprep.subr.mxu0 0.0
  %5689 = vmatpush1.msra.mxu0 %v5675
  %5690 = vmatprep.subr.mxu0 0.0
  %5691 = vmatpush1.msra.mxu0 %v5676
  %5692 = vmatprep.subr.mxu0 0.0
  %5693 = vmatpush1.msra.mxu0 0.0
  %5694 = vmatprep.subr.mxu0 0.0
  %5695 = vmatpush1.msra.mxu0 0.0
  %5696 = vmatprep.subr.mxu0 0.0
  %5697 = vmatpush1.msra.mxu0 0.0
  %5698 = vmatprep.subr.mxu0 0.0
  %5699 = vmatpush1.msra.mxu0 0.0
  %5700 = vmatprep.subr.mxu0 0.0
  %5701 = vmatpush1.msra.mxu0 0.0
  %5702 = vmatprep.subr.mxu0 0.0
  %5703 = vmatpush1.msra.mxu0 0.0
  %5704 = vmatprep.subr.mxu0 0.0
  %5705 = vmatpush1.msra.mxu0 0.0
  %5706 = vmatprep.subr.mxu0 0.0
  %5707 = vmatpush1.msra.mxu0 0.0
  %5708 = vmatprep.subr.mxu0 0.0
  %5709 = vmatpush1.msra.mxu0 0.0
  %5710 = vmatprep.subr.mxu0 0.0
  %5711 = vmatpush1.msra.mxu0 0.0
  %5712 = vmatprep.subr.mxu0 0.0
  %5713 = vmatpush1.msra.mxu0 0.0
  %5714 = vmatprep.subr.mxu0 0.0
  %5715 = vmatpush1.msra.mxu0 0.0
  %5716 = vmatprep.subr.mxu0 0.0
  %5717 = vmatpush1.msra.mxu0 0.0
  %5718 = vmatprep.subr.mxu0 0.0
  %5719 = vmatpush1.msra.mxu0 0.0
  %5720 = vmatprep.subr.mxu0 0.0
  %5721 = vmatpush1.msra.mxu0 0.0
  %5722 = vmatprep.subr.mxu0 0.0
  %5723 = vmatpush1.msra.mxu0 0.0
  %5724 = vmatprep.subr.mxu0 0.0
  %5725 = vmatpush1.msra.mxu0 0.0
  %5726 = vmatprep.subr.mxu0 0.0
  %5727 = vmatpush1.msra.mxu0 0.0
  %5728 = vmatprep.subr.mxu0 0.0
  %5729 = vmatpush1.msra.mxu0 0.0
  %5730 = vmatprep.subr.mxu0 0.0
  %5731 = vmatpush1.msra.mxu0 0.0
  %5732 = vmatprep.subr.mxu0 0.0
  %5733 = vmatpush1.msra.mxu0 0.0
  %5734 = vmatprep.subr.mxu0 0.0
  %5735 = vmatpush1.msra.mxu0 0.0
  %5736 = vmatprep.subr.mxu0 0.0
  %5737 = vmatpush1.msra.mxu0 0.0
  %5738 = vmatprep.subr.mxu0 0.0
  %5739 = vmatpush1.msra.mxu0 0.0
  %5740 = vmatprep.subr.mxu0 0.0
  %5741 = vmatpush1.msra.mxu0 0.0
  %5742 = vmatprep.subr.mxu0 0.0
  %5743 = vmatpush1.msra.mxu0 0.0
  %5744 = vmatprep.subr.mxu0 0.0
  %5745 = vmatpush1.msra.mxu0 0.0
  %5746 = vmatprep.subr.mxu0 0.0
  %5747 = vmatpush1.msra.mxu0 0.0
  %5748 = vmatprep.mubr.f32.mxu0 0.0
  %5749 = vmatmul.mubr.f32.gmra.mrb[0].mxu0 %v4747
  %v5750 = vpop.f32.mrb[0].mxu0
  %v5751 = vadd.f32 %v5682, %v5750
  %v5752 = vpop.f32.mrb[0].mxu0
  %5753 = vdwg.mxu0
  %v5754 = vld [vmem:[%s970] sm:$0xff]
  %v5755 = vld [vmem:[%s970 + $0x8] sm:$0xff]
  %v5756 = vld [vmem:[%s970 + $0x10] sm:$0xff]
  %v5757 = vld [vmem:[%s970 + $0x18] sm:$0xff]
  %v5758 = vld [vmem:[%s975] sm:$0x1]
  %v5760 = vlaneseq
  %v5761 = vshrl.u32 %v5760, 7
  %v5762 = vsub.s32 0, %v5761
  %v5763 = vrot.slane %v5758, %v5762
  %5765 = vmatprep.subr.mxu0 0.0
  %5766 = vmatpush1.msra.mxu0 %v5754
  %5767 = vmatprep.subr.mxu0 0.0
  %5768 = vmatpush1.msra.mxu0 %v5755
  %5769 = vmatprep.subr.mxu0 0.0
  %5770 = vmatpush1.msra.mxu0 %v5756
  %5771 = vmatprep.subr.mxu0 0.0
  %5772 = vmatpush1.msra.mxu0 %v5757
  %5773 = vmatprep.subr.mxu0 0.0
  %5774 = vmatpush1.msra.mxu0 0.0
  %5775 = vmatprep.subr.mxu0 0.0
  %5776 = vmatpush1.msra.mxu0 0.0
  %5777 = vmatprep.subr.mxu0 0.0
  %5778 = vmatpush1.msra.mxu0 0.0
  %5779 = vmatprep.subr.mxu0 0.0
  %5780 = vmatpush1.msra.mxu0 0.0
  %5781 = vmatprep.subr.mxu0 0.0
  %5782 = vmatpush1.msra.mxu0 0.0
  %5783 = vmatprep.subr.mxu0 0.0
  %5784 = vmatpush1.msra.mxu0 0.0
  %5785 = vmatprep.subr.mxu0 0.0
  %5786 = vmatpush1.msra.mxu0 0.0
  %5787 = vmatprep.subr.mxu0 0.0
  %5788 = vmatpush1.msra.mxu0 0.0
  %5789 = vmatprep.subr.mxu0 0.0
  %5790 = vmatpush1.msra.mxu0 0.0
  %5791 = vmatprep.subr.mxu0 0.0
  %5792 = vmatpush1.msra.mxu0 0.0
  %5793 = vmatprep.subr.mxu0 0.0
  %5794 = vmatpush1.msra.mxu0 0.0
  %5795 = vmatprep.subr.mxu0 0.0
  %5796 = vmatpush1.msra.mxu0 0.0
  %5797 = vmatprep.subr.mxu0 0.0
  %5798 = vmatpush1.msra.mxu0 0.0
  %5799 = vmatprep.subr.mxu0 0.0
  %5800 = vmatpush1.msra.mxu0 0.0
  %5801 = vmatprep.subr.mxu0 0.0
  %5802 = vmatpush1.msra.mxu0 0.0
  %5803 = vmatprep.subr.mxu0 0.0
  %5804 = vmatpush1.msra.mxu0 0.0
  %5805 = vmatprep.subr.mxu0 0.0
  %5806 = vmatpush1.msra.mxu0 0.0
  %5807 = vmatprep.subr.mxu0 0.0
  %5808 = vmatpush1.msra.mxu0 0.0
  %5809 = vmatprep.subr.mxu0 0.0
  %5810 = vmatpush1.msra.mxu0 0.0
  %5811 = vmatprep.subr.mxu0 0.0
  %5812 = vmatpush1.msra.mxu0 0.0
  %5813 = vmatprep.subr.mxu0 0.0
  %5814 = vmatpush1.msra.mxu0 0.0
  %5815 = vmatprep.subr.mxu0 0.0
  %5816 = vmatpush1.msra.mxu0 0.0
  %5817 = vmatprep.subr.mxu0 0.0
  %5818 = vmatpush1.msra.mxu0 0.0
  %5819 = vmatprep.subr.mxu0 0.0
  %5820 = vmatpush1.msra.mxu0 0.0
  %5821 = vmatprep.subr.mxu0 0.0
  %5822 = vmatpush1.msra.mxu0 0.0
  %5823 = vmatprep.subr.mxu0 0.0
  %5824 = vmatpush1.msra.mxu0 0.0
  %5825 = vmatprep.subr.mxu0 0.0
  %5826 = vmatpush1.msra.mxu0 0.0
  %5827 = vmatprep.subr.mxu0 0.0
  %5828 = vmatpush1.msra.mxu0 0.0
  %5829 = vmatprep.mubr.f32.mxu0 0.0
  %5830 = vmatmul.mubr.f32.gmra.mrb[0].mxu0 %v4747
  %v5831 = vpop.f32.mrb[0].mxu0
  %v5832 = vadd.f32 %v5763, %v5831
  %v5833 = vpop.f32.mrb[0].mxu0
  %5834 = vdwg.mxu0
  %v5835 = vld [vmem:[%s1053] sm:$0xff]
  %v5836 = vld [vmem:[%s1053 + $0x8] sm:$0xff]
  %v5837 = vld [vmem:[%s1053 + $0x10] sm:$0xff]
  %v5838 = vld [vmem:[%s1053 + $0x18] sm:$0xff]
  %v5839 = vld [vmem:[%s1058] sm:$0x1]
  %v5841 = vlaneseq
  %v5842 = vshrl.u32 %v5841, 7
  %v5843 = vsub.s32 0, %v5842
  %v5844 = vrot.slane %v5839, %v5843
  %5846 = vmatprep.subr.mxu0 0.0
  %5847 = vmatpush1.msra.mxu0 %v5835
  %5848 = vmatprep.subr.mxu0 0.0
  %5849 = vmatpush1.msra.mxu0 %v5836
  %5850 = vmatprep.subr.mxu0 0.0
  %5851 = vmatpush1.msra.mxu0 %v5837
  %5852 = vmatprep.subr.mxu0 0.0
  %5853 = vmatpush1.msra.mxu0 %v5838
  %5854 = vmatprep.subr.mxu0 0.0
  %5855 = vmatpush1.msra.mxu0 0.0
  %5856 = vmatprep.subr.mxu0 0.0
  %5857 = vmatpush1.msra.mxu0 0.0
  %5858 = vmatprep.subr.mxu0 0.0
  %5859 = vmatpush1.msra.mxu0 0.0
  %5860 = vmatprep.subr.mxu0 0.0
  %5861 = vmatpush1.msra.mxu0 0.0
  %5862 = vmatprep.subr.mxu0 0.0
  %5863 = vmatpush1.msra.mxu0 0.0
  %5864 = vmatprep.subr.mxu0 0.0
  %5865 = vmatpush1.msra.mxu0 0.0
  %5866 = vmatprep.subr.mxu0 0.0
  %5867 = vmatpush1.msra.mxu0 0.0
  %5868 = vmatprep.subr.mxu0 0.0
  %5869 = vmatpush1.msra.mxu0 0.0
  %5870 = vmatprep.subr.mxu0 0.0
  %5871 = vmatpush1.msra.mxu0 0.0
  %5872 = vmatprep.subr.mxu0 0.0
  %5873 = vmatpush1.msra.mxu0 0.0
  %5874 = vmatprep.subr.mxu0 0.0
  %5875 = vmatpush1.msra.mxu0 0.0
  %5876 = vmatprep.subr.mxu0 0.0
  %5877 = vmatpush1.msra.mxu0 0.0
  %5878 = vmatprep.subr.mxu0 0.0
  %5879 = vmatpush1.msra.mxu0 0.0
  %5880 = vmatprep.subr.mxu0 0.0
  %5881 = vmatpush1.msra.mxu0 0.0
  %5882 = vmatprep.subr.mxu0 0.0
  %5883 = vmatpush1.msra.mxu0 0.0
  %5884 = vmatprep.subr.mxu0 0.0
  %5885 = vmatpush1.msra.mxu0 0.0
  %5886 = vmatprep.subr.mxu0 0.0
  %5887 = vmatpush1.msra.mxu0 0.0
  %5888 = vmatprep.subr.mxu0 0.0
  %5889 = vmatpush1.msra.mxu0 0.0
  %5890 = vmatprep.subr.mxu0 0.0
  %5891 = vmatpush1.msra.mxu0 0.0
  %5892 = vmatprep.subr.mxu0 0.0
  %5893 = vmatpush1.msra.mxu0 0.0
  %5894 = vmatprep.subr.mxu0 0.0
  %5895 = vmatpush1.msra.mxu0 0.0
  %5896 = vmatprep.subr.mxu0 0.0
  %5897 = vmatpush1.msra.mxu0 0.0
  %5898 = vmatprep.subr.mxu0 0.0
  %5899 = vmatpush1.msra.mxu0 0.0
  %5900 = vmatprep.subr.mxu0 0.0
  %5901 = vmatpush1.msra.mxu0 0.0
  %5902 = vmatprep.subr.mxu0 0.0
  %5903 = vmatpush1.msra.mxu0 0.0
  %5904 = vmatprep.subr.mxu0 0.0
  %5905 = vmatpush1.msra.mxu0 0.0
  %5906 = vmatprep.subr.mxu0 0.0
  %5907 = vmatpush1.msra.mxu0 0.0
  %5908 = vmatprep.subr.mxu0 0.0
  %5909 = vmatpush1.msra.mxu0 0.0
  %5910 = vmatprep.mubr.f32.mxu0 0.0
  %5911 = vmatmul.mubr.f32.gmra.mrb[0].mxu0 %v4747
  %v5912 = vpop.f32.mrb[0].mxu0
  %v5913 = vadd.f32 %v5844, %v5912
  %v5914 = vpop.f32.mrb[0].mxu0
  %5915 = vdwg.mxu0
  %v5916 = vadd.f32 %v5510, %v5751
  %v5917 = vxor.u32 %v5916, 2147483648
  %v5918 = vmul.f32 %v5917, 1.442695
  %v5919 = vpow.pop %v5918
  %v5920 = vadd.f32 %v5919, 1.0
  %v5921 = vrcp.pop %v5920
  %v5922 = vmul.f32 1.0, %v5921
  %v5923 = vadd.f32 %v5590, %v5832
  %v5924 = vxor.u32 %v5923, 2147483648
  %v5925 = vmul.f32 %v5924, 1.442695
  %v5926 = vpow.pop %v5925
  %v5927 = vadd.f32 %v5926, 1.0
  %v5928 = vrcp.pop %v5927
  %v5929 = vmul.f32 1.0, %v5928
  %v5930 = vmul.f32 %v5922, %v5913
  %v5931 = vadd.f32 %v5670, %v5930
  %v5932 = vtanh.pop %v5931
  %v5933 = vsub.f32 1.0, %v5929
  %v5934 = vmul.f32 %v5933, %v5932
  %v5935 = vmul.f32 %v5929, %v4741
  %v5936 = vadd.f32 %v5934, %v5935
  %v5937 = vld [vmem:[%s11] sm:$0xff]
  %v5938 = vld [vmem:[%s11 + $0x8] sm:$0xff]
  %v5939 = vld [vmem:[%s11 + $0x10] sm:$0xff]
  %v5940 = vld [vmem:[%s11 + $0x18] sm:$0xff]
  %v5942 = vsel %vm144, %v5936, 0
  %5944 = vmatprep.subr.mxu0 0.0
  %5945 = vmatpush1.msra.mxu0 %v5937
  %5946 = vmatprep.subr.mxu0 0.0
  %5947 = vmatpush1.msra.mxu0 %v5938
  %5948 = vmatprep.subr.mxu0 0.0
  %5949 = vmatpush1.msra.mxu0 %v5939
  %5950 = vmatprep.subr.mxu0 0.0
  %5951 = vmatpush1.msra.mxu0 %v5940
  %5952 = vmatprep.subr.mxu0 0.0
  %5953 = vmatpush1.msra.mxu0 0.0
  %5954 = vmatprep.subr.mxu0 0.0
  %5955 = vmatpush1.msra.mxu0 0.0
  %5956 = vmatprep.subr.mxu0 0.0
  %5957 = vmatpush1.msra.mxu0 0.0
  %5958 = vmatprep.subr.mxu0 0.0
  %5959 = vmatpush1.msra.mxu0 0.0
  %5960 = vmatprep.subr.mxu0 0.0
  %5961 = vmatpush1.msra.mxu0 0.0
  %5962 = vmatprep.subr.mxu0 0.0
  %5963 = vmatpush1.msra.mxu0 0.0
  %5964 = vmatprep.subr.mxu0 0.0
  %5965 = vmatpush1.msra.mxu0 0.0
  %5966 = vmatprep.subr.mxu0 0.0
  %5967 = vmatpush1.msra.mxu0 0.0
  %5968 = vmatprep.subr.mxu0 0.0
  %5969 = vmatpush1.msra.mxu0 0.0
  %5970 = vmatprep.subr.mxu0 0.0
  %5971 = vmatpush1.msra.mxu0 0.0
  %5972 = vmatprep.subr.mxu0 0.0
  %5973 = vmatpush1.msra.mxu0 0.0
  %5974 = vmatprep.subr.mxu0 0.0
  %5975 = vmatpush1.msra.mxu0 0.0
  %5976 = vmatprep.subr.mxu0 0.0
  %5977 = vmatpush1.msra.mxu0 0.0
  %5978 = vmatprep.subr.mxu0 0.0
  %5979 = vmatpush1.msra.mxu0 0.0
  %5980 = vmatprep.subr.mxu0 0.0
  %5981 = vmatpush1.msra.mxu0 0.0
  %5982 = vmatprep.subr.mxu0 0.0
  %5983 = vmatpush1.msra.mxu0 0.0
  %5984 = vmatprep.subr.mxu0 0.0
  %5985 = vmatpush1.msra.mxu0 0.0
  %5986 = vmatprep.subr.mxu0 0.0
  %5987 = vmatpush1.msra.mxu0 0.0
  %5988 = vmatprep.subr.mxu0 0.0
  %5989 = vmatpush1.msra.mxu0 0.0
  %5990 = vmatprep.subr.mxu0 0.0
  %5991 = vmatpush1.msra.mxu0 0.0
  %5992 = vmatprep.subr.mxu0 0.0
  %5993 = vmatpush1.msra.mxu0 0.0
  %5994 = vmatprep.subr.mxu0 0.0
  %5995 = vmatpush1.msra.mxu0 0.0
  %5996 = vmatprep.subr.mxu0 0.0
  %5997 = vmatpush1.msra.mxu0 0.0
  %5998 = vmatprep.subr.mxu0 0.0
  %5999 = vmatpush1.msra.mxu0 0.0
  %6000 = vmatprep.subr.mxu0 0.0
  %6001 = vmatpush1.msra.mxu0 0.0
  %6002 = vmatprep.subr.mxu0 0.0
  %6003 = vmatpush1.msra.mxu0 0.0
  %6004 = vmatprep.subr.mxu0 0.0
  %6005 = vmatpush1.msra.mxu0 0.0
  %6006 = vmatprep.subr.mxu0 0.0
  %6007 = vmatpush1.msra.mxu0 0.0
  %6008 = vmatprep.mubr.f32.mxu0 0.0
  %6009 = vmatmul.mubr.f32.gmra.mrb[0].mxu0 %v5942
  %v6010 = vpop.f32.mrb[0].mxu0
  %v6011 = vadd.f32 %v52, %v6010
  %v6012 = vpop.f32.mrb[0].mxu0
  %6013 = vdwg.mxu0
  %v6014 = vsel %vm1234, %v6011, -inf
  %6015 = vmax.xlane.f32.xlu0 %v6014
  %v6016 = vpop.xlane.xlu0 %6015
  %v6017 = vsub.f32 %v6011, %v6016
  %v6018 = vmul.f32 %v6017, 1.442695
  %v6019 = vpow.pop %v6018
  %v6020 = vsel %vm1234, %v6019, 0.0
  %6021 = vadd.xlane.f32.xlu0 %v6020
  %v6022 = vpop.xlane.xlu0 %6021
  %v6023 = vlog2.pop %v6022
  %v6024 = vmul.f32 %v6023, 0.6931472
  %v6025 = vsub.f32 %v6017, %v6024
  %s6026 = scalar_lea.vmem %s12, 16
  %6027 = vst.msk [vmem:[%s6026] sm:$0xf] %vm1234, %v6025
  %vm6028 = vcmp.eq.f32.partialorder %v6011, %v6016
  %v6029 = vsel %vm6028, %v43, 10
  %v6030 = vsel %vm1234, %v6029, 2147483647
  %v6031 = vand.u32 %v6030, 65535
  %v6032 = vshra.s32 %v6030, 16
  %v6033 = vcvt.s32.f32 %v6031
  %v6034 = vcvt.s32.f32 %v6032
  %6035 = vmin.xlane.f32.xlu0 %v6034
  %v6036 = vpop.xlane.xlu0 %6035
  %vm6037 = vcmp.eq.f32.partialorder %v6034, %v6036
  %v6038 = vsel %vm6037, %v6033, inf
  %6039 = vmin.xlane.f32.xlu0 %v6038
  %v6040 = vpop.xlane.xlu0 %6039
  %v6041 = vcvt.f32.s32 %v6040
  %v6042 = vcvt.f32.s32 %v6036
  %v6043 = vshll.u32 %v6042, 16
  %v6044 = vadd.s32 %v6043, %v6041
  %vm6045 = vcmp.eq.s32.totalorder %v43, %v6044
  %v6046 = vsel %vm6045, 1, 0
  %v6047 = vcvt.s32.f32 %v6046
  %v6048 = vld [vmem:[%s3] sm:$0xff]
  %v6049 = vld [vmem:[%s3 + $0x8] sm:$0x3]
  %v6051 = vsel %vm55, %v6047, 0
  %v6054 = vsel %vm59, %v6049, 0
  %6056 = vmatprep.subr.mxu0 0.0
  %6057 = vmatpush1.msra.mxu0 %v6048
  %6058 = vmatprep.subr.mxu0 0.0
  %6059 = vmatpush1.msra.mxu0 %v6054
  %6060 = vmatprep.subr.mxu0 0.0
  %6061 = vmatpush1.msra.mxu0 0.0
  %6062 = vmatprep.subr.mxu0 0.0
  %6063 = vmatpush1.msra.mxu0 0.0
  %6064 = vmatprep.subr.mxu0 0.0
  %6065 = vmatpush1.msra.mxu0 0.0
  %6066 = vmatprep.subr.mxu0 0.0
  %6067 = vmatpush1.msra.mxu0 0.0
  %6068 = vmatprep.subr.mxu0 0.0
  %6069 = vmatpush1.msra.mxu0 0.0
  %6070 = vmatprep.subr.mxu0 0.0
  %6071 = vmatpush1.msra.mxu0 0.0
  %6072 = vmatprep.subr.mxu0 0.0
  %6073 = vmatpush1.msra.mxu0 0.0
  %6074 = vmatprep.subr.mxu0 0.0
  %6075 = vmatpush1.msra.mxu0 0.0
  %6076 = vmatprep.subr.mxu0 0.0
  %6077 = vmatpush1.msra.mxu0 0.0
  %6078 = vmatprep.subr.mxu0 0.0
  %6079 = vmatpush1.msra.mxu0 0.0
  %6080 = vmatprep.subr.mxu0 0.0
  %6081 = vmatpush1.msra.mxu0 0.0
  %6082 = vmatprep.subr.mxu0 0.0
  %6083 = vmatpush1.msra.mxu0 0.0
  %6084 = vmatprep.subr.mxu0 0.0
  %6085 = vmatpush1.msra.mxu0 0.0
  %6086 = vmatprep.subr.mxu0 0.0
  %6087 = vmatpush1.msra.mxu0 0.0
  %6088 = vmatprep.subr.mxu0 0.0
  %6089 = vmatpush1.msra.mxu0 0.0
  %6090 = vmatprep.subr.mxu0 0.0
  %6091 = vmatpush1.msra.mxu0 0.0
  %6092 = vmatprep.subr.mxu0 0.0
  %6093 = vmatpush1.msra.mxu0 0.0
  %6094 = vmatprep.subr.mxu0 0.0
  %6095 = vmatpush1.msra.mxu0 0.0
  %6096 = vmatprep.subr.mxu0 0.0
  %6097 = vmatpush1.msra.mxu0 0.0
  %6098 = vmatprep.subr.mxu0 0.0
  %6099 = vmatpush1.msra.mxu0 0.0
  %6100 = vmatprep.subr.mxu0 0.0
  %6101 = vmatpush1.msra.mxu0 0.0
  %6102 = vmatprep.subr.mxu0 0.0
  %6103 = vmatpush1.msra.mxu0 0.0
  %6104 = vmatprep.subr.mxu0 0.0
  %6105 = vmatpush1.msra.mxu0 0.0
  %6106 = vmatprep.subr.mxu0 0.0
  %6107 = vmatpush1.msra.mxu0 0.0
  %6108 = vmatprep.subr.mxu0 0.0
  %6109 = vmatpush1.msra.mxu0 0.0
  %6110 = vmatprep.subr.mxu0 0.0
  %6111 = vmatpush1.msra.mxu0 0.0
  %6112 = vmatprep.subr.mxu0 0.0
  %6113 = vmatpush1.msra.mxu0 0.0
  %6114 = vmatprep.subr.mxu0 0.0
  %6115 = vmatpush1.msra.mxu0 0.0
  %6116 = vmatprep.subr.mxu0 0.0
  %6117 = vmatpush1.msra.mxu0 0.0
  %6118 = vmatprep.subr.mxu0 0.0
  %6119 = vmatpush1.msra.mxu0 0.0
  %6120 = vmatprep.mubr.f32.mxu0 0.0
  %6121 = vmatmul.mubr.f32.gmra.mrb[0].mxu0 %v6051
  %v6122 = vpop.f32.mrb[0].mxu0
  %v6123 = vadd.f32 0.0, %v6122
  %v6124 = vpop.f32.mrb[0].mxu0
  %6125 = vdwg.mxu0
  %v6126 = vxor.u32 %v6123, 2147483648
  %v6127 = vmul.f32 %v6126, 1.442695
  %v6128 = vpow.pop %v6127
  %v6129 = vadd.f32 %v6128, 1.0
  %v6130 = vrcp.pop %v6129
  %v6131 = vmul.f32 1.0, %v6130
  %v6132 = vmul.f32 %v6123, %v6131
  %v6133 = vld [vmem:[%s4] sm:$0xff]
  %v6134 = vld [vmem:[%s4 + $0x8] sm:$0xff]
  %v6135 = vld [vmem:[%s4 + $0x10] sm:$0xff]
  %v6136 = vld [vmem:[%s4 + $0x18] sm:$0xff]
  %v6138 = vsel %vm144, %v6132, 0
  %6140 = vmatprep.subr.mxu0 0.0
  %6141 = vmatpush1.msra.mxu0 %v6133
  %6142 = vmatprep.subr.mxu0 0.0
  %6143 = vmatpush1.msra.mxu0 %v6134
  %6144 = vmatprep.subr.mxu0 0.0
  %6145 = vmatpush1.msra.mxu0 %v6135
  %6146 = vmatprep.subr.mxu0 0.0
  %6147 = vmatpush1.msra.mxu0 %v6136
  %6148 = vmatprep.subr.mxu0 0.0
  %6149 = vmatpush1.msra.mxu0 0.0
  %6150 = vmatprep.subr.mxu0 0.0
  %6151 = vmatpush1.msra.mxu0 0.0
  %6152 = vmatprep.subr.mxu0 0.0
  %6153 = vmatpush1.msra.mxu0 0.0
  %6154 = vmatprep.subr.mxu0 0.0
  %6155 = vmatpush1.msra.mxu0 0.0
  %6156 = vmatprep.subr.mxu0 0.0
  %6157 = vmatpush1.msra.mxu0 0.0
  %6158 = vmatprep.subr.mxu0 0.0
  %6159 = vmatpush1.msra.mxu0 0.0
  %6160 = vmatprep.subr.mxu0 0.0
  %6161 = vmatpush1.msra.mxu0 0.0
  %6162 = vmatprep.subr.mxu0 0.0
  %6163 = vmatpush1.msra.mxu0 0.0
  %6164 = vmatprep.subr.mxu0 0.0
  %6165 = vmatpush1.msra.mxu0 0.0
  %6166 = vmatprep.subr.mxu0 0.0
  %6167 = vmatpush1.msra.mxu0 0.0
  %6168 = vmatprep.subr.mxu0 0.0
  %6169 = vmatpush1.msra.mxu0 0.0
  %6170 = vmatprep.subr.mxu0 0.0
  %6171 = vmatpush1.msra.mxu0 0.0
  %6172 = vmatprep.subr.mxu0 0.0
  %6173 = vmatpush1.msra.mxu0 0.0
  %6174 = vmatprep.subr.mxu0 0.0
  %6175 = vmatpush1.msra.mxu0 0.0
  %6176 = vmatprep.subr.mxu0 0.0
  %6177 = vmatpush1.msra.mxu0 0.0
  %6178 = vmatprep.subr.mxu0 0.0
  %6179 = vmatpush1.msra.mxu0 0.0
  %6180 = vmatprep.subr.mxu0 0.0
  %6181 = vmatpush1.msra.mxu0 0.0
  %6182 = vmatprep.subr.mxu0 0.0
  %6183 = vmatpush1.msra.mxu0 0.0
  %6184 = vmatprep.subr.mxu0 0.0
  %6185 = vmatpush1.msra.mxu0 0.0
  %6186 = vmatprep.subr.mxu0 0.0
  %6187 = vmatpush1.msra.mxu0 0.0
  %6188 = vmatprep.subr.mxu0 0.0
  %6189 = vmatpush1.msra.mxu0 0.0
  %6190 = vmatprep.subr.mxu0 0.0
  %6191 = vmatpush1.msra.mxu0 0.0
  %6192 = vmatprep.subr.mxu0 0.0
  %6193 = vmatpush1.msra.mxu0 0.0
  %6194 = vmatprep.subr.mxu0 0.0
  %6195 = vmatpush1.msra.mxu0 0.0
  %6196 = vmatprep.subr.mxu0 0.0
  %6197 = vmatpush1.msra.mxu0 0.0
  %6198 = vmatprep.subr.mxu0 0.0
  %6199 = vmatpush1.msra.mxu0 0.0
  %6200 = vmatprep.subr.mxu0 0.0
  %6201 = vmatpush1.msra.mxu0 0.0
  %6202 = vmatprep.subr.mxu0 0.0
  %6203 = vmatpush1.msra.mxu0 0.0
  %6204 = vmatprep.mubr.f32.mxu0 0.0
  %6205 = vmatmul.mubr.f32.gmra.mrb[0].mxu0 %v6138
  %v6206 = vpop.f32.mrb[0].mxu0
  %v6207 = vadd.f32 %v47, %v6206
  %v6208 = vpop.f32.mrb[0].mxu0
  %6209 = vdwg.mxu0
  %v6210 = vld [vmem:[%s218] sm:$0xff]
  %v6211 = vld [vmem:[%s218 + $0x8] sm:$0xff]
  %v6212 = vld [vmem:[%s218 + $0x10] sm:$0xff]
  %v6213 = vld [vmem:[%s218 + $0x18] sm:$0xff]
  %6214 = vmatprep.subr.mxu0 0.0
  %6215 = vmatpush1.msra.mxu0 %v6210
  %6216 = vmatprep.subr.mxu0 0.0
  %6217 = vmatpush1.msra.mxu0 %v6211
  %6218 = vmatprep.subr.mxu0 0.0
  %6219 = vmatpush1.msra.mxu0 %v6212
  %6220 = vmatprep.subr.mxu0 0.0
  %6221 = vmatpush1.msra.mxu0 %v6213
  %6222 = vmatprep.subr.mxu0 0.0
  %6223 = vmatpush1.msra.mxu0 0.0
  %6224 = vmatprep.subr.mxu0 0.0
  %6225 = vmatpush1.msra.mxu0 0.0
  %6226 = vmatprep.subr.mxu0 0.0
  %6227 = vmatpush1.msra.mxu0 0.0
  %6228 = vmatprep.subr.mxu0 0.0
  %6229 = vmatpush1.msra.mxu0 0.0
  %6230 = vmatprep.subr.mxu0 0.0
  %6231 = vmatpush1.msra.mxu0 0.0
  %6232 = vmatprep.subr.mxu0 0.0
  %6233 = vmatpush1.msra.mxu0 0.0
  %6234 = vmatprep.subr.mxu0 0.0
  %6235 = vmatpush1.msra.mxu0 0.0
  %6236 = vmatprep.subr.mxu0 0.0
  %6237 = vmatpush1.msra.mxu0 0.0
  %6238 = vmatprep.subr.mxu0 0.0
  %6239 = vmatpush1.msra.mxu0 0.0
  %6240 = vmatprep.subr.mxu0 0.0
  %6241 = vmatpush1.msra.mxu0 0.0
  %6242 = vmatprep.subr.mxu0 0.0
  %6243 = vmatpush1.msra.mxu0 0.0
  %6244 = vmatprep.subr.mxu0 0.0
  %6245 = vmatpush1.msra.mxu0 0.0
  %6246 = vmatprep.subr.mxu0 0.0
  %6247 = vmatpush1.msra.mxu0 0.0
  %6248 = vmatprep.subr.mxu0 0.0
  %6249 = vmatpush1.msra.mxu0 0.0
  %6250 = vmatprep.subr.mxu0 0.0
  %6251 = vmatpush1.msra.mxu0 0.0
  %6252 = vmatprep.subr.mxu0 0.0
  %6253 = vmatpush1.msra.mxu0 0.0
  %6254 = vmatprep.subr.mxu0 0.0
  %6255 = vmatpush1.msra.mxu0 0.0
  %6256 = vmatprep.subr.mxu0 0.0
  %6257 = vmatpush1.msra.mxu0 0.0
  %6258 = vmatprep.subr.mxu0 0.0
  %6259 = vmatpush1.msra.mxu0 0.0
  %6260 = vmatprep.subr.mxu0 0.0
  %6261 = vmatpush1.msra.mxu0 0.0
  %6262 = vmatprep.subr.mxu0 0.0
  %6263 = vmatpush1.msra.mxu0 0.0
  %6264 = vmatprep.subr.mxu0 0.0
  %6265 = vmatpush1.msra.mxu0 0.0
  %6266 = vmatprep.subr.mxu0 0.0
  %6267 = vmatpush1.msra.mxu0 0.0
  %6268 = vmatprep.subr.mxu0 0.0
  %6269 = vmatpush1.msra.mxu0 0.0
  %6270 = vmatprep.subr.mxu0 0.0
  %6271 = vmatpush1.msra.mxu0 0.0
  %6272 = vmatprep.subr.mxu0 0.0
  %6273 = vmatpush1.msra.mxu0 0.0
  %6274 = vmatprep.subr.mxu0 0.0
  %6275 = vmatpush1.msra.mxu0 0.0
  %6276 = vmatprep.subr.mxu0 0.0
  %6277 = vmatpush1.msra.mxu0 0.0
  %6278 = vmatprep.mubr.f32.mxu0 0.0
  %6279 = vmatmul.mubr.f32.gmra.mrb[0].mxu0 %v6138
  %v6280 = vpop.f32.mrb[0].mxu0
  %v6281 = vadd.f32 %v49, %v6280
  %v6282 = vpop.f32.mrb[0].mxu0
  %6283 = vdwg.mxu0
  %v6284 = vld [vmem:[%s293] sm:$0xff]
  %v6285 = vld [vmem:[%s293 + $0x8] sm:$0xff]
  %v6286 = vld [vmem:[%s293 + $0x10] sm:$0xff]
  %v6287 = vld [vmem:[%s293 + $0x18] sm:$0xff]
  %6288 = vmatprep.subr.mxu0 0.0
  %6289 = vmatpush1.msra.mxu0 %v6284
  %6290 = vmatprep.subr.mxu0 0.0
  %6291 = vmatpush1.msra.mxu0 %v6285
  %6292 = vmatprep.subr.mxu0 0.0
  %6293 = vmatpush1.msra.mxu0 %v6286
  %6294 = vmatprep.subr.mxu0 0.0
  %6295 = vmatpush1.msra.mxu0 %v6287
  %6296 = vmatprep.subr.mxu0 0.0
  %6297 = vmatpush1.msra.mxu0 0.0
  %6298 = vmatprep.subr.mxu0 0.0
  %6299 = vmatpush1.msra.mxu0 0.0
  %6300 = vmatprep.subr.mxu0 0.0
  %6301 = vmatpush1.msra.mxu0 0.0
  %6302 = vmatprep.subr.mxu0 0.0
  %6303 = vmatpush1.msra.mxu0 0.0
  %6304 = vmatprep.subr.mxu0 0.0
  %6305 = vmatpush1.msra.mxu0 0.0
  %6306 = vmatprep.subr.mxu0 0.0
  %6307 = vmatpush1.msra.mxu0 0.0
  %6308 = vmatprep.subr.mxu0 0.0
  %6309 = vmatpush1.msra.mxu0 0.0
  %6310 = vmatprep.subr.mxu0 0.0
  %6311 = vmatpush1.msra.mxu0 0.0
  %6312 = vmatprep.subr.mxu0 0.0
  %6313 = vmatpush1.msra.mxu0 0.0
  %6314 = vmatprep.subr.mxu0 0.0
  %6315 = vmatpush1.msra.mxu0 0.0
  %6316 = vmatprep.subr.mxu0 0.0
  %6317 = vmatpush1.msra.mxu0 0.0
  %6318 = vmatprep.subr.mxu0 0.0
  %6319 = vmatpush1.msra.mxu0 0.0
  %6320 = vmatprep.subr.mxu0 0.0
  %6321 = vmatpush1.msra.mxu0 0.0
  %6322 = vmatprep.subr.mxu0 0.0
  %6323 = vmatpush1.msra.mxu0 0.0
  %6324 = vmatprep.subr.mxu0 0.0
  %6325 = vmatpush1.msra.mxu0 0.0
  %6326 = vmatprep.subr.mxu0 0.0
  %6327 = vmatpush1.msra.mxu0 0.0
  %6328 = vmatprep.subr.mxu0 0.0
  %6329 = vmatpush1.msra.mxu0 0.0
  %6330 = vmatprep.subr.mxu0 0.0
  %6331 = vmatpush1.msra.mxu0 0.0
  %6332 = vmatprep.subr.mxu0 0.0
  %6333 = vmatpush1.msra.mxu0 0.0
  %6334 = vmatprep.subr.mxu0 0.0
  %6335 = vmatpush1.msra.mxu0 0.0
  %6336 = vmatprep.subr.mxu0 0.0
  %6337 = vmatpush1.msra.mxu0 0.0
  %6338 = vmatprep.subr.mxu0 0.0
  %6339 = vmatpush1.msra.mxu0 0.0
  %6340 = vmatprep.subr.mxu0 0.0
  %6341 = vmatpush1.msra.mxu0 0.0
  %6342 = vmatprep.subr.mxu0 0.0
  %6343 = vmatpush1.msra.mxu0 0.0
  %6344 = vmatprep.subr.mxu0 0.0
  %6345 = vmatpush1.msra.mxu0 0.0
  %6346 = vmatprep.subr.mxu0 0.0
  %6347 = vmatpush1.msra.mxu0 0.0
  %6348 = vmatprep.subr.mxu0 0.0
  %6349 = vmatpush1.msra.mxu0 0.0
  %6350 = vmatprep.subr.mxu0 0.0
  %6351 = vmatpush1.msra.mxu0 0.0
  %6352 = vmatprep.mubr.f32.mxu0 0.0
  %6353 = vmatmul.mubr.f32.gmra.mrb[0].mxu0 %v6138
  %v6354 = vpop.f32.mrb[0].mxu0
  %v6355 = vadd.f32 %v51, %v6354
  %v6356 = vpop.f32.mrb[0].mxu0
  %6357 = vdwg.mxu0
  %v6358 = vld [vmem:[%s5] sm:$0xff]
  %v6359 = vld [vmem:[%s5 + $0x8] sm:$0xff]
  %v6360 = vld [vmem:[%s5 + $0x10] sm:$0xff]
  %v6361 = vld [vmem:[%s5 + $0x18] sm:$0xff]
  %v6362 = vld [vmem:[%s6] sm:$0x1]
  %v6364 = vlaneseq
  %v6365 = vshrl.u32 %v6364, 7
  %v6366 = vsub.s32 0, %v6365
  %v6367 = vrot.slane %v6362, %v6366
  %6369 = vmatprep.subr.mxu0 0.0
  %6370 = vmatpush1.msra.mxu0 %v6358
  %6371 = vmatprep.subr.mxu0 0.0
  %6372 = vmatpush1.msra.mxu0 %v6359
  %6373 = vmatprep.subr.mxu0 0.0
  %6374 = vmatpush1.msra.mxu0 %v6360
  %6375 = vmatprep.subr.mxu0 0.0
  %6376 = vmatpush1.msra.mxu0 %v6361
  %6377 = vmatprep.subr.mxu0 0.0
  %6378 = vmatpush1.msra.mxu0 0.0
  %6379 = vmatprep.subr.mxu0 0.0
  %6380 = vmatpush1.msra.mxu0 0.0
  %6381 = vmatprep.subr.mxu0 0.0
  %6382 = vmatpush1.msra.mxu0 0.0
  %6383 = vmatprep.subr.mxu0 0.0
  %6384 = vmatpush1.msra.mxu0 0.0
  %6385 = vmatprep.subr.mxu0 0.0
  %6386 = vmatpush1.msra.mxu0 0.0
  %6387 = vmatprep.subr.mxu0 0.0
  %6388 = vmatpush1.msra.mxu0 0.0
  %6389 = vmatprep.subr.mxu0 0.0
  %6390 = vmatpush1.msra.mxu0 0.0
  %6391 = vmatprep.subr.mxu0 0.0
  %6392 = vmatpush1.msra.mxu0 0.0
  %6393 = vmatprep.subr.mxu0 0.0
  %6394 = vmatpush1.msra.mxu0 0.0
  %6395 = vmatprep.subr.mxu0 0.0
  %6396 = vmatpush1.msra.mxu0 0.0
  %6397 = vmatprep.subr.mxu0 0.0
  %6398 = vmatpush1.msra.mxu0 0.0
  %6399 = vmatprep.subr.mxu0 0.0
  %6400 = vmatpush1.msra.mxu0 0.0
  %6401 = vmatprep.subr.mxu0 0.0
  %6402 = vmatpush1.msra.mxu0 0.0
  %6403 = vmatprep.subr.mxu0 0.0
  %6404 = vmatpush1.msra.mxu0 0.0
  %6405 = vmatprep.subr.mxu0 0.0
  %6406 = vmatpush1.msra.mxu0 0.0
  %6407 = vmatprep.subr.mxu0 0.0
  %6408 = vmatpush1.msra.mxu0 0.0
  %6409 = vmatprep.subr.mxu0 0.0
  %6410 = vmatpush1.msra.mxu0 0.0
  %6411 = vmatprep.subr.mxu0 0.0
  %6412 = vmatpush1.msra.mxu0 0.0
  %6413 = vmatprep.subr.mxu0 0.0
  %6414 = vmatpush1.msra.mxu0 0.0
  %6415 = vmatprep.subr.mxu0 0.0
  %6416 = vmatpush1.msra.mxu0 0.0
  %6417 = vmatprep.subr.mxu0 0.0
  %6418 = vmatpush1.msra.mxu0 0.0
  %6419 = vmatprep.subr.mxu0 0.0
  %6420 = vmatpush1.msra.mxu0 0.0
  %6421 = vmatprep.subr.mxu0 0.0
  %6422 = vmatpush1.msra.mxu0 0.0
  %6423 = vmatprep.subr.mxu0 0.0
  %6424 = vmatpush1.msra.mxu0 0.0
  %6425 = vmatprep.subr.mxu0 0.0
  %6426 = vmatpush1.msra.mxu0 0.0
  %6427 = vmatprep.subr.mxu0 0.0
  %6428 = vmatpush1.msra.mxu0 0.0
  %6429 = vmatprep.subr.mxu0 0.0
  %6430 = vmatpush1.msra.mxu0 0.0
  %6431 = vmatprep.subr.mxu0 0.0
  %6432 = vmatpush1.msra.mxu0 0.0
  %6433 = vmatprep.mubr.f32.mxu0 0.0
  %6434 = vmatmul.mubr.f32.gmra.mrb[0].mxu0 %v5441
  %v6435 = vpop.f32.mrb[0].mxu0
  %v6436 = vadd.f32 %v6367, %v6435
  %v6437 = vpop.f32.mrb[0].mxu0
  %6438 = vdwg.mxu0
  %v6439 = vld [vmem:[%s452] sm:$0xff]
  %v6440 = vld [vmem:[%s452 + $0x8] sm:$0xff]
  %v6441 = vld [vmem:[%s452 + $0x10] sm:$0xff]
  %v6442 = vld [vmem:[%s452 + $0x18] sm:$0xff]
  %v6443 = vld [vmem:[%s457] sm:$0x1]
  %v6445 = vlaneseq
  %v6446 = vshrl.u32 %v6445, 7
  %v6447 = vsub.s32 0, %v6446
  %v6448 = vrot.slane %v6443, %v6447
  %6450 = vmatprep.subr.mxu0 0.0
  %6451 = vmatpush1.msra.mxu0 %v6439
  %6452 = vmatprep.subr.mxu0 0.0
  %6453 = vmatpush1.msra.mxu0 %v6440
  %6454 = vmatprep.subr.mxu0 0.0
  %6455 = vmatpush1.msra.mxu0 %v6441
  %6456 = vmatprep.subr.mxu0 0.0
  %6457 = vmatpush1.msra.mxu0 %v6442
  %6458 = vmatprep.subr.mxu0 0.0
  %6459 = vmatpush1.msra.mxu0 0.0
  %6460 = vmatprep.subr.mxu0 0.0
  %6461 = vmatpush1.msra.mxu0 0.0
  %6462 = vmatprep.subr.mxu0 0.0
  %6463 = vmatpush1.msra.mxu0 0.0
  %6464 = vmatprep.subr.mxu0 0.0
  %6465 = vmatpush1.msra.mxu0 0.0
  %6466 = vmatprep.subr.mxu0 0.0
  %6467 = vmatpush1.msra.mxu0 0.0
  %6468 = vmatprep.subr.mxu0 0.0
  %6469 = vmatpush1.msra.mxu0 0.0
  %6470 = vmatprep.subr.mxu0 0.0
  %6471 = vmatpush1.msra.mxu0 0.0
  %6472 = vmatprep.subr.mxu0 0.0
  %6473 = vmatpush1.msra.mxu0 0.0
  %6474 = vmatprep.subr.mxu0 0.0
  %6475 = vmatpush1.msra.mxu0 0.0
  %6476 = vmatprep.subr.mxu0 0.0
  %6477 = vmatpush1.msra.mxu0 0.0
  %6478 = vmatprep.subr.mxu0 0.0
  %6479 = vmatpush1.msra.mxu0 0.0
  %6480 = vmatprep.subr.mxu0 0.0
  %6481 = vmatpush1.msra.mxu0 0.0
  %6482 = vmatprep.subr.mxu0 0.0
  %6483 = vmatpush1.msra.mxu0 0.0
  %6484 = vmatprep.subr.mxu0 0.0
  %6485 = vmatpush1.msra.mxu0 0.0
  %6486 = vmatprep.subr.mxu0 0.0
  %6487 = vmatpush1.msra.mxu0 0.0
  %6488 = vmatprep.subr.mxu0 0.0
  %6489 = vmatpush1.msra.mxu0 0.0
  %6490 = vmatprep.subr.mxu0 0.0
  %6491 = vmatpush1.msra.mxu0 0.0
  %6492 = vmatprep.subr.mxu0 0.0
  %6493 = vmatpush1.msra.mxu0 0.0
  %6494 = vmatprep.subr.mxu0 0.0
  %6495 = vmatpush1.msra.mxu0 0.0
  %6496 = vmatprep.subr.mxu0 0.0
  %6497 = vmatpush1.msra.mxu0 0.0
  %6498 = vmatprep.subr.mxu0 0.0
  %6499 = vmatpush1.msra.mxu0 0.0
  %6500 = vmatprep.subr.mxu0 0.0
  %6501 = vmatpush1.msra.mxu0 0.0
  %6502 = vmatprep.subr.mxu0 0.0
  %6503 = vmatpush1.msra.mxu0 0.0
  %6504 = vmatprep.subr.mxu0 0.0
  %6505 = vmatpush1.msra.mxu0 0.0
  %6506 = vmatprep.subr.mxu0 0.0
  %6507 = vmatpush1.msra.mxu0 0.0
  %6508 = vmatprep.subr.mxu0 0.0
  %6509 = vmatpush1.msra.mxu0 0.0
  %6510 = vmatprep.subr.mxu0 0.0
  %6511 = vmatpush1.msra.mxu0 0.0
  %6512 = vmatprep.subr.mxu0 0.0
  %6513 = vmatpush1.msra.mxu0 0.0
  %6514 = vmatprep.mubr.f32.mxu0 0.0
  %6515 = vmatmul.mubr.f32.gmra.mrb[0].mxu0 %v5441
  %v6516 = vpop.f32.mrb[0].mxu0
  %v6517 = vadd.f32 %v6448, %v6516
  %v6518 = vpop.f32.mrb[0].mxu0
  %6519 = vdwg.mxu0
  %v6520 = vld [vmem:[%s535] sm:$0xff]
  %v6521 = vld [vmem:[%s535 + $0x8] sm:$0xff]
  %v6522 = vld [vmem:[%s535 + $0x10] sm:$0xff]
  %v6523 = vld [vmem:[%s535 + $0x18] sm:$0xff]
  %v6524 = vld [vmem:[%s540] sm:$0x1]
  %v6526 = vlaneseq
  %v6527 = vshrl.u32 %v6526, 7
  %v6528 = vsub.s32 0, %v6527
  %v6529 = vrot.slane %v6524, %v6528
  %6531 = vmatprep.subr.mxu0 0.0
  %6532 = vmatpush1.msra.mxu0 %v6520
  %6533 = vmatprep.subr.mxu0 0.0
  %6534 = vmatpush1.msra.mxu0 %v6521
  %6535 = vmatprep.subr.mxu0 0.0
  %6536 = vmatpush1.msra.mxu0 %v6522
  %6537 = vmatprep.subr.mxu0 0.0
  %6538 = vmatpush1.msra.mxu0 %v6523
  %6539 = vmatprep.subr.mxu0 0.0
  %6540 = vmatpush1.msra.mxu0 0.0
  %6541 = vmatprep.subr.mxu0 0.0
  %6542 = vmatpush1.msra.mxu0 0.0
  %6543 = vmatprep.subr.mxu0 0.0
  %6544 = vmatpush1.msra.mxu0 0.0
  %6545 = vmatprep.subr.mxu0 0.0
  %6546 = vmatpush1.msra.mxu0 0.0
  %6547 = vmatprep.subr.mxu0 0.0
  %6548 = vmatpush1.msra.mxu0 0.0
  %6549 = vmatprep.subr.mxu0 0.0
  %6550 = vmatpush1.msra.mxu0 0.0
  %6551 = vmatprep.subr.mxu0 0.0
  %6552 = vmatpush1.msra.mxu0 0.0
  %6553 = vmatprep.subr.mxu0 0.0
  %6554 = vmatpush1.msra.mxu0 0.0
  %6555 = vmatprep.subr.mxu0 0.0
  %6556 = vmatpush1.msra.mxu0 0.0
  %6557 = vmatprep.subr.mxu0 0.0
  %6558 = vmatpush1.msra.mxu0 0.0
  %6559 = vmatprep.subr.mxu0 0.0
  %6560 = vmatpush1.msra.mxu0 0.0
  %6561 = vmatprep.subr.mxu0 0.0
  %6562 = vmatpush1.msra.mxu0 0.0
  %6563 = vmatprep.subr.mxu0 0.0
  %6564 = vmatpush1.msra.mxu0 0.0
  %6565 = vmatprep.subr.mxu0 0.0
  %6566 = vmatpush1.msra.mxu0 0.0
  %6567 = vmatprep.subr.mxu0 0.0
  %6568 = vmatpush1.msra.mxu0 0.0
  %6569 = vmatprep.subr.mxu0 0.0
  %6570 = vmatpush1.msra.mxu0 0.0
  %6571 = vmatprep.subr.mxu0 0.0
  %6572 = vmatpush1.msra.mxu0 0.0
  %6573 = vmatprep.subr.mxu0 0.0
  %6574 = vmatpush1.msra.mxu0 0.0
  %6575 = vmatprep.subr.mxu0 0.0
  %6576 = vmatpush1.msra.mxu0 0.0
  %6577 = vmatprep.subr.mxu0 0.0
  %6578 = vmatpush1.msra.mxu0 0.0
  %6579 = vmatprep.subr.mxu0 0.0
  %6580 = vmatpush1.msra.mxu0 0.0
  %6581 = vmatprep.subr.mxu0 0.0
  %6582 = vmatpush1.msra.mxu0 0.0
  %6583 = vmatprep.subr.mxu0 0.0
  %6584 = vmatpush1.msra.mxu0 0.0
  %6585 = vmatprep.subr.mxu0 0.0
  %6586 = vmatpush1.msra.mxu0 0.0
  %6587 = vmatprep.subr.mxu0 0.0
  %6588 = vmatpush1.msra.mxu0 0.0
  %6589 = vmatprep.subr.mxu0 0.0
  %6590 = vmatpush1.msra.mxu0 0.0
  %6591 = vmatprep.subr.mxu0 0.0
  %6592 = vmatpush1.msra.mxu0 0.0
  %6593 = vmatprep.subr.mxu0 0.0
  %6594 = vmatpush1.msra.mxu0 0.0
  %6595 = vmatprep.mubr.f32.mxu0 0.0
  %6596 = vmatmul.mubr.f32.gmra.mrb[0].mxu0 %v5441
  %v6597 = vpop.f32.mrb[0].mxu0
  %v6598 = vadd.f32 %v6529, %v6597
  %v6599 = vpop.f32.mrb[0].mxu0
  %6600 = vdwg.mxu0
  %v6601 = vadd.f32 %v6207, %v6436
  %v6602 = vxor.u32 %v6601, 2147483648
  %v6603 = vmul.f32 %v6602, 1.442695
  %v6604 = vpow.pop %v6603
  %v6605 = vadd.f32 %v6604, 1.0
  %v6606 = vrcp.pop %v6605
  %v6607 = vmul.f32 1.0, %v6606
  %v6608 = vadd.f32 %v6281, %v6517
  %v6609 = vxor.u32 %v6608, 2147483648
  %v6610 = vmul.f32 %v6609, 1.442695
  %v6611 = vpow.pop %v6610
  %v6612 = vadd.f32 %v6611, 1.0
  %v6613 = vrcp.pop %v6612
  %v6614 = vmul.f32 1.0, %v6613
  %v6615 = vmul.f32 %v6607, %v6598
  %v6616 = vadd.f32 %v6355, %v6615
  %v6617 = vtanh.pop %v6616
  %v6618 = vsub.f32 1.0, %v6614
  %v6619 = vmul.f32 %v6618, %v6617
  %v6620 = vmul.f32 %v6614, %v5426
  %v6621 = vadd.f32 %v6619, %v6620
  %v6622 = vld [vmem:[%s8] sm:$0x1]
  %v6623 = vld [vmem:[%s640] sm:$0x1]
  %v6624 = vld [vmem:[%s642] sm:$0x1]
  %v6625 = vld [vmem:[%s7] sm:$0xff]
  %v6626 = vld [vmem:[%s7 + $0x8] sm:$0xff]
  %v6627 = vld [vmem:[%s7 + $0x10] sm:$0xff]
  %v6628 = vld [vmem:[%s7 + $0x18] sm:$0xff]
  %v6630 = vlaneseq
  %v6631 = vshrl.u32 %v6630, 7
  %v6632 = vsub.s32 0, %v6631
  %v6633 = vrot.slane %v6622, %v6632
  %v6636 = vsel %vm144, %v6621, 0
  %6638 = vmatprep.subr.mxu0 0.0
  %6639 = vmatpush1.msra.mxu0 %v6625
  %6640 = vmatprep.subr.mxu0 0.0
  %6641 = vmatpush1.msra.mxu0 %v6626
  %6642 = vmatprep.subr.mxu0 0.0
  %6643 = vmatpush1.msra.mxu0 %v6627
  %6644 = vmatprep.subr.mxu0 0.0
  %6645 = vmatpush1.msra.mxu0 %v6628
  %6646 = vmatprep.subr.mxu0 0.0
  %6647 = vmatpush1.msra.mxu0 0.0
  %6648 = vmatprep.subr.mxu0 0.0
  %6649 = vmatpush1.msra.mxu0 0.0
  %6650 = vmatprep.subr.mxu0 0.0
  %6651 = vmatpush1.msra.mxu0 0.0
  %6652 = vmatprep.subr.mxu0 0.0
  %6653 = vmatpush1.msra.mxu0 0.0
  %6654 = vmatprep.subr.mxu0 0.0
  %6655 = vmatpush1.msra.mxu0 0.0
  %6656 = vmatprep.subr.mxu0 0.0
  %6657 = vmatpush1.msra.mxu0 0.0
  %6658 = vmatprep.subr.mxu0 0.0
  %6659 = vmatpush1.msra.mxu0 0.0
  %6660 = vmatprep.subr.mxu0 0.0
  %6661 = vmatpush1.msra.mxu0 0.0
  %6662 = vmatprep.subr.mxu0 0.0
  %6663 = vmatpush1.msra.mxu0 0.0
  %6664 = vmatprep.subr.mxu0 0.0
  %6665 = vmatpush1.msra.mxu0 0.0
  %6666 = vmatprep.subr.mxu0 0.0
  %6667 = vmatpush1.msra.mxu0 0.0
  %6668 = vmatprep.subr.mxu0 0.0
  %6669 = vmatpush1.msra.mxu0 0.0
  %6670 = vmatprep.subr.mxu0 0.0
  %6671 = vmatpush1.msra.mxu0 0.0
  %6672 = vmatprep.subr.mxu0 0.0
  %6673 = vmatpush1.msra.mxu0 0.0
  %6674 = vmatprep.subr.mxu0 0.0
  %6675 = vmatpush1.msra.mxu0 0.0
  %6676 = vmatprep.subr.mxu0 0.0
  %6677 = vmatpush1.msra.mxu0 0.0
  %6678 = vmatprep.subr.mxu0 0.0
  %6679 = vmatpush1.msra.mxu0 0.0
  %6680 = vmatprep.subr.mxu0 0.0
  %6681 = vmatpush1.msra.mxu0 0.0
  %6682 = vmatprep.subr.mxu0 0.0
  %6683 = vmatpush1.msra.mxu0 0.0
  %6684 = vmatprep.subr.mxu0 0.0
  %6685 = vmatpush1.msra.mxu0 0.0
  %6686 = vmatprep.subr.mxu0 0.0
  %6687 = vmatpush1.msra.mxu0 0.0
  %6688 = vmatprep.subr.mxu0 0.0
  %6689 = vmatpush1.msra.mxu0 0.0
  %6690 = vmatprep.subr.mxu0 0.0
  %6691 = vmatpush1.msra.mxu0 0.0
  %6692 = vmatprep.subr.mxu0 0.0
  %6693 = vmatpush1.msra.mxu0 0.0
  %6694 = vmatprep.subr.mxu0 0.0
  %6695 = vmatpush1.msra.mxu0 0.0
  %6696 = vmatprep.subr.mxu0 0.0
  %6697 = vmatpush1.msra.mxu0 0.0
  %6698 = vmatprep.subr.mxu0 0.0
  %6699 = vmatpush1.msra.mxu0 0.0
  %6700 = vmatprep.subr.mxu0 0.0
  %6701 = vmatpush1.msra.mxu0 0.0
  %6702 = vmatprep.mubr.f32.mxu0 0.0
  %6703 = vmatmul.mubr.f32.gmra.mrb[0].mxu0 %v6636
  %v6704 = vpop.f32.mrb[0].mxu0
  %v6705 = vadd.f32 %v6633, %v6704
  %v6706 = vpop.f32.mrb[0].mxu0
  %6707 = vdwg.mxu0
  %v6708 = vld [vmem:[%s727] sm:$0xff]
  %v6709 = vld [vmem:[%s727 + $0x8] sm:$0xff]
  %v6710 = vld [vmem:[%s727 + $0x10] sm:$0xff]
  %v6711 = vld [vmem:[%s727 + $0x18] sm:$0xff]
  %v6713 = vlaneseq
  %v6714 = vshrl.u32 %v6713, 7
  %v6715 = vsub.s32 0, %v6714
  %v6716 = vrot.slane %v6623, %v6715
  %6718 = vmatprep.subr.mxu0 0.0
  %6719 = vmatpush1.msra.mxu0 %v6708
  %6720 = vmatprep.subr.mxu0 0.0
  %6721 = vmatpush1.msra.mxu0 %v6709
  %6722 = vmatprep.subr.mxu0 0.0
  %6723 = vmatpush1.msra.mxu0 %v6710
  %6724 = vmatprep.subr.mxu0 0.0
  %6725 = vmatpush1.msra.mxu0 %v6711
  %6726 = vmatprep.subr.mxu0 0.0
  %6727 = vmatpush1.msra.mxu0 0.0
  %6728 = vmatprep.subr.mxu0 0.0
  %6729 = vmatpush1.msra.mxu0 0.0
  %6730 = vmatprep.subr.mxu0 0.0
  %6731 = vmatpush1.msra.mxu0 0.0
  %6732 = vmatprep.subr.mxu0 0.0
  %6733 = vmatpush1.msra.mxu0 0.0
  %6734 = vmatprep.subr.mxu0 0.0
  %6735 = vmatpush1.msra.mxu0 0.0
  %6736 = vmatprep.subr.mxu0 0.0
  %6737 = vmatpush1.msra.mxu0 0.0
  %6738 = vmatprep.subr.mxu0 0.0
  %6739 = vmatpush1.msra.mxu0 0.0
  %6740 = vmatprep.subr.mxu0 0.0
  %6741 = vmatpush1.msra.mxu0 0.0
  %6742 = vmatprep.subr.mxu0 0.0
  %6743 = vmatpush1.msra.mxu0 0.0
  %6744 = vmatprep.subr.mxu0 0.0
  %6745 = vmatpush1.msra.mxu0 0.0
  %6746 = vmatprep.subr.mxu0 0.0
  %6747 = vmatpush1.msra.mxu0 0.0
  %6748 = vmatprep.subr.mxu0 0.0
  %6749 = vmatpush1.msra.mxu0 0.0
  %6750 = vmatprep.subr.mxu0 0.0
  %6751 = vmatpush1.msra.mxu0 0.0
  %6752 = vmatprep.subr.mxu0 0.0
  %6753 = vmatpush1.msra.mxu0 0.0
  %6754 = vmatprep.subr.mxu0 0.0
  %6755 = vmatpush1.msra.mxu0 0.0
  %6756 = vmatprep.subr.mxu0 0.0
  %6757 = vmatpush1.msra.mxu0 0.0
  %6758 = vmatprep.subr.mxu0 0.0
  %6759 = vmatpush1.msra.mxu0 0.0
  %6760 = vmatprep.subr.mxu0 0.0
  %6761 = vmatpush1.msra.mxu0 0.0
  %6762 = vmatprep.subr.mxu0 0.0
  %6763 = vmatpush1.msra.mxu0 0.0
  %6764 = vmatprep.subr.mxu0 0.0
  %6765 = vmatpush1.msra.mxu0 0.0
  %6766 = vmatprep.subr.mxu0 0.0
  %6767 = vmatpush1.msra.mxu0 0.0
  %6768 = vmatprep.subr.mxu0 0.0
  %6769 = vmatpush1.msra.mxu0 0.0
  %6770 = vmatprep.subr.mxu0 0.0
  %6771 = vmatpush1.msra.mxu0 0.0
  %6772 = vmatprep.subr.mxu0 0.0
  %6773 = vmatpush1.msra.mxu0 0.0
  %6774 = vmatprep.subr.mxu0 0.0
  %6775 = vmatpush1.msra.mxu0 0.0
  %6776 = vmatprep.subr.mxu0 0.0
  %6777 = vmatpush1.msra.mxu0 0.0
  %6778 = vmatprep.subr.mxu0 0.0
  %6779 = vmatpush1.msra.mxu0 0.0
  %6780 = vmatprep.subr.mxu0 0.0
  %6781 = vmatpush1.msra.mxu0 0.0
  %6782 = vmatprep.mubr.f32.mxu0 0.0
  %6783 = vmatmul.mubr.f32.gmra.mrb[0].mxu0 %v6636
  %v6784 = vpop.f32.mrb[0].mxu0
  %v6785 = vadd.f32 %v6716, %v6784
  %v6786 = vpop.f32.mrb[0].mxu0
  %6787 = vdwg.mxu0
  %v6788 = vld [vmem:[%s808] sm:$0xff]
  %v6789 = vld [vmem:[%s808 + $0x8] sm:$0xff]
  %v6790 = vld [vmem:[%s808 + $0x10] sm:$0xff]
  %v6791 = vld [vmem:[%s808 + $0x18] sm:$0xff]
  %v6793 = vlaneseq
  %v6794 = vshrl.u32 %v6793, 7
  %v6795 = vsub.s32 0, %v6794
  %v6796 = vrot.slane %v6624, %v6795
  %6798 = vmatprep.subr.mxu0 0.0
  %6799 = vmatpush1.msra.mxu0 %v6788
  %6800 = vmatprep.subr.mxu0 0.0
  %6801 = vmatpush1.msra.mxu0 %v6789
  %6802 = vmatprep.subr.mxu0 0.0
  %6803 = vmatpush1.msra.mxu0 %v6790
  %6804 = vmatprep.subr.mxu0 0.0
  %6805 = vmatpush1.msra.mxu0 %v6791
  %6806 = vmatprep.subr.mxu0 0.0
  %6807 = vmatpush1.msra.mxu0 0.0
  %6808 = vmatprep.subr.mxu0 0.0
  %6809 = vmatpush1.msra.mxu0 0.0
  %6810 = vmatprep.subr.mxu0 0.0
  %6811 = vmatpush1.msra.mxu0 0.0
  %6812 = vmatprep.subr.mxu0 0.0
  %6813 = vmatpush1.msra.mxu0 0.0
  %6814 = vmatprep.subr.mxu0 0.0
  %6815 = vmatpush1.msra.mxu0 0.0
  %6816 = vmatprep.subr.mxu0 0.0
  %6817 = vmatpush1.msra.mxu0 0.0
  %6818 = vmatprep.subr.mxu0 0.0
  %6819 = vmatpush1.msra.mxu0 0.0
  %6820 = vmatprep.subr.mxu0 0.0
  %6821 = vmatpush1.msra.mxu0 0.0
  %6822 = vmatprep.subr.mxu0 0.0
  %6823 = vmatpush1.msra.mxu0 0.0
  %6824 = vmatprep.subr.mxu0 0.0
  %6825 = vmatpush1.msra.mxu0 0.0
  %6826 = vmatprep.subr.mxu0 0.0
  %6827 = vmatpush1.msra.mxu0 0.0
  %6828 = vmatprep.subr.mxu0 0.0
  %6829 = vmatpush1.msra.mxu0 0.0
  %6830 = vmatprep.subr.mxu0 0.0
  %6831 = vmatpush1.msra.mxu0 0.0
  %6832 = vmatprep.subr.mxu0 0.0
  %6833 = vmatpush1.msra.mxu0 0.0
  %6834 = vmatprep.subr.mxu0 0.0
  %6835 = vmatpush1.msra.mxu0 0.0
  %6836 = vmatprep.subr.mxu0 0.0
  %6837 = vmatpush1.msra.mxu0 0.0
  %6838 = vmatprep.subr.mxu0 0.0
  %6839 = vmatpush1.msra.mxu0 0.0
  %6840 = vmatprep.subr.mxu0 0.0
  %6841 = vmatpush1.msra.mxu0 0.0
  %6842 = vmatprep.subr.mxu0 0.0
  %6843 = vmatpush1.msra.mxu0 0.0
  %6844 = vmatprep.subr.mxu0 0.0
  %6845 = vmatpush1.msra.mxu0 0.0
  %6846 = vmatprep.subr.mxu0 0.0
  %6847 = vmatpush1.msra.mxu0 0.0
  %6848 = vmatprep.subr.mxu0 0.0
  %6849 = vmatpush1.msra.mxu0 0.0
  %6850 = vmatprep.subr.mxu0 0.0
  %6851 = vmatpush1.msra.mxu0 0.0
  %6852 = vmatprep.subr.mxu0 0.0
  %6853 = vmatpush1.msra.mxu0 0.0
  %6854 = vmatprep.subr.mxu0 0.0
  %6855 = vmatpush1.msra.mxu0 0.0
  %6856 = vmatprep.subr.mxu0 0.0
  %6857 = vmatpush1.msra.mxu0 0.0
  %6858 = vmatprep.subr.mxu0 0.0
  %6859 = vmatpush1.msra.mxu0 0.0
  %6860 = vmatprep.subr.mxu0 0.0
  %6861 = vmatpush1.msra.mxu0 0.0
  %6862 = vmatprep.mubr.f32.mxu0 0.0
  %6863 = vmatmul.mubr.f32.gmra.mrb[0].mxu0 %v6636
  %v6864 = vpop.f32.mrb[0].mxu0
  %v6865 = vadd.f32 %v6796, %v6864
  %v6866 = vpop.f32.mrb[0].mxu0
  %6867 = vdwg.mxu0
  %v6868 = vld [vmem:[%s9] sm:$0xff]
  %v6869 = vld [vmem:[%s9 + $0x8] sm:$0xff]
  %v6870 = vld [vmem:[%s9 + $0x10] sm:$0xff]
  %v6871 = vld [vmem:[%s9 + $0x18] sm:$0xff]
  %v6872 = vld [vmem:[%s10] sm:$0x1]
  %v6874 = vlaneseq
  %v6875 = vshrl.u32 %v6874, 7
  %v6876 = vsub.s32 0, %v6875
  %v6877 = vrot.slane %v6872, %v6876
  %6879 = vmatprep.subr.mxu0 0.0
  %6880 = vmatpush1.msra.mxu0 %v6868
  %6881 = vmatprep.subr.mxu0 0.0
  %6882 = vmatpush1.msra.mxu0 %v6869
  %6883 = vmatprep.subr.mxu0 0.0
  %6884 = vmatpush1.msra.mxu0 %v6870
  %6885 = vmatprep.subr.mxu0 0.0
  %6886 = vmatpush1.msra.mxu0 %v6871
  %6887 = vmatprep.subr.mxu0 0.0
  %6888 = vmatpush1.msra.mxu0 0.0
  %6889 = vmatprep.subr.mxu0 0.0
  %6890 = vmatpush1.msra.mxu0 0.0
  %6891 = vmatprep.subr.mxu0 0.0
  %6892 = vmatpush1.msra.mxu0 0.0
  %6893 = vmatprep.subr.mxu0 0.0
  %6894 = vmatpush1.msra.mxu0 0.0
  %6895 = vmatprep.subr.mxu0 0.0
  %6896 = vmatpush1.msra.mxu0 0.0
  %6897 = vmatprep.subr.mxu0 0.0
  %6898 = vmatpush1.msra.mxu0 0.0
  %6899 = vmatprep.subr.mxu0 0.0
  %6900 = vmatpush1.msra.mxu0 0.0
  %6901 = vmatprep.subr.mxu0 0.0
  %6902 = vmatpush1.msra.mxu0 0.0
  %6903 = vmatprep.subr.mxu0 0.0
  %6904 = vmatpush1.msra.mxu0 0.0
  %6905 = vmatprep.subr.mxu0 0.0
  %6906 = vmatpush1.msra.mxu0 0.0
  %6907 = vmatprep.subr.mxu0 0.0
  %6908 = vmatpush1.msra.mxu0 0.0
  %6909 = vmatprep.subr.mxu0 0.0
  %6910 = vmatpush1.msra.mxu0 0.0
  %6911 = vmatprep.subr.mxu0 0.0
  %6912 = vmatpush1.msra.mxu0 0.0
  %6913 = vmatprep.subr.mxu0 0.0
  %6914 = vmatpush1.msra.mxu0 0.0
  %6915 = vmatprep.subr.mxu0 0.0
  %6916 = vmatpush1.msra.mxu0 0.0
  %6917 = vmatprep.subr.mxu0 0.0
  %6918 = vmatpush1.msra.mxu0 0.0
  %6919 = vmatprep.subr.mxu0 0.0
  %6920 = vmatpush1.msra.mxu0 0.0
  %6921 = vmatprep.subr.mxu0 0.0
  %6922 = vmatpush1.msra.mxu0 0.0
  %6923 = vmatprep.subr.mxu0 0.0
  %6924 = vmatpush1.msra.mxu0 0.0
  %6925 = vmatprep.subr.mxu0 0.0
  %6926 = vmatpush1.msra.mxu0 0.0
  %6927 = vmatprep.subr.mxu0 0.0
  %6928 = vmatpush1.msra.mxu0 0.0
  %6929 = vmatprep.subr.mxu0 0.0
  %6930 = vmatpush1.msra.mxu0 0.0
  %6931 = vmatprep.subr.mxu0 0.0
  %6932 = vmatpush1.msra.mxu0 0.0
  %6933 = vmatprep.subr.mxu0 0.0
  %6934 = vmatpush1.msra.mxu0 0.0
  %6935 = vmatprep.subr.mxu0 0.0
  %6936 = vmatpush1.msra.mxu0 0.0
  %6937 = vmatprep.subr.mxu0 0.0
  %6938 = vmatpush1.msra.mxu0 0.0
  %6939 = vmatprep.subr.mxu0 0.0
  %6940 = vmatpush1.msra.mxu0 0.0
  %6941 = vmatprep.subr.mxu0 0.0
  %6942 = vmatpush1.msra.mxu0 0.0
  %6943 = vmatprep.mubr.f32.mxu0 0.0
  %6944 = vmatmul.mubr.f32.gmra.mrb[0].mxu0 %v5942
  %v6945 = vpop.f32.mrb[0].mxu0
  %v6946 = vadd.f32 %v6877, %v6945
  %v6947 = vpop.f32.mrb[0].mxu0
  %6948 = vdwg.mxu0
  %v6949 = vld [vmem:[%s970] sm:$0xff]
  %v6950 = vld [vmem:[%s970 + $0x8] sm:$0xff]
  %v6951 = vld [vmem:[%s970 + $0x10] sm:$0xff]
  %v6952 = vld [vmem:[%s970 + $0x18] sm:$0xff]
  %v6953 = vld [vmem:[%s975] sm:$0x1]
  %v6955 = vlaneseq
  %v6956 = vshrl.u32 %v6955, 7
  %v6957 = vsub.s32 0, %v6956
  %v6958 = vrot.slane %v6953, %v6957
  %6960 = vmatprep.subr.mxu0 0.0
  %6961 = vmatpush1.msra.mxu0 %v6949
  %6962 = vmatprep.subr.mxu0 0.0
  %6963 = vmatpush1.msra.mxu0 %v6950
  %6964 = vmatprep.subr.mxu0 0.0
  %6965 = vmatpush1.msra.mxu0 %v6951
  %6966 = vmatprep.subr.mxu0 0.0
  %6967 = vmatpush1.msra.mxu0 %v6952
  %6968 = vmatprep.subr.mxu0 0.0
  %6969 = vmatpush1.msra.mxu0 0.0
  %6970 = vmatprep.subr.mxu0 0.0
  %6971 = vmatpush1.msra.mxu0 0.0
  %6972 = vmatprep.subr.mxu0 0.0
  %6973 = vmatpush1.msra.mxu0 0.0
  %6974 = vmatprep.subr.mxu0 0.0
  %6975 = vmatpush1.msra.mxu0 0.0
  %6976 = vmatprep.subr.mxu0 0.0
  %6977 = vmatpush1.msra.mxu0 0.0
  %6978 = vmatprep.subr.mxu0 0.0
  %6979 = vmatpush1.msra.mxu0 0.0
  %6980 = vmatprep.subr.mxu0 0.0
  %6981 = vmatpush1.msra.mxu0 0.0
  %6982 = vmatprep.subr.mxu0 0.0
  %6983 = vmatpush1.msra.mxu0 0.0
  %6984 = vmatprep.subr.mxu0 0.0
  %6985 = vmatpush1.msra.mxu0 0.0
  %6986 = vmatprep.subr.mxu0 0.0
  %6987 = vmatpush1.msra.mxu0 0.0
  %6988 = vmatprep.subr.mxu0 0.0
  %6989 = vmatpush1.msra.mxu0 0.0
  %6990 = vmatprep.subr.mxu0 0.0
  %6991 = vmatpush1.msra.mxu0 0.0
  %6992 = vmatprep.subr.mxu0 0.0
  %6993 = vmatpush1.msra.mxu0 0.0
  %6994 = vmatprep.subr.mxu0 0.0
  %6995 = vmatpush1.msra.mxu0 0.0
  %6996 = vmatprep.subr.mxu0 0.0
  %6997 = vmatpush1.msra.mxu0 0.0
  %6998 = vmatprep.subr.mxu0 0.0
  %6999 = vmatpush1.msra.mxu0 0.0
  %7000 = vmatprep.subr.mxu0 0.0
  %7001 = vmatpush1.msra.mxu0 0.0
  %7002 = vmatprep.subr.mxu0 0.0
  %7003 = vmatpush1.msra.mxu0 0.0
  %7004 = vmatprep.subr.mxu0 0.0
  %7005 = vmatpush1.msra.mxu0 0.0
  %7006 = vmatprep.subr.mxu0 0.0
  %7007 = vmatpush1.msra.mxu0 0.0
  %7008 = vmatprep.subr.mxu0 0.0
  %7009 = vmatpush1.msra.mxu0 0.0
  %7010 = vmatprep.subr.mxu0 0.0
  %7011 = vmatpush1.msra.mxu0 0.0
  %7012 = vmatprep.subr.mxu0 0.0
  %7013 = vmatpush1.msra.mxu0 0.0
  %7014 = vmatprep.subr.mxu0 0.0
  %7015 = vmatpush1.msra.mxu0 0.0
  %7016 = vmatprep.subr.mxu0 0.0
  %7017 = vmatpush1.msra.mxu0 0.0
  %7018 = vmatprep.subr.mxu0 0.0
  %7019 = vmatpush1.msra.mxu0 0.0
  %7020 = vmatprep.subr.mxu0 0.0
  %7021 = vmatpush1.msra.mxu0 0.0
  %7022 = vmatprep.subr.mxu0 0.0
  %7023 = vmatpush1.msra.mxu0 0.0
  %7024 = vmatprep.mubr.f32.mxu0 0.0
  %7025 = vmatmul.mubr.f32.gmra.mrb[0].mxu0 %v5942
  %v7026 = vpop.f32.mrb[0].mxu0
  %v7027 = vadd.f32 %v6958, %v7026
  %v7028 = vpop.f32.mrb[0].mxu0
  %7029 = vdwg.mxu0
  %v7030 = vld [vmem:[%s1053] sm:$0xff]
  %v7031 = vld [vmem:[%s1053 + $0x8] sm:$0xff]
  %v7032 = vld [vmem:[%s1053 + $0x10] sm:$0xff]
  %v7033 = vld [vmem:[%s1053 + $0x18] sm:$0xff]
  %v7034 = vld [vmem:[%s1058] sm:$0x1]
  %v7036 = vlaneseq
  %v7037 = vshrl.u32 %v7036, 7
  %v7038 = vsub.s32 0, %v7037
  %v7039 = vrot.slane %v7034, %v7038
  %7041 = vmatprep.subr.mxu0 0.0
  %7042 = vmatpush1.msra.mxu0 %v7030
  %7043 = vmatprep.subr.mxu0 0.0
  %7044 = vmatpush1.msra.mxu0 %v7031
  %7045 = vmatprep.subr.mxu0 0.0
  %7046 = vmatpush1.msra.mxu0 %v7032
  %7047 = vmatprep.subr.mxu0 0.0
  %7048 = vmatpush1.msra.mxu0 %v7033
  %7049 = vmatprep.subr.mxu0 0.0
  %7050 = vmatpush1.msra.mxu0 0.0
  %7051 = vmatprep.subr.mxu0 0.0
  %7052 = vmatpush1.msra.mxu0 0.0
  %7053 = vmatprep.subr.mxu0 0.0
  %7054 = vmatpush1.msra.mxu0 0.0
  %7055 = vmatprep.subr.mxu0 0.0
  %7056 = vmatpush1.msra.mxu0 0.0
  %7057 = vmatprep.subr.mxu0 0.0
  %7058 = vmatpush1.msra.mxu0 0.0
  %7059 = vmatprep.subr.mxu0 0.0
  %7060 = vmatpush1.msra.mxu0 0.0
  %7061 = vmatprep.subr.mxu0 0.0
  %7062 = vmatpush1.msra.mxu0 0.0
  %7063 = vmatprep.subr.mxu0 0.0
  %7064 = vmatpush1.msra.mxu0 0.0
  %7065 = vmatprep.subr.mxu0 0.0
  %7066 = vmatpush1.msra.mxu0 0.0
  %7067 = vmatprep.subr.mxu0 0.0
  %7068 = vmatpush1.msra.mxu0 0.0
  %7069 = vmatprep.subr.mxu0 0.0
  %7070 = vmatpush1.msra.mxu0 0.0
  %7071 = vmatprep.subr.mxu0 0.0
  %7072 = vmatpush1.msra.mxu0 0.0
  %7073 = vmatprep.subr.mxu0 0.0
  %7074 = vmatpush1.msra.mxu0 0.0
  %7075 = vmatprep.subr.mxu0 0.0
  %7076 = vmatpush1.msra.mxu0 0.0
  %7077 = vmatprep.subr.mxu0 0.0
  %7078 = vmatpush1.msra.mxu0 0.0
  %7079 = vmatprep.subr.mxu0 0.0
  %7080 = vmatpush1.msra.mxu0 0.0
  %7081 = vmatprep.subr.mxu0 0.0
  %7082 = vmatpush1.msra.mxu0 0.0
  %7083 = vmatprep.subr.mxu0 0.0
  %7084 = vmatpush1.msra.mxu0 0.0
  %7085 = vmatprep.subr.mxu0 0.0
  %7086 = vmatpush1.msra.mxu0 0.0
  %7087 = vmatprep.subr.mxu0 0.0
  %7088 = vmatpush1.msra.mxu0 0.0
  %7089 = vmatprep.subr.mxu0 0.0
  %7090 = vmatpush1.msra.mxu0 0.0
  %7091 = vmatprep.subr.mxu0 0.0
  %7092 = vmatpush1.msra.mxu0 0.0
  %7093 = vmatprep.subr.mxu0 0.0
  %7094 = vmatpush1.msra.mxu0 0.0
  %7095 = vmatprep.subr.mxu0 0.0
  %7096 = vmatpush1.msra.mxu0 0.0
  %7097 = vmatprep.subr.mxu0 0.0
  %7098 = vmatpush1.msra.mxu0 0.0
  %7099 = vmatprep.subr.mxu0 0.0
  %7100 = vmatpush1.msra.mxu0 0.0
  %7101 = vmatprep.subr.mxu0 0.0
  %7102 = vmatpush1.msra.mxu0 0.0
  %7103 = vmatprep.subr.mxu0 0.0
  %7104 = vmatpush1.msra.mxu0 0.0
  %7105 = vmatprep.mubr.f32.mxu0 0.0
  %7106 = vmatmul.mubr.f32.gmra.mrb[0].mxu0 %v5942
  %v7107 = vpop.f32.mrb[0].mxu0
  %v7108 = vadd.f32 %v7039, %v7107
  %v7109 = vpop.f32.mrb[0].mxu0
  %7110 = vdwg.mxu0
  %v7111 = vadd.f32 %v6705, %v6946
  %v7112 = vxor.u32 %v7111, 2147483648
  %v7113 = vmul.f32 %v7112, 1.442695
  %v7114 = vpow.pop %v7113
  %v7115 = vadd.f32 %v7114, 1.0
  %v7116 = vrcp.pop %v7115
  %v7117 = vmul.f32 1.0, %v7116
  %v7118 = vadd.f32 %v6785, %v7027
  %v7119 = vxor.u32 %v7118, 2147483648
  %v7120 = vmul.f32 %v7119, 1.442695
  %v7121 = vpow.pop %v7120
  %v7122 = vadd.f32 %v7121, 1.0
  %v7123 = vrcp.pop %v7122
  %v7124 = vmul.f32 1.0, %v7123
  %v7125 = vmul.f32 %v7117, %v7108
  %v7126 = vadd.f32 %v6865, %v7125
  %v7127 = vtanh.pop %v7126
  %v7128 = vsub.f32 1.0, %v7124
  %v7129 = vmul.f32 %v7128, %v7127
  %v7130 = vmul.f32 %v7124, %v5936
  %v7131 = vadd.f32 %v7129, %v7130
  %v7132 = vld [vmem:[%s11] sm:$0xff]
  %v7133 = vld [vmem:[%s11 + $0x8] sm:$0xff]
  %v7134 = vld [vmem:[%s11 + $0x10] sm:$0xff]
  %v7135 = vld [vmem:[%s11 + $0x18] sm:$0xff]
  %v7137 = vsel %vm144, %v7131, 0
  %7139 = vmatprep.subr.mxu0 0.0
  %7140 = vmatpush1.msra.mxu0 %v7132
  %7141 = vmatprep.subr.mxu0 0.0
  %7142 = vmatpush1.msra.mxu0 %v7133
  %7143 = vmatprep.subr.mxu0 0.0
  %7144 = vmatpush1.msra.mxu0 %v7134
  %7145 = vmatprep.subr.mxu0 0.0
  %7146 = vmatpush1.msra.mxu0 %v7135
  %7147 = vmatprep.subr.mxu0 0.0
  %7148 = vmatpush1.msra.mxu0 0.0
  %7149 = vmatprep.subr.mxu0 0.0
  %7150 = vmatpush1.msra.mxu0 0.0
  %7151 = vmatprep.subr.mxu0 0.0
  %7152 = vmatpush1.msra.mxu0 0.0
  %7153 = vmatprep.subr.mxu0 0.0
  %7154 = vmatpush1.msra.mxu0 0.0
  %7155 = vmatprep.subr.mxu0 0.0
  %7156 = vmatpush1.msra.mxu0 0.0
  %7157 = vmatprep.subr.mxu0 0.0
  %7158 = vmatpush1.msra.mxu0 0.0
  %7159 = vmatprep.subr.mxu0 0.0
  %7160 = vmatpush1.msra.mxu0 0.0
  %7161 = vmatprep.subr.mxu0 0.0
  %7162 = vmatpush1.msra.mxu0 0.0
  %7163 = vmatprep.subr.mxu0 0.0
  %7164 = vmatpush1.msra.mxu0 0.0
  %7165 = vmatprep.subr.mxu0 0.0
  %7166 = vmatpush1.msra.mxu0 0.0
  %7167 = vmatprep.subr.mxu0 0.0
  %7168 = vmatpush1.msra.mxu0 0.0
  %7169 = vmatprep.subr.mxu0 0.0
  %7170 = vmatpush1.msra.mxu0 0.0
  %7171 = vmatprep.subr.mxu0 0.0
  %7172 = vmatpush1.msra.mxu0 0.0
  %7173 = vmatprep.subr.mxu0 0.0
  %7174 = vmatpush1.msra.mxu0 0.0
  %7175 = vmatprep.subr.mxu0 0.0
  %7176 = vmatpush1.msra.mxu0 0.0
  %7177 = vmatprep.subr.mxu0 0.0
  %7178 = vmatpush1.msra.mxu0 0.0
  %7179 = vmatprep.subr.mxu0 0.0
  %7180 = vmatpush1.msra.mxu0 0.0
  %7181 = vmatprep.subr.mxu0 0.0
  %7182 = vmatpush1.msra.mxu0 0.0
  %7183 = vmatprep.subr.mxu0 0.0
  %7184 = vmatpush1.msra.mxu0 0.0
  %7185 = vmatprep.subr.mxu0 0.0
  %7186 = vmatpush1.msra.mxu0 0.0
  %7187 = vmatprep.subr.mxu0 0.0
  %7188 = vmatpush1.msra.mxu0 0.0
  %7189 = vmatprep.subr.mxu0 0.0
  %7190 = vmatpush1.msra.mxu0 0.0
  %7191 = vmatprep.subr.mxu0 0.0
  %7192 = vmatpush1.msra.mxu0 0.0
  %7193 = vmatprep.subr.mxu0 0.0
  %7194 = vmatpush1.msra.mxu0 0.0
  %7195 = vmatprep.subr.mxu0 0.0
  %7196 = vmatpush1.msra.mxu0 0.0
  %7197 = vmatprep.subr.mxu0 0.0
  %7198 = vmatpush1.msra.mxu0 0.0
  %7199 = vmatprep.subr.mxu0 0.0
  %7200 = vmatpush1.msra.mxu0 0.0
  %7201 = vmatprep.subr.mxu0 0.0
  %7202 = vmatpush1.msra.mxu0 0.0
  %7203 = vmatprep.mubr.f32.mxu0 0.0
  %7204 = vmatmul.mubr.f32.gmra.mrb[0].mxu0 %v7137
  %v7205 = vpop.f32.mrb[0].mxu0
  %v7206 = vadd.f32 %v52, %v7205
  %v7207 = vpop.f32.mrb[0].mxu0
  %7208 = vdwg.mxu0
  %v7209 = vsel %vm1234, %v7206, -inf
  %7210 = vmax.xlane.f32.xlu0 %v7209
  %v7211 = vpop.xlane.xlu0 %7210
  %v7212 = vsub.f32 %v7206, %v7211
  %v7213 = vmul.f32 %v7212, 1.442695
  %v7214 = vpow.pop %v7213
  %v7215 = vsel %vm1234, %v7214, 0.0
  %7216 = vadd.xlane.f32.xlu0 %v7215
  %v7217 = vpop.xlane.xlu0 %7216
  %v7218 = vlog2.pop %v7217
  %v7219 = vmul.f32 %v7218, 0.6931472
  %v7220 = vsub.f32 %v7212, %v7219
  %s7221 = scalar_lea.vmem %s12, 20
  %7222 = vst.msk [vmem:[%s7221] sm:$0xf] %vm1234, %v7220
  %vm7223 = vcmp.eq.f32.partialorder %v7206, %v7211
  %v7224 = vsel %vm7223, %v43, 10
  %v7225 = vsel %vm1234, %v7224, 2147483647
  %v7226 = vand.u32 %v7225, 65535
  %v7227 = vshra.s32 %v7225, 16
  %v7228 = vcvt.s32.f32 %v7226
  %v7229 = vcvt.s32.f32 %v7227
  %7230 = vmin.xlane.f32.xlu0 %v7229
  %v7231 = vpop.xlane.xlu0 %7230
  %vm7232 = vcmp.eq.f32.partialorder %v7229, %v7231
  %v7233 = vsel %vm7232, %v7228, inf
  %7234 = vmin.xlane.f32.xlu0 %v7233
  %v7235 = vpop.xlane.xlu0 %7234
  %v7236 = vcvt.f32.s32 %v7235
  %v7237 = vcvt.f32.s32 %v7231
  %v7238 = vshll.u32 %v7237, 16
  %v7239 = vadd.s32 %v7238, %v7236
  %vm7240 = vcmp.eq.s32.totalorder %v43, %v7239
  %v7241 = vsel %vm7240, 1, 0
  %v7242 = vcvt.s32.f32 %v7241
  %v7243 = vld [vmem:[%s3] sm:$0xff]
  %v7244 = vld [vmem:[%s3 + $0x8] sm:$0x3]
  %v7246 = vsel %vm55, %v7242, 0
  %v7249 = vsel %vm59, %v7244, 0
  %7251 = vmatprep.subr.mxu0 0.0
  %7252 = vmatpush1.msra.mxu0 %v7243
  %7253 = vmatprep.subr.mxu0 0.0
  %7254 = vmatpush1.msra.mxu0 %v7249
  %7255 = vmatprep.subr.mxu0 0.0
  %7256 = vmatpush1.msra.mxu0 0.0
  %7257 = vmatprep.subr.mxu0 0.0
  %7258 = vmatpush1.msra.mxu0 0.0
  %7259 = vmatprep.subr.mxu0 0.0
  %7260 = vmatpush1.msra.mxu0 0.0
  %7261 = vmatprep.subr.mxu0 0.0
  %7262 = vmatpush1.msra.mxu0 0.0
  %7263 = vmatprep.subr.mxu0 0.0
  %7264 = vmatpush1.msra.mxu0 0.0
  %7265 = vmatprep.subr.mxu0 0.0
  %7266 = vmatpush1.msra.mxu0 0.0
  %7267 = vmatprep.subr.mxu0 0.0
  %7268 = vmatpush1.msra.mxu0 0.0
  %7269 = vmatprep.subr.mxu0 0.0
  %7270 = vmatpush1.msra.mxu0 0.0
  %7271 = vmatprep.subr.mxu0 0.0
  %7272 = vmatpush1.msra.mxu0 0.0
  %7273 = vmatprep.subr.mxu0 0.0
  %7274 = vmatpush1.msra.mxu0 0.0
  %7275 = vmatprep.subr.mxu0 0.0
  %7276 = vmatpush1.msra.mxu0 0.0
  %7277 = vmatprep.subr.mxu0 0.0
  %7278 = vmatpush1.msra.mxu0 0.0
  %7279 = vmatprep.subr.mxu0 0.0
  %7280 = vmatpush1.msra.mxu0 0.0
  %7281 = vmatprep.subr.mxu0 0.0
  %7282 = vmatpush1.msra.mxu0 0.0
  %7283 = vmatprep.subr.mxu0 0.0
  %7284 = vmatpush1.msra.mxu0 0.0
  %7285 = vmatprep.subr.mxu0 0.0
  %7286 = vmatpush1.msra.mxu0 0.0
  %7287 = vmatprep.subr.mxu0 0.0
  %7288 = vmatpush1.msra.mxu0 0.0
  %7289 = vmatprep.subr.mxu0 0.0
  %7290 = vmatpush1.msra.mxu0 0.0
  %7291 = vmatprep.subr.mxu0 0.0
  %7292 = vmatpush1.msra.mxu0 0.0
  %7293 = vmatprep.subr.mxu0 0.0
  %7294 = vmatpush1.msra.mxu0 0.0
  %7295 = vmatprep.subr.mxu0 0.0
  %7296 = vmatpush1.msra.mxu0 0.0
  %7297 = vmatprep.subr.mxu0 0.0
  %7298 = vmatpush1.msra.mxu0 0.0
  %7299 = vmatprep.subr.mxu0 0.0
  %7300 = vmatpush1.msra.mxu0 0.0
  %7301 = vmatprep.subr.mxu0 0.0
  %7302 = vmatpush1.msra.mxu0 0.0
  %7303 = vmatprep.subr.mxu0 0.0
  %7304 = vmatpush1.msra.mxu0 0.0
  %7305 = vmatprep.subr.mxu0 0.0
  %7306 = vmatpush1.msra.mxu0 0.0
  %7307 = vmatprep.subr.mxu0 0.0
  %7308 = vmatpush1.msra.mxu0 0.0
  %7309 = vmatprep.subr.mxu0 0.0
  %7310 = vmatpush1.msra.mxu0 0.0
  %7311 = vmatprep.subr.mxu0 0.0
  %7312 = vmatpush1.msra.mxu0 0.0
  %7313 = vmatprep.subr.mxu0 0.0
  %7314 = vmatpush1.msra.mxu0 0.0
  %7315 = vmatprep.mubr.f32.mxu0 0.0
  %7316 = vmatmul.mubr.f32.gmra.mrb[0].mxu0 %v7246
  %v7317 = vpop.f32.mrb[0].mxu0
  %v7318 = vadd.f32 0.0, %v7317
  %v7319 = vpop.f32.mrb[0].mxu0
  %7320 = vdwg.mxu0
  %v7321 = vxor.u32 %v7318, 2147483648
  %v7322 = vmul.f32 %v7321, 1.442695
  %v7323 = vpow.pop %v7322
  %v7324 = vadd.f32 %v7323, 1.0
  %v7325 = vrcp.pop %v7324
  %v7326 = vmul.f32 1.0, %v7325
  %v7327 = vmul.f32 %v7318, %v7326
  %v7328 = vld [vmem:[%s4] sm:$0xff]
  %v7329 = vld [vmem:[%s4 + $0x8] sm:$0xff]
  %v7330 = vld [vmem:[%s4 + $0x10] sm:$0xff]
  %v7331 = vld [vmem:[%s4 + $0x18] sm:$0xff]
  %v7333 = vsel %vm144, %v7327, 0
  %7335 = vmatprep.subr.mxu0 0.0
  %7336 = vmatpush1.msra.mxu0 %v7328
  %7337 = vmatprep.subr.mxu0 0.0
  %7338 = vmatpush1.msra.mxu0 %v7329
  %7339 = vmatprep.subr.mxu0 0.0
  %7340 = vmatpush1.msra.mxu0 %v7330
  %7341 = vmatprep.subr.mxu0 0.0
  %7342 = vmatpush1.msra.mxu0 %v7331
  %7343 = vmatprep.subr.mxu0 0.0
  %7344 = vmatpush1.msra.mxu0 0.0
  %7345 = vmatprep.subr.mxu0 0.0
  %7346 = vmatpush1.msra.mxu0 0.0
  %7347 = vmatprep.subr.mxu0 0.0
  %7348 = vmatpush1.msra.mxu0 0.0
  %7349 = vmatprep.subr.mxu0 0.0
  %7350 = vmatpush1.msra.mxu0 0.0
  %7351 = vmatprep.subr.mxu0 0.0
  %7352 = vmatpush1.msra.mxu0 0.0
  %7353 = vmatprep.subr.mxu0 0.0
  %7354 = vmatpush1.msra.mxu0 0.0
  %7355 = vmatprep.subr.mxu0 0.0
  %7356 = vmatpush1.msra.mxu0 0.0
  %7357 = vmatprep.subr.mxu0 0.0
  %7358 = vmatpush1.msra.mxu0 0.0
  %7359 = vmatprep.subr.mxu0 0.0
  %7360 = vmatpush1.msra.mxu0 0.0
  %7361 = vmatprep.subr.mxu0 0.0
  %7362 = vmatpush1.msra.mxu0 0.0
  %7363 = vmatprep.subr.mxu0 0.0
  %7364 = vmatpush1.msra.mxu0 0.0
  %7365 = vmatprep.subr.mxu0 0.0
  %7366 = vmatpush1.msra.mxu0 0.0
  %7367 = vmatprep.subr.mxu0 0.0
  %7368 = vmatpush1.msra.mxu0 0.0
  %7369 = vmatprep.subr.mxu0 0.0
  %7370 = vmatpush1.msra.mxu0 0.0
  %7371 = vmatprep.subr.mxu0 0.0
  %7372 = vmatpush1.msra.mxu0 0.0
  %7373 = vmatprep.subr.mxu0 0.0
  %7374 = vmatpush1.msra.mxu0 0.0
  %7375 = vmatprep.subr.mxu0 0.0
  %7376 = vmatpush1.msra.mxu0 0.0
  %7377 = vmatprep.subr.mxu0 0.0
  %7378 = vmatpush1.msra.mxu0 0.0
  %7379 = vmatprep.subr.mxu0 0.0
  %7380 = vmatpush1.msra.mxu0 0.0
  %7381 = vmatprep.subr.mxu0 0.0
  %7382 = vmatpush1.msra.mxu0 0.0
  %7383 = vmatprep.subr.mxu0 0.0
  %7384 = vmatpush1.msra.mxu0 0.0
  %7385 = vmatprep.subr.mxu0 0.0
  %7386 = vmatpush1.msra.mxu0 0.0
  %7387 = vmatprep.subr.mxu0 0.0
  %7388 = vmatpush1.msra.mxu0 0.0
  %7389 = vmatprep.subr.mxu0 0.0
  %7390 = vmatpush1.msra.mxu0 0.0
  %7391 = vmatprep.subr.mxu0 0.0
  %7392 = vmatpush1.msra.mxu0 0.0
  %7393 = vmatprep.subr.mxu0 0.0
  %7394 = vmatpush1.msra.mxu0 0.0
  %7395 = vmatprep.subr.mxu0 0.0
  %7396 = vmatpush1.msra.mxu0 0.0
  %7397 = vmatprep.subr.mxu0 0.0
  %7398 = vmatpush1.msra.mxu0 0.0
  %7399 = vmatprep.mubr.f32.mxu0 0.0
  %7400 = vmatmul.mubr.f32.gmra.mrb[0].mxu0 %v7333
  %v7401 = vpop.f32.mrb[0].mxu0
  %v7402 = vadd.f32 %v47, %v7401
  %v7403 = vpop.f32.mrb[0].mxu0
  %7404 = vdwg.mxu0
  %v7405 = vld [vmem:[%s218] sm:$0xff]
  %v7406 = vld [vmem:[%s218 + $0x8] sm:$0xff]
  %v7407 = vld [vmem:[%s218 + $0x10] sm:$0xff]
  %v7408 = vld [vmem:[%s218 + $0x18] sm:$0xff]
  %7409 = vmatprep.subr.mxu0 0.0
  %7410 = vmatpush1.msra.mxu0 %v7405
  %7411 = vmatprep.subr.mxu0 0.0
  %7412 = vmatpush1.msra.mxu0 %v7406
  %7413 = vmatprep.subr.mxu0 0.0
  %7414 = vmatpush1.msra.mxu0 %v7407
  %7415 = vmatprep.subr.mxu0 0.0
  %7416 = vmatpush1.msra.mxu0 %v7408
  %7417 = vmatprep.subr.mxu0 0.0
  %7418 = vmatpush1.msra.mxu0 0.0
  %7419 = vmatprep.subr.mxu0 0.0
  %7420 = vmatpush1.msra.mxu0 0.0
  %7421 = vmatprep.subr.mxu0 0.0
  %7422 = vmatpush1.msra.mxu0 0.0
  %7423 = vmatprep.subr.mxu0 0.0
  %7424 = vmatpush1.msra.mxu0 0.0
  %7425 = vmatprep.subr.mxu0 0.0
  %7426 = vmatpush1.msra.mxu0 0.0
  %7427 = vmatprep.subr.mxu0 0.0
  %7428 = vmatpush1.msra.mxu0 0.0
  %7429 = vmatprep.subr.mxu0 0.0
  %7430 = vmatpush1.msra.mxu0 0.0
  %7431 = vmatprep.subr.mxu0 0.0
  %7432 = vmatpush1.msra.mxu0 0.0
  %7433 = vmatprep.subr.mxu0 0.0
  %7434 = vmatpush1.msra.mxu0 0.0
  %7435 = vmatprep.subr.mxu0 0.0
  %7436 = vmatpush1.msra.mxu0 0.0
  %7437 = vmatprep.subr.mxu0 0.0
  %7438 = vmatpush1.msra.mxu0 0.0
  %7439 = vmatprep.subr.mxu0 0.0
  %7440 = vmatpush1.msra.mxu0 0.0
  %7441 = vmatprep.subr.mxu0 0.0
  %7442 = vmatpush1.msra.mxu0 0.0
  %7443 = vmatprep.subr.mxu0 0.0
  %7444 = vmatpush1.msra.mxu0 0.0
  %7445 = vmatprep.subr.mxu0 0.0
  %7446 = vmatpush1.msra.mxu0 0.0
  %7447 = vmatprep.subr.mxu0 0.0
  %7448 = vmatpush1.msra.mxu0 0.0
  %7449 = vmatprep.subr.mxu0 0.0
  %7450 = vmatpush1.msra.mxu0 0.0
  %7451 = vmatprep.subr.mxu0 0.0
  %7452 = vmatpush1.msra.mxu0 0.0
  %7453 = vmatprep.subr.mxu0 0.0
  %7454 = vmatpush1.msra.mxu0 0.0
  %7455 = vmatprep.subr.mxu0 0.0
  %7456 = vmatpush1.msra.mxu0 0.0
  %7457 = vmatprep.subr.mxu0 0.0
  %7458 = vmatpush1.msra.mxu0 0.0
  %7459 = vmatprep.subr.mxu0 0.0
  %7460 = vmatpush1.msra.mxu0 0.0
  %7461 = vmatprep.subr.mxu0 0.0
  %7462 = vmatpush1.msra.mxu0 0.0
  %7463 = vmatprep.subr.mxu0 0.0
  %7464 = vmatpush1.msra.mxu0 0.0
  %7465 = vmatprep.subr.mxu0 0.0
  %7466 = vmatpush1.msra.mxu0 0.0
  %7467 = vmatprep.subr.mxu0 0.0
  %7468 = vmatpush1.msra.mxu0 0.0
  %7469 = vmatprep.subr.mxu0 0.0
  %7470 = vmatpush1.msra.mxu0 0.0
  %7471 = vmatprep.subr.mxu0 0.0
  %7472 = vmatpush1.msra.mxu0 0.0
  %7473 = vmatprep.mubr.f32.mxu0 0.0
  %7474 = vmatmul.mubr.f32.gmra.mrb[0].mxu0 %v7333
  %v7475 = vpop.f32.mrb[0].mxu0
  %v7476 = vadd.f32 %v49, %v7475
  %v7477 = vpop.f32.mrb[0].mxu0
  %7478 = vdwg.mxu0
  %v7479 = vld [vmem:[%s293] sm:$0xff]
  %v7480 = vld [vmem:[%s293 + $0x8] sm:$0xff]
  %v7481 = vld [vmem:[%s293 + $0x10] sm:$0xff]
  %v7482 = vld [vmem:[%s293 + $0x18] sm:$0xff]
  %7483 = vmatprep.subr.mxu0 0.0
  %7484 = vmatpush1.msra.mxu0 %v7479
  %7485 = vmatprep.subr.mxu0 0.0
  %7486 = vmatpush1.msra.mxu0 %v7480
  %7487 = vmatprep.subr.mxu0 0.0
  %7488 = vmatpush1.msra.mxu0 %v7481
  %7489 = vmatprep.subr.mxu0 0.0
  %7490 = vmatpush1.msra.mxu0 %v7482
  %7491 = vmatprep.subr.mxu0 0.0
  %7492 = vmatpush1.msra.mxu0 0.0
  %7493 = vmatprep.subr.mxu0 0.0
  %7494 = vmatpush1.msra.mxu0 0.0
  %7495 = vmatprep.subr.mxu0 0.0
  %7496 = vmatpush1.msra.mxu0 0.0
  %7497 = vmatprep.subr.mxu0 0.0
  %7498 = vmatpush1.msra.mxu0 0.0
  %7499 = vmatprep.subr.mxu0 0.0
  %7500 = vmatpush1.msra.mxu0 0.0
  %7501 = vmatprep.subr.mxu0 0.0
  %7502 = vmatpush1.msra.mxu0 0.0
  %7503 = vmatprep.subr.mxu0 0.0
  %7504 = vmatpush1.msra.mxu0 0.0
  %7505 = vmatprep.subr.mxu0 0.0
  %7506 = vmatpush1.msra.mxu0 0.0
  %7507 = vmatprep.subr.mxu0 0.0
  %7508 = vmatpush1.msra.mxu0 0.0
  %7509 = vmatprep.subr.mxu0 0.0
  %7510 = vmatpush1.msra.mxu0 0.0
  %7511 = vmatprep.subr.mxu0 0.0
  %7512 = vmatpush1.msra.mxu0 0.0
  %7513 = vmatprep.subr.mxu0 0.0
  %7514 = vmatpush1.msra.mxu0 0.0
  %7515 = vmatprep.subr.mxu0 0.0
  %7516 = vmatpush1.msra.mxu0 0.0
  %7517 = vmatprep.subr.mxu0 0.0
  %7518 = vmatpush1.msra.mxu0 0.0
  %7519 = vmatprep.subr.mxu0 0.0
  %7520 = vmatpush1.msra.mxu0 0.0
  %7521 = vmatprep.subr.mxu0 0.0
  %7522 = vmatpush1.msra.mxu0 0.0
  %7523 = vmatprep.subr.mxu0 0.0
  %7524 = vmatpush1.msra.mxu0 0.0
  %7525 = vmatprep.subr.mxu0 0.0
  %7526 = vmatpush1.msra.mxu0 0.0
  %7527 = vmatprep.subr.mxu0 0.0
  %7528 = vmatpush1.msra.mxu0 0.0
  %7529 = vmatprep.subr.mxu0 0.0
  %7530 = vmatpush1.msra.mxu0 0.0
  %7531 = vmatprep.subr.mxu0 0.0
  %7532 = vmatpush1.msra.mxu0 0.0
  %7533 = vmatprep.subr.mxu0 0.0
  %7534 = vmatpush1.msra.mxu0 0.0
  %7535 = vmatprep.subr.mxu0 0.0
  %7536 = vmatpush1.msra.mxu0 0.0
  %7537 = vmatprep.subr.mxu0 0.0
  %7538 = vmatpush1.msra.mxu0 0.0
  %7539 = vmatprep.subr.mxu0 0.0
  %7540 = vmatpush1.msra.mxu0 0.0
  %7541 = vmatprep.subr.mxu0 0.0
  %7542 = vmatpush1.msra.mxu0 0.0
  %7543 = vmatprep.subr.mxu0 0.0
  %7544 = vmatpush1.msra.mxu0 0.0
  %7545 = vmatprep.subr.mxu0 0.0
  %7546 = vmatpush1.msra.mxu0 0.0
  %7547 = vmatprep.mubr.f32.mxu0 0.0
  %7548 = vmatmul.mubr.f32.gmra.mrb[0].mxu0 %v7333
  %v7549 = vpop.f32.mrb[0].mxu0
  %v7550 = vadd.f32 %v51, %v7549
  %v7551 = vpop.f32.mrb[0].mxu0
  %7552 = vdwg.mxu0
  %v7553 = vld [vmem:[%s5] sm:$0xff]
  %v7554 = vld [vmem:[%s5 + $0x8] sm:$0xff]
  %v7555 = vld [vmem:[%s5 + $0x10] sm:$0xff]
  %v7556 = vld [vmem:[%s5 + $0x18] sm:$0xff]
  %v7557 = vld [vmem:[%s6] sm:$0x1]
  %v7559 = vlaneseq
  %v7560 = vshrl.u32 %v7559, 7
  %v7561 = vsub.s32 0, %v7560
  %v7562 = vrot.slane %v7557, %v7561
  %7564 = vmatprep.subr.mxu0 0.0
  %7565 = vmatpush1.msra.mxu0 %v7553
  %7566 = vmatprep.subr.mxu0 0.0
  %7567 = vmatpush1.msra.mxu0 %v7554
  %7568 = vmatprep.subr.mxu0 0.0
  %7569 = vmatpush1.msra.mxu0 %v7555
  %7570 = vmatprep.subr.mxu0 0.0
  %7571 = vmatpush1.msra.mxu0 %v7556
  %7572 = vmatprep.subr.mxu0 0.0
  %7573 = vmatpush1.msra.mxu0 0.0
  %7574 = vmatprep.subr.mxu0 0.0
  %7575 = vmatpush1.msra.mxu0 0.0
  %7576 = vmatprep.subr.mxu0 0.0
  %7577 = vmatpush1.msra.mxu0 0.0
  %7578 = vmatprep.subr.mxu0 0.0
  %7579 = vmatpush1.msra.mxu0 0.0
  %7580 = vmatprep.subr.mxu0 0.0
  %7581 = vmatpush1.msra.mxu0 0.0
  %7582 = vmatprep.subr.mxu0 0.0
  %7583 = vmatpush1.msra.mxu0 0.0
  %7584 = vmatprep.subr.mxu0 0.0
  %7585 = vmatpush1.msra.mxu0 0.0
  %7586 = vmatprep.subr.mxu0 0.0
  %7587 = vmatpush1.msra.mxu0 0.0
  %7588 = vmatprep.subr.mxu0 0.0
  %7589 = vmatpush1.msra.mxu0 0.0
  %7590 = vmatprep.subr.mxu0 0.0
  %7591 = vmatpush1.msra.mxu0 0.0
  %7592 = vmatprep.subr.mxu0 0.0
  %7593 = vmatpush1.msra.mxu0 0.0
  %7594 = vmatprep.subr.mxu0 0.0
  %7595 = vmatpush1.msra.mxu0 0.0
  %7596 = vmatprep.subr.mxu0 0.0
  %7597 = vmatpush1.msra.mxu0 0.0
  %7598 = vmatprep.subr.mxu0 0.0
  %7599 = vmatpush1.msra.mxu0 0.0
  %7600 = vmatprep.subr.mxu0 0.0
  %7601 = vmatpush1.msra.mxu0 0.0
  %7602 = vmatprep.subr.mxu0 0.0
  %7603 = vmatpush1.msra.mxu0 0.0
  %7604 = vmatprep.subr.mxu0 0.0
  %7605 = vmatpush1.msra.mxu0 0.0
  %7606 = vmatprep.subr.mxu0 0.0
  %7607 = vmatpush1.msra.mxu0 0.0
  %7608 = vmatprep.subr.mxu0 0.0
  %7609 = vmatpush1.msra.mxu0 0.0
  %7610 = vmatprep.subr.mxu0 0.0
  %7611 = vmatpush1.msra.mxu0 0.0
  %7612 = vmatprep.subr.mxu0 0.0
  %7613 = vmatpush1.msra.mxu0 0.0
  %7614 = vmatprep.subr.mxu0 0.0
  %7615 = vmatpush1.msra.mxu0 0.0
  %7616 = vmatprep.subr.mxu0 0.0
  %7617 = vmatpush1.msra.mxu0 0.0
  %7618 = vmatprep.subr.mxu0 0.0
  %7619 = vmatpush1.msra.mxu0 0.0
  %7620 = vmatprep.subr.mxu0 0.0
  %7621 = vmatpush1.msra.mxu0 0.0
  %7622 = vmatprep.subr.mxu0 0.0
  %7623 = vmatpush1.msra.mxu0 0.0
  %7624 = vmatprep.subr.mxu0 0.0
  %7625 = vmatpush1.msra.mxu0 0.0
  %7626 = vmatprep.subr.mxu0 0.0
  %7627 = vmatpush1.msra.mxu0 0.0
  %7628 = vmatprep.mubr.f32.mxu0 0.0
  %7629 = vmatmul.mubr.f32.gmra.mrb[0].mxu0 %v6636
  %v7630 = vpop.f32.mrb[0].mxu0
  %v7631 = vadd.f32 %v7562, %v7630
  %v7632 = vpop.f32.mrb[0].mxu0
  %7633 = vdwg.mxu0
  %v7634 = vld [vmem:[%s452] sm:$0xff]
  %v7635 = vld [vmem:[%s452 + $0x8] sm:$0xff]
  %v7636 = vld [vmem:[%s452 + $0x10] sm:$0xff]
  %v7637 = vld [vmem:[%s452 + $0x18] sm:$0xff]
  %v7638 = vld [vmem:[%s457] sm:$0x1]
  %v7640 = vlaneseq
  %v7641 = vshrl.u32 %v7640, 7
  %v7642 = vsub.s32 0, %v7641
  %v7643 = vrot.slane %v7638, %v7642
  %7645 = vmatprep.subr.mxu0 0.0
  %7646 = vmatpush1.msra.mxu0 %v7634
  %7647 = vmatprep.subr.mxu0 0.0
  %7648 = vmatpush1.msra.mxu0 %v7635
  %7649 = vmatprep.subr.mxu0 0.0
  %7650 = vmatpush1.msra.mxu0 %v7636
  %7651 = vmatprep.subr.mxu0 0.0
  %7652 = vmatpush1.msra.mxu0 %v7637
  %7653 = vmatprep.subr.mxu0 0.0
  %7654 = vmatpush1.msra.mxu0 0.0
  %7655 = vmatprep.subr.mxu0 0.0
  %7656 = vmatpush1.msra.mxu0 0.0
  %7657 = vmatprep.subr.mxu0 0.0
  %7658 = vmatpush1.msra.mxu0 0.0
  %7659 = vmatprep.subr.mxu0 0.0
  %7660 = vmatpush1.msra.mxu0 0.0
  %7661 = vmatprep.subr.mxu0 0.0
  %7662 = vmatpush1.msra.mxu0 0.0
  %7663 = vmatprep.subr.mxu0 0.0
  %7664 = vmatpush1.msra.mxu0 0.0
  %7665 = vmatprep.subr.mxu0 0.0
  %7666 = vmatpush1.msra.mxu0 0.0
  %7667 = vmatprep.subr.mxu0 0.0
  %7668 = vmatpush1.msra.mxu0 0.0
  %7669 = vmatprep.subr.mxu0 0.0
  %7670 = vmatpush1.msra.mxu0 0.0
  %7671 = vmatprep.subr.mxu0 0.0
  %7672 = vmatpush1.msra.mxu0 0.0
  %7673 = vmatprep.subr.mxu0 0.0
  %7674 = vmatpush1.msra.mxu0 0.0
  %7675 = vmatprep.subr.mxu0 0.0
  %7676 = vmatpush1.msra.mxu0 0.0
  %7677 = vmatprep.subr.mxu0 0.0
  %7678 = vmatpush1.msra.mxu0 0.0
  %7679 = vmatprep.subr.mxu0 0.0
  %7680 = vmatpush1.msra.mxu0 0.0
  %7681 = vmatprep.subr.mxu0 0.0
  %7682 = vmatpush1.msra.mxu0 0.0
  %7683 = vmatprep.subr.mxu0 0.0
  %7684 = vmatpush1.msra.mxu0 0.0
  %7685 = vmatprep.subr.mxu0 0.0
  %7686 = vmatpush1.msra.mxu0 0.0
  %7687 = vmatprep.subr.mxu0 0.0
  %7688 = vmatpush1.msra.mxu0 0.0
  %7689 = vmatprep.subr.mxu0 0.0
  %7690 = vmatpush1.msra.mxu0 0.0
  %7691 = vmatprep.subr.mxu0 0.0
  %7692 = vmatpush1.msra.mxu0 0.0
  %7693 = vmatprep.subr.mxu0 0.0
  %7694 = vmatpush1.msra.mxu0 0.0
  %7695 = vmatprep.subr.mxu0 0.0
  %7696 = vmatpush1.msra.mxu0 0.0
  %7697 = vmatprep.subr.mxu0 0.0
  %7698 = vmatpush1.msra.mxu0 0.0
  %7699 = vmatprep.subr.mxu0 0.0
  %7700 = vmatpush1.msra.mxu0 0.0
  %7701 = vmatprep.subr.mxu0 0.0
  %7702 = vmatpush1.msra.mxu0 0.0
  %7703 = vmatprep.subr.mxu0 0.0
  %7704 = vmatpush1.msra.mxu0 0.0
  %7705 = vmatprep.subr.mxu0 0.0
  %7706 = vmatpush1.msra.mxu0 0.0
  %7707 = vmatprep.subr.mxu0 0.0
  %7708 = vmatpush1.msra.mxu0 0.0
  %7709 = vmatprep.mubr.f32.mxu0 0.0
  %7710 = vmatmul.mubr.f32.gmra.mrb[0].mxu0 %v6636
  %v7711 = vpop.f32.mrb[0].mxu0
  %v7712 = vadd.f32 %v7643, %v7711
  %v7713 = vpop.f32.mrb[0].mxu0
  %7714 = vdwg.mxu0
  %v7715 = vld [vmem:[%s535] sm:$0xff]
  %v7716 = vld [vmem:[%s535 + $0x8] sm:$0xff]
  %v7717 = vld [vmem:[%s535 + $0x10] sm:$0xff]
  %v7718 = vld [vmem:[%s535 + $0x18] sm:$0xff]
  %v7719 = vld [vmem:[%s540] sm:$0x1]
  %v7721 = vlaneseq
  %v7722 = vshrl.u32 %v7721, 7
  %v7723 = vsub.s32 0, %v7722
  %v7724 = vrot.slane %v7719, %v7723
  %7726 = vmatprep.subr.mxu0 0.0
  %7727 = vmatpush1.msra.mxu0 %v7715
  %7728 = vmatprep.subr.mxu0 0.0
  %7729 = vmatpush1.msra.mxu0 %v7716
  %7730 = vmatprep.subr.mxu0 0.0
  %7731 = vmatpush1.msra.mxu0 %v7717
  %7732 = vmatprep.subr.mxu0 0.0
  %7733 = vmatpush1.msra.mxu0 %v7718
  %7734 = vmatprep.subr.mxu0 0.0
  %7735 = vmatpush1.msra.mxu0 0.0
  %7736 = vmatprep.subr.mxu0 0.0
  %7737 = vmatpush1.msra.mxu0 0.0
  %7738 = vmatprep.subr.mxu0 0.0
  %7739 = vmatpush1.msra.mxu0 0.0
  %7740 = vmatprep.subr.mxu0 0.0
  %7741 = vmatpush1.msra.mxu0 0.0
  %7742 = vmatprep.subr.mxu0 0.0
  %7743 = vmatpush1.msra.mxu0 0.0
  %7744 = vmatprep.subr.mxu0 0.0
  %7745 = vmatpush1.msra.mxu0 0.0
  %7746 = vmatprep.subr.mxu0 0.0
  %7747 = vmatpush1.msra.mxu0 0.0
  %7748 = vmatprep.subr.mxu0 0.0
  %7749 = vmatpush1.msra.mxu0 0.0
  %7750 = vmatprep.subr.mxu0 0.0
  %7751 = vmatpush1.msra.mxu0 0.0
  %7752 = vmatprep.subr.mxu0 0.0
  %7753 = vmatpush1.msra.mxu0 0.0
  %7754 = vmatprep.subr.mxu0 0.0
  %7755 = vmatpush1.msra.mxu0 0.0
  %7756 = vmatprep.subr.mxu0 0.0
  %7757 = vmatpush1.msra.mxu0 0.0
  %7758 = vmatprep.subr.mxu0 0.0
  %7759 = vmatpush1.msra.mxu0 0.0
  %7760 = vmatprep.subr.mxu0 0.0
  %7761 = vmatpush1.msra.mxu0 0.0
  %7762 = vmatprep.subr.mxu0 0.0
  %7763 = vmatpush1.msra.mxu0 0.0
  %7764 = vmatprep.subr.mxu0 0.0
  %7765 = vmatpush1.msra.mxu0 0.0
  %7766 = vmatprep.subr.mxu0 0.0
  %7767 = vmatpush1.msra.mxu0 0.0
  %7768 = vmatprep.subr.mxu0 0.0
  %7769 = vmatpush1.msra.mxu0 0.0
  %7770 = vmatprep.subr.mxu0 0.0
  %7771 = vmatpush1.msra.mxu0 0.0
  %7772 = vmatprep.subr.mxu0 0.0
  %7773 = vmatpush1.msra.mxu0 0.0
  %7774 = vmatprep.subr.mxu0 0.0
  %7775 = vmatpush1.msra.mxu0 0.0
  %7776 = vmatprep.subr.mxu0 0.0
  %7777 = vmatpush1.msra.mxu0 0.0
  %7778 = vmatprep.subr.mxu0 0.0
  %7779 = vmatpush1.msra.mxu0 0.0
  %7780 = vmatprep.subr.mxu0 0.0
  %7781 = vmatpush1.msra.mxu0 0.0
  %7782 = vmatprep.subr.mxu0 0.0
  %7783 = vmatpush1.msra.mxu0 0.0
  %7784 = vmatprep.subr.mxu0 0.0
  %7785 = vmatpush1.msra.mxu0 0.0
  %7786 = vmatprep.subr.mxu0 0.0
  %7787 = vmatpush1.msra.mxu0 0.0
  %7788 = vmatprep.subr.mxu0 0.0
  %7789 = vmatpush1.msra.mxu0 0.0
  %7790 = vmatprep.mubr.f32.mxu0 0.0
  %7791 = vmatmul.mubr.f32.gmra.mrb[0].mxu0 %v6636
  %v7792 = vpop.f32.mrb[0].mxu0
  %v7793 = vadd.f32 %v7724, %v7792
  %v7794 = vpop.f32.mrb[0].mxu0
  %7795 = vdwg.mxu0
  %v7796 = vadd.f32 %v7402, %v7631
  %v7797 = vxor.u32 %v7796, 2147483648
  %v7798 = vmul.f32 %v7797, 1.442695
  %v7799 = vpow.pop %v7798
  %v7800 = vadd.f32 %v7799, 1.0
  %v7801 = vrcp.pop %v7800
  %v7802 = vmul.f32 1.0, %v7801
  %v7803 = vadd.f32 %v7476, %v7712
  %v7804 = vxor.u32 %v7803, 2147483648
  %v7805 = vmul.f32 %v7804, 1.442695
  %v7806 = vpow.pop %v7805
  %v7807 = vadd.f32 %v7806, 1.0
  %v7808 = vrcp.pop %v7807
  %v7809 = vmul.f32 1.0, %v7808
  %v7810 = vmul.f32 %v7802, %v7793
  %v7811 = vadd.f32 %v7550, %v7810
  %v7812 = vtanh.pop %v7811
  %v7813 = vsub.f32 1.0, %v7809
  %v7814 = vmul.f32 %v7813, %v7812
  %v7815 = vmul.f32 %v7809, %v6621
  %v7816 = vadd.f32 %v7814, %v7815
  %v7817 = vld [vmem:[%s8] sm:$0x1]
  %v7818 = vld [vmem:[%s640] sm:$0x1]
  %v7819 = vld [vmem:[%s642] sm:$0x1]
  %v7820 = vld [vmem:[%s7] sm:$0xff]
  %v7821 = vld [vmem:[%s7 + $0x8] sm:$0xff]
  %v7822 = vld [vmem:[%s7 + $0x10] sm:$0xff]
  %v7823 = vld [vmem:[%s7 + $0x18] sm:$0xff]
  %v7825 = vlaneseq
  %v7826 = vshrl.u32 %v7825, 7
  %v7827 = vsub.s32 0, %v7826
  %v7828 = vrot.slane %v7817, %v7827
  %v7831 = vsel %vm144, %v7816, 0
  %7833 = vmatprep.subr.mxu0 0.0
  %7834 = vmatpush1.msra.mxu0 %v7820
  %7835 = vmatprep.subr.mxu0 0.0
  %7836 = vmatpush1.msra.mxu0 %v7821
  %7837 = vmatprep.subr.mxu0 0.0
  %7838 = vmatpush1.msra.mxu0 %v7822
  %7839 = vmatprep.subr.mxu0 0.0
  %7840 = vmatpush1.msra.mxu0 %v7823
  %7841 = vmatprep.subr.mxu0 0.0
  %7842 = vmatpush1.msra.mxu0 0.0
  %7843 = vmatprep.subr.mxu0 0.0
  %7844 = vmatpush1.msra.mxu0 0.0
  %7845 = vmatprep.subr.mxu0 0.0
  %7846 = vmatpush1.msra.mxu0 0.0
  %7847 = vmatprep.subr.mxu0 0.0
  %7848 = vmatpush1.msra.mxu0 0.0
  %7849 = vmatprep.subr.mxu0 0.0
  %7850 = vmatpush1.msra.mxu0 0.0
  %7851 = vmatprep.subr.mxu0 0.0
  %7852 = vmatpush1.msra.mxu0 0.0
  %7853 = vmatprep.subr.mxu0 0.0
  %7854 = vmatpush1.msra.mxu0 0.0
  %7855 = vmatprep.subr.mxu0 0.0
  %7856 = vmatpush1.msra.mxu0 0.0
  %7857 = vmatprep.subr.mxu0 0.0
  %7858 = vmatpush1.msra.mxu0 0.0
  %7859 = vmatprep.subr.mxu0 0.0
  %7860 = vmatpush1.msra.mxu0 0.0
  %7861 = vmatprep.subr.mxu0 0.0
  %7862 = vmatpush1.msra.mxu0 0.0
  %7863 = vmatprep.subr.mxu0 0.0
  %7864 = vmatpush1.msra.mxu0 0.0
  %7865 = vmatprep.subr.mxu0 0.0
  %7866 = vmatpush1.msra.mxu0 0.0
  %7867 = vmatprep.subr.mxu0 0.0
  %7868 = vmatpush1.msra.mxu0 0.0
  %7869 = vmatprep.subr.mxu0 0.0
  %7870 = vmatpush1.msra.mxu0 0.0
  %7871 = vmatprep.subr.mxu0 0.0
  %7872 = vmatpush1.msra.mxu0 0.0
  %7873 = vmatprep.subr.mxu0 0.0
  %7874 = vmatpush1.msra.mxu0 0.0
  %7875 = vmatprep.subr.mxu0 0.0
  %7876 = vmatpush1.msra.mxu0 0.0
  %7877 = vmatprep.subr.mxu0 0.0
  %7878 = vmatpush1.msra.mxu0 0.0
  %7879 = vmatprep.subr.mxu0 0.0
  %7880 = vmatpush1.msra.mxu0 0.0
  %7881 = vmatprep.subr.mxu0 0.0
  %7882 = vmatpush1.msra.mxu0 0.0
  %7883 = vmatprep.subr.mxu0 0.0
  %7884 = vmatpush1.msra.mxu0 0.0
  %7885 = vmatprep.subr.mxu0 0.0
  %7886 = vmatpush1.msra.mxu0 0.0
  %7887 = vmatprep.subr.mxu0 0.0
  %7888 = vmatpush1.msra.mxu0 0.0
  %7889 = vmatprep.subr.mxu0 0.0
  %7890 = vmatpush1.msra.mxu0 0.0
  %7891 = vmatprep.subr.mxu0 0.0
  %7892 = vmatpush1.msra.mxu0 0.0
  %7893 = vmatprep.subr.mxu0 0.0
  %7894 = vmatpush1.msra.mxu0 0.0
  %7895 = vmatprep.subr.mxu0 0.0
  %7896 = vmatpush1.msra.mxu0 0.0
  %7897 = vmatprep.mubr.f32.mxu0 0.0
  %7898 = vmatmul.mubr.f32.gmra.mrb[0].mxu0 %v7831
  %v7899 = vpop.f32.mrb[0].mxu0
  %v7900 = vadd.f32 %v7828, %v7899
  %v7901 = vpop.f32.mrb[0].mxu0
  %7902 = vdwg.mxu0
  %v7903 = vld [vmem:[%s727] sm:$0xff]
  %v7904 = vld [vmem:[%s727 + $0x8] sm:$0xff]
  %v7905 = vld [vmem:[%s727 + $0x10] sm:$0xff]
  %v7906 = vld [vmem:[%s727 + $0x18] sm:$0xff]
  %v7908 = vlaneseq
  %v7909 = vshrl.u32 %v7908, 7
  %v7910 = vsub.s32 0, %v7909
  %v7911 = vrot.slane %v7818, %v7910
  %7913 = vmatprep.subr.mxu0 0.0
  %7914 = vmatpush1.msra.mxu0 %v7903
  %7915 = vmatprep.subr.mxu0 0.0
  %7916 = vmatpush1.msra.mxu0 %v7904
  %7917 = vmatprep.subr.mxu0 0.0
  %7918 = vmatpush1.msra.mxu0 %v7905
  %7919 = vmatprep.subr.mxu0 0.0
  %7920 = vmatpush1.msra.mxu0 %v7906
  %7921 = vmatprep.subr.mxu0 0.0
  %7922 = vmatpush1.msra.mxu0 0.0
  %7923 = vmatprep.subr.mxu0 0.0
  %7924 = vmatpush1.msra.mxu0 0.0
  %7925 = vmatprep.subr.mxu0 0.0
  %7926 = vmatpush1.msra.mxu0 0.0
  %7927 = vmatprep.subr.mxu0 0.0
  %7928 = vmatpush1.msra.mxu0 0.0
  %7929 = vmatprep.subr.mxu0 0.0
  %7930 = vmatpush1.msra.mxu0 0.0
  %7931 = vmatprep.subr.mxu0 0.0
  %7932 = vmatpush1.msra.mxu0 0.0
  %7933 = vmatprep.subr.mxu0 0.0
  %7934 = vmatpush1.msra.mxu0 0.0
  %7935 = vmatprep.subr.mxu0 0.0
  %7936 = vmatpush1.msra.mxu0 0.0
  %7937 = vmatprep.subr.mxu0 0.0
  %7938 = vmatpush1.msra.mxu0 0.0
  %7939 = vmatprep.subr.mxu0 0.0
  %7940 = vmatpush1.msra.mxu0 0.0
  %7941 = vmatprep.subr.mxu0 0.0
  %7942 = vmatpush1.msra.mxu0 0.0
  %7943 = vmatprep.subr.mxu0 0.0
  %7944 = vmatpush1.msra.mxu0 0.0
  %7945 = vmatprep.subr.mxu0 0.0
  %7946 = vmatpush1.msra.mxu0 0.0
  %7947 = vmatprep.subr.mxu0 0.0
  %7948 = vmatpush1.msra.mxu0 0.0
  %7949 = vmatprep.subr.mxu0 0.0
  %7950 = vmatpush1.msra.mxu0 0.0
  %7951 = vmatprep.subr.mxu0 0.0
  %7952 = vmatpush1.msra.mxu0 0.0
  %7953 = vmatprep.subr.mxu0 0.0
  %7954 = vmatpush1.msra.mxu0 0.0
  %7955 = vmatprep.subr.mxu0 0.0
  %7956 = vmatpush1.msra.mxu0 0.0
  %7957 = vmatprep.subr.mxu0 0.0
  %7958 = vmatpush1.msra.mxu0 0.0
  %7959 = vmatprep.subr.mxu0 0.0
  %7960 = vmatpush1.msra.mxu0 0.0
  %7961 = vmatprep.subr.mxu0 0.0
  %7962 = vmatpush1.msra.mxu0 0.0
  %7963 = vmatprep.subr.mxu0 0.0
  %7964 = vmatpush1.msra.mxu0 0.0
  %7965 = vmatprep.subr.mxu0 0.0
  %7966 = vmatpush1.msra.mxu0 0.0
  %7967 = vmatprep.subr.mxu0 0.0
  %7968 = vmatpush1.msra.mxu0 0.0
  %7969 = vmatprep.subr.mxu0 0.0
  %7970 = vmatpush1.msra.mxu0 0.0
  %7971 = vmatprep.subr.mxu0 0.0
  %7972 = vmatpush1.msra.mxu0 0.0
  %7973 = vmatprep.subr.mxu0 0.0
  %7974 = vmatpush1.msra.mxu0 0.0
  %7975 = vmatprep.subr.mxu0 0.0
  %7976 = vmatpush1.msra.mxu0 0.0
  %7977 = vmatprep.mubr.f32.mxu0 0.0
  %7978 = vmatmul.mubr.f32.gmra.mrb[0].mxu0 %v7831
  %v7979 = vpop.f32.mrb[0].mxu0
  %v7980 = vadd.f32 %v7911, %v7979
  %v7981 = vpop.f32.mrb[0].mxu0
  %7982 = vdwg.mxu0
  %v7983 = vld [vmem:[%s808] sm:$0xff]
  %v7984 = vld [vmem:[%s808 + $0x8] sm:$0xff]
  %v7985 = vld [vmem:[%s808 + $0x10] sm:$0xff]
  %v7986 = vld [vmem:[%s808 + $0x18] sm:$0xff]
  %v7988 = vlaneseq
  %v7989 = vshrl.u32 %v7988, 7
  %v7990 = vsub.s32 0, %v7989
  %v7991 = vrot.slane %v7819, %v7990
  %7993 = vmatprep.subr.mxu0 0.0
  %7994 = vmatpush1.msra.mxu0 %v7983
  %7995 = vmatprep.subr.mxu0 0.0
  %7996 = vmatpush1.msra.mxu0 %v7984
  %7997 = vmatprep.subr.mxu0 0.0
  %7998 = vmatpush1.msra.mxu0 %v7985
  %7999 = vmatprep.subr.mxu0 0.0
  %8000 = vmatpush1.msra.mxu0 %v7986
  %8001 = vmatprep.subr.mxu0 0.0
  %8002 = vmatpush1.msra.mxu0 0.0
  %8003 = vmatprep.subr.mxu0 0.0
  %8004 = vmatpush1.msra.mxu0 0.0
  %8005 = vmatprep.subr.mxu0 0.0
  %8006 = vmatpush1.msra.mxu0 0.0
  %8007 = vmatprep.subr.mxu0 0.0
  %8008 = vmatpush1.msra.mxu0 0.0
  %8009 = vmatprep.subr.mxu0 0.0
  %8010 = vmatpush1.msra.mxu0 0.0
  %8011 = vmatprep.subr.mxu0 0.0
  %8012 = vmatpush1.msra.mxu0 0.0
  %8013 = vmatprep.subr.mxu0 0.0
  %8014 = vmatpush1.msra.mxu0 0.0
  %8015 = vmatprep.subr.mxu0 0.0
  %8016 = vmatpush1.msra.mxu0 0.0
  %8017 = vmatprep.subr.mxu0 0.0
  %8018 = vmatpush1.msra.mxu0 0.0
  %8019 = vmatprep.subr.mxu0 0.0
  %8020 = vmatpush1.msra.mxu0 0.0
  %8021 = vmatprep.subr.mxu0 0.0
  %8022 = vmatpush1.msra.mxu0 0.0
  %8023 = vmatprep.subr.mxu0 0.0
  %8024 = vmatpush1.msra.mxu0 0.0
  %8025 = vmatprep.subr.mxu0 0.0
  %8026 = vmatpush1.msra.mxu0 0.0
  %8027 = vmatprep.subr.mxu0 0.0
  %8028 = vmatpush1.msra.mxu0 0.0
  %8029 = vmatprep.subr.mxu0 0.0
  %8030 = vmatpush1.msra.mxu0 0.0
  %8031 = vmatprep.subr.mxu0 0.0
  %8032 = vmatpush1.msra.mxu0 0.0
  %8033 = vmatprep.subr.mxu0 0.0
  %8034 = vmatpush1.msra.mxu0 0.0
  %8035 = vmatprep.subr.mxu0 0.0
  %8036 = vmatpush1.msra.mxu0 0.0
  %8037 = vmatprep.subr.mxu0 0.0
  %8038 = vmatpush1.msra.mxu0 0.0
  %8039 = vmatprep.subr.mxu0 0.0
  %8040 = vmatpush1.msra.mxu0 0.0
  %8041 = vmatprep.subr.mxu0 0.0
  %8042 = vmatpush1.msra.mxu0 0.0
  %8043 = vmatprep.subr.mxu0 0.0
  %8044 = vmatpush1.msra.mxu0 0.0
  %8045 = vmatprep.subr.mxu0 0.0
  %8046 = vmatpush1.msra.mxu0 0.0
  %8047 = vmatprep.subr.mxu0 0.0
  %8048 = vmatpush1.msra.mxu0 0.0
  %8049 = vmatprep.subr.mxu0 0.0
  %8050 = vmatpush1.msra.mxu0 0.0
  %8051 = vmatprep.subr.mxu0 0.0
  %8052 = vmatpush1.msra.mxu0 0.0
  %8053 = vmatprep.subr.mxu0 0.0
  %8054 = vmatpush1.msra.mxu0 0.0
  %8055 = vmatprep.subr.mxu0 0.0
  %8056 = vmatpush1.msra.mxu0 0.0
  %8057 = vmatprep.mubr.f32.mxu0 0.0
  %8058 = vmatmul.mubr.f32.gmra.mrb[0].mxu0 %v7831
  %v8059 = vpop.f32.mrb[0].mxu0
  %v8060 = vadd.f32 %v7991, %v8059
  %v8061 = vpop.f32.mrb[0].mxu0
  %8062 = vdwg.mxu0
  %v8063 = vld [vmem:[%s9] sm:$0xff]
  %v8064 = vld [vmem:[%s9 + $0x8] sm:$0xff]
  %v8065 = vld [vmem:[%s9 + $0x10] sm:$0xff]
  %v8066 = vld [vmem:[%s9 + $0x18] sm:$0xff]
  %v8067 = vld [vmem:[%s10] sm:$0x1]
  %v8069 = vlaneseq
  %v8070 = vshrl.u32 %v8069, 7
  %v8071 = vsub.s32 0, %v8070
  %v8072 = vrot.slane %v8067, %v8071
  %8074 = vmatprep.subr.mxu0 0.0
  %8075 = vmatpush1.msra.mxu0 %v8063
  %8076 = vmatprep.subr.mxu0 0.0
  %8077 = vmatpush1.msra.mxu0 %v8064
  %8078 = vmatprep.subr.mxu0 0.0
  %8079 = vmatpush1.msra.mxu0 %v8065
  %8080 = vmatprep.subr.mxu0 0.0
  %8081 = vmatpush1.msra.mxu0 %v8066
  %8082 = vmatprep.subr.mxu0 0.0
  %8083 = vmatpush1.msra.mxu0 0.0
  %8084 = vmatprep.subr.mxu0 0.0
  %8085 = vmatpush1.msra.mxu0 0.0
  %8086 = vmatprep.subr.mxu0 0.0
  %8087 = vmatpush1.msra.mxu0 0.0
  %8088 = vmatprep.subr.mxu0 0.0
  %8089 = vmatpush1.msra.mxu0 0.0
  %8090 = vmatprep.subr.mxu0 0.0
  %8091 = vmatpush1.msra.mxu0 0.0
  %8092 = vmatprep.subr.mxu0 0.0
  %8093 = vmatpush1.msra.mxu0 0.0
  %8094 = vmatprep.subr.mxu0 0.0
  %8095 = vmatpush1.msra.mxu0 0.0
  %8096 = vmatprep.subr.mxu0 0.0
  %8097 = vmatpush1.msra.mxu0 0.0
  %8098 = vmatprep.subr.mxu0 0.0
  %8099 = vmatpush1.msra.mxu0 0.0
  %8100 = vmatprep.subr.mxu0 0.0
  %8101 = vmatpush1.msra.mxu0 0.0
  %8102 = vmatprep.subr.mxu0 0.0
  %8103 = vmatpush1.msra.mxu0 0.0
  %8104 = vmatprep.subr.mxu0 0.0
  %8105 = vmatpush1.msra.mxu0 0.0
  %8106 = vmatprep.subr.mxu0 0.0
  %8107 = vmatpush1.msra.mxu0 0.0
  %8108 = vmatprep.subr.mxu0 0.0
  %8109 = vmatpush1.msra.mxu0 0.0
  %8110 = vmatprep.subr.mxu0 0.0
  %8111 = vmatpush1.msra.mxu0 0.0
  %8112 = vmatprep.subr.mxu0 0.0
  %8113 = vmatpush1.msra.mxu0 0.0
  %8114 = vmatprep.subr.mxu0 0.0
  %8115 = vmatpush1.msra.mxu0 0.0
  %8116 = vmatprep.subr.mxu0 0.0
  %8117 = vmatpush1.msra.mxu0 0.0
  %8118 = vmatprep.subr.mxu0 0.0
  %8119 = vmatpush1.msra.mxu0 0.0
  %8120 = vmatprep.subr.mxu0 0.0
  %8121 = vmatpush1.msra.mxu0 0.0
  %8122 = vmatprep.subr.mxu0 0.0
  %8123 = vmatpush1.msra.mxu0 0.0
  %8124 = vmatprep.subr.mxu0 0.0
  %8125 = vmatpush1.msra.mxu0 0.0
  %8126 = vmatprep.subr.mxu0 0.0
  %8127 = vmatpush1.msra.mxu0 0.0
  %8128 = vmatprep.subr.mxu0 0.0
  %8129 = vmatpush1.msra.mxu0 0.0
  %8130 = vmatprep.subr.mxu0 0.0
  %8131 = vmatpush1.msra.mxu0 0.0
  %8132 = vmatprep.subr.mxu0 0.0
  %8133 = vmatpush1.msra.mxu0 0.0
  %8134 = vmatprep.subr.mxu0 0.0
  %8135 = vmatpush1.msra.mxu0 0.0
  %8136 = vmatprep.subr.mxu0 0.0
  %8137 = vmatpush1.msra.mxu0 0.0
  %8138 = vmatprep.mubr.f32.mxu0 0.0
  %8139 = vmatmul.mubr.f32.gmra.mrb[0].mxu0 %v7137
  %v8140 = vpop.f32.mrb[0].mxu0
  %v8141 = vadd.f32 %v8072, %v8140
  %v8142 = vpop.f32.mrb[0].mxu0
  %8143 = vdwg.mxu0
  %v8144 = vld [vmem:[%s970] sm:$0xff]
  %v8145 = vld [vmem:[%s970 + $0x8] sm:$0xff]
  %v8146 = vld [vmem:[%s970 + $0x10] sm:$0xff]
  %v8147 = vld [vmem:[%s970 + $0x18] sm:$0xff]
  %v8148 = vld [vmem:[%s975] sm:$0x1]
  %v8150 = vlaneseq
  %v8151 = vshrl.u32 %v8150, 7
  %v8152 = vsub.s32 0, %v8151
  %v8153 = vrot.slane %v8148, %v8152
  %8155 = vmatprep.subr.mxu0 0.0
  %8156 = vmatpush1.msra.mxu0 %v8144
  %8157 = vmatprep.subr.mxu0 0.0
  %8158 = vmatpush1.msra.mxu0 %v8145
  %8159 = vmatprep.subr.mxu0 0.0
  %8160 = vmatpush1.msra.mxu0 %v8146
  %8161 = vmatprep.subr.mxu0 0.0
  %8162 = vmatpush1.msra.mxu0 %v8147
  %8163 = vmatprep.subr.mxu0 0.0
  %8164 = vmatpush1.msra.mxu0 0.0
  %8165 = vmatprep.subr.mxu0 0.0
  %8166 = vmatpush1.msra.mxu0 0.0
  %8167 = vmatprep.subr.mxu0 0.0
  %8168 = vmatpush1.msra.mxu0 0.0
  %8169 = vmatprep.subr.mxu0 0.0
  %8170 = vmatpush1.msra.mxu0 0.0
  %8171 = vmatprep.subr.mxu0 0.0
  %8172 = vmatpush1.msra.mxu0 0.0
  %8173 = vmatprep.subr.mxu0 0.0
  %8174 = vmatpush1.msra.mxu0 0.0
  %8175 = vmatprep.subr.mxu0 0.0
  %8176 = vmatpush1.msra.mxu0 0.0
  %8177 = vmatprep.subr.mxu0 0.0
  %8178 = vmatpush1.msra.mxu0 0.0
  %8179 = vmatprep.subr.mxu0 0.0
  %8180 = vmatpush1.msra.mxu0 0.0
  %8181 = vmatprep.subr.mxu0 0.0
  %8182 = vmatpush1.msra.mxu0 0.0
  %8183 = vmatprep.subr.mxu0 0.0
  %8184 = vmatpush1.msra.mxu0 0.0
  %8185 = vmatprep.subr.mxu0 0.0
  %8186 = vmatpush1.msra.mxu0 0.0
  %8187 = vmatprep.subr.mxu0 0.0
  %8188 = vmatpush1.msra.mxu0 0.0
  %8189 = vmatprep.subr.mxu0 0.0
  %8190 = vmatpush1.msra.mxu0 0.0
  %8191 = vmatprep.subr.mxu0 0.0
  %8192 = vmatpush1.msra.mxu0 0.0
  %8193 = vmatprep.subr.mxu0 0.0
  %8194 = vmatpush1.msra.mxu0 0.0
  %8195 = vmatprep.subr.mxu0 0.0
  %8196 = vmatpush1.msra.mxu0 0.0
  %8197 = vmatprep.subr.mxu0 0.0
  %8198 = vmatpush1.msra.mxu0 0.0
  %8199 = vmatprep.subr.mxu0 0.0
  %8200 = vmatpush1.msra.mxu0 0.0
  %8201 = vmatprep.subr.mxu0 0.0
  %8202 = vmatpush1.msra.mxu0 0.0
  %8203 = vmatprep.subr.mxu0 0.0
  %8204 = vmatpush1.msra.mxu0 0.0
  %8205 = vmatprep.subr.mxu0 0.0
  %8206 = vmatpush1.msra.mxu0 0.0
  %8207 = vmatprep.subr.mxu0 0.0
  %8208 = vmatpush1.msra.mxu0 0.0
  %8209 = vmatprep.subr.mxu0 0.0
  %8210 = vmatpush1.msra.mxu0 0.0
  %8211 = vmatprep.subr.mxu0 0.0
  %8212 = vmatpush1.msra.mxu0 0.0
  %8213 = vmatprep.subr.mxu0 0.0
  %8214 = vmatpush1.msra.mxu0 0.0
  %8215 = vmatprep.subr.mxu0 0.0
  %8216 = vmatpush1.msra.mxu0 0.0
  %8217 = vmatprep.subr.mxu0 0.0
  %8218 = vmatpush1.msra.mxu0 0.0
  %8219 = vmatprep.mubr.f32.mxu0 0.0
  %8220 = vmatmul.mubr.f32.gmra.mrb[0].mxu0 %v7137
  %v8221 = vpop.f32.mrb[0].mxu0
  %v8222 = vadd.f32 %v8153, %v8221
  %v8223 = vpop.f32.mrb[0].mxu0
  %8224 = vdwg.mxu0
  %v8225 = vld [vmem:[%s1053] sm:$0xff]
  %v8226 = vld [vmem:[%s1053 + $0x8] sm:$0xff]
  %v8227 = vld [vmem:[%s1053 + $0x10] sm:$0xff]
  %v8228 = vld [vmem:[%s1053 + $0x18] sm:$0xff]
  %v8229 = vld [vmem:[%s1058] sm:$0x1]
  %v8231 = vlaneseq
  %v8232 = vshrl.u32 %v8231, 7
  %v8233 = vsub.s32 0, %v8232
  %v8234 = vrot.slane %v8229, %v8233
  %8236 = vmatprep.subr.mxu0 0.0
  %8237 = vmatpush1.msra.mxu0 %v8225
  %8238 = vmatprep.subr.mxu0 0.0
  %8239 = vmatpush1.msra.mxu0 %v8226
  %8240 = vmatprep.subr.mxu0 0.0
  %8241 = vmatpush1.msra.mxu0 %v8227
  %8242 = vmatprep.subr.mxu0 0.0
  %8243 = vmatpush1.msra.mxu0 %v8228
  %8244 = vmatprep.subr.mxu0 0.0
  %8245 = vmatpush1.msra.mxu0 0.0
  %8246 = vmatprep.subr.mxu0 0.0
  %8247 = vmatpush1.msra.mxu0 0.0
  %8248 = vmatprep.subr.mxu0 0.0
  %8249 = vmatpush1.msra.mxu0 0.0
  %8250 = vmatprep.subr.mxu0 0.0
  %8251 = vmatpush1.msra.mxu0 0.0
  %8252 = vmatprep.subr.mxu0 0.0
  %8253 = vmatpush1.msra.mxu0 0.0
  %8254 = vmatprep.subr.mxu0 0.0
  %8255 = vmatpush1.msra.mxu0 0.0
  %8256 = vmatprep.subr.mxu0 0.0
  %8257 = vmatpush1.msra.mxu0 0.0
  %8258 = vmatprep.subr.mxu0 0.0
  %8259 = vmatpush1.msra.mxu0 0.0
  %8260 = vmatprep.subr.mxu0 0.0
  %8261 = vmatpush1.msra.mxu0 0.0
  %8262 = vmatprep.subr.mxu0 0.0
  %8263 = vmatpush1.msra.mxu0 0.0
  %8264 = vmatprep.subr.mxu0 0.0
  %8265 = vmatpush1.msra.mxu0 0.0
  %8266 = vmatprep.subr.mxu0 0.0
  %8267 = vmatpush1.msra.mxu0 0.0
  %8268 = vmatprep.subr.mxu0 0.0
  %8269 = vmatpush1.msra.mxu0 0.0
  %8270 = vmatprep.subr.mxu0 0.0
  %8271 = vmatpush1.msra.mxu0 0.0
  %8272 = vmatprep.subr.mxu0 0.0
  %8273 = vmatpush1.msra.mxu0 0.0
  %8274 = vmatprep.subr.mxu0 0.0
  %8275 = vmatpush1.msra.mxu0 0.0
  %8276 = vmatprep.subr.mxu0 0.0
  %8277 = vmatpush1.msra.mxu0 0.0
  %8278 = vmatprep.subr.mxu0 0.0
  %8279 = vmatpush1.msra.mxu0 0.0
  %8280 = vmatprep.subr.mxu0 0.0
  %8281 = vmatpush1.msra.mxu0 0.0
  %8282 = vmatprep.subr.mxu0 0.0
  %8283 = vmatpush1.msra.mxu0 0.0
  %8284 = vmatprep.subr.mxu0 0.0
  %8285 = vmatpush1.msra.mxu0 0.0
  %8286 = vmatprep.subr.mxu0 0.0
  %8287 = vmatpush1.msra.mxu0 0.0
  %8288 = vmatprep.subr.mxu0 0.0
  %8289 = vmatpush1.msra.mxu0 0.0
  %8290 = vmatprep.subr.mxu0 0.0
  %8291 = vmatpush1.msra.mxu0 0.0
  %8292 = vmatprep.subr.mxu0 0.0
  %8293 = vmatpush1.msra.mxu0 0.0
  %8294 = vmatprep.subr.mxu0 0.0
  %8295 = vmatpush1.msra.mxu0 0.0
  %8296 = vmatprep.subr.mxu0 0.0
  %8297 = vmatpush1.msra.mxu0 0.0
  %8298 = vmatprep.subr.mxu0 0.0
  %8299 = vmatpush1.msra.mxu0 0.0
  %8300 = vmatprep.mubr.f32.mxu0 0.0
  %8301 = vmatmul.mubr.f32.gmra.mrb[0].mxu0 %v7137
  %v8302 = vpop.f32.mrb[0].mxu0
  %v8303 = vadd.f32 %v8234, %v8302
  %v8304 = vpop.f32.mrb[0].mxu0
  %8305 = vdwg.mxu0
  %v8306 = vadd.f32 %v7900, %v8141
  %v8307 = vxor.u32 %v8306, 2147483648
  %v8308 = vmul.f32 %v8307, 1.442695
  %v8309 = vpow.pop %v8308
  %v8310 = vadd.f32 %v8309, 1.0
  %v8311 = vrcp.pop %v8310
  %v8312 = vmul.f32 1.0, %v8311
  %v8313 = vadd.f32 %v7980, %v8222
  %v8314 = vxor.u32 %v8313, 2147483648
  %v8315 = vmul.f32 %v8314, 1.442695
  %v8316 = vpow.pop %v8315
  %v8317 = vadd.f32 %v8316, 1.0
  %v8318 = vrcp.pop %v8317
  %v8319 = vmul.f32 1.0, %v8318
  %v8320 = vmul.f32 %v8312, %v8303
  %v8321 = vadd.f32 %v8060, %v8320
  %v8322 = vtanh.pop %v8321
  %v8323 = vsub.f32 1.0, %v8319
  %v8324 = vmul.f32 %v8323, %v8322
  %v8325 = vmul.f32 %v8319, %v7131
  %v8326 = vadd.f32 %v8324, %v8325
  %v8327 = vld [vmem:[%s11] sm:$0xff]
  %v8328 = vld [vmem:[%s11 + $0x8] sm:$0xff]
  %v8329 = vld [vmem:[%s11 + $0x10] sm:$0xff]
  %v8330 = vld [vmem:[%s11 + $0x18] sm:$0xff]
  %v8332 = vsel %vm144, %v8326, 0
  %8334 = vmatprep.subr.mxu0 0.0
  %8335 = vmatpush1.msra.mxu0 %v8327
  %8336 = vmatprep.subr.mxu0 0.0
  %8337 = vmatpush1.msra.mxu0 %v8328
  %8338 = vmatprep.subr.mxu0 0.0
  %8339 = vmatpush1.msra.mxu0 %v8329
  %8340 = vmatprep.subr.mxu0 0.0
  %8341 = vmatpush1.msra.mxu0 %v8330
  %8342 = vmatprep.subr.mxu0 0.0
  %8343 = vmatpush1.msra.mxu0 0.0
  %8344 = vmatprep.subr.mxu0 0.0
  %8345 = vmatpush1.msra.mxu0 0.0
  %8346 = vmatprep.subr.mxu0 0.0
  %8347 = vmatpush1.msra.mxu0 0.0
  %8348 = vmatprep.subr.mxu0 0.0
  %8349 = vmatpush1.msra.mxu0 0.0
  %8350 = vmatprep.subr.mxu0 0.0
  %8351 = vmatpush1.msra.mxu0 0.0
  %8352 = vmatprep.subr.mxu0 0.0
  %8353 = vmatpush1.msra.mxu0 0.0
  %8354 = vmatprep.subr.mxu0 0.0
  %8355 = vmatpush1.msra.mxu0 0.0
  %8356 = vmatprep.subr.mxu0 0.0
  %8357 = vmatpush1.msra.mxu0 0.0
  %8358 = vmatprep.subr.mxu0 0.0
  %8359 = vmatpush1.msra.mxu0 0.0
  %8360 = vmatprep.subr.mxu0 0.0
  %8361 = vmatpush1.msra.mxu0 0.0
  %8362 = vmatprep.subr.mxu0 0.0
  %8363 = vmatpush1.msra.mxu0 0.0
  %8364 = vmatprep.subr.mxu0 0.0
  %8365 = vmatpush1.msra.mxu0 0.0
  %8366 = vmatprep.subr.mxu0 0.0
  %8367 = vmatpush1.msra.mxu0 0.0
  %8368 = vmatprep.subr.mxu0 0.0
  %8369 = vmatpush1.msra.mxu0 0.0
  %8370 = vmatprep.subr.mxu0 0.0
  %8371 = vmatpush1.msra.mxu0 0.0
  %8372 = vmatprep.subr.mxu0 0.0
  %8373 = vmatpush1.msra.mxu0 0.0
  %8374 = vmatprep.subr.mxu0 0.0
  %8375 = vmatpush1.msra.mxu0 0.0
  %8376 = vmatprep.subr.mxu0 0.0
  %8377 = vmatpush1.msra.mxu0 0.0
  %8378 = vmatprep.subr.mxu0 0.0
  %8379 = vmatpush1.msra.mxu0 0.0
  %8380 = vmatprep.subr.mxu0 0.0
  %8381 = vmatpush1.msra.mxu0 0.0
  %8382 = vmatprep.subr.mxu0 0.0
  %8383 = vmatpush1.msra.mxu0 0.0
  %8384 = vmatprep.subr.mxu0 0.0
  %8385 = vmatpush1.msra.mxu0 0.0
  %8386 = vmatprep.subr.mxu0 0.0
  %8387 = vmatpush1.msra.mxu0 0.0
  %8388 = vmatprep.subr.mxu0 0.0
  %8389 = vmatpush1.msra.mxu0 0.0
  %8390 = vmatprep.subr.mxu0 0.0
  %8391 = vmatpush1.msra.mxu0 0.0
  %8392 = vmatprep.subr.mxu0 0.0
  %8393 = vmatpush1.msra.mxu0 0.0
  %8394 = vmatprep.subr.mxu0 0.0
  %8395 = vmatpush1.msra.mxu0 0.0
  %8396 = vmatprep.subr.mxu0 0.0
  %8397 = vmatpush1.msra.mxu0 0.0
  %8398 = vmatprep.mubr.f32.mxu0 0.0
  %8399 = vmatmul.mubr.f32.gmra.mrb[0].mxu0 %v8332
  %v8400 = vpop.f32.mrb[0].mxu0
  %v8401 = vadd.f32 %v52, %v8400
  %v8402 = vpop.f32.mrb[0].mxu0
  %8403 = vdwg.mxu0
  %v8404 = vsel %vm1234, %v8401, -inf
  %8405 = vmax.xlane.f32.xlu0 %v8404
  %v8406 = vpop.xlane.xlu0 %8405
  %v8407 = vsub.f32 %v8401, %v8406
  %v8408 = vmul.f32 %v8407, 1.442695
  %v8409 = vpow.pop %v8408
  %v8410 = vsel %vm1234, %v8409, 0.0
  %8411 = vadd.xlane.f32.xlu0 %v8410
  %v8412 = vpop.xlane.xlu0 %8411
  %v8413 = vlog2.pop %v8412
  %v8414 = vmul.f32 %v8413, 0.6931472
  %v8415 = vsub.f32 %v8407, %v8414
  %s8416 = scalar_lea.vmem %s12, 24
  %8417 = vst.msk [vmem:[%s8416] sm:$0xf] %vm1234, %v8415
  %vm8418 = vcmp.eq.f32.partialorder %v8401, %v8406
  %v8419 = vsel %vm8418, %v43, 10
  %v8420 = vsel %vm1234, %v8419, 2147483647
  %v8421 = vand.u32 %v8420, 65535
  %v8422 = vshra.s32 %v8420, 16
  %v8423 = vcvt.s32.f32 %v8421
  %v8424 = vcvt.s32.f32 %v8422
  %8425 = vmin.xlane.f32.xlu0 %v8424
  %v8426 = vpop.xlane.xlu0 %8425
  %vm8427 = vcmp.eq.f32.partialorder %v8424, %v8426
  %v8428 = vsel %vm8427, %v8423, inf
  %8429 = vmin.xlane.f32.xlu0 %v8428
  %v8430 = vpop.xlane.xlu0 %8429
  %v8431 = vcvt.f32.s32 %v8430
  %v8432 = vcvt.f32.s32 %v8426
  %v8433 = vshll.u32 %v8432, 16
  %v8434 = vadd.s32 %v8433, %v8431
  %vm8435 = vcmp.eq.s32.totalorder %v43, %v8434
  %v8436 = vsel %vm8435, 1, 0
  %v8437 = vcvt.s32.f32 %v8436
  %v8438 = vld [vmem:[%s3] sm:$0xff]
  %v8439 = vld [vmem:[%s3 + $0x8] sm:$0x3]
  %v8441 = vsel %vm55, %v8437, 0
  %v8444 = vsel %vm59, %v8439, 0
  %8446 = vmatprep.subr.mxu0 0.0
  %8447 = vmatpush1.msra.mxu0 %v8438
  %8448 = vmatprep.subr.mxu0 0.0
  %8449 = vmatpush1.msra.mxu0 %v8444
  %8450 = vmatprep.subr.mxu0 0.0
  %8451 = vmatpush1.msra.mxu0 0.0
  %8452 = vmatprep.subr.mxu0 0.0
  %8453 = vmatpush1.msra.mxu0 0.0
  %8454 = vmatprep.subr.mxu0 0.0
  %8455 = vmatpush1.msra.mxu0 0.0
  %8456 = vmatprep.subr.mxu0 0.0
  %8457 = vmatpush1.msra.mxu0 0.0
  %8458 = vmatprep.subr.mxu0 0.0
  %8459 = vmatpush1.msra.mxu0 0.0
  %8460 = vmatprep.subr.mxu0 0.0
  %8461 = vmatpush1.msra.mxu0 0.0
  %8462 = vmatprep.subr.mxu0 0.0
  %8463 = vmatpush1.msra.mxu0 0.0
  %8464 = vmatprep.subr.mxu0 0.0
  %8465 = vmatpush1.msra.mxu0 0.0
  %8466 = vmatprep.subr.mxu0 0.0
  %8467 = vmatpush1.msra.mxu0 0.0
  %8468 = vmatprep.subr.mxu0 0.0
  %8469 = vmatpush1.msra.mxu0 0.0
  %8470 = vmatprep.subr.mxu0 0.0
  %8471 = vmatpush1.msra.mxu0 0.0
  %8472 = vmatprep.subr.mxu0 0.0
  %8473 = vmatpush1.msra.mxu0 0.0
  %8474 = vmatprep.subr.mxu0 0.0
  %8475 = vmatpush1.msra.mxu0 0.0
  %8476 = vmatprep.subr.mxu0 0.0
  %8477 = vmatpush1.msra.mxu0 0.0
  %8478 = vmatprep.subr.mxu0 0.0
  %8479 = vmatpush1.msra.mxu0 0.0
  %8480 = vmatprep.subr.mxu0 0.0
  %8481 = vmatpush1.msra.mxu0 0.0
  %8482 = vmatprep.subr.mxu0 0.0
  %8483 = vmatpush1.msra.mxu0 0.0
  %8484 = vmatprep.subr.mxu0 0.0
  %8485 = vmatpush1.msra.mxu0 0.0
  %8486 = vmatprep.subr.mxu0 0.0
  %8487 = vmatpush1.msra.mxu0 0.0
  %8488 = vmatprep.subr.mxu0 0.0
  %8489 = vmatpush1.msra.mxu0 0.0
  %8490 = vmatprep.subr.mxu0 0.0
  %8491 = vmatpush1.msra.mxu0 0.0
  %8492 = vmatprep.subr.mxu0 0.0
  %8493 = vmatpush1.msra.mxu0 0.0
  %8494 = vmatprep.subr.mxu0 0.0
  %8495 = vmatpush1.msra.mxu0 0.0
  %8496 = vmatprep.subr.mxu0 0.0
  %8497 = vmatpush1.msra.mxu0 0.0
  %8498 = vmatprep.subr.mxu0 0.0
  %8499 = vmatpush1.msra.mxu0 0.0
  %8500 = vmatprep.subr.mxu0 0.0
  %8501 = vmatpush1.msra.mxu0 0.0
  %8502 = vmatprep.subr.mxu0 0.0
  %8503 = vmatpush1.msra.mxu0 0.0
  %8504 = vmatprep.subr.mxu0 0.0
  %8505 = vmatpush1.msra.mxu0 0.0
  %8506 = vmatprep.subr.mxu0 0.0
  %8507 = vmatpush1.msra.mxu0 0.0
  %8508 = vmatprep.subr.mxu0 0.0
  %8509 = vmatpush1.msra.mxu0 0.0
  %8510 = vmatprep.mubr.f32.mxu0 0.0
  %8511 = vmatmul.mubr.f32.gmra.mrb[0].mxu0 %v8441
  %v8512 = vpop.f32.mrb[0].mxu0
  %v8513 = vadd.f32 0.0, %v8512
  %v8514 = vpop.f32.mrb[0].mxu0
  %8515 = vdwg.mxu0
  %v8516 = vxor.u32 %v8513, 2147483648
  %v8517 = vmul.f32 %v8516, 1.442695
  %v8518 = vpow.pop %v8517
  %v8519 = vadd.f32 %v8518, 1.0
  %v8520 = vrcp.pop %v8519
  %v8521 = vmul.f32 1.0, %v8520
  %v8522 = vmul.f32 %v8513, %v8521
  %v8523 = vld [vmem:[%s4] sm:$0xff]
  %v8524 = vld [vmem:[%s4 + $0x8] sm:$0xff]
  %v8525 = vld [vmem:[%s4 + $0x10] sm:$0xff]
  %v8526 = vld [vmem:[%s4 + $0x18] sm:$0xff]
  %v8528 = vsel %vm144, %v8522, 0
  %8530 = vmatprep.subr.mxu0 0.0
  %8531 = vmatpush1.msra.mxu0 %v8523
  %8532 = vmatprep.subr.mxu0 0.0
  %8533 = vmatpush1.msra.mxu0 %v8524
  %8534 = vmatprep.subr.mxu0 0.0
  %8535 = vmatpush1.msra.mxu0 %v8525
  %8536 = vmatprep.subr.mxu0 0.0
  %8537 = vmatpush1.msra.mxu0 %v8526
  %8538 = vmatprep.subr.mxu0 0.0
  %8539 = vmatpush1.msra.mxu0 0.0
  %8540 = vmatprep.subr.mxu0 0.0
  %8541 = vmatpush1.msra.mxu0 0.0
  %8542 = vmatprep.subr.mxu0 0.0
  %8543 = vmatpush1.msra.mxu0 0.0
  %8544 = vmatprep.subr.mxu0 0.0
  %8545 = vmatpush1.msra.mxu0 0.0
  %8546 = vmatprep.subr.mxu0 0.0
  %8547 = vmatpush1.msra.mxu0 0.0
  %8548 = vmatprep.subr.mxu0 0.0
  %8549 = vmatpush1.msra.mxu0 0.0
  %8550 = vmatprep.subr.mxu0 0.0
  %8551 = vmatpush1.msra.mxu0 0.0
  %8552 = vmatprep.subr.mxu0 0.0
  %8553 = vmatpush1.msra.mxu0 0.0
  %8554 = vmatprep.subr.mxu0 0.0
  %8555 = vmatpush1.msra.mxu0 0.0
  %8556 = vmatprep.subr.mxu0 0.0
  %8557 = vmatpush1.msra.mxu0 0.0
  %8558 = vmatprep.subr.mxu0 0.0
  %8559 = vmatpush1.msra.mxu0 0.0
  %8560 = vmatprep.subr.mxu0 0.0
  %8561 = vmatpush1.msra.mxu0 0.0
  %8562 = vmatprep.subr.mxu0 0.0
  %8563 = vmatpush1.msra.mxu0 0.0
  %8564 = vmatprep.subr.mxu0 0.0
  %8565 = vmatpush1.msra.mxu0 0.0
  %8566 = vmatprep.subr.mxu0 0.0
  %8567 = vmatpush1.msra.mxu0 0.0
  %8568 = vmatprep.subr.mxu0 0.0
  %8569 = vmatpush1.msra.mxu0 0.0
  %8570 = vmatprep.subr.mxu0 0.0
  %8571 = vmatpush1.msra.mxu0 0.0
  %8572 = vmatprep.subr.mxu0 0.0
  %8573 = vmatpush1.msra.mxu0 0.0
  %8574 = vmatprep.subr.mxu0 0.0
  %8575 = vmatpush1.msra.mxu0 0.0
  %8576 = vmatprep.subr.mxu0 0.0
  %8577 = vmatpush1.msra.mxu0 0.0
  %8578 = vmatprep.subr.mxu0 0.0
  %8579 = vmatpush1.msra.mxu0 0.0
  %8580 = vmatprep.subr.mxu0 0.0
  %8581 = vmatpush1.msra.mxu0 0.0
  %8582 = vmatprep.subr.mxu0 0.0
  %8583 = vmatpush1.msra.mxu0 0.0
  %8584 = vmatprep.subr.mxu0 0.0
  %8585 = vmatpush1.msra.mxu0 0.0
  %8586 = vmatprep.subr.mxu0 0.0
  %8587 = vmatpush1.msra.mxu0 0.0
  %8588 = vmatprep.subr.mxu0 0.0
  %8589 = vmatpush1.msra.mxu0 0.0
  %8590 = vmatprep.subr.mxu0 0.0
  %8591 = vmatpush1.msra.mxu0 0.0
  %8592 = vmatprep.subr.mxu0 0.0
  %8593 = vmatpush1.msra.mxu0 0.0
  %8594 = vmatprep.mubr.f32.mxu0 0.0
  %8595 = vmatmul.mubr.f32.gmra.mrb[0].mxu0 %v8528
  %v8596 = vpop.f32.mrb[0].mxu0
  %v8597 = vadd.f32 %v47, %v8596
  %v8598 = vpop.f32.mrb[0].mxu0
  %8599 = vdwg.mxu0
  %v8600 = vld [vmem:[%s218] sm:$0xff]
  %v8601 = vld [vmem:[%s218 + $0x8] sm:$0xff]
  %v8602 = vld [vmem:[%s218 + $0x10] sm:$0xff]
  %v8603 = vld [vmem:[%s218 + $0x18] sm:$0xff]
  %8604 = vmatprep.subr.mxu0 0.0
  %8605 = vmatpush1.msra.mxu0 %v8600
  %8606 = vmatprep.subr.mxu0 0.0
  %8607 = vmatpush1.msra.mxu0 %v8601
  %8608 = vmatprep.subr.mxu0 0.0
  %8609 = vmatpush1.msra.mxu0 %v8602
  %8610 = vmatprep.subr.mxu0 0.0
  %8611 = vmatpush1.msra.mxu0 %v8603
  %8612 = vmatprep.subr.mxu0 0.0
  %8613 = vmatpush1.msra.mxu0 0.0
  %8614 = vmatprep.subr.mxu0 0.0
  %8615 = vmatpush1.msra.mxu0 0.0
  %8616 = vmatprep.subr.mxu0 0.0
  %8617 = vmatpush1.msra.mxu0 0.0
  %8618 = vmatprep.subr.mxu0 0.0
  %8619 = vmatpush1.msra.mxu0 0.0
  %8620 = vmatprep.subr.mxu0 0.0
  %8621 = vmatpush1.msra.mxu0 0.0
  %8622 = vmatprep.subr.mxu0 0.0
  %8623 = vmatpush1.msra.mxu0 0.0
  %8624 = vmatprep.subr.mxu0 0.0
  %8625 = vmatpush1.msra.mxu0 0.0
  %8626 = vmatprep.subr.mxu0 0.0
  %8627 = vmatpush1.msra.mxu0 0.0
  %8628 = vmatprep.subr.mxu0 0.0
  %8629 = vmatpush1.msra.mxu0 0.0
  %8630 = vmatprep.subr.mxu0 0.0
  %8631 = vmatpush1.msra.mxu0 0.0
  %8632 = vmatprep.subr.mxu0 0.0
  %8633 = vmatpush1.msra.mxu0 0.0
  %8634 = vmatprep.subr.mxu0 0.0
  %8635 = vmatpush1.msra.mxu0 0.0
  %8636 = vmatprep.subr.mxu0 0.0
  %8637 = vmatpush1.msra.mxu0 0.0
  %8638 = vmatprep.subr.mxu0 0.0
  %8639 = vmatpush1.msra.mxu0 0.0
  %8640 = vmatprep.subr.mxu0 0.0
  %8641 = vmatpush1.msra.mxu0 0.0
  %8642 = vmatprep.subr.mxu0 0.0
  %8643 = vmatpush1.msra.mxu0 0.0
  %8644 = vmatprep.subr.mxu0 0.0
  %8645 = vmatpush1.msra.mxu0 0.0
  %8646 = vmatprep.subr.mxu0 0.0
  %8647 = vmatpush1.msra.mxu0 0.0
  %8648 = vmatprep.subr.mxu0 0.0
  %8649 = vmatpush1.msra.mxu0 0.0
  %8650 = vmatprep.subr.mxu0 0.0
  %8651 = vmatpush1.msra.mxu0 0.0
  %8652 = vmatprep.subr.mxu0 0.0
  %8653 = vmatpush1.msra.mxu0 0.0
  %8654 = vmatprep.subr.mxu0 0.0
  %8655 = vmatpush1.msra.mxu0 0.0
  %8656 = vmatprep.subr.mxu0 0.0
  %8657 = vmatpush1.msra.mxu0 0.0
  %8658 = vmatprep.subr.mxu0 0.0
  %8659 = vmatpush1.msra.mxu0 0.0
  %8660 = vmatprep.subr.mxu0 0.0
  %8661 = vmatpush1.msra.mxu0 0.0
  %8662 = vmatprep.subr.mxu0 0.0
  %8663 = vmatpush1.msra.mxu0 0.0
  %8664 = vmatprep.subr.mxu0 0.0
  %8665 = vmatpush1.msra.mxu0 0.0
  %8666 = vmatprep.subr.mxu0 0.0
  %8667 = vmatpush1.msra.mxu0 0.0
  %8668 = vmatprep.mubr.f32.mxu0 0.0
  %8669 = vmatmul.mubr.f32.gmra.mrb[0].mxu0 %v8528
  %v8670 = vpop.f32.mrb[0].mxu0
  %v8671 = vadd.f32 %v49, %v8670
  %v8672 = vpop.f32.mrb[0].mxu0
  %8673 = vdwg.mxu0
  %v8674 = vld [vmem:[%s293] sm:$0xff]
  %v8675 = vld [vmem:[%s293 + $0x8] sm:$0xff]
  %v8676 = vld [vmem:[%s293 + $0x10] sm:$0xff]
  %v8677 = vld [vmem:[%s293 + $0x18] sm:$0xff]
  %8678 = vmatprep.subr.mxu0 0.0
  %8679 = vmatpush1.msra.mxu0 %v8674
  %8680 = vmatprep.subr.mxu0 0.0
  %8681 = vmatpush1.msra.mxu0 %v8675
  %8682 = vmatprep.subr.mxu0 0.0
  %8683 = vmatpush1.msra.mxu0 %v8676
  %8684 = vmatprep.subr.mxu0 0.0
  %8685 = vmatpush1.msra.mxu0 %v8677
  %8686 = vmatprep.subr.mxu0 0.0
  %8687 = vmatpush1.msra.mxu0 0.0
  %8688 = vmatprep.subr.mxu0 0.0
  %8689 = vmatpush1.msra.mxu0 0.0
  %8690 = vmatprep.subr.mxu0 0.0
  %8691 = vmatpush1.msra.mxu0 0.0
  %8692 = vmatprep.subr.mxu0 0.0
  %8693 = vmatpush1.msra.mxu0 0.0
  %8694 = vmatprep.subr.mxu0 0.0
  %8695 = vmatpush1.msra.mxu0 0.0
  %8696 = vmatprep.subr.mxu0 0.0
  %8697 = vmatpush1.msra.mxu0 0.0
  %8698 = vmatprep.subr.mxu0 0.0
  %8699 = vmatpush1.msra.mxu0 0.0
  %8700 = vmatprep.subr.mxu0 0.0
  %8701 = vmatpush1.msra.mxu0 0.0
  %8702 = vmatprep.subr.mxu0 0.0
  %8703 = vmatpush1.msra.mxu0 0.0
  %8704 = vmatprep.subr.mxu0 0.0
  %8705 = vmatpush1.msra.mxu0 0.0
  %8706 = vmatprep.subr.mxu0 0.0
  %8707 = vmatpush1.msra.mxu0 0.0
  %8708 = vmatprep.subr.mxu0 0.0
  %8709 = vmatpush1.msra.mxu0 0.0
  %8710 = vmatprep.subr.mxu0 0.0
  %8711 = vmatpush1.msra.mxu0 0.0
  %8712 = vmatprep.subr.mxu0 0.0
  %8713 = vmatpush1.msra.mxu0 0.0
  %8714 = vmatprep.subr.mxu0 0.0
  %8715 = vmatpush1.msra.mxu0 0.0
  %8716 = vmatprep.subr.mxu0 0.0
  %8717 = vmatpush1.msra.mxu0 0.0
  %8718 = vmatprep.subr.mxu0 0.0
  %8719 = vmatpush1.msra.mxu0 0.0
  %8720 = vmatprep.subr.mxu0 0.0
  %8721 = vmatpush1.msra.mxu0 0.0
  %8722 = vmatprep.subr.mxu0 0.0
  %8723 = vmatpush1.msra.mxu0 0.0
  %8724 = vmatprep.subr.mxu0 0.0
  %8725 = vmatpush1.msra.mxu0 0.0
  %8726 = vmatprep.subr.mxu0 0.0
  %8727 = vmatpush1.msra.mxu0 0.0
  %8728 = vmatprep.subr.mxu0 0.0
  %8729 = vmatpush1.msra.mxu0 0.0
  %8730 = vmatprep.subr.mxu0 0.0
  %8731 = vmatpush1.msra.mxu0 0.0
  %8732 = vmatprep.subr.mxu0 0.0
  %8733 = vmatpush1.msra.mxu0 0.0
  %8734 = vmatprep.subr.mxu0 0.0
  %8735 = vmatpush1.msra.mxu0 0.0
  %8736 = vmatprep.subr.mxu0 0.0
  %8737 = vmatpush1.msra.mxu0 0.0
  %8738 = vmatprep.subr.mxu0 0.0
  %8739 = vmatpush1.msra.mxu0 0.0
  %8740 = vmatprep.subr.mxu0 0.0
  %8741 = vmatpush1.msra.mxu0 0.0
  %8742 = vmatprep.mubr.f32.mxu0 0.0
  %8743 = vmatmul.mubr.f32.gmra.mrb[0].mxu0 %v8528
  %v8744 = vpop.f32.mrb[0].mxu0
  %v8745 = vadd.f32 %v51, %v8744
  %v8746 = vpop.f32.mrb[0].mxu0
  %8747 = vdwg.mxu0
  %v8748 = vld [vmem:[%s5] sm:$0xff]
  %v8749 = vld [vmem:[%s5 + $0x8] sm:$0xff]
  %v8750 = vld [vmem:[%s5 + $0x10] sm:$0xff]
  %v8751 = vld [vmem:[%s5 + $0x18] sm:$0xff]
  %v8752 = vld [vmem:[%s6] sm:$0x1]
  %v8754 = vlaneseq
  %v8755 = vshrl.u32 %v8754, 7
  %v8756 = vsub.s32 0, %v8755
  %v8757 = vrot.slane %v8752, %v8756
  %8759 = vmatprep.subr.mxu0 0.0
  %8760 = vmatpush1.msra.mxu0 %v8748
  %8761 = vmatprep.subr.mxu0 0.0
  %8762 = vmatpush1.msra.mxu0 %v8749
  %8763 = vmatprep.subr.mxu0 0.0
  %8764 = vmatpush1.msra.mxu0 %v8750
  %8765 = vmatprep.subr.mxu0 0.0
  %8766 = vmatpush1.msra.mxu0 %v8751
  %8767 = vmatprep.subr.mxu0 0.0
  %8768 = vmatpush1.msra.mxu0 0.0
  %8769 = vmatprep.subr.mxu0 0.0
  %8770 = vmatpush1.msra.mxu0 0.0
  %8771 = vmatprep.subr.mxu0 0.0
  %8772 = vmatpush1.msra.mxu0 0.0
  %8773 = vmatprep.subr.mxu0 0.0
  %8774 = vmatpush1.msra.mxu0 0.0
  %8775 = vmatprep.subr.mxu0 0.0
  %8776 = vmatpush1.msra.mxu0 0.0
  %8777 = vmatprep.subr.mxu0 0.0
  %8778 = vmatpush1.msra.mxu0 0.0
  %8779 = vmatprep.subr.mxu0 0.0
  %8780 = vmatpush1.msra.mxu0 0.0
  %8781 = vmatprep.subr.mxu0 0.0
  %8782 = vmatpush1.msra.mxu0 0.0
  %8783 = vmatprep.subr.mxu0 0.0
  %8784 = vmatpush1.msra.mxu0 0.0
  %8785 = vmatprep.subr.mxu0 0.0
  %8786 = vmatpush1.msra.mxu0 0.0
  %8787 = vmatprep.subr.mxu0 0.0
  %8788 = vmatpush1.msra.mxu0 0.0
  %8789 = vmatprep.subr.mxu0 0.0
  %8790 = vmatpush1.msra.mxu0 0.0
  %8791 = vmatprep.subr.mxu0 0.0
  %8792 = vmatpush1.msra.mxu0 0.0
  %8793 = vmatprep.subr.mxu0 0.0
  %8794 = vmatpush1.msra.mxu0 0.0
  %8795 = vmatprep.subr.mxu0 0.0
  %8796 = vmatpush1.msra.mxu0 0.0
  %8797 = vmatprep.subr.mxu0 0.0
  %8798 = vmatpush1.msra.mxu0 0.0
  %8799 = vmatprep.subr.mxu0 0.0
  %8800 = vmatpush1.msra.mxu0 0.0
  %8801 = vmatprep.subr.mxu0 0.0
  %8802 = vmatpush1.msra.mxu0 0.0
  %8803 = vmatprep.subr.mxu0 0.0
  %8804 = vmatpush1.msra.mxu0 0.0
  %8805 = vmatprep.subr.mxu0 0.0
  %8806 = vmatpush1.msra.mxu0 0.0
  %8807 = vmatprep.subr.mxu0 0.0
  %8808 = vmatpush1.msra.mxu0 0.0
  %8809 = vmatprep.subr.mxu0 0.0
  %8810 = vmatpush1.msra.mxu0 0.0
  %8811 = vmatprep.subr.mxu0 0.0
  %8812 = vmatpush1.msra.mxu0 0.0
  %8813 = vmatprep.subr.mxu0 0.0
  %8814 = vmatpush1.msra.mxu0 0.0
  %8815 = vmatprep.subr.mxu0 0.0
  %8816 = vmatpush1.msra.mxu0 0.0
  %8817 = vmatprep.subr.mxu0 0.0
  %8818 = vmatpush1.msra.mxu0 0.0
  %8819 = vmatprep.subr.mxu0 0.0
  %8820 = vmatpush1.msra.mxu0 0.0
  %8821 = vmatprep.subr.mxu0 0.0
  %8822 = vmatpush1.msra.mxu0 0.0
  %8823 = vmatprep.mubr.f32.mxu0 0.0
  %8824 = vmatmul.mubr.f32.gmra.mrb[0].mxu0 %v7831
  %v8825 = vpop.f32.mrb[0].mxu0
  %v8826 = vadd.f32 %v8757, %v8825
  %v8827 = vpop.f32.mrb[0].mxu0
  %8828 = vdwg.mxu0
  %v8829 = vld [vmem:[%s452] sm:$0xff]
  %v8830 = vld [vmem:[%s452 + $0x8] sm:$0xff]
  %v8831 = vld [vmem:[%s452 + $0x10] sm:$0xff]
  %v8832 = vld [vmem:[%s452 + $0x18] sm:$0xff]
  %v8833 = vld [vmem:[%s457] sm:$0x1]
  %v8835 = vlaneseq
  %v8836 = vshrl.u32 %v8835, 7
  %v8837 = vsub.s32 0, %v8836
  %v8838 = vrot.slane %v8833, %v8837
  %8840 = vmatprep.subr.mxu0 0.0
  %8841 = vmatpush1.msra.mxu0 %v8829
  %8842 = vmatprep.subr.mxu0 0.0
  %8843 = vmatpush1.msra.mxu0 %v8830
  %8844 = vmatprep.subr.mxu0 0.0
  %8845 = vmatpush1.msra.mxu0 %v8831
  %8846 = vmatprep.subr.mxu0 0.0
  %8847 = vmatpush1.msra.mxu0 %v8832
  %8848 = vmatprep.subr.mxu0 0.0
  %8849 = vmatpush1.msra.mxu0 0.0
  %8850 = vmatprep.subr.mxu0 0.0
  %8851 = vmatpush1.msra.mxu0 0.0
  %8852 = vmatprep.subr.mxu0 0.0
  %8853 = vmatpush1.msra.mxu0 0.0
  %8854 = vmatprep.subr.mxu0 0.0
  %8855 = vmatpush1.msra.mxu0 0.0
  %8856 = vmatprep.subr.mxu0 0.0
  %8857 = vmatpush1.msra.mxu0 0.0
  %8858 = vmatprep.subr.mxu0 0.0
  %8859 = vmatpush1.msra.mxu0 0.0
  %8860 = vmatprep.subr.mxu0 0.0
  %8861 = vmatpush1.msra.mxu0 0.0
  %8862 = vmatprep.subr.mxu0 0.0
  %8863 = vmatpush1.msra.mxu0 0.0
  %8864 = vmatprep.subr.mxu0 0.0
  %8865 = vmatpush1.msra.mxu0 0.0
  %8866 = vmatprep.subr.mxu0 0.0
  %8867 = vmatpush1.msra.mxu0 0.0
  %8868 = vmatprep.subr.mxu0 0.0
  %8869 = vmatpush1.msra.mxu0 0.0
  %8870 = vmatprep.subr.mxu0 0.0
  %8871 = vmatpush1.msra.mxu0 0.0
  %8872 = vmatprep.subr.mxu0 0.0
  %8873 = vmatpush1.msra.mxu0 0.0
  %8874 = vmatprep.subr.mxu0 0.0
  %8875 = vmatpush1.msra.mxu0 0.0
  %8876 = vmatprep.subr.mxu0 0.0
  %8877 = vmatpush1.msra.mxu0 0.0
  %8878 = vmatprep.subr.mxu0 0.0
  %8879 = vmatpush1.msra.mxu0 0.0
  %8880 = vmatprep.subr.mxu0 0.0
  %8881 = vmatpush1.msra.mxu0 0.0
  %8882 = vmatprep.subr.mxu0 0.0
  %8883 = vmatpush1.msra.mxu0 0.0
  %8884 = vmatprep.subr.mxu0 0.0
  %8885 = vmatpush1.msra.mxu0 0.0
  %8886 = vmatprep.subr.mxu0 0.0
  %8887 = vmatpush1.msra.mxu0 0.0
  %8888 = vmatprep.subr.mxu0 0.0
  %8889 = vmatpush1.msra.mxu0 0.0
  %8890 = vmatprep.subr.mxu0 0.0
  %8891 = vmatpush1.msra.mxu0 0.0
  %8892 = vmatprep.subr.mxu0 0.0
  %8893 = vmatpush1.msra.mxu0 0.0
  %8894 = vmatprep.subr.mxu0 0.0
  %8895 = vmatpush1.msra.mxu0 0.0
  %8896 = vmatprep.subr.mxu0 0.0
  %8897 = vmatpush1.msra.mxu0 0.0
  %8898 = vmatprep.subr.mxu0 0.0
  %8899 = vmatpush1.msra.mxu0 0.0
  %8900 = vmatprep.subr.mxu0 0.0
  %8901 = vmatpush1.msra.mxu0 0.0
  %8902 = vmatprep.subr.mxu0 0.0
  %8903 = vmatpush1.msra.mxu0 0.0
  %8904 = vmatprep.mubr.f32.mxu0 0.0
  %8905 = vmatmul.mubr.f32.gmra.mrb[0].mxu0 %v7831
  %v8906 = vpop.f32.mrb[0].mxu0
  %v8907 = vadd.f32 %v8838, %v8906
  %v8908 = vpop.f32.mrb[0].mxu0
  %8909 = vdwg.mxu0
  %v8910 = vld [vmem:[%s535] sm:$0xff]
  %v8911 = vld [vmem:[%s535 + $0x8] sm:$0xff]
  %v8912 = vld [vmem:[%s535 + $0x10] sm:$0xff]
  %v8913 = vld [vmem:[%s535 + $0x18] sm:$0xff]
  %v8914 = vld [vmem:[%s540] sm:$0x1]
  %v8916 = vlaneseq
  %v8917 = vshrl.u32 %v8916, 7
  %v8918 = vsub.s32 0, %v8917
  %v8919 = vrot.slane %v8914, %v8918
  %8921 = vmatprep.subr.mxu0 0.0
  %8922 = vmatpush1.msra.mxu0 %v8910
  %8923 = vmatprep.subr.mxu0 0.0
  %8924 = vmatpush1.msra.mxu0 %v8911
  %8925 = vmatprep.subr.mxu0 0.0
  %8926 = vmatpush1.msra.mxu0 %v8912
  %8927 = vmatprep.subr.mxu0 0.0
  %8928 = vmatpush1.msra.mxu0 %v8913
  %8929 = vmatprep.subr.mxu0 0.0
  %8930 = vmatpush1.msra.mxu0 0.0
  %8931 = vmatprep.subr.mxu0 0.0
  %8932 = vmatpush1.msra.mxu0 0.0
  %8933 = vmatprep.subr.mxu0 0.0
  %8934 = vmatpush1.msra.mxu0 0.0
  %8935 = vmatprep.subr.mxu0 0.0
  %8936 = vmatpush1.msra.mxu0 0.0
  %8937 = vmatprep.subr.mxu0 0.0
  %8938 = vmatpush1.msra.mxu0 0.0
  %8939 = vmatprep.subr.mxu0 0.0
  %8940 = vmatpush1.msra.mxu0 0.0
  %8941 = vmatprep.subr.mxu0 0.0
  %8942 = vmatpush1.msra.mxu0 0.0
  %8943 = vmatprep.subr.mxu0 0.0
  %8944 = vmatpush1.msra.mxu0 0.0
  %8945 = vmatprep.subr.mxu0 0.0
  %8946 = vmatpush1.msra.mxu0 0.0
  %8947 = vmatprep.subr.mxu0 0.0
  %8948 = vmatpush1.msra.mxu0 0.0
  %8949 = vmatprep.subr.mxu0 0.0
  %8950 = vmatpush1.msra.mxu0 0.0
  %8951 = vmatprep.subr.mxu0 0.0
  %8952 = vmatpush1.msra.mxu0 0.0
  %8953 = vmatprep.subr.mxu0 0.0
  %8954 = vmatpush1.msra.mxu0 0.0
  %8955 = vmatprep.subr.mxu0 0.0
  %8956 = vmatpush1.msra.mxu0 0.0
  %8957 = vmatprep.subr.mxu0 0.0
  %8958 = vmatpush1.msra.mxu0 0.0
  %8959 = vmatprep.subr.mxu0 0.0
  %8960 = vmatpush1.msra.mxu0 0.0
  %8961 = vmatprep.subr.mxu0 0.0
  %8962 = vmatpush1.msra.mxu0 0.0
  %8963 = vmatprep.subr.mxu0 0.0
  %8964 = vmatpush1.msra.mxu0 0.0
  %8965 = vmatprep.subr.mxu0 0.0
  %8966 = vmatpush1.msra.mxu0 0.0
  %8967 = vmatprep.subr.mxu0 0.0
  %8968 = vmatpush1.msra.mxu0 0.0
  %8969 = vmatprep.subr.mxu0 0.0
  %8970 = vmatpush1.msra.mxu0 0.0
  %8971 = vmatprep.subr.mxu0 0.0
  %8972 = vmatpush1.msra.mxu0 0.0
  %8973 = vmatprep.subr.mxu0 0.0
  %8974 = vmatpush1.msra.mxu0 0.0
  %8975 = vmatprep.subr.mxu0 0.0
  %8976 = vmatpush1.msra.mxu0 0.0
  %8977 = vmatprep.subr.mxu0 0.0
  %8978 = vmatpush1.msra.mxu0 0.0
  %8979 = vmatprep.subr.mxu0 0.0
  %8980 = vmatpush1.msra.mxu0 0.0
  %8981 = vmatprep.subr.mxu0 0.0
  %8982 = vmatpush1.msra.mxu0 0.0
  %8983 = vmatprep.subr.mxu0 0.0
  %8984 = vmatpush1.msra.mxu0 0.0
  %8985 = vmatprep.mubr.f32.mxu0 0.0
  %8986 = vmatmul.mubr.f32.gmra.mrb[0].mxu0 %v7831
  %v8987 = vpop.f32.mrb[0].mxu0
  %v8988 = vadd.f32 %v8919, %v8987
  %v8989 = vpop.f32.mrb[0].mxu0
  %8990 = vdwg.mxu0
  %v8991 = vadd.f32 %v8597, %v8826
  %v8992 = vxor.u32 %v8991, 2147483648
  %v8993 = vmul.f32 %v8992, 1.442695
  %v8994 = vpow.pop %v8993
  %v8995 = vadd.f32 %v8994, 1.0
  %v8996 = vrcp.pop %v8995
  %v8997 = vmul.f32 1.0, %v8996
  %v8998 = vadd.f32 %v8671, %v8907
  %v8999 = vxor.u32 %v8998, 2147483648
  %v9000 = vmul.f32 %v8999, 1.442695
  %v9001 = vpow.pop %v9000
  %v9002 = vadd.f32 %v9001, 1.0
  %v9003 = vrcp.pop %v9002
  %v9004 = vmul.f32 1.0, %v9003
  %v9005 = vmul.f32 %v8997, %v8988
  %v9006 = vadd.f32 %v8745, %v9005
  %v9007 = vtanh.pop %v9006
  %v9008 = vsub.f32 1.0, %v9004
  %v9009 = vmul.f32 %v9008, %v9007
  %v9010 = vmul.f32 %v9004, %v7816
  %v9011 = vadd.f32 %v9009, %v9010
  %v9012 = vld [vmem:[%s8] sm:$0x1]
  %v9013 = vld [vmem:[%s640] sm:$0x1]
  %v9014 = vld [vmem:[%s642] sm:$0x1]
  %v9015 = vld [vmem:[%s7] sm:$0xff]
  %v9016 = vld [vmem:[%s7 + $0x8] sm:$0xff]
  %v9017 = vld [vmem:[%s7 + $0x10] sm:$0xff]
  %v9018 = vld [vmem:[%s7 + $0x18] sm:$0xff]
  %v9020 = vlaneseq
  %v9021 = vshrl.u32 %v9020, 7
  %v9022 = vsub.s32 0, %v9021
  %v9023 = vrot.slane %v9012, %v9022
  %v9026 = vsel %vm144, %v9011, 0
  %9028 = vmatprep.subr.mxu0 0.0
  %9029 = vmatpush1.msra.mxu0 %v9015
  %9030 = vmatprep.subr.mxu0 0.0
  %9031 = vmatpush1.msra.mxu0 %v9016
  %9032 = vmatprep.subr.mxu0 0.0
  %9033 = vmatpush1.msra.mxu0 %v9017
  %9034 = vmatprep.subr.mxu0 0.0
  %9035 = vmatpush1.msra.mxu0 %v9018
  %9036 = vmatprep.subr.mxu0 0.0
  %9037 = vmatpush1.msra.mxu0 0.0
  %9038 = vmatprep.subr.mxu0 0.0
  %9039 = vmatpush1.msra.mxu0 0.0
  %9040 = vmatprep.subr.mxu0 0.0
  %9041 = vmatpush1.msra.mxu0 0.0
  %9042 = vmatprep.subr.mxu0 0.0
  %9043 = vmatpush1.msra.mxu0 0.0
  %9044 = vmatprep.subr.mxu0 0.0
  %9045 = vmatpush1.msra.mxu0 0.0
  %9046 = vmatprep.subr.mxu0 0.0
  %9047 = vmatpush1.msra.mxu0 0.0
  %9048 = vmatprep.subr.mxu0 0.0
  %9049 = vmatpush1.msra.mxu0 0.0
  %9050 = vmatprep.subr.mxu0 0.0
  %9051 = vmatpush1.msra.mxu0 0.0
  %9052 = vmatprep.subr.mxu0 0.0
  %9053 = vmatpush1.msra.mxu0 0.0
  %9054 = vmatprep.subr.mxu0 0.0
  %9055 = vmatpush1.msra.mxu0 0.0
  %9056 = vmatprep.subr.mxu0 0.0
  %9057 = vmatpush1.msra.mxu0 0.0
  %9058 = vmatprep.subr.mxu0 0.0
  %9059 = vmatpush1.msra.mxu0 0.0
  %9060 = vmatprep.subr.mxu0 0.0
  %9061 = vmatpush1.msra.mxu0 0.0
  %9062 = vmatprep.subr.mxu0 0.0
  %9063 = vmatpush1.msra.mxu0 0.0
  %9064 = vmatprep.subr.mxu0 0.0
  %9065 = vmatpush1.msra.mxu0 0.0
  %9066 = vmatprep.subr.mxu0 0.0
  %9067 = vmatpush1.msra.mxu0 0.0
  %9068 = vmatprep.subr.mxu0 0.0
  %9069 = vmatpush1.msra.mxu0 0.0
  %9070 = vmatprep.subr.mxu0 0.0
  %9071 = vmatpush1.msra.mxu0 0.0
  %9072 = vmatprep.subr.mxu0 0.0
  %9073 = vmatpush1.msra.mxu0 0.0
  %9074 = vmatprep.subr.mxu0 0.0
  %9075 = vmatpush1.msra.mxu0 0.0
  %9076 = vmatprep.subr.mxu0 0.0
  %9077 = vmatpush1.msra.mxu0 0.0
  %9078 = vmatprep.subr.mxu0 0.0
  %9079 = vmatpush1.msra.mxu0 0.0
  %9080 = vmatprep.subr.mxu0 0.0
  %9081 = vmatpush1.msra.mxu0 0.0
  %9082 = vmatprep.subr.mxu0 0.0
  %9083 = vmatpush1.msra.mxu0 0.0
  %9084 = vmatprep.subr.mxu0 0.0
  %9085 = vmatpush1.msra.mxu0 0.0
  %9086 = vmatprep.subr.mxu0 0.0
  %9087 = vmatpush1.msra.mxu0 0.0
  %9088 = vmatprep.subr.mxu0 0.0
  %9089 = vmatpush1.msra.mxu0 0.0
  %9090 = vmatprep.subr.mxu0 0.0
  %9091 = vmatpush1.msra.mxu0 0.0
  %9092 = vmatprep.mubr.f32.mxu0 0.0
  %9093 = vmatmul.mubr.f32.gmra.mrb[0].mxu0 %v9026
  %v9094 = vpop.f32.mrb[0].mxu0
  %v9095 = vadd.f32 %v9023, %v9094
  %v9096 = vpop.f32.mrb[0].mxu0
  %9097 = vdwg.mxu0
  %v9098 = vld [vmem:[%s727] sm:$0xff]
  %v9099 = vld [vmem:[%s727 + $0x8] sm:$0xff]
  %v9100 = vld [vmem:[%s727 + $0x10] sm:$0xff]
  %v9101 = vld [vmem:[%s727 + $0x18] sm:$0xff]
  %v9103 = vlaneseq
  %v9104 = vshrl.u32 %v9103, 7
  %v9105 = vsub.s32 0, %v9104
  %v9106 = vrot.slane %v9013, %v9105
  %9108 = vmatprep.subr.mxu0 0.0
  %9109 = vmatpush1.msra.mxu0 %v9098
  %9110 = vmatprep.subr.mxu0 0.0
  %9111 = vmatpush1.msra.mxu0 %v9099
  %9112 = vmatprep.subr.mxu0 0.0
  %9113 = vmatpush1.msra.mxu0 %v9100
  %9114 = vmatprep.subr.mxu0 0.0
  %9115 = vmatpush1.msra.mxu0 %v9101
  %9116 = vmatprep.subr.mxu0 0.0
  %9117 = vmatpush1.msra.mxu0 0.0
  %9118 = vmatprep.subr.mxu0 0.0
  %9119 = vmatpush1.msra.mxu0 0.0
  %9120 = vmatprep.subr.mxu0 0.0
  %9121 = vmatpush1.msra.mxu0 0.0
  %9122 = vmatprep.subr.mxu0 0.0
  %9123 = vmatpush1.msra.mxu0 0.0
  %9124 = vmatprep.subr.mxu0 0.0
  %9125 = vmatpush1.msra.mxu0 0.0
  %9126 = vmatprep.subr.mxu0 0.0
  %9127 = vmatpush1.msra.mxu0 0.0
  %9128 = vmatprep.subr.mxu0 0.0
  %9129 = vmatpush1.msra.mxu0 0.0
  %9130 = vmatprep.subr.mxu0 0.0
  %9131 = vmatpush1.msra.mxu0 0.0
  %9132 = vmatprep.subr.mxu0 0.0
  %9133 = vmatpush1.msra.mxu0 0.0
  %9134 = vmatprep.subr.mxu0 0.0
  %9135 = vmatpush1.msra.mxu0 0.0
  %9136 = vmatprep.subr.mxu0 0.0
  %9137 = vmatpush1.msra.mxu0 0.0
  %9138 = vmatprep.subr.mxu0 0.0
  %9139 = vmatpush1.msra.mxu0 0.0
  %9140 = vmatprep.subr.mxu0 0.0
  %9141 = vmatpush1.msra.mxu0 0.0
  %9142 = vmatprep.subr.mxu0 0.0
  %9143 = vmatpush1.msra.mxu0 0.0
  %9144 = vmatprep.subr.mxu0 0.0
  %9145 = vmatpush1.msra.mxu0 0.0
  %9146 = vmatprep.subr.mxu0 0.0
  %9147 = vmatpush1.msra.mxu0 0.0
  %9148 = vmatprep.subr.mxu0 0.0
  %9149 = vmatpush1.msra.mxu0 0.0
  %9150 = vmatprep.subr.mxu0 0.0
  %9151 = vmatpush1.msra.mxu0 0.0
  %9152 = vmatprep.subr.mxu0 0.0
  %9153 = vmatpush1.msra.mxu0 0.0
  %9154 = vmatprep.subr.mxu0 0.0
  %9155 = vmatpush1.msra.mxu0 0.0
  %9156 = vmatprep.subr.mxu0 0.0
  %9157 = vmatpush1.msra.mxu0 0.0
  %9158 = vmatprep.subr.mxu0 0.0
  %9159 = vmatpush1.msra.mxu0 0.0
  %9160 = vmatprep.subr.mxu0 0.0
  %9161 = vmatpush1.msra.mxu0 0.0
  %9162 = vmatprep.subr.mxu0 0.0
  %9163 = vmatpush1.msra.mxu0 0.0
  %9164 = vmatprep.subr.mxu0 0.0
  %9165 = vmatpush1.msra.mxu0 0.0
  %9166 = vmatprep.subr.mxu0 0.0
  %9167 = vmatpush1.msra.mxu0 0.0
  %9168 = vmatprep.subr.mxu0 0.0
  %9169 = vmatpush1.msra.mxu0 0.0
  %9170 = vmatprep.subr.mxu0 0.0
  %9171 = vmatpush1.msra.mxu0 0.0
  %9172 = vmatprep.mubr.f32.mxu0 0.0
  %9173 = vmatmul.mubr.f32.gmra.mrb[0].mxu0 %v9026
  %v9174 = vpop.f32.mrb[0].mxu0
  %v9175 = vadd.f32 %v9106, %v9174
  %v9176 = vpop.f32.mrb[0].mxu0
  %9177 = vdwg.mxu0
  %v9178 = vld [vmem:[%s808] sm:$0xff]
  %v9179 = vld [vmem:[%s808 + $0x8] sm:$0xff]
  %v9180 = vld [vmem:[%s808 + $0x10] sm:$0xff]
  %v9181 = vld [vmem:[%s808 + $0x18] sm:$0xff]
  %v9183 = vlaneseq
  %v9184 = vshrl.u32 %v9183, 7
  %v9185 = vsub.s32 0, %v9184
  %v9186 = vrot.slane %v9014, %v9185
  %9188 = vmatprep.subr.mxu0 0.0
  %9189 = vmatpush1.msra.mxu0 %v9178
  %9190 = vmatprep.subr.mxu0 0.0
  %9191 = vmatpush1.msra.mxu0 %v9179
  %9192 = vmatprep.subr.mxu0 0.0
  %9193 = vmatpush1.msra.mxu0 %v9180
  %9194 = vmatprep.subr.mxu0 0.0
  %9195 = vmatpush1.msra.mxu0 %v9181
  %9196 = vmatprep.subr.mxu0 0.0
  %9197 = vmatpush1.msra.mxu0 0.0
  %9198 = vmatprep.subr.mxu0 0.0
  %9199 = vmatpush1.msra.mxu0 0.0
  %9200 = vmatprep.subr.mxu0 0.0
  %9201 = vmatpush1.msra.mxu0 0.0
  %9202 = vmatprep.subr.mxu0 0.0
  %9203 = vmatpush1.msra.mxu0 0.0
  %9204 = vmatprep.subr.mxu0 0.0
  %9205 = vmatpush1.msra.mxu0 0.0
  %9206 = vmatprep.subr.mxu0 0.0
  %9207 = vmatpush1.msra.mxu0 0.0
  %9208 = vmatprep.subr.mxu0 0.0
  %9209 = vmatpush1.msra.mxu0 0.0
  %9210 = vmatprep.subr.mxu0 0.0
  %9211 = vmatpush1.msra.mxu0 0.0
  %9212 = vmatprep.subr.mxu0 0.0
  %9213 = vmatpush1.msra.mxu0 0.0
  %9214 = vmatprep.subr.mxu0 0.0
  %9215 = vmatpush1.msra.mxu0 0.0
  %9216 = vmatprep.subr.mxu0 0.0
  %9217 = vmatpush1.msra.mxu0 0.0
  %9218 = vmatprep.subr.mxu0 0.0
  %9219 = vmatpush1.msra.mxu0 0.0
  %9220 = vmatprep.subr.mxu0 0.0
  %9221 = vmatpush1.msra.mxu0 0.0
  %9222 = vmatprep.subr.mxu0 0.0
  %9223 = vmatpush1.msra.mxu0 0.0
  %9224 = vmatprep.subr.mxu0 0.0
  %9225 = vmatpush1.msra.mxu0 0.0
  %9226 = vmatprep.subr.mxu0 0.0
  %9227 = vmatpush1.msra.mxu0 0.0
  %9228 = vmatprep.subr.mxu0 0.0
  %9229 = vmatpush1.msra.mxu0 0.0
  %9230 = vmatprep.subr.mxu0 0.0
  %9231 = vmatpush1.msra.mxu0 0.0
  %9232 = vmatprep.subr.mxu0 0.0
  %9233 = vmatpush1.msra.mxu0 0.0
  %9234 = vmatprep.subr.mxu0 0.0
  %9235 = vmatpush1.msra.mxu0 0.0
  %9236 = vmatprep.subr.mxu0 0.0
  %9237 = vmatpush1.msra.mxu0 0.0
  %9238 = vmatprep.subr.mxu0 0.0
  %9239 = vmatpush1.msra.mxu0 0.0
  %9240 = vmatprep.subr.mxu0 0.0
  %9241 = vmatpush1.msra.mxu0 0.0
  %9242 = vmatprep.subr.mxu0 0.0
  %9243 = vmatpush1.msra.mxu0 0.0
  %9244 = vmatprep.subr.mxu0 0.0
  %9245 = vmatpush1.msra.mxu0 0.0
  %9246 = vmatprep.subr.mxu0 0.0
  %9247 = vmatpush1.msra.mxu0 0.0
  %9248 = vmatprep.subr.mxu0 0.0
  %9249 = vmatpush1.msra.mxu0 0.0
  %9250 = vmatprep.subr.mxu0 0.0
  %9251 = vmatpush1.msra.mxu0 0.0
  %9252 = vmatprep.mubr.f32.mxu0 0.0
  %9253 = vmatmul.mubr.f32.gmra.mrb[0].mxu0 %v9026
  %v9254 = vpop.f32.mrb[0].mxu0
  %v9255 = vadd.f32 %v9186, %v9254
  %v9256 = vpop.f32.mrb[0].mxu0
  %9257 = vdwg.mxu0
  %v9258 = vld [vmem:[%s9] sm:$0xff]
  %v9259 = vld [vmem:[%s9 + $0x8] sm:$0xff]
  %v9260 = vld [vmem:[%s9 + $0x10] sm:$0xff]
  %v9261 = vld [vmem:[%s9 + $0x18] sm:$0xff]
  %v9262 = vld [vmem:[%s10] sm:$0x1]
  %v9264 = vlaneseq
  %v9265 = vshrl.u32 %v9264, 7
  %v9266 = vsub.s32 0, %v9265
  %v9267 = vrot.slane %v9262, %v9266
  %9269 = vmatprep.subr.mxu0 0.0
  %9270 = vmatpush1.msra.mxu0 %v9258
  %9271 = vmatprep.subr.mxu0 0.0
  %9272 = vmatpush1.msra.mxu0 %v9259
  %9273 = vmatprep.subr.mxu0 0.0
  %9274 = vmatpush1.msra.mxu0 %v9260
  %9275 = vmatprep.subr.mxu0 0.0
  %9276 = vmatpush1.msra.mxu0 %v9261
  %9277 = vmatprep.subr.mxu0 0.0
  %9278 = vmatpush1.msra.mxu0 0.0
  %9279 = vmatprep.subr.mxu0 0.0
  %9280 = vmatpush1.msra.mxu0 0.0
  %9281 = vmatprep.subr.mxu0 0.0
  %9282 = vmatpush1.msra.mxu0 0.0
  %9283 = vmatprep.subr.mxu0 0.0
  %9284 = vmatpush1.msra.mxu0 0.0
  %9285 = vmatprep.subr.mxu0 0.0
  %9286 = vmatpush1.msra.mxu0 0.0
  %9287 = vmatprep.subr.mxu0 0.0
  %9288 = vmatpush1.msra.mxu0 0.0
  %9289 = vmatprep.subr.mxu0 0.0
  %9290 = vmatpush1.msra.mxu0 0.0
  %9291 = vmatprep.subr.mxu0 0.0
  %9292 = vmatpush1.msra.mxu0 0.0
  %9293 = vmatprep.subr.mxu0 0.0
  %9294 = vmatpush1.msra.mxu0 0.0
  %9295 = vmatprep.subr.mxu0 0.0
  %9296 = vmatpush1.msra.mxu0 0.0
  %9297 = vmatprep.subr.mxu0 0.0
  %9298 = vmatpush1.msra.mxu0 0.0
  %9299 = vmatprep.subr.mxu0 0.0
  %9300 = vmatpush1.msra.mxu0 0.0
  %9301 = vmatprep.subr.mxu0 0.0
  %9302 = vmatpush1.msra.mxu0 0.0
  %9303 = vmatprep.subr.mxu0 0.0
  %9304 = vmatpush1.msra.mxu0 0.0
  %9305 = vmatprep.subr.mxu0 0.0
  %9306 = vmatpush1.msra.mxu0 0.0
  %9307 = vmatprep.subr.mxu0 0.0
  %9308 = vmatpush1.msra.mxu0 0.0
  %9309 = vmatprep.subr.mxu0 0.0
  %9310 = vmatpush1.msra.mxu0 0.0
  %9311 = vmatprep.subr.mxu0 0.0
  %9312 = vmatpush1.msra.mxu0 0.0
  %9313 = vmatprep.subr.mxu0 0.0
  %9314 = vmatpush1.msra.mxu0 0.0
  %9315 = vmatprep.subr.mxu0 0.0
  %9316 = vmatpush1.msra.mxu0 0.0
  %9317 = vmatprep.subr.mxu0 0.0
  %9318 = vmatpush1.msra.mxu0 0.0
  %9319 = vmatprep.subr.mxu0 0.0
  %9320 = vmatpush1.msra.mxu0 0.0
  %9321 = vmatprep.subr.mxu0 0.0
  %9322 = vmatpush1.msra.mxu0 0.0
  %9323 = vmatprep.subr.mxu0 0.0
  %9324 = vmatpush1.msra.mxu0 0.0
  %9325 = vmatprep.subr.mxu0 0.0
  %9326 = vmatpush1.msra.mxu0 0.0
  %9327 = vmatprep.subr.mxu0 0.0
  %9328 = vmatpush1.msra.mxu0 0.0
  %9329 = vmatprep.subr.mxu0 0.0
  %9330 = vmatpush1.msra.mxu0 0.0
  %9331 = vmatprep.subr.mxu0 0.0
  %9332 = vmatpush1.msra.mxu0 0.0
  %9333 = vmatprep.mubr.f32.mxu0 0.0
  %9334 = vmatmul.mubr.f32.gmra.mrb[0].mxu0 %v8332
  %v9335 = vpop.f32.mrb[0].mxu0
  %v9336 = vadd.f32 %v9267, %v9335
  %v9337 = vpop.f32.mrb[0].mxu0
  %9338 = vdwg.mxu0
  %v9339 = vld [vmem:[%s970] sm:$0xff]
  %v9340 = vld [vmem:[%s970 + $0x8] sm:$0xff]
  %v9341 = vld [vmem:[%s970 + $0x10] sm:$0xff]
  %v9342 = vld [vmem:[%s970 + $0x18] sm:$0xff]
  %v9343 = vld [vmem:[%s975] sm:$0x1]
  %v9345 = vlaneseq
  %v9346 = vshrl.u32 %v9345, 7
  %v9347 = vsub.s32 0, %v9346
  %v9348 = vrot.slane %v9343, %v9347
  %9350 = vmatprep.subr.mxu0 0.0
  %9351 = vmatpush1.msra.mxu0 %v9339
  %9352 = vmatprep.subr.mxu0 0.0
  %9353 = vmatpush1.msra.mxu0 %v9340
  %9354 = vmatprep.subr.mxu0 0.0
  %9355 = vmatpush1.msra.mxu0 %v9341
  %9356 = vmatprep.subr.mxu0 0.0
  %9357 = vmatpush1.msra.mxu0 %v9342
  %9358 = vmatprep.subr.mxu0 0.0
  %9359 = vmatpush1.msra.mxu0 0.0
  %9360 = vmatprep.subr.mxu0 0.0
  %9361 = vmatpush1.msra.mxu0 0.0
  %9362 = vmatprep.subr.mxu0 0.0
  %9363 = vmatpush1.msra.mxu0 0.0
  %9364 = vmatprep.subr.mxu0 0.0
  %9365 = vmatpush1.msra.mxu0 0.0
  %9366 = vmatprep.subr.mxu0 0.0
  %9367 = vmatpush1.msra.mxu0 0.0
  %9368 = vmatprep.subr.mxu0 0.0
  %9369 = vmatpush1.msra.mxu0 0.0
  %9370 = vmatprep.subr.mxu0 0.0
  %9371 = vmatpush1.msra.mxu0 0.0
  %9372 = vmatprep.subr.mxu0 0.0
  %9373 = vmatpush1.msra.mxu0 0.0
  %9374 = vmatprep.subr.mxu0 0.0
  %9375 = vmatpush1.msra.mxu0 0.0
  %9376 = vmatprep.subr.mxu0 0.0
  %9377 = vmatpush1.msra.mxu0 0.0
  %9378 = vmatprep.subr.mxu0 0.0
  %9379 = vmatpush1.msra.mxu0 0.0
  %9380 = vmatprep.subr.mxu0 0.0
  %9381 = vmatpush1.msra.mxu0 0.0
  %9382 = vmatprep.subr.mxu0 0.0
  %9383 = vmatpush1.msra.mxu0 0.0
  %9384 = vmatprep.subr.mxu0 0.0
  %9385 = vmatpush1.msra.mxu0 0.0
  %9386 = vmatprep.subr.mxu0 0.0
  %9387 = vmatpush1.msra.mxu0 0.0
  %9388 = vmatprep.subr.mxu0 0.0
  %9389 = vmatpush1.msra.mxu0 0.0
  %9390 = vmatprep.subr.mxu0 0.0
  %9391 = vmatpush1.msra.mxu0 0.0
  %9392 = vmatprep.subr.mxu0 0.0
  %9393 = vmatpush1.msra.mxu0 0.0
  %9394 = vmatprep.subr.mxu0 0.0
  %9395 = vmatpush1.msra.mxu0 0.0
  %9396 = vmatprep.subr.mxu0 0.0
  %9397 = vmatpush1.msra.mxu0 0.0
  %9398 = vmatprep.subr.mxu0 0.0
  %9399 = vmatpush1.msra.mxu0 0.0
  %9400 = vmatprep.subr.mxu0 0.0
  %9401 = vmatpush1.msra.mxu0 0.0
  %9402 = vmatprep.subr.mxu0 0.0
  %9403 = vmatpush1.msra.mxu0 0.0
  %9404 = vmatprep.subr.mxu0 0.0
  %9405 = vmatpush1.msra.mxu0 0.0
  %9406 = vmatprep.subr.mxu0 0.0
  %9407 = vmatpush1.msra.mxu0 0.0
  %9408 = vmatprep.subr.mxu0 0.0
  %9409 = vmatpush1.msra.mxu0 0.0
  %9410 = vmatprep.subr.mxu0 0.0
  %9411 = vmatpush1.msra.mxu0 0.0
  %9412 = vmatprep.subr.mxu0 0.0
  %9413 = vmatpush1.msra.mxu0 0.0
  %9414 = vmatprep.mubr.f32.mxu0 0.0
  %9415 = vmatmul.mubr.f32.gmra.mrb[0].mxu0 %v8332
  %v9416 = vpop.f32.mrb[0].mxu0
  %v9417 = vadd.f32 %v9348, %v9416
  %v9418 = vpop.f32.mrb[0].mxu0
  %9419 = vdwg.mxu0
  %v9420 = vld [vmem:[%s1053] sm:$0xff]
  %v9421 = vld [vmem:[%s1053 + $0x8] sm:$0xff]
  %v9422 = vld [vmem:[%s1053 + $0x10] sm:$0xff]
  %v9423 = vld [vmem:[%s1053 + $0x18] sm:$0xff]
  %v9424 = vld [vmem:[%s1058] sm:$0x1]
  %v9426 = vlaneseq
  %v9427 = vshrl.u32 %v9426, 7
  %v9428 = vsub.s32 0, %v9427
  %v9429 = vrot.slane %v9424, %v9428
  %9431 = vmatprep.subr.mxu0 0.0
  %9432 = vmatpush1.msra.mxu0 %v9420
  %9433 = vmatprep.subr.mxu0 0.0
  %9434 = vmatpush1.msra.mxu0 %v9421
  %9435 = vmatprep.subr.mxu0 0.0
  %9436 = vmatpush1.msra.mxu0 %v9422
  %9437 = vmatprep.subr.mxu0 0.0
  %9438 = vmatpush1.msra.mxu0 %v9423
  %9439 = vmatprep.subr.mxu0 0.0
  %9440 = vmatpush1.msra.mxu0 0.0
  %9441 = vmatprep.subr.mxu0 0.0
  %9442 = vmatpush1.msra.mxu0 0.0
  %9443 = vmatprep.subr.mxu0 0.0
  %9444 = vmatpush1.msra.mxu0 0.0
  %9445 = vmatprep.subr.mxu0 0.0
  %9446 = vmatpush1.msra.mxu0 0.0
  %9447 = vmatprep.subr.mxu0 0.0
  %9448 = vmatpush1.msra.mxu0 0.0
  %9449 = vmatprep.subr.mxu0 0.0
  %9450 = vmatpush1.msra.mxu0 0.0
  %9451 = vmatprep.subr.mxu0 0.0
  %9452 = vmatpush1.msra.mxu0 0.0
  %9453 = vmatprep.subr.mxu0 0.0
  %9454 = vmatpush1.msra.mxu0 0.0
  %9455 = vmatprep.subr.mxu0 0.0
  %9456 = vmatpush1.msra.mxu0 0.0
  %9457 = vmatprep.subr.mxu0 0.0
  %9458 = vmatpush1.msra.mxu0 0.0
  %9459 = vmatprep.subr.mxu0 0.0
  %9460 = vmatpush1.msra.mxu0 0.0
  %9461 = vmatprep.subr.mxu0 0.0
  %9462 = vmatpush1.msra.mxu0 0.0
  %9463 = vmatprep.subr.mxu0 0.0
  %9464 = vmatpush1.msra.mxu0 0.0
  %9465 = vmatprep.subr.mxu0 0.0
  %9466 = vmatpush1.msra.mxu0 0.0
  %9467 = vmatprep.subr.mxu0 0.0
  %9468 = vmatpush1.msra.mxu0 0.0
  %9469 = vmatprep.subr.mxu0 0.0
  %9470 = vmatpush1.msra.mxu0 0.0
  %9471 = vmatprep.subr.mxu0 0.0
  %9472 = vmatpush1.msra.mxu0 0.0
  %9473 = vmatprep.subr.mxu0 0.0
  %9474 = vmatpush1.msra.mxu0 0.0
  %9475 = vmatprep.subr.mxu0 0.0
  %9476 = vmatpush1.msra.mxu0 0.0
  %9477 = vmatprep.subr.mxu0 0.0
  %9478 = vmatpush1.msra.mxu0 0.0
  %9479 = vmatprep.subr.mxu0 0.0
  %9480 = vmatpush1.msra.mxu0 0.0
  %9481 = vmatprep.subr.mxu0 0.0
  %9482 = vmatpush1.msra.mxu0 0.0
  %9483 = vmatprep.subr.mxu0 0.0
  %9484 = vmatpush1.msra.mxu0 0.0
  %9485 = vmatprep.subr.mxu0 0.0
  %9486 = vmatpush1.msra.mxu0 0.0
  %9487 = vmatprep.subr.mxu0 0.0
  %9488 = vmatpush1.msra.mxu0 0.0
  %9489 = vmatprep.subr.mxu0 0.0
  %9490 = vmatpush1.msra.mxu0 0.0
  %9491 = vmatprep.subr.mxu0 0.0
  %9492 = vmatpush1.msra.mxu0 0.0
  %9493 = vmatprep.subr.mxu0 0.0
  %9494 = vmatpush1.msra.mxu0 0.0
  %9495 = vmatprep.mubr.f32.mxu0 0.0
  %9496 = vmatmul.mubr.f32.gmra.mrb[0].mxu0 %v8332
  %v9497 = vpop.f32.mrb[0].mxu0
  %v9498 = vadd.f32 %v9429, %v9497
  %v9499 = vpop.f32.mrb[0].mxu0
  %9500 = vdwg.mxu0
  %v9501 = vadd.f32 %v9095, %v9336
  %v9502 = vxor.u32 %v9501, 2147483648
  %v9503 = vmul.f32 %v9502, 1.442695
  %v9504 = vpow.pop %v9503
  %v9505 = vadd.f32 %v9504, 1.0
  %v9506 = vrcp.pop %v9505
  %v9507 = vmul.f32 1.0, %v9506
  %v9508 = vadd.f32 %v9175, %v9417
  %v9509 = vxor.u32 %v9508, 2147483648
  %v9510 = vmul.f32 %v9509, 1.442695
  %v9511 = vpow.pop %v9510
  %v9512 = vadd.f32 %v9511, 1.0
  %v9513 = vrcp.pop %v9512
  %v9514 = vmul.f32 1.0, %v9513
  %v9515 = vmul.f32 %v9507, %v9498
  %v9516 = vadd.f32 %v9255, %v9515
  %v9517 = vtanh.pop %v9516
  %v9518 = vsub.f32 1.0, %v9514
  %v9519 = vmul.f32 %v9518, %v9517
  %v9520 = vmul.f32 %v9514, %v8326
  %v9521 = vadd.f32 %v9519, %v9520
  %v9522 = vld [vmem:[%s11] sm:$0xff]
  %v9523 = vld [vmem:[%s11 + $0x8] sm:$0xff]
  %v9524 = vld [vmem:[%s11 + $0x10] sm:$0xff]
  %v9525 = vld [vmem:[%s11 + $0x18] sm:$0xff]
  %v9527 = vsel %vm144, %v9521, 0
  %9529 = vmatprep.subr.mxu0 0.0
  %9530 = vmatpush1.msra.mxu0 %v9522
  %9531 = vmatprep.subr.mxu0 0.0
  %9532 = vmatpush1.msra.mxu0 %v9523
  %9533 = vmatprep.subr.mxu0 0.0
  %9534 = vmatpush1.msra.mxu0 %v9524
  %9535 = vmatprep.subr.mxu0 0.0
  %9536 = vmatpush1.msra.mxu0 %v9525
  %9537 = vmatprep.subr.mxu0 0.0
  %9538 = vmatpush1.msra.mxu0 0.0
  %9539 = vmatprep.subr.mxu0 0.0
  %9540 = vmatpush1.msra.mxu0 0.0
  %9541 = vmatprep.subr.mxu0 0.0
  %9542 = vmatpush1.msra.mxu0 0.0
  %9543 = vmatprep.subr.mxu0 0.0
  %9544 = vmatpush1.msra.mxu0 0.0
  %9545 = vmatprep.subr.mxu0 0.0
  %9546 = vmatpush1.msra.mxu0 0.0
  %9547 = vmatprep.subr.mxu0 0.0
  %9548 = vmatpush1.msra.mxu0 0.0
  %9549 = vmatprep.subr.mxu0 0.0
  %9550 = vmatpush1.msra.mxu0 0.0
  %9551 = vmatprep.subr.mxu0 0.0
  %9552 = vmatpush1.msra.mxu0 0.0
  %9553 = vmatprep.subr.mxu0 0.0
  %9554 = vmatpush1.msra.mxu0 0.0
  %9555 = vmatprep.subr.mxu0 0.0
  %9556 = vmatpush1.msra.mxu0 0.0
  %9557 = vmatprep.subr.mxu0 0.0
  %9558 = vmatpush1.msra.mxu0 0.0
  %9559 = vmatprep.subr.mxu0 0.0
  %9560 = vmatpush1.msra.mxu0 0.0
  %9561 = vmatprep.subr.mxu0 0.0
  %9562 = vmatpush1.msra.mxu0 0.0
  %9563 = vmatprep.subr.mxu0 0.0
  %9564 = vmatpush1.msra.mxu0 0.0
  %9565 = vmatprep.subr.mxu0 0.0
  %9566 = vmatpush1.msra.mxu0 0.0
  %9567 = vmatprep.subr.mxu0 0.0
  %9568 = vmatpush1.msra.mxu0 0.0
  %9569 = vmatprep.subr.mxu0 0.0
  %9570 = vmatpush1.msra.mxu0 0.0
  %9571 = vmatprep.subr.mxu0 0.0
  %9572 = vmatpush1.msra.mxu0 0.0
  %9573 = vmatprep.subr.mxu0 0.0
  %9574 = vmatpush1.msra.mxu0 0.0
  %9575 = vmatprep.subr.mxu0 0.0
  %9576 = vmatpush1.msra.mxu0 0.0
  %9577 = vmatprep.subr.mxu0 0.0
  %9578 = vmatpush1.msra.mxu0 0.0
  %9579 = vmatprep.subr.mxu0 0.0
  %9580 = vmatpush1.msra.mxu0 0.0
  %9581 = vmatprep.subr.mxu0 0.0
  %9582 = vmatpush1.msra.mxu0 0.0
  %9583 = vmatprep.subr.mxu0 0.0
  %9584 = vmatpush1.msra.mxu0 0.0
  %9585 = vmatprep.subr.mxu0 0.0
  %9586 = vmatpush1.msra.mxu0 0.0
  %9587 = vmatprep.subr.mxu0 0.0
  %9588 = vmatpush1.msra.mxu0 0.0
  %9589 = vmatprep.subr.mxu0 0.0
  %9590 = vmatpush1.msra.mxu0 0.0
  %9591 = vmatprep.subr.mxu0 0.0
  %9592 = vmatpush1.msra.mxu0 0.0
  %9593 = vmatprep.mubr.f32.mxu0 0.0
  %9594 = vmatmul.mubr.f32.gmra.mrb[0].mxu0 %v9527
  %v9595 = vpop.f32.mrb[0].mxu0
  %v9596 = vadd.f32 %v52, %v9595
  %v9597 = vpop.f32.mrb[0].mxu0
  %9598 = vdwg.mxu0
  %v9599 = vsel %vm1234, %v9596, -inf
  %9600 = vmax.xlane.f32.xlu0 %v9599
  %v9601 = vpop.xlane.xlu0 %9600
  %v9602 = vsub.f32 %v9596, %v9601
  %v9603 = vmul.f32 %v9602, 1.442695
  %v9604 = vpow.pop %v9603
  %v9605 = vsel %vm1234, %v9604, 0.0
  %9606 = vadd.xlane.f32.xlu0 %v9605
  %v9607 = vpop.xlane.xlu0 %9606
  %v9608 = vlog2.pop %v9607
  %v9609 = vmul.f32 %v9608, 0.6931472
  %v9610 = vsub.f32 %v9602, %v9609
  %s9611 = scalar_lea.vmem %s12, 28
  %9612 = vst.msk [vmem:[%s9611] sm:$0xf] %vm1234, %v9610
  // Predicated region
  $region50: #{text_decoder_forward.1} parent=0 // pred_check
    _
  $region51: #{text_decoder_forward.1} parent=0 // pred_check_branch
    %9614 = sbr.rel (0) target = $region53
  $region52: #{text_decoder_forward.1} parent=0 // pred_region
    _
  $region53: #{text_decoder_forward.1} parent=0 // pred_fallthru
    _
  // Predicated region
  $region54: #{text_decoder_forward.1} parent=0 // pred_check
    _
  $region55: #{text_decoder_forward.1} parent=0 // pred_check_branch
    %9616 = sbr.rel (0) target = $region57
  $region56: #{text_decoder_forward.1} parent=0 // pred_region
    _
  $region57: #{text_decoder_forward.1} parent=0 // pred_fallthru
    _

</llo_original>
